<compile_context>
chip_gen: v5e
topology: v5e:2x2
jax: 0.10.0
libtpu: 0.0.40
codegen_flags: <defaults>
</compile_context>

<pallas_src>
import jax
import jax.numpy as jnp
from jax.experimental import pallas as pl
from jax.experimental.pallas import tpu as pltpu

_LANE = 128                      # TPU lane width: channel dims are padded to a multiple of this
_SUB = 8                         # sublane multiple used for the in-kernel (rows, lanes) folds
_COMPUTE_DTYPE = jnp.bfloat16    # MXU input dtype (f32 accumulation); set jnp.float32 for full precision


def _rup(n, m):
    return ((n + m - 1) // m) * m


# ----------------------------------------------------------------------------
# Generic "tap-programmed" conv kernel.  For each output phase p:
#   out_p = relu( sum_t  x[phase_t, dh_t:dh_t+Ho, dw_t:dw_t+Wo, :] @ W[t]  + b ) [+ residual]
# Tap lists are static Python data -> fully unrolled at trace time; the activation block is
# DMA'd into VMEM once per grid step and every tap is a plain static slice of it.
# ----------------------------------------------------------------------------
def _make_tap_conv_kernel(taps_per_phase, Ho, Wo, has_residual):
    n_phase = len(taps_per_phase)

    def kernel(*refs):
        x_ref, w_ref, b_ref = refs[0], refs[1], refs[2]
        pos = 3
        res_ref = None
        if has_residual:
            res_ref = refs[pos]
            pos += 1
        out_refs = refs[pos:pos + n_phase]

        bias = b_ref[...]                                   # (1, Cpo) f32
        cpo = bias.shape[-1]
        for p in range(n_phase):
            acc = None
            for (pidx, dh, dw, widx) in taps_per_phase[p]:
                xs = x_ref[pidx, dh:dh + Ho, dw:dw + Wo, :]          # (Ho, Wo, Cpi) bf16
                lhs = xs.reshape(Ho * Wo, xs.shape[-1])              # Wo % 8 == 0 -> free fold
                contrib = jnp.dot(lhs, w_ref[widx],
                                  preferred_element_type=jnp.float32)
                acc = contrib if acc is None else acc + contrib
            y = jnp.maximum(acc + bias, 0.0)                         # fused bias + ReLU
            if has_residual:                                         # post-ReLU residual add
                y = y + res_ref[0].reshape(Ho * Wo, cpo).astype(jnp.float32)
            out_refs[p][0] = y.reshape(Ho, Wo, cpo).astype(out_refs[p].dtype)

    return kernel


def _tap_conv(x_phases, npi, w_stack, bias, taps_per_phase, Ho, Wo, out_dtype,
              residual=None):
    """x_phases: (B*npi, Hp, Wp, Cpi) bf16 ; w_stack: (T, Cpi, Cpo) bf16 ; bias: (1, Cpo) f32.
    Returns a tuple with one (B, Ho, Wo, Cpo) array per output phase."""
    Bn, Hp, Wp, Cpi = x_phases.shape
    B = Bn // npi
    T, _, Cpo = w_stack.shape
    n_phase = len(taps_per_phase)

    if residual is not None:
        rb, rh, rw, rc = residual.shape
        if (rh, rw, rc) != (Ho, Wo, Cpo):
            residual = jnp.pad(residual,
                               ((0, 0), (0, Ho - rh), (0, Wo - rw), (0, Cpo - rc)))

    in_specs = [
        pl.BlockSpec((npi, Hp, Wp, Cpi), lambda b: (b, 0, 0, 0)),  # activation: read once/conv
        pl.BlockSpec((T, Cpi, Cpo), lambda b: (0, 0, 0)),          # weights, grid-invariant
        pl.BlockSpec((1, Cpo), lambda b: (0, 0)),                  # bias, grid-invariant
    ]
    args = [x_phases, w_stack, bias]
    if residual is not None:
        in_specs.append(pl.BlockSpec((1, Ho, Wo, Cpo), lambda b: (b, 0, 0, 0)))
        args.append(residual)

    out_shape = tuple(jax.ShapeDtypeStruct((B, Ho, Wo, Cpo), out_dtype)
                      for _ in range(n_phase))
    out_specs = tuple(pl.BlockSpec((1, Ho, Wo, Cpo), lambda b: (b, 0, 0, 0))
                      for _ in range(n_phase))

    return pl.pallas_call(
        _make_tap_conv_kernel(taps_per_phase, Ho, Wo, residual is not None),
        out_shape=out_shape,
        grid=(B,),
        in_specs=in_specs,
        out_specs=out_specs,
        compiler_params=pltpu.CompilerParams(
            dimension_semantics=("parallel",),    # batch shards across TCs on v7x megacore
            vmem_limit_bytes=32 * 1024 * 1024,
        ),
    )(*args)


# ----------------------------------------------------------------------------
# Weight packing (PyTorch layouts -> (KH*KW, Cpi, Cpo) bf16 tap stacks, lane-padded)
# ----------------------------------------------------------------------------
def _prep_conv_weights(w_oihw, bias):
    Cout, Cin, KH, KW = w_oihw.shape
    Cpi, Cpo = _rup(Cin, _LANE), _rup(Cout, _LANE)
    w = jnp.transpose(w_oihw, (2, 3, 1, 0)).reshape(KH * KW, Cin, Cout)
    w = jnp.pad(w, ((0, 0), (0, Cpi - Cin), (0, Cpo - Cout))).astype(_COMPUTE_DTYPE)
    b = jnp.pad(bias, (0, Cpo - Cout)).astype(jnp.float32).reshape(1, Cpo)
    return w, b


def _prep_tconv_weights(w_iohw, bias):
    Cin, Cout, KH, KW = w_iohw.shape
    Cpi, Cpo = _rup(Cin, _LANE), _rup(Cout, _LANE)
    w = jnp.transpose(w_iohw, (2, 3, 0, 1)).reshape(KH * KW, Cin, Cout)
    w = jnp.pad(w, ((0, 0), (0, Cpi - Cin), (0, Cpo - Cout))).astype(_COMPUTE_DTYPE)
    b = jnp.pad(bias, (0, Cpo - Cout)).astype(jnp.float32).reshape(1, Cpo)
    return w, b


# ----------------------------------------------------------------------------
# Conv drivers (geometry + a single fused pad/cast per conv; no im2col)
# ----------------------------------------------------------------------------
def _conv3x3_s1(x, w_stack, bias, out_dtype, residual=None):
    """3x3 / stride 1 / padding 1 conv + bias + ReLU (+ post-ReLU residual).
    x: (B, H, W, C) -> (B, H, Wc, Cpo) with Wc = rup(W, 8); caller slices [:, :, :W]."""
    B, H, W, C = x.shape
    _, Cpi, _ = w_stack.shape
    Ho, Wo = H, _rup(W, _SUB)                 # compute width padded to a sublane multiple
    Hp, Wp = Ho + 2, Wo + 2
    xp = jnp.pad(x.astype(_COMPUTE_DTYPE),
                 ((0, 0), (1, Hp - 1 - H), (1, Wp - 1 - W), (0, Cpi - C)))
    taps = tuple((0, kh, kw, kh * 3 + kw) for kh in range(3) for kw in range(3))
    (out,) = _tap_conv(xp, 1, w_stack, bias, (taps,), Ho, Wo, out_dtype, residual)
    return out


def _conv3x3_s2(x, w_stack, bias, out_dtype, residual=None):
    """3x3 / stride 2 / padding 1 conv + bias + ReLU (+ post-ReLU residual).
    The 2x2 input phases (space-to-depth) are formed in the wrapper so every kernel tap is a
    plain contiguous slice.  x: (B, H, W, C) -> (B, Ho, Woc, Cpo)."""
    B, H, W, C = x.shape
    _, Cpi, _ = w_stack.shape
    Ho = (H + 2 - 3) // 2 + 1
    Wo = _rup((W + 2 - 3) // 2 + 1, _SUB)
    Hp, Wp = 2 * Ho + 2, 2 * Wo + 2           # even -> clean phase reshape; covers all taps
    xp = jnp.pad(x.astype(_COMPUTE_DTYPE),
                 ((0, 0), (1, Hp - 1 - H), (1, Wp - 1 - W), (0, Cpi - C)))
    Hh, Wh = Hp // 2, Wp // 2
    xph = (xp.reshape(B, Hh, 2, Wh, 2, Cpi)
             .transpose(0, 2, 4, 1, 3, 5)
             .reshape(B * 4, Hh, Wh, Cpi))    # phase (a,b)[i,j] = xp[2i+a, 2j+b]
    taps = tuple(((kh % 2) * 2 + (kw % 2), kh // 2, kw // 2, kh * 3 + kw)
                 for kh in range(3) for kw in range(3))
    (out,) = _tap_conv(xph, 4, w_stack, bias, (taps,), Ho, Wo, out_dtype, residual)
    return out


def _tconv_phase_taps():
    # conv_transpose2d(k=3, stride=2, padding=1):
    #   out[2i+a, 2j+b] = sum_{kh in K(a), kw in K(b)} x[i + d(kh), j + d(kw)] * W[kh, kw]
    #   with K(0) = {1}, K(1) = {0, 2};  d(0) = 1, d(1) = d(2) = 0.
    rows = {0: ((1, 0),), 1: ((0, 1), (2, 0))}
    phases = []
    for a in (0, 1):
        for b in (0, 1):
            phases.append(tuple((0, dh, dw, kh * 3 + kw)
                                for kh, dh in rows[a] for kw, dw in rows[b]))
    return tuple(phases)      # order: (even,even), (even,odd), (odd,even), (odd,odd)


def _tconv3x3_s2(x, w_stack, bias, out_dtype):
    """conv_transpose2d(k=3, stride=2, padding=1) + bias + ReLU via the 4-phase sub-pixel
    decomposition (no zero-dilated input).  Returns 4 phase planes, each (B, H, Wc, Cpo)."""
    B, H, W, C = x.shape
    _, Cpi, _ = w_stack.shape
    Ho, Wo = H, _rup(W, _SUB)
    # one trailing zero row/col keeps the x[i+1]/x[j+1] taps of the odd phases in-bounds;
    # the extra outputs they produce are cut off when the phases are re-interleaved.
    xp = jnp.pad(x.astype(_COMPUTE_DTYPE),
                 ((0, 0), (0, 1), (0, Wo + 1 - W), (0, Cpi - C)))
    return _tap_conv(xp, 1, w_stack, bias, _tconv_phase_taps(), Ho, Wo, out_dtype, None)


# ----------------------------------------------------------------------------
# Goctave forward (Pallas)
# ----------------------------------------------------------------------------
def goctave_forward(x_h, x_l, params, *, stride=1, padding=1):
    """x_h: (B, S_h, S_h, c_h) NHWC, x_l: (B, S_l, S_l, c_l) NHWC with S_h = 2*S_l - 1
    (required by the module's final adds).  Returns (X_h_out, X_l_out) in f32."""
    assert stride == 1 and padding == 1, "only the module defaults are supported"
    w_hh, b_hh = _prep_conv_weights(*params['hh'])
    w_hl, b_hl = _prep_conv_weights(*params['hl'])
    w_ll, b_ll = _prep_conv_weights(*params['ll'])
    w_lh, b_lh = _prep_tconv_weights(*params['lh'])

    B, H_h, W_h, _ = x_h.shape
    _, H_l, W_l, _ = x_l.shape
    assert H_h == 2 * H_l - 1 and W_h == 2 * W_l - 1, "module requires S_h = 2*S_l - 1"
    c_h_out = params['hh'][0].shape[0]
    c_l_out = params['ll'][0].shape[0]

    # X_h2h = relu(conv(X_h))      -- bf16 intermediate (re-read as h2l input and residual)
    x_h2h = _conv3x3_s1(x_h, w_hh, b_hh, _COMPUTE_DTYPE)[:, :, :W_h, :]
    # X_l2l = relu(conv(X_l))      -- bf16 intermediate (l2h input + low-branch residual)
    x_l2l = _conv3x3_s1(x_l, w_ll, b_ll, _COMPUTE_DTYPE)[:, :, :W_l, :]

    # X_l_out = X_l2l + relu(conv_s2(X_h2h))   -- residual add fused into the kernel epilogue
    x_l_out = _conv3x3_s2(x_h2h, w_hl, b_hl, jnp.float32, residual=x_l2l)
    x_l_out = x_l_out[:, :H_l, :W_l, :c_l_out]

    # X_l2h = relu(conv_transpose_s2(X_l2l)) via 4 sub-pixel phases, then one cheap
    # interleave + slice + residual add (fused by XLA into a single elementwise pass).
    p00, p01, p10, p11 = _tconv3x3_s2(x_l2l, w_lh, b_lh, jnp.float32)
    top = jnp.stack([p00, p01], axis=3)                    # (B, H_l, Wc, 2, Cp)
    bot = jnp.stack([p10, p11], axis=3)
    full = jnp.stack([top, bot], axis=2)                   # (B, H_l, 2, Wc, 2, Cp)
    Wc = p00.shape[2]
    x_l2h = full.reshape(B, 2 * H_l, 2 * Wc, full.shape[-1])[:, :H_h, :W_h, :]
    x_h_out = (x_h2h.astype(jnp.float32) + x_l2h)[:, :, :, :c_h_out]

    return x_h_out, x_l_out


# ----------------------------------------------------------------------------
# Synthetic parameters (PyTorch layouts / shapes)
# ----------------------------------------------------------------------------
def init_params(key, in_channels, out_channels, kernel_size=(3, 3),
                alpha_in=0.5, alpha_out=0.5):
    cin_h = int(in_channels * (1 - alpha_in))
    cin_l = int(in_channels * alpha_in)
    cout_h = int(out_channels * (1 - alpha_out))
    cout_l = int(out_channels * alpha_out)
    kh, kw = kernel_size
    specs = {
        'hh': ((cout_h, cin_h, kh, kw), cin_h, cout_h),    # conv2d
        'hl': ((cout_l, cout_h, kh, kw), cout_h, cout_l),  # conv2d (stride 2)
        'll': ((cout_l, cin_l, kh, kw), cin_l, cout_l),    # conv2d
        'lh': ((cout_l, cout_h, kh, kw), cout_l, cout_h),  # conv_transpose2d (IOHW)
    }
    params = {}
    for k, name in zip(jax.random.split(key, len(specs)), sorted(specs)):
        wshape, fan_c, blen = specs[name]
        kw_, kb_ = jax.random.split(k)
        w = jax.random.normal(kw_, wshape, jnp.float32) / jnp.sqrt(kh * kw * fan_c)
        b = jax.random.normal(kb_, (blen,), jnp.float32) * 0.1
        params[name] = (w, b)
    return params


# ----------------------------------------------------------------------------
# Pure-JAX reference (f32, HIGHEST precision) for verification
# ----------------------------------------------------------------------------
def ref_forward(x_h, x_l, params, *, stride=1, padding=1):
    w_hh, b_hh = params['hh']; w_hl, b_hl = params['hl']
    w_ll, b_ll = params['ll']; w_lh, b_lh = params['lh']
    relu = lambda t: jnp.maximum(t, 0.0)

    def conv(x, w, b, s, p):
        y = jax.lax.conv_general_dilated(
            x, w, window_strides=(s, s), padding=[(p, p), (p, p)],
            dimension_numbers=('NHWC', 'OIHW', 'NHWC'),
            precision=jax.lax.Precision.HIGHEST)
        return y + b

    def conv_t(x, w, b, s, p):
        k = w.shape[-1]
        y = jax.lax.conv_general_dilated(
            x, w[:, :, ::-1, ::-1], window_strides=(1, 1),
            padding=[(k - 1 - p, k - 1 - p)] * 2, lhs_dilation=(s, s),
            dimension_numbers=('NHWC', 'IOHW', 'NHWC'),
            precision=jax.lax.Precision.HIGHEST)
        return y + b

    x_h2h = relu(conv(x_h, w_hh, b_hh, stride, padding))
    x_h2l = relu(conv(x_h2h, w_hl, b_hl, 2, padding))
    x_l2l = relu(conv(x_l, w_ll, b_ll, stride, padding))
    x_l2h = relu(conv_t(x_l2l, w_lh, b_lh, 2, padding))
    return x_h2h + x_l2h, x_l2l + x_h2l


# ----------------------------------------------------------------------------
if __name__ == "__main__":
    # Goctave(in_channels=8, out_channels=8, kernel_size=(3,3), alpha=0.5, stride=1, padding=1)
    # -> 4 high-frequency + 4 low-frequency channels per branch.
    # The module's final adds require S_h = 2*S_l - 1 with kernel 3 / padding 1.
    B = 2
    in_channels = out_channels = 8
    S_l = 8
    S_h = 2 * S_l - 1          # 15

    key = jax.random.PRNGKey(0)
    k_h, k_l, k_p = jax.random.split(key, 3)
    c_h = int(in_channels * 0.5)
    c_l = in_channels - c_h
    x_h = jax.random.normal(k_h, (B, S_h, S_h, c_h), jnp.float32)   # NHWC (torch: (B,4,15,15))
    x_l = jax.random.normal(k_l, (B, S_l, S_l, c_l), jnp.float32)   # NHWC (torch: (B,4,8,8))
    params = init_params(k_p, in_channels, out_channels)

    fwd = jax.jit(goctave_forward)
    out_h, out_l = jax.block_until_ready(fwd(x_h, x_l, params))
    assert out_h.shape == (B, S_h, S_h, c_h), out_h.shape
    assert out_l.shape == (B, S_l, S_l, c_l), out_l.shape
    assert jnp.isfinite(out_h).all() and jnp.isfinite(out_l).all(), "non-finite output"

    ref_h, ref_l = ref_forward(x_h, x_l, params)
    err_h = float(jnp.max(jnp.abs(out_h - ref_h)))
    err_l = float(jnp.max(jnp.abs(out_l - ref_l)))
    # Tolerance sized for bf16 MXU inputs / bf16 intermediates with f32 accumulation.
    tol = 1e-1
    assert err_h < tol and err_l < tol, f"mismatch vs reference: err_h={err_h}, err_l={err_l}"

    print("KERNEL_OK")
</pallas_src>

<mosaic_0001>
module attributes {stable_mosaic.version = 11 : i64} {
  func.func @kernel(%arg0: i32, %arg1: memref<1x10x10x128xbf16, #tpu.memory_space<vmem>>, %arg2: memref<9x128x128xbf16, #tpu.memory_space<vmem>>, %arg3: memref<1x128xf32, #tpu.memory_space<vmem>>, %arg4: memref<1x8x8x128xbf16, #tpu.memory_space<vmem>>) attributes {dimension_semantics = [#tpu.dimension_semantics<parallel>], iteration_bounds = array<i64: 2>, scalar_prefetch = 0 : i64, scratch_operands = 0 : i64, tpu.core_type = #tpu.core_type<tc>, window_params = [{transform_indices = @transform_0, window_bounds = array<i64: 1, 10, 10, 128>}, {pipeline_mode = #tpu.pipeline_mode<synchronous>, transform_indices = @transform_1, window_bounds = array<i64: 9, 128, 128>}, {pipeline_mode = #tpu.pipeline_mode<synchronous>, transform_indices = @transform_2, window_bounds = array<i64: 1, 128>}, {transform_indices = @transform_3, window_bounds = array<i64: 1, 8, 8, 128>}]} {
    %c0 = arith.constant 0 : index
    %c0_0 = arith.constant 0 : index
    %0 = vector.load %arg3[%c0, %c0_0] : memref<1x128xf32, #tpu.memory_space<vmem>>, vector<1x128xf32>
    %c0_1 = arith.constant 0 : index
    %c0_2 = arith.constant 0 : index
    %c0_3 = arith.constant 0 : index
    %c0_4 = arith.constant 0 : index
    %1 = vector.load %arg1[%c0_1, %c0_2, %c0_3, %c0_4] : memref<1x10x10x128xbf16, #tpu.memory_space<vmem>>, vector<1x8x8x128xbf16>
    %2 = vector.shape_cast %1 : vector<1x8x8x128xbf16> to vector<8x8x128xbf16>
    %3 = vector.shape_cast %2 : vector<8x8x128xbf16> to vector<64x128xbf16>
    %c0_5 = arith.constant 0 : index
    %c0_6 = arith.constant 0 : index
    %c0_7 = arith.constant 0 : index
    %4 = vector.load %arg2[%c0_5, %c0_6, %c0_7] : memref<9x128x128xbf16, #tpu.memory_space<vmem>>, vector<1x128x128xbf16>
    %5 = vector.shape_cast %4 : vector<1x128x128xbf16> to vector<128x128xbf16>
    %cst = arith.constant dense<0.000000e+00> : vector<64x128xf32>
    %6 = tpu.matmul %3, %5, %cst {dimension_numbers = #tpu.dot_dimension_numbers<[1], [0], [0], [1], [0, 0, 1, 1], [], []>} : vector<64x128xbf16>, vector<128x128xbf16>, vector<64x128xf32> -> vector<64x128xf32>
    %c0_8 = arith.constant 0 : index
    %c0_9 = arith.constant 0 : index
    %c1 = arith.constant 1 : index
    %c0_10 = arith.constant 0 : index
    %7 = vector.load %arg1[%c0_8, %c0_9, %c1, %c0_10] : memref<1x10x10x128xbf16, #tpu.memory_space<vmem>>, vector<1x8x8x128xbf16>
    %8 = vector.shape_cast %7 : vector<1x8x8x128xbf16> to vector<8x8x128xbf16>
    %9 = vector.shape_cast %8 : vector<8x8x128xbf16> to vector<64x128xbf16>
    %c1_11 = arith.constant 1 : index
    %c0_12 = arith.constant 0 : index
    %c0_13 = arith.constant 0 : index
    %10 = vector.load %arg2[%c1_11, %c0_12, %c0_13] : memref<9x128x128xbf16, #tpu.memory_space<vmem>>, vector<1x128x128xbf16>
    %11 = vector.shape_cast %10 : vector<1x128x128xbf16> to vector<128x128xbf16>
    %cst_14 = arith.constant dense<0.000000e+00> : vector<64x128xf32>
    %12 = tpu.matmul %9, %11, %cst_14 {dimension_numbers = #tpu.dot_dimension_numbers<[1], [0], [0], [1], [0, 0, 1, 1], [], []>} : vector<64x128xbf16>, vector<128x128xbf16>, vector<64x128xf32> -> vector<64x128xf32>
    %13 = arith.addf %6, %12 : vector<64x128xf32>
    %c0_15 = arith.constant 0 : index
    %c0_16 = arith.constant 0 : index
    %c2 = arith.constant 2 : index
    %c0_17 = arith.constant 0 : index
    %14 = vector.load %arg1[%c0_15, %c0_16, %c2, %c0_17] : memref<1x10x10x128xbf16, #tpu.memory_space<vmem>>, vector<1x8x8x128xbf16>
    %15 = vector.shape_cast %14 : vector<1x8x8x128xbf16> to vector<8x8x128xbf16>
    %16 = vector.shape_cast %15 : vector<8x8x128xbf16> to vector<64x128xbf16>
    %c2_18 = arith.constant 2 : index
    %c0_19 = arith.constant 0 : index
    %c0_20 = arith.constant 0 : index
    %17 = vector.load %arg2[%c2_18, %c0_19, %c0_20] : memref<9x128x128xbf16, #tpu.memory_space<vmem>>, vector<1x128x128xbf16>
    %18 = vector.shape_cast %17 : vector<1x128x128xbf16> to vector<128x128xbf16>
    %cst_21 = arith.constant dense<0.000000e+00> : vector<64x128xf32>
    %19 = tpu.matmul %16, %18, %cst_21 {dimension_numbers = #tpu.dot_dimension_numbers<[1], [0], [0], [1], [0, 0, 1, 1], [], []>} : vector<64x128xbf16>, vector<128x128xbf16>, vector<64x128xf32> -> vector<64x128xf32>
    %20 = arith.addf %13, %19 : vector<64x128xf32>
    %c0_22 = arith.constant 0 : index
    %c1_23 = arith.constant 1 : index
    %c0_24 = arith.constant 0 : index
    %c0_25 = arith.constant 0 : index
    %21 = vector.load %arg1[%c0_22, %c1_23, %c0_24, %c0_25] : memref<1x10x10x128xbf16, #tpu.memory_space<vmem>>, vector<1x8x8x128xbf16>
    %22 = vector.shape_cast %21 : vector<1x8x8x128xbf16> to vector<8x8x128xbf16>
    %23 = vector.shape_cast %22 : vector<8x8x128xbf16> to vector<64x128xbf16>
    %c3 = arith.constant 3 : index
    %c0_26 = arith.constant 0 : index
    %c0_27 = arith.constant 0 : index
    %24 = vector.load %arg2[%c3, %c0_26, %c0_27] : memref<9x128x128xbf16, #tpu.memory_space<vmem>>, vector<1x128x128xbf16>
    %25 = vector.shape_cast %24 : vector<1x128x128xbf16> to vector<128x128xbf16>
    %cst_28 = arith.constant dense<0.000000e+00> : vector<64x128xf32>
    %26 = tpu.matmul %23, %25, %cst_28 {dimension_numbers = #tpu.dot_dimension_numbers<[1], [0], [0], [1], [0, 0, 1, 1], [], []>} : vector<64x128xbf16>, vector<128x128xbf16>, vector<64x128xf32> -> vector<64x128xf32>
    %27 = arith.addf %20, %26 : vector<64x128xf32>
    %c0_29 = arith.constant 0 : index
    %c1_30 = arith.constant 1 : index
    %c1_31 = arith.constant 1 : index
    %c0_32 = arith.constant 0 : index
    %28 = vector.load %arg1[%c0_29, %c1_30, %c1_31, %c0_32] : memref<1x10x10x128xbf16, #tpu.memory_space<vmem>>, vector<1x8x8x128xbf16>
    %29 = vector.shape_cast %28 : vector<1x8x8x128xbf16> to vector<8x8x128xbf16>
    %30 = vector.shape_cast %29 : vector<8x8x128xbf16> to vector<64x128xbf16>
    %c4 = arith.constant 4 : index
    %c0_33 = arith.constant 0 : index
    %c0_34 = arith.constant 0 : index
    %31 = vector.load %arg2[%c4, %c0_33, %c0_34] : memref<9x128x128xbf16, #tpu.memory_space<vmem>>, vector<1x128x128xbf16>
    %32 = vector.shape_cast %31 : vector<1x128x128xbf16> to vector<128x128xbf16>
    %cst_35 = arith.constant dense<0.000000e+00> : vector<64x128xf32>
    %33 = tpu.matmul %30, %32, %cst_35 {dimension_numbers = #tpu.dot_dimension_numbers<[1], [0], [0], [1], [0, 0, 1, 1], [], []>} : vector<64x128xbf16>, vector<128x128xbf16>, vector<64x128xf32> -> vector<64x128xf32>
    %34 = arith.addf %27, %33 : vector<64x128xf32>
    %c0_36 = arith.constant 0 : index
    %c1_37 = arith.constant 1 : index
    %c2_38 = arith.constant 2 : index
    %c0_39 = arith.constant 0 : index
    %35 = vector.load %arg1[%c0_36, %c1_37, %c2_38, %c0_39] : memref<1x10x10x128xbf16, #tpu.memory_space<vmem>>, vector<1x8x8x128xbf16>
    %36 = vector.shape_cast %35 : vector<1x8x8x128xbf16> to vector<8x8x128xbf16>
    %37 = vector.shape_cast %36 : vector<8x8x128xbf16> to vector<64x128xbf16>
    %c5 = arith.constant 5 : index
    %c0_40 = arith.constant 0 : index
    %c0_41 = arith.constant 0 : index
    %38 = vector.load %arg2[%c5, %c0_40, %c0_41] : memref<9x128x128xbf16, #tpu.memory_space<vmem>>, vector<1x128x128xbf16>
    %39 = vector.shape_cast %38 : vector<1x128x128xbf16> to vector<128x128xbf16>
    %cst_42 = arith.constant dense<0.000000e+00> : vector<64x128xf32>
    %40 = tpu.matmul %37, %39, %cst_42 {dimension_numbers = #tpu.dot_dimension_numbers<[1], [0], [0], [1], [0, 0, 1, 1], [], []>} : vector<64x128xbf16>, vector<128x128xbf16>, vector<64x128xf32> -> vector<64x128xf32>
    %41 = arith.addf %34, %40 : vector<64x128xf32>
    %c0_43 = arith.constant 0 : index
    %c2_44 = arith.constant 2 : index
    %c0_45 = arith.constant 0 : index
    %c0_46 = arith.constant 0 : index
    %42 = vector.load %arg1[%c0_43, %c2_44, %c0_45, %c0_46] : memref<1x10x10x128xbf16, #tpu.memory_space<vmem>>, vector<1x8x8x128xbf16>
    %43 = vector.shape_cast %42 : vector<1x8x8x128xbf16> to vector<8x8x128xbf16>
    %44 = vector.shape_cast %43 : vector<8x8x128xbf16> to vector<64x128xbf16>
    %c6 = arith.constant 6 : index
    %c0_47 = arith.constant 0 : index
    %c0_48 = arith.constant 0 : index
    %45 = vector.load %arg2[%c6, %c0_47, %c0_48] : memref<9x128x128xbf16, #tpu.memory_space<vmem>>, vector<1x128x128xbf16>
    %46 = vector.shape_cast %45 : vector<1x128x128xbf16> to vector<128x128xbf16>
    %cst_49 = arith.constant dense<0.000000e+00> : vector<64x128xf32>
    %47 = tpu.matmul %44, %46, %cst_49 {dimension_numbers = #tpu.dot_dimension_numbers<[1], [0], [0], [1], [0, 0, 1, 1], [], []>} : vector<64x128xbf16>, vector<128x128xbf16>, vector<64x128xf32> -> vector<64x128xf32>
    %48 = arith.addf %41, %47 : vector<64x128xf32>
    %c0_50 = arith.constant 0 : index
    %c2_51 = arith.constant 2 : index
    %c1_52 = arith.constant 1 : index
    %c0_53 = arith.constant 0 : index
    %49 = vector.load %arg1[%c0_50, %c2_51, %c1_52, %c0_53] : memref<1x10x10x128xbf16, #tpu.memory_space<vmem>>, vector<1x8x8x128xbf16>
    %50 = vector.shape_cast %49 : vector<1x8x8x128xbf16> to vector<8x8x128xbf16>
    %51 = vector.shape_cast %50 : vector<8x8x128xbf16> to vector<64x128xbf16>
    %c7 = arith.constant 7 : index
    %c0_54 = arith.constant 0 : index
    %c0_55 = arith.constant 0 : index
    %52 = vector.load %arg2[%c7, %c0_54, %c0_55] : memref<9x128x128xbf16, #tpu.memory_space<vmem>>, vector<1x128x128xbf16>
    %53 = vector.shape_cast %52 : vector<1x128x128xbf16> to vector<128x128xbf16>
    %cst_56 = arith.constant dense<0.000000e+00> : vector<64x128xf32>
    %54 = tpu.matmul %51, %53, %cst_56 {dimension_numbers = #tpu.dot_dimension_numbers<[1], [0], [0], [1], [0, 0, 1, 1], [], []>} : vector<64x128xbf16>, vector<128x128xbf16>, vector<64x128xf32> -> vector<64x128xf32>
    %55 = arith.addf %48, %54 : vector<64x128xf32>
    %c0_57 = arith.constant 0 : index
    %c2_58 = arith.constant 2 : index
    %c2_59 = arith.constant 2 : index
    %c0_60 = arith.constant 0 : index
    %56 = vector.load %arg1[%c0_57, %c2_58, %c2_59, %c0_60] : memref<1x10x10x128xbf16, #tpu.memory_space<vmem>>, vector<1x8x8x128xbf16>
    %57 = vector.shape_cast %56 : vector<1x8x8x128xbf16> to vector<8x8x128xbf16>
    %58 = vector.shape_cast %57 : vector<8x8x128xbf16> to vector<64x128xbf16>
    %c8 = arith.constant 8 : index
    %c0_61 = arith.constant 0 : index
    %c0_62 = arith.constant 0 : index
    %59 = vector.load %arg2[%c8, %c0_61, %c0_62] : memref<9x128x128xbf16, #tpu.memory_space<vmem>>, vector<1x128x128xbf16>
    %60 = vector.shape_cast %59 : vector<1x128x128xbf16> to vector<128x128xbf16>
    %cst_63 = arith.constant dense<0.000000e+00> : vector<64x128xf32>
    %61 = tpu.matmul %58, %60, %cst_63 {dimension_numbers = #tpu.dot_dimension_numbers<[1], [0], [0], [1], [0, 0, 1, 1], [], []>} : vector<64x128xbf16>, vector<128x128xbf16>, vector<64x128xf32> -> vector<64x128xf32>
    %62 = arith.addf %55, %61 : vector<64x128xf32>
    %63 = vector.broadcast %0 : vector<1x128xf32> to vector<64x128xf32>
    %64 = arith.addf %62, %63 : vector<64x128xf32>
    %cst_64 = arith.constant 0.000000e+00 : f32
    %65 = vector.broadcast %cst_64 : f32 to vector<64x128xf32>
    %66 = arith.maximumf %64, %65 : vector<64x128xf32>
    %67 = vector.shape_cast %66 : vector<64x128xf32> to vector<8x8x128xf32>
    %68 = arith.truncf %67 : vector<8x8x128xf32> to vector<8x8x128xbf16>
    %c0_65 = arith.constant 0 : index
    %c0_66 = arith.constant 0 : index
    %c0_67 = arith.constant 0 : index
    %c0_68 = arith.constant 0 : index
    %69 = vector.load %arg4[%c0_65, %c0_66, %c0_67, %c0_68] : memref<1x8x8x128xbf16, #tpu.memory_space<vmem>>, vector<1x8x8x128xbf16>
    %70 = vector.shape_cast %69 : vector<1x8x8x128xbf16> to vector<8x8x128xbf16>
    %71 = vector.shape_cast %68 : vector<8x8x128xbf16> to vector<1x8x8x128xbf16>
    tpu.vector_store %arg4[%c0_65, %c0_66, %c0_67, %c0_68], %71 {strides = array<i32>} : memref<1x8x8x128xbf16, #tpu.memory_space<vmem>>, vector<1x8x8x128xbf16>,
    return
  }
  func.func @transform_0(%arg0: i32) -> (i32, i32, i32, i32) {
    %c0_i32 = arith.constant 0 : i32
    %c0_i32_0 = arith.constant 0 : i32
    %c0_i32_1 = arith.constant 0 : i32
    %c0_i32_2 = arith.constant 0 : i32
    return %arg0, %c0_i32, %c0_i32_0, %c0_i32_1 : i32, i32, i32, i32
  }
  func.func @transform_1(%arg0: i32) -> (i32, i32, i32) {
    %c0_i32 = arith.constant 0 : i32
    %c0_i32_0 = arith.constant 0 : i32
    %c0_i32_1 = arith.constant 0 : i32
    %c0_i32_2 = arith.constant 0 : i32
    return %c0_i32, %c0_i32_0, %c0_i32_1 : i32, i32, i32
  }
  func.func @transform_2(%arg0: i32) -> (i32, i32) {
    %c0_i32 = arith.constant 0 : i32
    %c0_i32_0 = arith.constant 0 : i32
    %c0_i32_1 = arith.constant 0 : i32
    return %c0_i32, %c0_i32_0 : i32, i32
  }
  func.func @transform_3(%arg0: i32) -> (i32, i32, i32, i32) {
    %c0_i32 = arith.constant 0 : i32
    %c0_i32_0 = arith.constant 0 : i32
    %c0_i32_1 = arith.constant 0 : i32
    %c0_i32_2 = arith.constant 0 : i32
    return %arg0, %c0_i32, %c0_i32_0, %c0_i32_1 : i32, i32, i32, i32
  }
}

module attributes {stable_mosaic.version = 11 : i64} {
  func.func @kernel(%arg0: i32, %arg1: memref<1x9x9x128xbf16, #tpu.memory_space<vmem>>, %arg2: memref<9x128x128xbf16, #tpu.memory_space<vmem>>, %arg3: memref<1x128xf32, #tpu.memory_space<vmem>>, %arg4: memref<1x8x8x128xf32, #tpu.memory_space<vmem>>, %arg5: memref<1x8x8x128xf32, #tpu.memory_space<vmem>>, %arg6: memref<1x8x8x128xf32, #tpu.memory_space<vmem>>, %arg7: memref<1x8x8x128xf32, #tpu.memory_space<vmem>>) attributes {dimension_semantics = [#tpu.dimension_semantics<parallel>], iteration_bounds = array<i64: 2>, scalar_prefetch = 0 : i64, scratch_operands = 0 : i64, tpu.core_type = #tpu.core_type<tc>, window_params = [{transform_indices = @transform_0, window_bounds = array<i64: 1, 9, 9, 128>}, {pipeline_mode = #tpu.pipeline_mode<synchronous>, transform_indices = @transform_1, window_bounds = array<i64: 9, 128, 128>}, {pipeline_mode = #tpu.pipeline_mode<synchronous>, transform_indices = @transform_2, window_bounds = array<i64: 1, 128>}, {transform_indices = @transform_3, window_bounds = array<i64: 1, 8, 8, 128>}, {transform_indices = @transform_4, window_bounds = array<i64: 1, 8, 8, 128>}, {transform_indices = @transform_5, window_bounds = array<i64: 1, 8, 8, 128>}, {transform_indices = @transform_6, window_bounds = array<i64: 1, 8, 8, 128>}]} {
    %c0 = arith.constant 0 : index
    %c0_0 = arith.constant 0 : index
    %0 = vector.load %arg3[%c0, %c0_0] : memref<1x128xf32, #tpu.memory_space<vmem>>, vector<1x128xf32>
    %c0_1 = arith.constant 0 : index
    %c0_2 = arith.constant 0 : index
    %c0_3 = arith.constant 0 : index
    %c0_4 = arith.constant 0 : index
    %1 = vector.load %arg1[%c0_1, %c0_2, %c0_3, %c0_4] : memref<1x9x9x128xbf16, #tpu.memory_space<vmem>>, vector<1x8x8x128xbf16>
    %2 = vector.shape_cast %1 : vector<1x8x8x128xbf16> to vector<8x8x128xbf16>
    %3 = vector.shape_cast %2 : vector<8x8x128xbf16> to vector<64x128xbf16>
    %c4 = arith.constant 4 : index
    %c0_5 = arith.constant 0 : index
    %c0_6 = arith.constant 0 : index
    %4 = vector.load %arg2[%c4, %c0_5, %c0_6] : memref<9x128x128xbf16, #tpu.memory_space<vmem>>, vector<1x128x128xbf16>
    %5 = vector.shape_cast %4 : vector<1x128x128xbf16> to vector<128x128xbf16>
    %cst = arith.constant dense<0.000000e+00> : vector<64x128xf32>
    %6 = tpu.matmul %3, %5, %cst {dimension_numbers = #tpu.dot_dimension_numbers<[1], [0], [0], [1], [0, 0, 1, 1], [], []>} : vector<64x128xbf16>, vector<128x128xbf16>, vector<64x128xf32> -> vector<64x128xf32>
    %7 = vector.broadcast %0 : vector<1x128xf32> to vector<64x128xf32>
    %8 = arith.addf %6, %7 : vector<64x128xf32>
    %cst_7 = arith.constant 0.000000e+00 : f32
    %9 = vector.broadcast %cst_7 : f32 to vector<64x128xf32>
    %10 = arith.maximumf %8, %9 : vector<64x128xf32>
    %11 = vector.shape_cast %10 : vector<64x128xf32> to vector<8x8x128xf32>
    %c0_8 = arith.constant 0 : index
    %c0_9 = arith.constant 0 : index
    %c0_10 = arith.constant 0 : index
    %c0_11 = arith.constant 0 : index
    %12 = vector.load %arg4[%c0_8, %c0_9, %c0_10, %c0_11] : memref<1x8x8x128xf32, #tpu.memory_space<vmem>>, vector<1x8x8x128xf32>
    %13 = vector.shape_cast %12 : vector<1x8x8x128xf32> to vector<8x8x128xf32>
    %14 = vector.shape_cast %11 : vector<8x8x128xf32> to vector<1x8x8x128xf32>
    tpu.vector_store %arg4[%c0_8, %c0_9, %c0_10, %c0_11], %14 {strides = array<i32>} : memref<1x8x8x128xf32, #tpu.memory_space<vmem>>, vector<1x8x8x128xf32>,
    %c0_12 = arith.constant 0 : index
    %c0_13 = arith.constant 0 : index
    %c1 = arith.constant 1 : index
    %c0_14 = arith.constant 0 : index
    %15 = vector.load %arg1[%c0_12, %c0_13, %c1, %c0_14] : memref<1x9x9x128xbf16, #tpu.memory_space<vmem>>, vector<1x8x8x128xbf16>
    %16 = vector.shape_cast %15 : vector<1x8x8x128xbf16> to vector<8x8x128xbf16>
    %17 = vector.shape_cast %16 : vector<8x8x128xbf16> to vector<64x128xbf16>
    %c3 = arith.constant 3 : index
    %c0_15 = arith.constant 0 : index
    %c0_16 = arith.constant 0 : index
    %18 = vector.load %arg2[%c3, %c0_15, %c0_16] : memref<9x128x128xbf16, #tpu.memory_space<vmem>>, vector<1x128x128xbf16>
    %19 = vector.shape_cast %18 : vector<1x128x128xbf16> to vector<128x128xbf16>
    %cst_17 = arith.constant dense<0.000000e+00> : vector<64x128xf32>
    %20 = tpu.matmul %17, %19, %cst_17 {dimension_numbers = #tpu.dot_dimension_numbers<[1], [0], [0], [1], [0, 0, 1, 1], [], []>} : vector<64x128xbf16>, vector<128x128xbf16>, vector<64x128xf32> -> vector<64x128xf32>
    %c0_18 = arith.constant 0 : index
    %c0_19 = arith.constant 0 : index
    %c0_20 = arith.constant 0 : index
    %c0_21 = arith.constant 0 : index
    %21 = vector.load %arg1[%c0_18, %c0_19, %c0_20, %c0_21] : memref<1x9x9x128xbf16, #tpu.memory_space<vmem>>, vector<1x8x8x128xbf16>
    %22 = vector.shape_cast %21 : vector<1x8x8x128xbf16> to vector<8x8x128xbf16>
    %23 = vector.shape_cast %22 : vector<8x8x128xbf16> to vector<64x128xbf16>
    %c5 = arith.constant 5 : index
    %c0_22 = arith.constant 0 : index
    %c0_23 = arith.constant 0 : index
    %24 = vector.load %arg2[%c5, %c0_22, %c0_23] : memref<9x128x128xbf16, #tpu.memory_space<vmem>>, vector<1x128x128xbf16>
    %25 = vector.shape_cast %24 : vector<1x128x128xbf16> to vector<128x128xbf16>
    %cst_24 = arith.constant dense<0.000000e+00> : vector<64x128xf32>
    %26 = tpu.matmul %23, %25, %cst_24 {dimension_numbers = #tpu.dot_dimension_numbers<[1], [0], [0], [1], [0, 0, 1, 1], [], []>} : vector<64x128xbf16>, vector<128x128xbf16>, vector<64x128xf32> -> vector<64x128xf32>
    %27 = arith.addf %20, %26 : vector<64x128xf32>
    %28 = vector.broadcast %0 : vector<1x128xf32> to vector<64x128xf32>
    %29 = arith.addf %27, %28 : vector<64x128xf32>
    %cst_25 = arith.constant 0.000000e+00 : f32
    %30 = vector.broadcast %cst_25 : f32 to vector<64x128xf32>
    %31 = arith.maximumf %29, %30 : vector<64x128xf32>
    %32 = vector.shape_cast %31 : vector<64x128xf32> to vector<8x8x128xf32>
    %c0_26 = arith.constant 0 : index
    %c0_27 = arith.constant 0 : index
    %c0_28 = arith.constant 0 : index
    %c0_29 = arith.constant 0 : index
    %33 = vector.load %arg5[%c0_26, %c0_27, %c0_28, %c0_29] : memref<1x8x8x128xf32, #tpu.memory_space<vmem>>, vector<1x8x8x128xf32>
    %34 = vector.shape_cast %33 : vector<1x8x8x128xf32> to vector<8x8x128xf32>
    %35 = vector.shape_cast %32 : vector<8x8x128xf32> to vector<1x8x8x128xf32>
    tpu.vector_store %arg5[%c0_26, %c0_27, %c0_28, %c0_29], %35 {strides = array<i32>} : memref<1x8x8x128xf32, #tpu.memory_space<vmem>>, vector<1x8x8x128xf32>,
    %c0_30 = arith.constant 0 : index
    %c1_31 = arith.constant 1 : index
    %c0_32 = arith.constant 0 : index
    %c0_33 = arith.constant 0 : index
    %36 = vector.load %arg1[%c0_30, %c1_31, %c0_32, %c0_33] : memref<1x9x9x128xbf16, #tpu.memory_space<vmem>>, vector<1x8x8x128xbf16>
    %37 = vector.shape_cast %36 : vector<1x8x8x128xbf16> to vector<8x8x128xbf16>
    %38 = vector.shape_cast %37 : vector<8x8x128xbf16> to vector<64x128xbf16>
    %c1_34 = arith.constant 1 : index
    %c0_35 = arith.constant 0 : index
    %c0_36 = arith.constant 0 : index
    %39 = vector.load %arg2[%c1_34, %c0_35, %c0_36] : memref<9x128x128xbf16, #tpu.memory_space<vmem>>, vector<1x128x128xbf16>
    %40 = vector.shape_cast %39 : vector<1x128x128xbf16> to vector<128x128xbf16>
    %cst_37 = arith.constant dense<0.000000e+00> : vector<64x128xf32>
    %41 = tpu.matmul %38, %40, %cst_37 {dimension_numbers = #tpu.dot_dimension_numbers<[1], [0], [0], [1], [0, 0, 1, 1], [], []>} : vector<64x128xbf16>, vector<128x128xbf16>, vector<64x128xf32> -> vector<64x128xf32>
    %c0_38 = arith.constant 0 : index
    %c0_39 = arith.constant 0 : index
    %c0_40 = arith.constant 0 : index
    %c0_41 = arith.constant 0 : index
    %42 = vector.load %arg1[%c0_38, %c0_39, %c0_40, %c0_41] : memref<1x9x9x128xbf16, #tpu.memory_space<vmem>>, vector<1x8x8x128xbf16>
    %43 = vector.shape_cast %42 : vector<1x8x8x128xbf16> to vector<8x8x128xbf16>
    %44 = vector.shape_cast %43 : vector<8x8x128xbf16> to vector<64x128xbf16>
    %c7 = arith.constant 7 : index
    %c0_42 = arith.constant 0 : index
    %c0_43 = arith.constant 0 : index
    %45 = vector.load %arg2[%c7, %c0_42, %c0_43] : memref<9x128x128xbf16, #tpu.memory_space<vmem>>, vector<1x128x128xbf16>
    %46 = vector.shape_cast %45 : vector<1x128x128xbf16> to vector<128x128xbf16>
    %cst_44 = arith.constant dense<0.000000e+00> : vector<64x128xf32>
    %47 = tpu.matmul %44, %46, %cst_44 {dimension_numbers = #tpu.dot_dimension_numbers<[1], [0], [0], [1], [0, 0, 1, 1], [], []>} : vector<64x128xbf16>, vector<128x128xbf16>, vector<64x128xf32> -> vector<64x128xf32>
    %48 = arith.addf %41, %47 : vector<64x128xf32>
    %49 = vector.broadcast %0 : vector<1x128xf32> to vector<64x128xf32>
    %50 = arith.addf %48, %49 : vector<64x128xf32>
    %cst_45 = arith.constant 0.000000e+00 : f32
    %51 = vector.broadcast %cst_45 : f32 to vector<64x128xf32>
    %52 = arith.maximumf %50, %51 : vector<64x128xf32>
    %53 = vector.shape_cast %52 : vector<64x128xf32> to vector<8x8x128xf32>
    %c0_46 = arith.constant 0 : index
    %c0_47 = arith.constant 0 : index
    %c0_48 = arith.constant 0 : index
    %c0_49 = arith.constant 0 : index
    %54 = vector.load %arg6[%c0_46, %c0_47, %c0_48, %c0_49] : memref<1x8x8x128xf32, #tpu.memory_space<vmem>>, vector<1x8x8x128xf32>
    %55 = vector.shape_cast %54 : vector<1x8x8x128xf32> to vector<8x8x128xf32>
    %56 = vector.shape_cast %53 : vector<8x8x128xf32> to vector<1x8x8x128xf32>
    tpu.vector_store %arg6[%c0_46, %c0_47, %c0_48, %c0_49], %56 {strides = array<i32>} : memref<1x8x8x128xf32, #tpu.memory_space<vmem>>, vector<1x8x8x128xf32>,
    %c0_50 = arith.constant 0 : index
    %c1_51 = arith.constant 1 : index
    %c1_52 = arith.constant 1 : index
    %c0_53 = arith.constant 0 : index
    %57 = vector.load %arg1[%c0_50, %c1_51, %c1_52, %c0_53] : memref<1x9x9x128xbf16, #tpu.memory_space<vmem>>, vector<1x8x8x128xbf16>
    %58 = vector.shape_cast %57 : vector<1x8x8x128xbf16> to vector<8x8x128xbf16>
    %59 = vector.shape_cast %58 : vector<8x8x128xbf16> to vector<64x128xbf16>
    %c0_54 = arith.constant 0 : index
    %c0_55 = arith.constant 0 : index
    %c0_56 = arith.constant 0 : index
    %60 = vector.load %arg2[%c0_54, %c0_55, %c0_56] : memref<9x128x128xbf16, #tpu.memory_space<vmem>>, vector<1x128x128xbf16>
    %61 = vector.shape_cast %60 : vector<1x128x128xbf16> to vector<128x128xbf16>
    %cst_57 = arith.constant dense<0.000000e+00> : vector<64x128xf32>
    %62 = tpu.matmul %59, %61, %cst_57 {dimension_numbers = #tpu.dot_dimension_numbers<[1], [0], [0], [1], [0, 0, 1, 1], [], []>} : vector<64x128xbf16>, vector<128x128xbf16>, vector<64x128xf32> -> vector<64x128xf32>
    %c0_58 = arith.constant 0 : index
    %c1_59 = arith.constant 1 : index
    %c0_60 = arith.constant 0 : index
    %c0_61 = arith.constant 0 : index
    %63 = vector.load %arg1[%c0_58, %c1_59, %c0_60, %c0_61] : memref<1x9x9x128xbf16, #tpu.memory_space<vmem>>, vector<1x8x8x128xbf16>
    %64 = vector.shape_cast %63 : vector<1x8x8x128xbf16> to vector<8x8x128xbf16>
    %65 = vector.shape_cast %64 : vector<8x8x128xbf16> to vector<64x128xbf16>
    %c2 = arith.constant 2 : index
    %c0_62 = arith.constant 0 : index
    %c0_63 = arith.constant 0 : index
    %66 = vector.load %arg2[%c2, %c0_62, %c0_63] : memref<9x128x128xbf16, #tpu.memory_space<vmem>>, vector<1x128x128xbf16>
    %67 = vector.shape_cast %66 : vector<1x128x128xbf16> to vector<128x128xbf16>
    %cst_64 = arith.constant dense<0.000000e+00> : vector<64x128xf32>
    %68 = tpu.matmul %65, %67, %cst_64 {dimension_numbers = #tpu.dot_dimension_numbers<[1], [0], [0], [1], [0, 0, 1, 1], [], []>} : vector<64x128xbf16>, vector<128x128xbf16>, vector<64x128xf32> -> vector<64x128xf32>
    %69 = arith.addf %62, %68 : vector<64x128xf32>
    %c0_65 = arith.constant 0 : index
    %c0_66 = arith.constant 0 : index
    %c1_67 = arith.constant 1 : index
    %c0_68 = arith.constant 0 : index
    %70 = vector.load %arg1[%c0_65, %c0_66, %c1_67, %c0_68] : memref<1x9x9x128xbf16, #tpu.memory_space<vmem>>, vector<1x8x8x128xbf16>
    %71 = vector.shape_cast %70 : vector<1x8x8x128xbf16> to vector<8x8x128xbf16>
    %72 = vector.shape_cast %71 : vector<8x8x128xbf16> to vector<64x128xbf16>
    %c6 = arith.constant 6 : index
    %c0_69 = arith.constant 0 : index
    %c0_70 = arith.constant 0 : index
    %73 = vector.load %arg2[%c6, %c0_69, %c0_70] : memref<9x128x128xbf16, #tpu.memory_space<vmem>>, vector<1x128x128xbf16>
    %74 = vector.shape_cast %73 : vector<1x128x128xbf16> to vector<128x128xbf16>
    %cst_71 = arith.constant dense<0.000000e+00> : vector<64x128xf32>
    %75 = tpu.matmul %72, %74, %cst_71 {dimension_numbers = #tpu.dot_dimension_numbers<[1], [0], [0], [1], [0, 0, 1, 1], [], []>} : vector<64x128xbf16>, vector<128x128xbf16>, vector<64x128xf32> -> vector<64x128xf32>
    %76 = arith.addf %69, %75 : vector<64x128xf32>
    %c0_72 = arith.constant 0 : index
    %c0_73 = arith.constant 0 : index
    %c0_74 = arith.constant 0 : index
    %c0_75 = arith.constant 0 : index
    %77 = vector.load %arg1[%c0_72, %c0_73, %c0_74, %c0_75] : memref<1x9x9x128xbf16, #tpu.memory_space<vmem>>, vector<1x8x8x128xbf16>
    %78 = vector.shape_cast %77 : vector<1x8x8x128xbf16> to vector<8x8x128xbf16>
    %79 = vector.shape_cast %78 : vector<8x8x128xbf16> to vector<64x128xbf16>
    %c8 = arith.constant 8 : index
    %c0_76 = arith.constant 0 : index
    %c0_77 = arith.constant 0 : index
    %80 = vector.load %arg2[%c8, %c0_76, %c0_77] : memref<9x128x128xbf16, #tpu.memory_space<vmem>>, vector<1x128x128xbf16>
    %81 = vector.shape_cast %80 : vector<1x128x128xbf16> to vector<128x128xbf16>
    %cst_78 = arith.constant dense<0.000000e+00> : vector<64x128xf32>
    %82 = tpu.matmul %79, %81, %cst_78 {dimension_numbers = #tpu.dot_dimension_numbers<[1], [0], [0], [1], [0, 0, 1, 1], [], []>} : vector<64x128xbf16>, vector<128x128xbf16>, vector<64x128xf32> -> vector<64x128xf32>
    %83 = arith.addf %76, %82 : vector<64x128xf32>
    %84 = vector.broadcast %0 : vector<1x128xf32> to vector<64x128xf32>
    %85 = arith.addf %83, %84 : vector<64x128xf32>
    %cst_79 = arith.constant 0.000000e+00 : f32
    %86 = vector.broadcast %cst_79 : f32 to vector<64x128xf32>
    %87 = arith.maximumf %85, %86 : vector<64x128xf32>
    %88 = vector.shape_cast %87 : vector<64x128xf32> to vector<8x8x128xf32>
    %c0_80 = arith.constant 0 : index
    %c0_81 = arith.constant 0 : index
    %c0_82 = arith.constant 0 : index
    %c0_83 = arith.constant 0 : index
    %89 = vector.load %arg7[%c0_80, %c0_81, %c0_82, %c0_83] : memref<1x8x8x128xf32, #tpu.memory_space<vmem>>, vector<1x8x8x128xf32>
    %90 = vector.shape_cast %89 : vector<1x8x8x128xf32> to vector<8x8x128xf32>
    %91 = vector.shape_cast %88 : vector<8x8x128xf32> to vector<1x8x8x128xf32>
    tpu.vector_store %arg7[%c0_80, %c0_81, %c0_82, %c0_83], %91 {strides = array<i32>} : memref<1x8x8x128xf32, #tpu.memory_space<vmem>>, vector<1x8x8x128xf32>,
    return
  }
  func.func @transform_0(%arg0: i32) -> (i32, i32, i32, i32) {
    %c0_i32 = arith.constant 0 : i32
    %c0_i32_0 = arith.constant 0 : i32
    %c0_i32_1 = arith.constant 0 : i32
    %c0_i32_2 = arith.constant 0 : i32
    return %arg0, %c0_i32, %c0_i32_0, %c0_i32_1 : i32, i32, i32, i32
  }
  func.func @transform_1(%arg0: i32) -> (i32, i32, i32) {
    %c0_i32 = arith.constant 0 : i32
    %c0_i32_0 = arith.constant 0 : i32
    %c0_i32_1 = arith.constant 0 : i32
    %c0_i32_2 = arith.constant 0 : i32
    return %c0_i32, %c0_i32_0, %c0_i32_1 : i32, i32, i32
  }
  func.func @transform_2(%arg0: i32) -> (i32, i32) {
    %c0_i32 = arith.constant 0 : i32
    %c0_i32_0 = arith.constant 0 : i32
    %c0_i32_1 = arith.constant 0 : i32
    return %c0_i32, %c0_i32_0 : i32, i32
  }
  func.func @transform_3(%arg0: i32) -> (i32, i32, i32, i32) {
    %c0_i32 = arith.constant 0 : i32
    %c0_i32_0 = arith.constant 0 : i32
    %c0_i32_1 = arith.constant 0 : i32
    %c0_i32_2 = arith.constant 0 : i32
    return %arg0, %c0_i32, %c0_i32_0, %c0_i32_1 : i32, i32, i32, i32
  }
  func.func @transform_4(%arg0: i32) -> (i32, i32, i32, i32) {
    %c0_i32 = arith.constant 0 : i32
    %c0_i32_0 = arith.constant 0 : i32
    %c0_i32_1 = arith.constant 0 : i32
    %c0_i32_2 = arith.constant 0 : i32
    return %arg0, %c0_i32, %c0_i32_0, %c0_i32_1 : i32, i32, i32, i32
  }
  func.func @transform_5(%arg0: i32) -> (i32, i32, i32, i32) {
    %c0_i32 = arith.constant 0 : i32
    %c0_i32_0 = arith.constant 0 : i32
    %c0_i32_1 = arith.constant 0 : i32
    %c0_i32_2 = arith.constant 0 : i32
    return %arg0, %c0_i32, %c0_i32_0, %c0_i32_1 : i32, i32, i32, i32
  }
  func.func @transform_6(%arg0: i32) -> (i32, i32, i32, i32) {
    %c0_i32 = arith.constant 0 : i32
    %c0_i32_0 = arith.constant 0 : i32
    %c0_i32_1 = arith.constant 0 : i32
    %c0_i32_2 = arith.constant 0 : i32
    return %arg0, %c0_i32, %c0_i32_0, %c0_i32_1 : i32, i32, i32, i32
  }
}

module attributes {stable_mosaic.version = 11 : i64} {
  func.func @kernel(%arg0: i32, %arg1: memref<1x17x18x128xbf16, #tpu.memory_space<vmem>>, %arg2: memref<9x128x128xbf16, #tpu.memory_space<vmem>>, %arg3: memref<1x128xf32, #tpu.memory_space<vmem>>, %arg4: memref<1x15x16x128xbf16, #tpu.memory_space<vmem>>) attributes {dimension_semantics = [#tpu.dimension_semantics<parallel>], iteration_bounds = array<i64: 2>, scalar_prefetch = 0 : i64, scratch_operands = 0 : i64, tpu.core_type = #tpu.core_type<tc>, window_params = [{transform_indices = @transform_0, window_bounds = array<i64: 1, 17, 18, 128>}, {pipeline_mode = #tpu.pipeline_mode<synchronous>, transform_indices = @transform_1, window_bounds = array<i64: 9, 128, 128>}, {pipeline_mode = #tpu.pipeline_mode<synchronous>, transform_indices = @transform_2, window_bounds = array<i64: 1, 128>}, {transform_indices = @transform_3, window_bounds = array<i64: 1, 15, 16, 128>}]} {
    %c0 = arith.constant 0 : index
    %c0_0 = arith.constant 0 : index
    %0 = vector.load %arg3[%c0, %c0_0] : memref<1x128xf32, #tpu.memory_space<vmem>>, vector<1x128xf32>
    %c0_1 = arith.constant 0 : index
    %c0_2 = arith.constant 0 : index
    %c0_3 = arith.constant 0 : index
    %c0_4 = arith.constant 0 : index
    %1 = vector.load %arg1[%c0_1, %c0_2, %c0_3, %c0_4] : memref<1x17x18x128xbf16, #tpu.memory_space<vmem>>, vector<1x15x16x128xbf16>
    %2 = vector.shape_cast %1 : vector<1x15x16x128xbf16> to vector<15x16x128xbf16>
    %3 = vector.shape_cast %2 : vector<15x16x128xbf16> to vector<240x128xbf16>
    %c0_5 = arith.constant 0 : index
    %c0_6 = arith.constant 0 : index
    %c0_7 = arith.constant 0 : index
    %4 = vector.load %arg2[%c0_5, %c0_6, %c0_7] : memref<9x128x128xbf16, #tpu.memory_space<vmem>>, vector<1x128x128xbf16>
    %5 = vector.shape_cast %4 : vector<1x128x128xbf16> to vector<128x128xbf16>
    %cst = arith.constant dense<0.000000e+00> : vector<240x128xf32>
    %6 = tpu.matmul %3, %5, %cst {dimension_numbers = #tpu.dot_dimension_numbers<[1], [0], [0], [1], [0, 0, 1, 1], [], []>} : vector<240x128xbf16>, vector<128x128xbf16>, vector<240x128xf32> -> vector<240x128xf32>
    %c0_8 = arith.constant 0 : index
    %c0_9 = arith.constant 0 : index
    %c1 = arith.constant 1 : index
    %c0_10 = arith.constant 0 : index
    %7 = vector.load %arg1[%c0_8, %c0_9, %c1, %c0_10] : memref<1x17x18x128xbf16, #tpu.memory_space<vmem>>, vector<1x15x16x128xbf16>
    %8 = vector.shape_cast %7 : vector<1x15x16x128xbf16> to vector<15x16x128xbf16>
    %9 = vector.shape_cast %8 : vector<15x16x128xbf16> to vector<240x128xbf16>
    %c1_11 = arith.constant 1 : index
    %c0_12 = arith.constant 0 : index
    %c0_13 = arith.constant 0 : index
    %10 = vector.load %arg2[%c1_11, %c0_12, %c0_13] : memref<9x128x128xbf16, #tpu.memory_space<vmem>>, vector<1x128x128xbf16>
    %11 = vector.shape_cast %10 : vector<1x128x128xbf16> to vector<128x128xbf16>
    %cst_14 = arith.constant dense<0.000000e+00> : vector<240x128xf32>
    %12 = tpu.matmul %9, %11, %cst_14 {dimension_numbers = #tpu.dot_dimension_numbers<[1], [0], [0], [1], [0, 0, 1, 1], [], []>} : vector<240x128xbf16>, vector<128x128xbf16>, vector<240x128xf32> -> vector<240x128xf32>
    %13 = arith.addf %6, %12 : vector<240x128xf32>
    %c0_15 = arith.constant 0 : index
    %c0_16 = arith.constant 0 : index
    %c2 = arith.constant 2 : index
    %c0_17 = arith.constant 0 : index
    %14 = vector.load %arg1[%c0_15, %c0_16, %c2, %c0_17] : memref<1x17x18x128xbf16, #tpu.memory_space<vmem>>, vector<1x15x16x128xbf16>
    %15 = vector.shape_cast %14 : vector<1x15x16x128xbf16> to vector<15x16x128xbf16>
    %16 = vector.shape_cast %15 : vector<15x16x128xbf16> to vector<240x128xbf16>
    %c2_18 = arith.constant 2 : index
    %c0_19 = arith.constant 0 : index
    %c0_20 = arith.constant 0 : index
    %17 = vector.load %arg2[%c2_18, %c0_19, %c0_20] : memref<9x128x128xbf16, #tpu.memory_space<vmem>>, vector<1x128x128xbf16>
    %18 = vector.shape_cast %17 : vector<1x128x128xbf16> to vector<128x128xbf16>
    %cst_21 = arith.constant dense<0.000000e+00> : vector<240x128xf32>
    %19 = tpu.matmul %16, %18, %cst_21 {dimension_numbers = #tpu.dot_dimension_numbers<[1], [0], [0], [1], [0, 0, 1, 1], [], []>} : vector<240x128xbf16>, vector<128x128xbf16>, vector<240x128xf32> -> vector<240x128xf32>
    %20 = arith.addf %13, %19 : vector<240x128xf32>
    %c0_22 = arith.constant 0 : index
    %c1_23 = arith.constant 1 : index
    %c0_24 = arith.constant 0 : index
    %c0_25 = arith.constant 0 : index
    %21 = vector.load %arg1[%c0_22, %c1_23, %c0_24, %c0_25] : memref<1x17x18x128xbf16, #tpu.memory_space<vmem>>, vector<1x15x16x128xbf16>
    %22 = vector.shape_cast %21 : vector<1x15x16x128xbf16> to vector<15x16x128xbf16>
    %23 = vector.shape_cast %22 : vector<15x16x128xbf16> to vector<240x128xbf16>
    %c3 = arith.constant 3 : index
    %c0_26 = arith.constant 0 : index
    %c0_27 = arith.constant 0 : index
    %24 = vector.load %arg2[%c3, %c0_26, %c0_27] : memref<9x128x128xbf16, #tpu.memory_space<vmem>>, vector<1x128x128xbf16>
    %25 = vector.shape_cast %24 : vector<1x128x128xbf16> to vector<128x128xbf16>
    %cst_28 = arith.constant dense<0.000000e+00> : vector<240x128xf32>
    %26 = tpu.matmul %23, %25, %cst_28 {dimension_numbers = #tpu.dot_dimension_numbers<[1], [0], [0], [1], [0, 0, 1, 1], [], []>} : vector<240x128xbf16>, vector<128x128xbf16>, vector<240x128xf32> -> vector<240x128xf32>
    %27 = arith.addf %20, %26 : vector<240x128xf32>
    %c0_29 = arith.constant 0 : index
    %c1_30 = arith.constant 1 : index
    %c1_31 = arith.constant 1 : index
    %c0_32 = arith.constant 0 : index
    %28 = vector.load %arg1[%c0_29, %c1_30, %c1_31, %c0_32] : memref<1x17x18x128xbf16, #tpu.memory_space<vmem>>, vector<1x15x16x128xbf16>
    %29 = vector.shape_cast %28 : vector<1x15x16x128xbf16> to vector<15x16x128xbf16>
    %30 = vector.shape_cast %29 : vector<15x16x128xbf16> to vector<240x128xbf16>
    %c4 = arith.constant 4 : index
    %c0_33 = arith.constant 0 : index
    %c0_34 = arith.constant 0 : index
    %31 = vector.load %arg2[%c4, %c0_33, %c0_34] : memref<9x128x128xbf16, #tpu.memory_space<vmem>>, vector<1x128x128xbf16>
    %32 = vector.shape_cast %31 : vector<1x128x128xbf16> to vector<128x128xbf16>
    %cst_35 = arith.constant dense<0.000000e+00> : vector<240x128xf32>
    %33 = tpu.matmul %30, %32, %cst_35 {dimension_numbers = #tpu.dot_dimension_numbers<[1], [0], [0], [1], [0, 0, 1, 1], [], []>} : vector<240x128xbf16>, vector<128x128xbf16>, vector<240x128xf32> -> vector<240x128xf32>
    %34 = arith.addf %27, %33 : vector<240x128xf32>
    %c0_36 = arith.constant 0 : index
    %c1_37 = arith.constant 1 : index
    %c2_38 = arith.constant 2 : index
    %c0_39 = arith.constant 0 : index
    %35 = vector.load %arg1[%c0_36, %c1_37, %c2_38, %c0_39] : memref<1x17x18x128xbf16, #tpu.memory_space<vmem>>, vector<1x15x16x128xbf16>
    %36 = vector.shape_cast %35 : vector<1x15x16x128xbf16> to vector<15x16x128xbf16>
    %37 = vector.shape_cast %36 : vector<15x16x128xbf16> to vector<240x128xbf16>
    %c5 = arith.constant 5 : index
    %c0_40 = arith.constant 0 : index
    %c0_41 = arith.constant 0 : index
    %38 = vector.load %arg2[%c5, %c0_40, %c0_41] : memref<9x128x128xbf16, #tpu.memory_space<vmem>>, vector<1x128x128xbf16>
    %39 = vector.shape_cast %38 : vector<1x128x128xbf16> to vector<128x128xbf16>
    %cst_42 = arith.constant dense<0.000000e+00> : vector<240x128xf32>
    %40 = tpu.matmul %37, %39, %cst_42 {dimension_numbers = #tpu.dot_dimension_numbers<[1], [0], [0], [1], [0, 0, 1, 1], [], []>} : vector<240x128xbf16>, vector<128x128xbf16>, vector<240x128xf32> -> vector<240x128xf32>
    %41 = arith.addf %34, %40 : vector<240x128xf32>
    %c0_43 = arith.constant 0 : index
    %c2_44 = arith.constant 2 : index
    %c0_45 = arith.constant 0 : index
    %c0_46 = arith.constant 0 : index
    %42 = vector.load %arg1[%c0_43, %c2_44, %c0_45, %c0_46] : memref<1x17x18x128xbf16, #tpu.memory_space<vmem>>, vector<1x15x16x128xbf16>
    %43 = vector.shape_cast %42 : vector<1x15x16x128xbf16> to vector<15x16x128xbf16>
    %44 = vector.shape_cast %43 : vector<15x16x128xbf16> to vector<240x128xbf16>
    %c6 = arith.constant 6 : index
    %c0_47 = arith.constant 0 : index
    %c0_48 = arith.constant 0 : index
    %45 = vector.load %arg2[%c6, %c0_47, %c0_48] : memref<9x128x128xbf16, #tpu.memory_space<vmem>>, vector<1x128x128xbf16>
    %46 = vector.shape_cast %45 : vector<1x128x128xbf16> to vector<128x128xbf16>
    %cst_49 = arith.constant dense<0.000000e+00> : vector<240x128xf32>
    %47 = tpu.matmul %44, %46, %cst_49 {dimension_numbers = #tpu.dot_dimension_numbers<[1], [0], [0], [1], [0, 0, 1, 1], [], []>} : vector<240x128xbf16>, vector<128x128xbf16>, vector<240x128xf32> -> vector<240x128xf32>
    %48 = arith.addf %41, %47 : vector<240x128xf32>
    %c0_50 = arith.constant 0 : index
    %c2_51 = arith.constant 2 : index
    %c1_52 = arith.constant 1 : index
    %c0_53 = arith.constant 0 : index
    %49 = vector.load %arg1[%c0_50, %c2_51, %c1_52, %c0_53] : memref<1x17x18x128xbf16, #tpu.memory_space<vmem>>, vector<1x15x16x128xbf16>
    %50 = vector.shape_cast %49 : vector<1x15x16x128xbf16> to vector<15x16x128xbf16>
    %51 = vector.shape_cast %50 : vector<15x16x128xbf16> to vector<240x128xbf16>
    %c7 = arith.constant 7 : index
    %c0_54 = arith.constant 0 : index
    %c0_55 = arith.constant 0 : index
    %52 = vector.load %arg2[%c7, %c0_54, %c0_55] : memref<9x128x128xbf16, #tpu.memory_space<vmem>>, vector<1x128x128xbf16>
    %53 = vector.shape_cast %52 : vector<1x128x128xbf16> to vector<128x128xbf16>
    %cst_56 = arith.constant dense<0.000000e+00> : vector<240x128xf32>
    %54 = tpu.matmul %51, %53, %cst_56 {dimension_numbers = #tpu.dot_dimension_numbers<[1], [0], [0], [1], [0, 0, 1, 1], [], []>} : vector<240x128xbf16>, vector<128x128xbf16>, vector<240x128xf32> -> vector<240x128xf32>
    %55 = arith.addf %48, %54 : vector<240x128xf32>
    %c0_57 = arith.constant 0 : index
    %c2_58 = arith.constant 2 : index
    %c2_59 = arith.constant 2 : index
    %c0_60 = arith.constant 0 : index
    %56 = vector.load %arg1[%c0_57, %c2_58, %c2_59, %c0_60] : memref<1x17x18x128xbf16, #tpu.memory_space<vmem>>, vector<1x15x16x128xbf16>
    %57 = vector.shape_cast %56 : vector<1x15x16x128xbf16> to vector<15x16x128xbf16>
    %58 = vector.shape_cast %57 : vector<15x16x128xbf16> to vector<240x128xbf16>
    %c8 = arith.constant 8 : index
    %c0_61 = arith.constant 0 : index
    %c0_62 = arith.constant 0 : index
    %59 = vector.load %arg2[%c8, %c0_61, %c0_62] : memref<9x128x128xbf16, #tpu.memory_space<vmem>>, vector<1x128x128xbf16>
    %60 = vector.shape_cast %59 : vector<1x128x128xbf16> to vector<128x128xbf16>
    %cst_63 = arith.constant dense<0.000000e+00> : vector<240x128xf32>
    %61 = tpu.matmul %58, %60, %cst_63 {dimension_numbers = #tpu.dot_dimension_numbers<[1], [0], [0], [1], [0, 0, 1, 1], [], []>} : vector<240x128xbf16>, vector<128x128xbf16>, vector<240x128xf32> -> vector<240x128xf32>
    %62 = arith.addf %55, %61 : vector<240x128xf32>
    %63 = vector.broadcast %0 : vector<1x128xf32> to vector<240x128xf32>
    %64 = arith.addf %62, %63 : vector<240x128xf32>
    %cst_64 = arith.constant 0.000000e+00 : f32
    %65 = vector.broadcast %cst_64 : f32 to vector<240x128xf32>
    %66 = arith.maximumf %64, %65 : vector<240x128xf32>
    %67 = vector.shape_cast %66 : vector<240x128xf32> to vector<15x16x128xf32>
    %68 = arith.truncf %67 : vector<15x16x128xf32> to vector<15x16x128xbf16>
    %c0_65 = arith.constant 0 : index
    %c0_66 = arith.constant 0 : index
    %c0_67 = arith.constant 0 : index
    %c0_68 = arith.constant 0 : index
    %69 = vector.load %arg4[%c0_65, %c0_66, %c0_67, %c0_68] : memref<1x15x16x128xbf16, #tpu.memory_space<vmem>>, vector<1x15x16x128xbf16>
    %70 = vector.shape_cast %69 : vector<1x15x16x128xbf16> to vector<15x16x128xbf16>
    %71 = vector.shape_cast %68 : vector<15x16x128xbf16> to vector<1x15x16x128xbf16>
    tpu.vector_store %arg4[%c0_65, %c0_66, %c0_67, %c0_68], %71 {strides = array<i32>} : memref<1x15x16x128xbf16, #tpu.memory_space<vmem>>, vector<1x15x16x128xbf16>,
    return
  }
  func.func @transform_0(%arg0: i32) -> (i32, i32, i32, i32) {
    %c0_i32 = arith.constant 0 : i32
    %c0_i32_0 = arith.constant 0 : i32
    %c0_i32_1 = arith.constant 0 : i32
    %c0_i32_2 = arith.constant 0 : i32
    return %arg0, %c0_i32, %c0_i32_0, %c0_i32_1 : i32, i32, i32, i32
  }
  func.func @transform_1(%arg0: i32) -> (i32, i32, i32) {
    %c0_i32 = arith.constant 0 : i32
    %c0_i32_0 = arith.constant 0 : i32
    %c0_i32_1 = arith.constant 0 : i32
    %c0_i32_2 = arith.constant 0 : i32
    return %c0_i32, %c0_i32_0, %c0_i32_1 : i32, i32, i32
  }
  func.func @transform_2(%arg0: i32) -> (i32, i32) {
    %c0_i32 = arith.constant 0 : i32
    %c0_i32_0 = arith.constant 0 : i32
    %c0_i32_1 = arith.constant 0 : i32
    return %c0_i32, %c0_i32_0 : i32, i32
  }
  func.func @transform_3(%arg0: i32) -> (i32, i32, i32, i32) {
    %c0_i32 = arith.constant 0 : i32
    %c0_i32_0 = arith.constant 0 : i32
    %c0_i32_1 = arith.constant 0 : i32
    %c0_i32_2 = arith.constant 0 : i32
    return %arg0, %c0_i32, %c0_i32_0, %c0_i32_1 : i32, i32, i32, i32
  }
}

module attributes {stable_mosaic.version = 11 : i64} {
  func.func @kernel(%arg0: i32, %arg1: memref<4x9x9x128xbf16, #tpu.memory_space<vmem>>, %arg2: memref<9x128x128xbf16, #tpu.memory_space<vmem>>, %arg3: memref<1x128xf32, #tpu.memory_space<vmem>>, %arg4: memref<1x8x8x128xbf16, #tpu.memory_space<vmem>>, %arg5: memref<1x8x8x128xf32, #tpu.memory_space<vmem>>) attributes {dimension_semantics = [#tpu.dimension_semantics<parallel>], iteration_bounds = array<i64: 2>, scalar_prefetch = 0 : i64, scratch_operands = 0 : i64, tpu.core_type = #tpu.core_type<tc>, window_params = [{transform_indices = @transform_0, window_bounds = array<i64: 4, 9, 9, 128>}, {pipeline_mode = #tpu.pipeline_mode<synchronous>, transform_indices = @transform_1, window_bounds = array<i64: 9, 128, 128>}, {pipeline_mode = #tpu.pipeline_mode<synchronous>, transform_indices = @transform_2, window_bounds = array<i64: 1, 128>}, {transform_indices = @transform_3, window_bounds = array<i64: 1, 8, 8, 128>}, {transform_indices = @transform_4, window_bounds = array<i64: 1, 8, 8, 128>}]} {
    %c0 = arith.constant 0 : index
    %c0_0 = arith.constant 0 : index
    %0 = vector.load %arg3[%c0, %c0_0] : memref<1x128xf32, #tpu.memory_space<vmem>>, vector<1x128xf32>
    %c0_1 = arith.constant 0 : index
    %c0_2 = arith.constant 0 : index
    %c0_3 = arith.constant 0 : index
    %c0_4 = arith.constant 0 : index
    %1 = vector.load %arg1[%c0_1, %c0_2, %c0_3, %c0_4] : memref<4x9x9x128xbf16, #tpu.memory_space<vmem>>, vector<1x8x8x128xbf16>
    %2 = vector.shape_cast %1 : vector<1x8x8x128xbf16> to vector<8x8x128xbf16>
    %3 = vector.shape_cast %2 : vector<8x8x128xbf16> to vector<64x128xbf16>
    %c0_5 = arith.constant 0 : index
    %c0_6 = arith.constant 0 : index
    %c0_7 = arith.constant 0 : index
    %4 = vector.load %arg2[%c0_5, %c0_6, %c0_7] : memref<9x128x128xbf16, #tpu.memory_space<vmem>>, vector<1x128x128xbf16>
    %5 = vector.shape_cast %4 : vector<1x128x128xbf16> to vector<128x128xbf16>
    %cst = arith.constant dense<0.000000e+00> : vector<64x128xf32>
    %6 = tpu.matmul %3, %5, %cst {dimension_numbers = #tpu.dot_dimension_numbers<[1], [0], [0], [1], [0, 0, 1, 1], [], []>} : vector<64x128xbf16>, vector<128x128xbf16>, vector<64x128xf32> -> vector<64x128xf32>
    %c1 = arith.constant 1 : index
    %c0_8 = arith.constant 0 : index
    %c0_9 = arith.constant 0 : index
    %c0_10 = arith.constant 0 : index
    %7 = vector.load %arg1[%c1, %c0_8, %c0_9, %c0_10] : memref<4x9x9x128xbf16, #tpu.memory_space<vmem>>, vector<1x8x8x128xbf16>
    %8 = vector.shape_cast %7 : vector<1x8x8x128xbf16> to vector<8x8x128xbf16>
    %9 = vector.shape_cast %8 : vector<8x8x128xbf16> to vector<64x128xbf16>
    %c1_11 = arith.constant 1 : index
    %c0_12 = arith.constant 0 : index
    %c0_13 = arith.constant 0 : index
    %10 = vector.load %arg2[%c1_11, %c0_12, %c0_13] : memref<9x128x128xbf16, #tpu.memory_space<vmem>>, vector<1x128x128xbf16>
    %11 = vector.shape_cast %10 : vector<1x128x128xbf16> to vector<128x128xbf16>
    %cst_14 = arith.constant dense<0.000000e+00> : vector<64x128xf32>
    %12 = tpu.matmul %9, %11, %cst_14 {dimension_numbers = #tpu.dot_dimension_numbers<[1], [0], [0], [1], [0, 0, 1, 1], [], []>} : vector<64x128xbf16>, vector<128x128xbf16>, vector<64x128xf32> -> vector<64x128xf32>
    %13 = arith.addf %6, %12 : vector<64x128xf32>
    %c0_15 = arith.constant 0 : index
    %c0_16 = arith.constant 0 : index
    %c1_17 = arith.constant 1 : index
    %c0_18 = arith.constant 0 : index
    %14 = vector.load %arg1[%c0_15, %c0_16, %c1_17, %c0_18] : memref<4x9x9x128xbf16, #tpu.memory_space<vmem>>, vector<1x8x8x128xbf16>
    %15 = vector.shape_cast %14 : vector<1x8x8x128xbf16> to vector<8x8x128xbf16>
    %16 = vector.shape_cast %15 : vector<8x8x128xbf16> to vector<64x128xbf16>
    %c2 = arith.constant 2 : index
    %c0_19 = arith.constant 0 : index
    %c0_20 = arith.constant 0 : index
    %17 = vector.load %arg2[%c2, %c0_19, %c0_20] : memref<9x128x128xbf16, #tpu.memory_space<vmem>>, vector<1x128x128xbf16>
    %18 = vector.shape_cast %17 : vector<1x128x128xbf16> to vector<128x128xbf16>
    %cst_21 = arith.constant dense<0.000000e+00> : vector<64x128xf32>
    %19 = tpu.matmul %16, %18, %cst_21 {dimension_numbers = #tpu.dot_dimension_numbers<[1], [0], [0], [1], [0, 0, 1, 1], [], []>} : vector<64x128xbf16>, vector<128x128xbf16>, vector<64x128xf32> -> vector<64x128xf32>
    %20 = arith.addf %13, %19 : vector<64x128xf32>
    %c2_22 = arith.constant 2 : index
    %c0_23 = arith.constant 0 : index
    %c0_24 = arith.constant 0 : index
    %c0_25 = arith.constant 0 : index
    %21 = vector.load %arg1[%c2_22, %c0_23, %c0_24, %c0_25] : memref<4x9x9x128xbf16, #tpu.memory_space<vmem>>, vector<1x8x8x128xbf16>
    %22 = vector.shape_cast %21 : vector<1x8x8x128xbf16> to vector<8x8x128xbf16>
    %23 = vector.shape_cast %22 : vector<8x8x128xbf16> to vector<64x128xbf16>
    %c3 = arith.constant 3 : index
    %c0_26 = arith.constant 0 : index
    %c0_27 = arith.constant 0 : index
    %24 = vector.load %arg2[%c3, %c0_26, %c0_27] : memref<9x128x128xbf16, #tpu.memory_space<vmem>>, vector<1x128x128xbf16>
    %25 = vector.shape_cast %24 : vector<1x128x128xbf16> to vector<128x128xbf16>
    %cst_28 = arith.constant dense<0.000000e+00> : vector<64x128xf32>
    %26 = tpu.matmul %23, %25, %cst_28 {dimension_numbers = #tpu.dot_dimension_numbers<[1], [0], [0], [1], [0, 0, 1, 1], [], []>} : vector<64x128xbf16>, vector<128x128xbf16>, vector<64x128xf32> -> vector<64x128xf32>
    %27 = arith.addf %20, %26 : vector<64x128xf32>
    %c3_29 = arith.constant 3 : index
    %c0_30 = arith.constant 0 : index
    %c0_31 = arith.constant 0 : index
    %c0_32 = arith.constant 0 : index
    %28 = vector.load %arg1[%c3_29, %c0_30, %c0_31, %c0_32] : memref<4x9x9x128xbf16, #tpu.memory_space<vmem>>, vector<1x8x8x128xbf16>
    %29 = vector.shape_cast %28 : vector<1x8x8x128xbf16> to vector<8x8x128xbf16>
    %30 = vector.shape_cast %29 : vector<8x8x128xbf16> to vector<64x128xbf16>
    %c4 = arith.constant 4 : index
    %c0_33 = arith.constant 0 : index
    %c0_34 = arith.constant 0 : index
    %31 = vector.load %arg2[%c4, %c0_33, %c0_34] : memref<9x128x128xbf16, #tpu.memory_space<vmem>>, vector<1x128x128xbf16>
    %32 = vector.shape_cast %31 : vector<1x128x128xbf16> to vector<128x128xbf16>
    %cst_35 = arith.constant dense<0.000000e+00> : vector<64x128xf32>
    %33 = tpu.matmul %30, %32, %cst_35 {dimension_numbers = #tpu.dot_dimension_numbers<[1], [0], [0], [1], [0, 0, 1, 1], [], []>} : vector<64x128xbf16>, vector<128x128xbf16>, vector<64x128xf32> -> vector<64x128xf32>
    %34 = arith.addf %27, %33 : vector<64x128xf32>
    %c2_36 = arith.constant 2 : index
    %c0_37 = arith.constant 0 : index
    %c1_38 = arith.constant 1 : index
    %c0_39 = arith.constant 0 : index
    %35 = vector.load %arg1[%c2_36, %c0_37, %c1_38, %c0_39] : memref<4x9x9x128xbf16, #tpu.memory_space<vmem>>, vector<1x8x8x128xbf16>
    %36 = vector.shape_cast %35 : vector<1x8x8x128xbf16> to vector<8x8x128xbf16>
    %37 = vector.shape_cast %36 : vector<8x8x128xbf16> to vector<64x128xbf16>
    %c5 = arith.constant 5 : index
    %c0_40 = arith.constant 0 : index
    %c0_41 = arith.constant 0 : index
    %38 = vector.load %arg2[%c5, %c0_40, %c0_41] : memref<9x128x128xbf16, #tpu.memory_space<vmem>>, vector<1x128x128xbf16>
    %39 = vector.shape_cast %38 : vector<1x128x128xbf16> to vector<128x128xbf16>
    %cst_42 = arith.constant dense<0.000000e+00> : vector<64x128xf32>
    %40 = tpu.matmul %37, %39, %cst_42 {dimension_numbers = #tpu.dot_dimension_numbers<[1], [0], [0], [1], [0, 0, 1, 1], [], []>} : vector<64x128xbf16>, vector<128x128xbf16>, vector<64x128xf32> -> vector<64x128xf32>
    %41 = arith.addf %34, %40 : vector<64x128xf32>
    %c0_43 = arith.constant 0 : index
    %c1_44 = arith.constant 1 : index
    %c0_45 = arith.constant 0 : index
    %c0_46 = arith.constant 0 : index
    %42 = vector.load %arg1[%c0_43, %c1_44, %c0_45, %c0_46] : memref<4x9x9x128xbf16, #tpu.memory_space<vmem>>, vector<1x8x8x128xbf16>
    %43 = vector.shape_cast %42 : vector<1x8x8x128xbf16> to vector<8x8x128xbf16>
    %44 = vector.shape_cast %43 : vector<8x8x128xbf16> to vector<64x128xbf16>
    %c6 = arith.constant 6 : index
    %c0_47 = arith.constant 0 : index
    %c0_48 = arith.constant 0 : index
    %45 = vector.load %arg2[%c6, %c0_47, %c0_48] : memref<9x128x128xbf16, #tpu.memory_space<vmem>>, vector<1x128x128xbf16>
    %46 = vector.shape_cast %45 : vector<1x128x128xbf16> to vector<128x128xbf16>
    %cst_49 = arith.constant dense<0.000000e+00> : vector<64x128xf32>
    %47 = tpu.matmul %44, %46, %cst_49 {dimension_numbers = #tpu.dot_dimension_numbers<[1], [0], [0], [1], [0, 0, 1, 1], [], []>} : vector<64x128xbf16>, vector<128x128xbf16>, vector<64x128xf32> -> vector<64x128xf32>
    %48 = arith.addf %41, %47 : vector<64x128xf32>
    %c1_50 = arith.constant 1 : index
    %c1_51 = arith.constant 1 : index
    %c0_52 = arith.constant 0 : index
    %c0_53 = arith.constant 0 : index
    %49 = vector.load %arg1[%c1_50, %c1_51, %c0_52, %c0_53] : memref<4x9x9x128xbf16, #tpu.memory_space<vmem>>, vector<1x8x8x128xbf16>
    %50 = vector.shape_cast %49 : vector<1x8x8x128xbf16> to vector<8x8x128xbf16>
    %51 = vector.shape_cast %50 : vector<8x8x128xbf16> to vector<64x128xbf16>
    %c7 = arith.constant 7 : index
    %c0_54 = arith.constant 0 : index
    %c0_55 = arith.constant 0 : index
    %52 = vector.load %arg2[%c7, %c0_54, %c0_55] : memref<9x128x128xbf16, #tpu.memory_space<vmem>>, vector<1x128x128xbf16>
    %53 = vector.shape_cast %52 : vector<1x128x128xbf16> to vector<128x128xbf16>
    %cst_56 = arith.constant dense<0.000000e+00> : vector<64x128xf32>
    %54 = tpu.matmul %51, %53, %cst_56 {dimension_numbers = #tpu.dot_dimension_numbers<[1], [0], [0], [1], [0, 0, 1, 1], [], []>} : vector<64x128xbf16>, vector<128x128xbf16>, vector<64x128xf32> -> vector<64x128xf32>
    %55 = arith.addf %48, %54 : vector<64x128xf32>
    %c0_57 = arith.constant 0 : index
    %c1_58 = arith.constant 1 : index
    %c1_59 = arith.constant 1 : index
    %c0_60 = arith.constant 0 : index
    %56 = vector.load %arg1[%c0_57, %c1_58, %c1_59, %c0_60] : memref<4x9x9x128xbf16, #tpu.memory_space<vmem>>, vector<1x8x8x128xbf16>
    %57 = vector.shape_cast %56 : vector<1x8x8x128xbf16> to vector<8x8x128xbf16>
    %58 = vector.shape_cast %57 : vector<8x8x128xbf16> to vector<64x128xbf16>
    %c8 = arith.constant 8 : index
    %c0_61 = arith.constant 0 : index
    %c0_62 = arith.constant 0 : index
    %59 = vector.load %arg2[%c8, %c0_61, %c0_62] : memref<9x128x128xbf16, #tpu.memory_space<vmem>>, vector<1x128x128xbf16>
    %60 = vector.shape_cast %59 : vector<1x128x128xbf16> to vector<128x128xbf16>
    %cst_63 = arith.constant dense<0.000000e+00> : vector<64x128xf32>
    %61 = tpu.matmul %58, %60, %cst_63 {dimension_numbers = #tpu.dot_dimension_numbers<[1], [0], [0], [1], [0, 0, 1, 1], [], []>} : vector<64x128xbf16>, vector<128x128xbf16>, vector<64x128xf32> -> vector<64x128xf32>
    %62 = arith.addf %55, %61 : vector<64x128xf32>
    %63 = vector.broadcast %0 : vector<1x128xf32> to vector<64x128xf32>
    %64 = arith.addf %62, %63 : vector<64x128xf32>
    %cst_64 = arith.constant 0.000000e+00 : f32
    %65 = vector.broadcast %cst_64 : f32 to vector<64x128xf32>
    %66 = arith.maximumf %64, %65 : vector<64x128xf32>
    %c0_65 = arith.constant 0 : index
    %c0_66 = arith.constant 0 : index
    %c0_67 = arith.constant 0 : index
    %c0_68 = arith.constant 0 : index
    %67 = vector.load %arg4[%c0_65, %c0_66, %c0_67, %c0_68] : memref<1x8x8x128xbf16, #tpu.memory_space<vmem>>, vector<1x8x8x128xbf16>
    %68 = vector.shape_cast %67 : vector<1x8x8x128xbf16> to vector<8x8x128xbf16>
    %69 = vector.shape_cast %68 : vector<8x8x128xbf16> to vector<64x128xbf16>
    %70 = arith.extf %69 : vector<64x128xbf16> to vector<64x128xf32>
    %71 = arith.addf %66, %70 : vector<64x128xf32>
    %72 = vector.shape_cast %71 : vector<64x128xf32> to vector<8x8x128xf32>
    %c0_69 = arith.constant 0 : index
    %c0_70 = arith.constant 0 : index
    %c0_71 = arith.constant 0 : index
    %c0_72 = arith.constant 0 : index
    %73 = vector.load %arg5[%c0_69, %c0_70, %c0_71, %c0_72] : memref<1x8x8x128xf32, #tpu.memory_space<vmem>>, vector<1x8x8x128xf32>
    %74 = vector.shape_cast %73 : vector<1x8x8x128xf32> to vector<8x8x128xf32>
    %75 = vector.shape_cast %72 : vector<8x8x128xf32> to vector<1x8x8x128xf32>
    tpu.vector_store %arg5[%c0_69, %c0_70, %c0_71, %c0_72], %75 {strides = array<i32>} : memref<1x8x8x128xf32, #tpu.memory_space<vmem>>, vector<1x8x8x128xf32>,
    return
  }
  func.func @transform_0(%arg0: i32) -> (i32, i32, i32, i32) {
    %c0_i32 = arith.constant 0 : i32
    %c0_i32_0 = arith.constant 0 : i32
    %c0_i32_1 = arith.constant 0 : i32
    %c0_i32_2 = arith.constant 0 : i32
    return %arg0, %c0_i32, %c0_i32_0, %c0_i32_1 : i32, i32, i32, i32
  }
  func.func @transform_1(%arg0: i32) -> (i32, i32, i32) {
    %c0_i32 = arith.constant 0 : i32
    %c0_i32_0 = arith.constant 0 : i32
    %c0_i32_1 = arith.constant 0 : i32
    %c0_i32_2 = arith.constant 0 : i32
    return %c0_i32, %c0_i32_0, %c0_i32_1 : i32, i32, i32
  }
  func.func @transform_2(%arg0: i32) -> (i32, i32) {
    %c0_i32 = arith.constant 0 : i32
    %c0_i32_0 = arith.constant 0 : i32
    %c0_i32_1 = arith.constant 0 : i32
    return %c0_i32, %c0_i32_0 : i32, i32
  }
  func.func @transform_3(%arg0: i32) -> (i32, i32, i32, i32) {
    %c0_i32 = arith.constant 0 : i32
    %c0_i32_0 = arith.constant 0 : i32
    %c0_i32_1 = arith.constant 0 : i32
    %c0_i32_2 = arith.constant 0 : i32
    return %arg0, %c0_i32, %c0_i32_0, %c0_i32_1 : i32, i32, i32, i32
  }
  func.func @transform_4(%arg0: i32) -> (i32, i32, i32, i32) {
    %c0_i32 = arith.constant 0 : i32
    %c0_i32_0 = arith.constant 0 : i32
    %c0_i32_1 = arith.constant 0 : i32
    %c0_i32_2 = arith.constant 0 : i32
    return %arg0, %c0_i32, %c0_i32_0, %c0_i32_1 : i32, i32, i32, i32
  }
}

</mosaic_0001>

<llo_original>
// kernel: goctave_forward.5
$region0: #{goctave_forward.5}
  #allocation0 [shape = 'u32[]', space=smem, size = 0x4, offset = 0x4, fixed_abs, tag = 'smem constant byte address 0x4 - core index']
  #allocation1 [shape = 'u32[72,128]{1,0:T(1,128)}', space=vmem, size = 0x9000, scoped, tag = 'internal scratch']
  %s0 = inlined_call_operand.vmem [shape: bf16[2,10,10,128], index: 0, kind: input, shape index: {}]
  %s1 = inlined_call_operand.vmem [shape: bf16[9,128,128], index: 1, kind: input, shape index: {}]
  %s2 = inlined_call_operand.vmem [shape: f32[1,128], index: 2, kind: input, shape index: {}]
  %s3 = inlined_call_operand.vmem [shape: bf16[2,8,8,128], index: 3, kind: output, shape index: {}]
  %s4 = sld [smem:[#allocation0]]
  $region45: #{goctave_forward.5} parent=0
    _
  %s6 = ssub.s32 1, %s4
  %s7 = scalar_select 0, %s6, %s4
  loop: start=0, step=1, limit=4
  $region2: #{goctave_forward.5} parent=0 // loop_pre_header
    _
  $region3: #{goctave_forward.5} parent=0 // loop_header
    %s9 = sphi 0, %s13
    %p10 = scmp.ge.s32.totalorder %s9, 4
    %s19 = sphi 0, %s21
    %s22 = sphi 0, %s19
    %s23 = sphi 0, %s22
    %s39 = sphi 0, %s23
    %s43 = sphi 0, %s43
    %s45 = sphi 0, %s43
    %s46 = sphi 0, %s45
    %s60 = sphi 0, %s46
    %s64 = sphi 0, %s64
    %s66 = sphi 0, %s64
    %s67 = sphi 0, %s66
    %s81 = sphi 0, %s67
    %s87 = sphi 0, %s89
    %s90 = sphi 0, %s87
    %s91 = sphi 0, %s90
    %s107 = sphi 0, %s91
  $region4: #{goctave_forward.5} parent=0 // loop_header_branch
    %12 = sbr.rel (%p10) target = $region8
  $region5: #{goctave_forward.5} parent=0 // loop_body
    %s14 = ssub.s32 %s9, 1
    %s15 = ssub.s32 %s9, 2
    %s16 = sadd.s32 %s9, 1
    %s17 = ssub.s32 %s9, %s16
    %p18 = scmp.eq.s32.totalorder %s17, 0
    %s20 = sadd.s32 %s19, 1
    %s21 = scalar_select %p18, %s19, %s20
    %p24 = pneg %p18
    %p25 = scmp.eq.s32.totalorder %s9, 1
    %p26 = por %p24, %p25
    %p27 = scmp.ne.s32.totalorder %s19, %s22
    %p28 = scmp.eq.s32.totalorder %s9, 0
    %p29 = por %p27, %p28
    %p30 = scmp.ne.s32.totalorder %s19, %s22
    %p31 = scmp.eq.s32.totalorder %s14, 1
    %p32 = por %p30, %p31
    %p33 = scmp.ne.s32.totalorder %s22, %s23
    %p34 = scmp.eq.s32.totalorder %s14, 0
    %p35 = por %p33, %p34
    %p36 = scmp.ne.s32.totalorder %s22, %s23
    %p37 = scmp.eq.s32.totalorder %s15, 1
    %p38 = por %p36, %p37
    %p40 = scmp.ne.s32.totalorder %s23, %s39
    %p41 = scmp.eq.s32.totalorder %s15, 0
    %p42 = por %p40, %p41
    %s44 = sadd.s32 %s43, 1
    %p47 = scmp.eq.s32.totalorder %s9, 1
    %p48 = scmp.ne.s32.totalorder %s43, %s45
    %p49 = scmp.eq.s32.totalorder %s9, 0
    %p50 = por %p48, %p49
    %p51 = scmp.ne.s32.totalorder %s43, %s45
    %p52 = scmp.eq.s32.totalorder %s14, 1
    %p53 = por %p51, %p52
    %p54 = scmp.ne.s32.totalorder %s45, %s46
    %p55 = scmp.eq.s32.totalorder %s14, 0
    %p56 = por %p54, %p55
    %p57 = scmp.ne.s32.totalorder %s45, %s46
    %p58 = scmp.eq.s32.totalorder %s15, 1
    %p59 = por %p57, %p58
    %p61 = scmp.ne.s32.totalorder %s46, %s60
    %p62 = scmp.eq.s32.totalorder %s15, 0
    %p63 = por %p61, %p62
    %s65 = sadd.s32 %s64, 1
    %p68 = scmp.eq.s32.totalorder %s9, 1
    %p69 = scmp.ne.s32.totalorder %s64, %s66
    %p70 = scmp.eq.s32.totalorder %s9, 0
    %p71 = por %p69, %p70
    %p72 = scmp.ne.s32.totalorder %s64, %s66
    %p73 = scmp.eq.s32.totalorder %s14, 1
    %p74 = por %p72, %p73
    %p75 = scmp.ne.s32.totalorder %s66, %s67
    %p76 = scmp.eq.s32.totalorder %s14, 0
    %p77 = por %p75, %p76
    %p78 = scmp.ne.s32.totalorder %s66, %s67
    %p79 = scmp.eq.s32.totalorder %s15, 1
    %p80 = por %p78, %p79
    %p82 = scmp.ne.s32.totalorder %s67, %s81
    %p83 = scmp.eq.s32.totalorder %s15, 0
    %p84 = por %p82, %p83
    %s85 = ssub.s32 %s9, %s16
    %p86 = scmp.eq.s32.totalorder %s85, 0
    %s88 = sadd.s32 %s87, 1
    %s89 = scalar_select %p86, %s87, %s88
    %p92 = pneg %p86
    %p93 = scmp.eq.s32.totalorder %s9, 1
    %p94 = por %p92, %p93
    %p95 = scmp.ne.s32.totalorder %s87, %s90
    %p96 = scmp.eq.s32.totalorder %s9, 0
    %p97 = por %p95, %p96
    %p98 = scmp.ne.s32.totalorder %s87, %s90
    %p99 = scmp.eq.s32.totalorder %s14, 1
    %p100 = por %p98, %p99
    %p101 = scmp.ne.s32.totalorder %s90, %s91
    %p102 = scmp.eq.s32.totalorder %s14, 0
    %p103 = por %p101, %p102
    %p104 = scmp.ne.s32.totalorder %s90, %s91
    %p105 = scmp.eq.s32.totalorder %s15, 1
    %p106 = por %p104, %p105
    %p108 = scmp.ne.s32.totalorder %s91, %s107
    %p109 = scmp.eq.s32.totalorder %s15, 0
    %p110 = por %p108, %p109
    %p111 = scmp.le.s32.totalorder 1, %s9
    %p112 = scmp.lt.s32.totalorder %s9, 3
    %p113 = pnand %p111, %p112
    %p114 = pneg %p113
    // Predicated region
    $region9: #{goctave_forward.5} parent=5 // pred_check
      _
    $region10: #{goctave_forward.5} parent=5 // pred_check_branch
      %116 = sbr.rel (%p113) target = $region12
    $region11: #{goctave_forward.5} parent=5 // pred_region
      %s117 = ssub.s32 %s9, 1
      // Predicated region
      $region13: #{goctave_forward.5} parent=11 // pred_check
        %p118 = pneg %p56
      $region14: #{goctave_forward.5} parent=11 // pred_check_branch
        %120 = sbr.rel (%p118) target = $region16
      $region15: #{goctave_forward.5} parent=11 // pred_region
        _
      $region16: #{goctave_forward.5} parent=11 // pred_fallthru
        _
      // Predicated region
      $region17: #{goctave_forward.5} parent=11 // pred_check
        %p121 = pneg %p77
      $region18: #{goctave_forward.5} parent=11 // pred_check_branch
        %123 = sbr.rel (%p121) target = $region20
      $region19: #{goctave_forward.5} parent=11 // pred_region
        _
      $region20: #{goctave_forward.5} parent=11 // pred_fallthru
        _
    $region12: #{goctave_forward.5} parent=5 // pred_fallthru
      _
    %p124 = scmp.lt.s32.totalorder %s9, 2
    // Predicated region
    $region21: #{goctave_forward.5} parent=5 // pred_check
      %p125 = pneg %p124
    $region22: #{goctave_forward.5} parent=5 // pred_check_branch
      %127 = sbr.rel (%p125) target = $region24
    $region23: #{goctave_forward.5} parent=5 // pred_region
      // Predicated region
      $region25: #{goctave_forward.5} parent=23 // pred_check
        %p128 = pneg %p29
      $region26: #{goctave_forward.5} parent=23 // pred_check_branch
        %130 = sbr.rel (%p128) target = $region28
      $region27: #{goctave_forward.5} parent=23 // pred_region
        %p131 = scmp.lt.s32.totalorder %s9, 1
        %s132 = scalar_select %p131, %s9, 1
        %s133 = smul.addr %s132, 20
        %s134 = smul.addr %s133, 4
        %s135 = scalar_lea.vmem %s0, %s134
      $region28: #{goctave_forward.5} parent=23 // pred_fallthru
        _
    $region24: #{goctave_forward.5} parent=5 // pred_fallthru
      _
    %p136 = scmp.le.s32.totalorder 1, %s9
    %p137 = scmp.lt.s32.totalorder %s9, 3
    %p138 = pnand %p136, %p137
    %p139 = pneg %p138
    // Predicated region
    $region29: #{goctave_forward.5} parent=5 // pred_check
      _
    $region30: #{goctave_forward.5} parent=5 // pred_check_branch
      %141 = sbr.rel (%p138) target = $region32
    $region31: #{goctave_forward.5} parent=5 // pred_region
      %s142 = ssub.s32 %s9, 1
      %p143 = scmp.lt.s32.totalorder %s14, 1
      %s144 = scalar_select %p143, %s14, 1
      %s145 = smul.addr %s144, 20
      %s146 = smul.addr %s145, 4
      %s147 = scalar_lea.vmem %s0, %s146
      %p148 = pneg %p35
      %p149 = pneg %p32
      %p150 = pneg %p56
      %p151 = pneg %p53
      %p152 = pneg %p77
      %p153 = pneg %p74
      %p154 = pneg %p103
      %p155 = pneg %p100
      %p156 = scmp.lt.s32.totalorder %s14, 1
      %s157 = scalar_select %p156, %s14, 1
      %s158 = smul.addr %s157, 8
      %s159 = smul.addr %s158, 4
      %s160 = scalar_lea.vmem %s3, %s159
      %p161 = scmp.lt.s32.totalorder %s14, 1
      %s162 = scalar_select %p161, %s14, 1
      %s163 = smul.addr %s162, 20
      %s164 = smul.addr %s163, 4
      %s165 = scalar_lea.vmem %s0, %s164
      %p166 = scmp.lt.s32.totalorder %s14, 1
      %s167 = scalar_select %p166, %s14, 1
      %s168 = smul.addr %s167, 8
      %s169 = smul.addr %s168, 4
      %s170 = scalar_lea.vmem %s3, %s169
      %v171 = vld [vmem:[%s2] sm:$0x1]
      %v172 = vld [vmem:[%s165] sm:$0xf]
      %v173 = vld [vmem:[%s165 + $0x8] sm:$0xf]
      %v174 = vld [vmem:[%s165 + $0x10] sm:$0xf]
      %v175 = vld [vmem:[%s165 + $0x18] sm:$0xf]
      %v176 = vld [vmem:[%s165 + $0x20] sm:$0xf]
      %v177 = vld [vmem:[%s165 + $0x28] sm:$0xf]
      %v178 = vld [vmem:[%s165 + $0x30] sm:$0xf]
      %v179 = vld [vmem:[%s165 + $0x38] sm:$0xf]
      %v180 = vld [vmem:[%s1] sm:$0xf]
      %v181 = vld [vmem:[%s1 + $0x4] sm:$0xf]
      %v182 = vld [vmem:[%s1 + $0x8] sm:$0xf]
      %v183 = vld [vmem:[%s1 + $0xc] sm:$0xf]
      %v184 = vld [vmem:[%s1 + $0x10] sm:$0xf]
      %v185 = vld [vmem:[%s1 + $0x14] sm:$0xf]
      %v186 = vld [vmem:[%s1 + $0x18] sm:$0xf]
      %v187 = vld [vmem:[%s1 + $0x1c] sm:$0xf]
      %v188 = vld [vmem:[%s1 + $0x20] sm:$0xf]
      %v189 = vld [vmem:[%s1 + $0x24] sm:$0xf]
      %v190 = vld [vmem:[%s1 + $0x28] sm:$0xf]
      %v191 = vld [vmem:[%s1 + $0x2c] sm:$0xf]
      %v192 = vld [vmem:[%s1 + $0x30] sm:$0xf]
      %v193 = vld [vmem:[%s1 + $0x34] sm:$0xf]
      %v194 = vld [vmem:[%s1 + $0x38] sm:$0xf]
      %v195 = vld [vmem:[%s1 + $0x3c] sm:$0xf]
      %v196 = vld [vmem:[%s165 + $0x4] sm:$0x1]
      %v197 = vld [vmem:[%s165 + $0xc] sm:$0x1]
      %v198 = vld [vmem:[%s165 + $0x14] sm:$0x1]
      %v199 = vld [vmem:[%s165 + $0x1c] sm:$0x1]
      %v200 = vld [vmem:[%s165 + $0x24] sm:$0x1]
      %v201 = vld [vmem:[%s165 + $0x2c] sm:$0x1]
      %v202 = vld [vmem:[%s165 + $0x34] sm:$0x1]
      %v203 = vld [vmem:[%s165 + $0x3c] sm:$0x1]
      %vm204 = vsmask.f32 3328
      %vm205 = vsmask.f32 7440
      %vm206 = vmor %vm204, %vm205
      %v208 = vshrl.u32 %v172, 16
      %v210 = vrot.slane %v208, 4
      %v211 = vshll.u32 %v172, 16
      %v213 = vrot.slane %v211, 5
      %v214 = vor.u32 %v210, %v213
      %v215 = vrot.slane %v214, 4
      %v217 = vshll.u32 %v196, 16
      %v219 = vrot.slane %v217, 5
      %v220 = vsel %vm206, %v215, %v219
      %v222 = vshrl.u32 %v173, 16
      %v224 = vrot.slane %v222, 4
      %v225 = vshll.u32 %v173, 16
      %v227 = vrot.slane %v225, 5
      %v228 = vor.u32 %v224, %v227
      %v229 = vrot.slane %v228, 4
      %v231 = vshll.u32 %v197, 16
      %v233 = vrot.slane %v231, 5
      %v234 = vsel %vm206, %v229, %v233
      %v236 = vshrl.u32 %v174, 16
      %v238 = vrot.slane %v236, 4
      %v239 = vshll.u32 %v174, 16
      %v241 = vrot.slane %v239, 5
      %v242 = vor.u32 %v238, %v241
      %v243 = vrot.slane %v242, 4
      %v245 = vshll.u32 %v198, 16
      %v247 = vrot.slane %v245, 5
      %v248 = vsel %vm206, %v243, %v247
      %v250 = vshrl.u32 %v175, 16
      %v252 = vrot.slane %v250, 4
      %v253 = vshll.u32 %v175, 16
      %v255 = vrot.slane %v253, 5
      %v256 = vor.u32 %v252, %v255
      %v257 = vrot.slane %v256, 4
      %v259 = vshll.u32 %v199, 16
      %v261 = vrot.slane %v259, 5
      %v262 = vsel %vm206, %v257, %v261
      %v264 = vshrl.u32 %v176, 16
      %v266 = vrot.slane %v264, 4
      %v267 = vshll.u32 %v176, 16
      %v269 = vrot.slane %v267, 5
      %v270 = vor.u32 %v266, %v269
      %v271 = vrot.slane %v270, 4
      %v273 = vshll.u32 %v200, 16
      %v275 = vrot.slane %v273, 5
      %v276 = vsel %vm206, %v271, %v275
      %v278 = vshrl.u32 %v177, 16
      %v280 = vrot.slane %v278, 4
      %v281 = vshll.u32 %v177, 16
      %v283 = vrot.slane %v281, 5
      %v284 = vor.u32 %v280, %v283
      %v285 = vrot.slane %v284, 4
      %v287 = vshll.u32 %v201, 16
      %v289 = vrot.slane %v287, 5
      %v290 = vsel %vm206, %v285, %v289
      %v292 = vshrl.u32 %v178, 16
      %v294 = vrot.slane %v292, 4
      %v295 = vshll.u32 %v178, 16
      %v297 = vrot.slane %v295, 5
      %v298 = vor.u32 %v294, %v297
      %v299 = vrot.slane %v298, 4
      %v301 = vshll.u32 %v202, 16
      %v303 = vrot.slane %v301, 5
      %v304 = vsel %vm206, %v299, %v303
      %v306 = vshrl.u32 %v179, 16
      %v308 = vrot.slane %v306, 4
      %v309 = vshll.u32 %v179, 16
      %v311 = vrot.slane %v309, 5
      %v312 = vor.u32 %v308, %v311
      %v313 = vrot.slane %v312, 4
      %v315 = vshll.u32 %v203, 16
      %v317 = vrot.slane %v315, 5
      %v318 = vsel %vm206, %v313, %v317
      %s319 = scalar_lea.vmem %s1, 64
      %v320 = vld [vmem:[%s319] sm:$0xf]
      %v321 = vld [vmem:[%s319 + $0x4] sm:$0xf]
      %v322 = vld [vmem:[%s319 + $0x8] sm:$0xf]
      %v323 = vld [vmem:[%s319 + $0xc] sm:$0xf]
      %v324 = vld [vmem:[%s319 + $0x10] sm:$0xf]
      %v325 = vld [vmem:[%s319 + $0x14] sm:$0xf]
      %v326 = vld [vmem:[%s319 + $0x18] sm:$0xf]
      %v327 = vld [vmem:[%s319 + $0x1c] sm:$0xf]
      %v328 = vld [vmem:[%s319 + $0x20] sm:$0xf]
      %v329 = vld [vmem:[%s319 + $0x24] sm:$0xf]
      %v330 = vld [vmem:[%s319 + $0x28] sm:$0xf]
      %v331 = vld [vmem:[%s319 + $0x2c] sm:$0xf]
      %v332 = vld [vmem:[%s319 + $0x30] sm:$0xf]
      %v333 = vld [vmem:[%s319 + $0x34] sm:$0xf]
      %v334 = vld [vmem:[%s319 + $0x38] sm:$0xf]
      %v335 = vld [vmem:[%s319 + $0x3c] sm:$0xf]
      %v336 = vunpack.c.l.b16 %v220
      %v337 = vunpack.c.l.b16 %v234
      %v338 = vunpack.c.l.b16 %v248
      %v339 = vunpack.c.l.b16 %v262
      %v340 = vunpack.c.l.b16 %v276
      %v341 = vunpack.c.l.b16 %v290
      %v342 = vunpack.c.l.b16 %v304
      %v343 = vunpack.c.l.b16 %v318
      %v344 = vpack.c.b16 %v337, %v336
      %v345 = vpack.c.b16 %v339, %v338
      %v346 = vpack.c.b16 %v341, %v340
      %v347 = vpack.c.b16 %v343, %v342
      %v368 = vunpack.c.l.b16 %v320
      %v369 = vunpack.c.l.b16 %v321
      %v370 = vunpack.c.l.b16 %v322
      %v371 = vunpack.c.l.b16 %v323
      %v372 = vunpack.c.l.b16 %v324
      %v373 = vunpack.c.l.b16 %v325
      %v374 = vunpack.c.l.b16 %v326
      %v375 = vunpack.c.l.b16 %v327
      %v376 = vunpack.c.l.b16 %v328
      %v377 = vunpack.c.l.b16 %v329
      %v378 = vunpack.c.l.b16 %v330
      %v379 = vunpack.c.l.b16 %v331
      %v380 = vunpack.c.l.b16 %v332
      %v381 = vunpack.c.l.b16 %v333
      %v382 = vunpack.c.l.b16 %v334
      %v383 = vunpack.c.l.b16 %v335
      %v384 = vpack.c.b16 %v369, %v368
      %v385 = vpack.c.b16 %v371, %v370
      %v386 = vpack.c.b16 %v373, %v372
      %v387 = vpack.c.b16 %v375, %v374
      %v388 = vpack.c.b16 %v377, %v376
      %v389 = vpack.c.b16 %v379, %v378
      %v390 = vpack.c.b16 %v381, %v380
      %v391 = vpack.c.b16 %v383, %v382
      %400 = vmatpush.bf16.msra.mxu0 %v391
      %401 = vmatpush.bf16.msra.mxu0 %v390
      %402 = vmatpush.bf16.msra.mxu0 %v389
      %403 = vmatpush.bf16.msra.mxu0 %v388
      %404 = vmatpush.bf16.msra.mxu0 %v387
      %405 = vmatpush.bf16.msra.mxu0 %v386
      %406 = vmatpush.bf16.msra.mxu0 %v385
      %407 = vmatpush.bf16.msra.mxu0 %v384
      %408 = vmatmul.bf16.gmra.mxu0 %v344
      %v409 = vpop.f32.mrf.mxu0
      %v410 = vadd.f32 0.0, %v409
      %v411 = vpop.f32.mrf.mxu0
      %v412 = vadd.f32 0.0, %v411
      %413 = vmatmul.bf16.gmra.mxu0 %v345
      %v414 = vpop.f32.mrf.mxu0
      %v415 = vadd.f32 0.0, %v414
      %v416 = vpop.f32.mrf.mxu0
      %v417 = vadd.f32 0.0, %v416
      %418 = vmatmul.bf16.gmra.mxu0 %v346
      %v419 = vpop.f32.mrf.mxu0
      %v420 = vadd.f32 0.0, %v419
      %v421 = vpop.f32.mrf.mxu0
      %v422 = vadd.f32 0.0, %v421
      %423 = vmatmul.bf16.gmra.mxu0 %v347
      %v424 = vpop.f32.mrf.mxu0
      %v425 = vadd.f32 0.0, %v424
      %v426 = vpop.f32.mrf.mxu0
      %v427 = vadd.f32 0.0, %v426
      %428 = vdwg.mxu0
      %v437 = vunpack.c.l.b16 %v172
      %v438 = vunpack.c.l.b16 %v173
      %v439 = vunpack.c.l.b16 %v174
      %v440 = vunpack.c.l.b16 %v175
      %v441 = vunpack.c.l.b16 %v176
      %v442 = vunpack.c.l.b16 %v177
      %v443 = vunpack.c.l.b16 %v178
      %v444 = vunpack.c.l.b16 %v179
      %v445 = vpack.c.b16 %v438, %v437
      %v446 = vpack.c.b16 %v440, %v439
      %v447 = vpack.c.b16 %v442, %v441
      %v448 = vpack.c.b16 %v444, %v443
      %v469 = vunpack.c.l.b16 %v180
      %v470 = vunpack.c.l.b16 %v181
      %v471 = vunpack.c.l.b16 %v182
      %v472 = vunpack.c.l.b16 %v183
      %v473 = vunpack.c.l.b16 %v184
      %v474 = vunpack.c.l.b16 %v185
      %v475 = vunpack.c.l.b16 %v186
      %v476 = vunpack.c.l.b16 %v187
      %v477 = vunpack.c.l.b16 %v188
      %v478 = vunpack.c.l.b16 %v189
      %v479 = vunpack.c.l.b16 %v190
      %v480 = vunpack.c.l.b16 %v191
      %v481 = vunpack.c.l.b16 %v192
      %v482 = vunpack.c.l.b16 %v193
      %v483 = vunpack.c.l.b16 %v194
      %v484 = vunpack.c.l.b16 %v195
      %v485 = vpack.c.b16 %v470, %v469
      %v486 = vpack.c.b16 %v472, %v471
      %v487 = vpack.c.b16 %v474, %v473
      %v488 = vpack.c.b16 %v476, %v475
      %v489 = vpack.c.b16 %v478, %v477
      %v490 = vpack.c.b16 %v480, %v479
      %v491 = vpack.c.b16 %v482, %v481
      %v492 = vpack.c.b16 %v484, %v483
      %501 = vmatpush.bf16.msra.mxu0 %v492
      %502 = vmatpush.bf16.msra.mxu0 %v491
      %503 = vmatpush.bf16.msra.mxu0 %v490
      %504 = vmatpush.bf16.msra.mxu0 %v489
      %505 = vmatpush.bf16.msra.mxu0 %v488
      %506 = vmatpush.bf16.msra.mxu0 %v487
      %507 = vmatpush.bf16.msra.mxu0 %v486
      %508 = vmatpush.bf16.msra.mxu0 %v485
      %509 = vmatmul.bf16.gmra.mxu0 %v445
      %v510 = vpop.f32.mrf.mxu0
      %v511 = vadd.f32 %v410, %v510
      %v512 = vpop.f32.mrf.mxu0
      %v513 = vadd.f32 %v412, %v512
      %514 = vmatmul.bf16.gmra.mxu0 %v446
      %v515 = vpop.f32.mrf.mxu0
      %v516 = vadd.f32 %v415, %v515
      %v517 = vpop.f32.mrf.mxu0
      %v518 = vadd.f32 %v417, %v517
      %519 = vmatmul.bf16.gmra.mxu0 %v447
      %v520 = vpop.f32.mrf.mxu0
      %v521 = vadd.f32 %v420, %v520
      %v522 = vpop.f32.mrf.mxu0
      %v523 = vadd.f32 %v422, %v522
      %524 = vmatmul.bf16.gmra.mxu0 %v448
      %v525 = vpop.f32.mrf.mxu0
      %v526 = vadd.f32 %v425, %v525
      %v527 = vpop.f32.mrf.mxu0
      %v528 = vadd.f32 %v427, %v527
      %529 = vdwg.mxu0
      %v530 = vld [vmem:[%s165] sm:$0xe]
      %v531 = vld [vmem:[%s165 + $0x8] sm:$0xe]
      %v532 = vld [vmem:[%s165 + $0x10] sm:$0xe]
      %v533 = vld [vmem:[%s165 + $0x18] sm:$0xe]
      %v534 = vld [vmem:[%s165 + $0x20] sm:$0xe]
      %v535 = vld [vmem:[%s165 + $0x28] sm:$0xe]
      %v536 = vld [vmem:[%s165 + $0x30] sm:$0xe]
      %v537 = vld [vmem:[%s165 + $0x38] sm:$0xe]
      %vm554 = vcmask 1042432
      %vm555 = vcmask 1046532
      %vm556 = vmor %vm554, %vm555
      %v557 = vrot.slane %v530, 5
      %v558 = vrot.slane %v557, 4
      %v559 = vrot.slane %v196, 5
      %v560 = vsel %vm556, %v558, %v559
      %v561 = vrot.slane %v531, 5
      %v562 = vrot.slane %v561, 4
      %v563 = vrot.slane %v197, 5
      %v564 = vsel %vm556, %v562, %v563
      %v565 = vrot.slane %v532, 5
      %v566 = vrot.slane %v565, 4
      %v567 = vrot.slane %v198, 5
      %v568 = vsel %vm556, %v566, %v567
      %v569 = vrot.slane %v533, 5
      %v570 = vrot.slane %v569, 4
      %v571 = vrot.slane %v199, 5
      %v572 = vsel %vm556, %v570, %v571
      %v573 = vrot.slane %v534, 5
      %v574 = vrot.slane %v573, 4
      %v575 = vrot.slane %v200, 5
      %v576 = vsel %vm556, %v574, %v575
      %v577 = vrot.slane %v535, 5
      %v578 = vrot.slane %v577, 4
      %v579 = vrot.slane %v201, 5
      %v580 = vsel %vm556, %v578, %v579
      %v581 = vrot.slane %v536, 5
      %v582 = vrot.slane %v581, 4
      %v583 = vrot.slane %v202, 5
      %v584 = vsel %vm556, %v582, %v583
      %v585 = vrot.slane %v537, 5
      %v586 = vrot.slane %v585, 4
      %v587 = vrot.slane %v203, 5
      %v588 = vsel %vm556, %v586, %v587
      %s589 = scalar_lea.vmem %s1, 128
      %v590 = vld [vmem:[%s589] sm:$0xf]
      %v591 = vld [vmem:[%s589 + $0x4] sm:$0xf]
      %v592 = vld [vmem:[%s589 + $0x8] sm:$0xf]
      %v593 = vld [vmem:[%s589 + $0xc] sm:$0xf]
      %v594 = vld [vmem:[%s589 + $0x10] sm:$0xf]
      %v595 = vld [vmem:[%s589 + $0x14] sm:$0xf]
      %v596 = vld [vmem:[%s589 + $0x18] sm:$0xf]
      %v597 = vld [vmem:[%s589 + $0x1c] sm:$0xf]
      %v598 = vld [vmem:[%s589 + $0x20] sm:$0xf]
      %v599 = vld [vmem:[%s589 + $0x24] sm:$0xf]
      %v600 = vld [vmem:[%s589 + $0x28] sm:$0xf]
      %v601 = vld [vmem:[%s589 + $0x2c] sm:$0xf]
      %v602 = vld [vmem:[%s589 + $0x30] sm:$0xf]
      %v603 = vld [vmem:[%s589 + $0x34] sm:$0xf]
      %v604 = vld [vmem:[%s589 + $0x38] sm:$0xf]
      %v605 = vld [vmem:[%s589 + $0x3c] sm:$0xf]
      %v606 = vunpack.c.l.b16 %v560
      %v607 = vunpack.c.l.b16 %v564
      %v608 = vunpack.c.l.b16 %v568
      %v609 = vunpack.c.l.b16 %v572
      %v610 = vunpack.c.l.b16 %v576
      %v611 = vunpack.c.l.b16 %v580
      %v612 = vunpack.c.l.b16 %v584
      %v613 = vunpack.c.l.b16 %v588
      %v614 = vpack.c.b16 %v607, %v606
      %v615 = vpack.c.b16 %v609, %v608
      %v616 = vpack.c.b16 %v611, %v610
      %v617 = vpack.c.b16 %v613, %v612
      %v638 = vunpack.c.l.b16 %v590
      %v639 = vunpack.c.l.b16 %v591
      %v640 = vunpack.c.l.b16 %v592
      %v641 = vunpack.c.l.b16 %v593
      %v642 = vunpack.c.l.b16 %v594
      %v643 = vunpack.c.l.b16 %v595
      %v644 = vunpack.c.l.b16 %v596
      %v645 = vunpack.c.l.b16 %v597
      %v646 = vunpack.c.l.b16 %v598
      %v647 = vunpack.c.l.b16 %v599
      %v648 = vunpack.c.l.b16 %v600
      %v649 = vunpack.c.l.b16 %v601
      %v650 = vunpack.c.l.b16 %v602
      %v651 = vunpack.c.l.b16 %v603
      %v652 = vunpack.c.l.b16 %v604
      %v653 = vunpack.c.l.b16 %v605
      %v654 = vpack.c.b16 %v639, %v638
      %v655 = vpack.c.b16 %v641, %v640
      %v656 = vpack.c.b16 %v643, %v642
      %v657 = vpack.c.b16 %v645, %v644
      %v658 = vpack.c.b16 %v647, %v646
      %v659 = vpack.c.b16 %v649, %v648
      %v660 = vpack.c.b16 %v651, %v650
      %v661 = vpack.c.b16 %v653, %v652
      %670 = vmatpush.bf16.msra.mxu0 %v661
      %671 = vmatpush.bf16.msra.mxu0 %v660
      %672 = vmatpush.bf16.msra.mxu0 %v659
      %673 = vmatpush.bf16.msra.mxu0 %v658
      %674 = vmatpush.bf16.msra.mxu0 %v657
      %675 = vmatpush.bf16.msra.mxu0 %v656
      %676 = vmatpush.bf16.msra.mxu0 %v655
      %677 = vmatpush.bf16.msra.mxu0 %v654
      %678 = vmatmul.bf16.gmra.mxu0 %v614
      %v679 = vpop.f32.mrf.mxu0
      %v680 = vadd.f32 0.0, %v679
      %v681 = vpop.f32.mrf.mxu0
      %v682 = vadd.f32 0.0, %v681
      %683 = vmatmul.bf16.gmra.mxu0 %v615
      %v684 = vpop.f32.mrf.mxu0
      %v685 = vadd.f32 0.0, %v684
      %v686 = vpop.f32.mrf.mxu0
      %v687 = vadd.f32 0.0, %v686
      %688 = vmatmul.bf16.gmra.mxu0 %v616
      %v689 = vpop.f32.mrf.mxu0
      %v690 = vadd.f32 0.0, %v689
      %v691 = vpop.f32.mrf.mxu0
      %v692 = vadd.f32 0.0, %v691
      %693 = vmatmul.bf16.gmra.mxu0 %v617
      %v694 = vpop.f32.mrf.mxu0
      %v695 = vadd.f32 0.0, %v694
      %v696 = vpop.f32.mrf.mxu0
      %v697 = vadd.f32 0.0, %v696
      %698 = vdwg.mxu0
      %v699 = vadd.f32 %v511, %v680
      %v700 = vadd.f32 %v513, %v682
      %v701 = vadd.f32 %v516, %v685
      %v702 = vadd.f32 %v518, %v687
      %v703 = vadd.f32 %v521, %v690
      %v704 = vadd.f32 %v523, %v692
      %v705 = vadd.f32 %v526, %v695
      %v706 = vadd.f32 %v528, %v697
      %s707 = scalar_lea.vmem %s165, 8
      %v708 = vld [vmem:[%s707] sm:$0xf]
      %v709 = vld [vmem:[%s707 + $0x8] sm:$0xf]
      %v710 = vld [vmem:[%s707 + $0x10] sm:$0xf]
      %v711 = vld [vmem:[%s707 + $0x18] sm:$0xf]
      %v712 = vld [vmem:[%s707 + $0x20] sm:$0xf]
      %v713 = vld [vmem:[%s707 + $0x28] sm:$0xf]
      %v714 = vld [vmem:[%s707 + $0x30] sm:$0xf]
      %v715 = vld [vmem:[%s707 + $0x38] sm:$0xf]
      %s716 = scalar_lea.vmem %s1, 192
      %v717 = vld [vmem:[%s716] sm:$0xf]
      %v718 = vld [vmem:[%s716 + $0x4] sm:$0xf]
      %v719 = vld [vmem:[%s716 + $0x8] sm:$0xf]
      %v720 = vld [vmem:[%s716 + $0xc] sm:$0xf]
      %v721 = vld [vmem:[%s716 + $0x10] sm:$0xf]
      %v722 = vld [vmem:[%s716 + $0x14] sm:$0xf]
      %v723 = vld [vmem:[%s716 + $0x18] sm:$0xf]
      %v724 = vld [vmem:[%s716 + $0x1c] sm:$0xf]
      %v725 = vld [vmem:[%s716 + $0x20] sm:$0xf]
      %v726 = vld [vmem:[%s716 + $0x24] sm:$0xf]
      %v727 = vld [vmem:[%s716 + $0x28] sm:$0xf]
      %v728 = vld [vmem:[%s716 + $0x2c] sm:$0xf]
      %v729 = vld [vmem:[%s716 + $0x30] sm:$0xf]
      %v730 = vld [vmem:[%s716 + $0x34] sm:$0xf]
      %v731 = vld [vmem:[%s716 + $0x38] sm:$0xf]
      %v732 = vld [vmem:[%s716 + $0x3c] sm:$0xf]
      %v741 = vunpack.c.l.b16 %v708
      %v742 = vunpack.c.l.b16 %v709
      %v743 = vunpack.c.l.b16 %v710
      %v744 = vunpack.c.l.b16 %v711
      %v745 = vunpack.c.l.b16 %v712
      %v746 = vunpack.c.l.b16 %v713
      %v747 = vunpack.c.l.b16 %v714
      %v748 = vunpack.c.l.b16 %v715
      %v749 = vpack.c.b16 %v742, %v741
      %v750 = vpack.c.b16 %v744, %v743
      %v751 = vpack.c.b16 %v746, %v745
      %v752 = vpack.c.b16 %v748, %v747
      %v773 = vunpack.c.l.b16 %v717
      %v774 = vunpack.c.l.b16 %v718
      %v775 = vunpack.c.l.b16 %v719
      %v776 = vunpack.c.l.b16 %v720
      %v777 = vunpack.c.l.b16 %v721
      %v778 = vunpack.c.l.b16 %v722
      %v779 = vunpack.c.l.b16 %v723
      %v780 = vunpack.c.l.b16 %v724
      %v781 = vunpack.c.l.b16 %v725
      %v782 = vunpack.c.l.b16 %v726
      %v783 = vunpack.c.l.b16 %v727
      %v784 = vunpack.c.l.b16 %v728
      %v785 = vunpack.c.l.b16 %v729
      %v786 = vunpack.c.l.b16 %v730
      %v787 = vunpack.c.l.b16 %v731
      %v788 = vunpack.c.l.b16 %v732
      %v789 = vpack.c.b16 %v774, %v773
      %v790 = vpack.c.b16 %v776, %v775
      %v791 = vpack.c.b16 %v778, %v777
      %v792 = vpack.c.b16 %v780, %v779
      %v793 = vpack.c.b16 %v782, %v781
      %v794 = vpack.c.b16 %v784, %v783
      %v795 = vpack.c.b16 %v786, %v785
      %v796 = vpack.c.b16 %v788, %v787
      %805 = vmatpush.bf16.msra.mxu0 %v796
      %806 = vmatpush.bf16.msra.mxu0 %v795
      %807 = vmatpush.bf16.msra.mxu0 %v794
      %808 = vmatpush.bf16.msra.mxu0 %v793
      %809 = vmatpush.bf16.msra.mxu0 %v792
      %810 = vmatpush.bf16.msra.mxu0 %v791
      %811 = vmatpush.bf16.msra.mxu0 %v790
      %812 = vmatpush.bf16.msra.mxu0 %v789
      %813 = vmatmul.bf16.gmra.mxu0 %v749
      %v814 = vpop.f32.mrf.mxu0
      %v815 = vadd.f32 0.0, %v814
      %v816 = vpop.f32.mrf.mxu0
      %v817 = vadd.f32 0.0, %v816
      %818 = vmatmul.bf16.gmra.mxu0 %v750
      %v819 = vpop.f32.mrf.mxu0
      %v820 = vadd.f32 0.0, %v819
      %v821 = vpop.f32.mrf.mxu0
      %v822 = vadd.f32 0.0, %v821
      %823 = vmatmul.bf16.gmra.mxu0 %v751
      %v824 = vpop.f32.mrf.mxu0
      %v825 = vadd.f32 0.0, %v824
      %v826 = vpop.f32.mrf.mxu0
      %v827 = vadd.f32 0.0, %v826
      %828 = vmatmul.bf16.gmra.mxu0 %v752
      %v829 = vpop.f32.mrf.mxu0
      %v830 = vadd.f32 0.0, %v829
      %v831 = vpop.f32.mrf.mxu0
      %v832 = vadd.f32 0.0, %v831
      %833 = vdwg.mxu0
      %v834 = vadd.f32 %v699, %v815
      %v835 = vadd.f32 %v700, %v817
      %v836 = vadd.f32 %v701, %v820
      %v837 = vadd.f32 %v702, %v822
      %v838 = vadd.f32 %v703, %v825
      %v839 = vadd.f32 %v704, %v827
      %v840 = vadd.f32 %v705, %v830
      %v841 = vadd.f32 %v706, %v832
      %v842 = vld [vmem:[%s707] sm:$0xf]
      %v843 = vld [vmem:[%s707 + $0x4] sm:$0x1]
      %v844 = vld [vmem:[%s707 + $0x8] sm:$0xf]
      %v845 = vld [vmem:[%s707 + $0xc] sm:$0x1]
      %v846 = vld [vmem:[%s707 + $0x10] sm:$0xf]
      %v847 = vld [vmem:[%s707 + $0x14] sm:$0x1]
      %v848 = vld [vmem:[%s707 + $0x18] sm:$0xf]
      %v849 = vld [vmem:[%s707 + $0x1c] sm:$0x1]
      %v850 = vld [vmem:[%s707 + $0x20] sm:$0xf]
      %v851 = vld [vmem:[%s707 + $0x24] sm:$0x1]
      %v852 = vld [vmem:[%s707 + $0x28] sm:$0xf]
      %v853 = vld [vmem:[%s707 + $0x2c] sm:$0x1]
      %v854 = vld [vmem:[%s707 + $0x30] sm:$0xf]
      %v855 = vld [vmem:[%s707 + $0x34] sm:$0x1]
      %v856 = vld [vmem:[%s707 + $0x38] sm:$0xf]
      %v857 = vld [vmem:[%s707 + $0x3c] sm:$0x1]
      %v859 = vshrl.u32 %v842, 16
      %v861 = vrot.slane %v859, 4
      %v862 = vshll.u32 %v842, 16
      %v864 = vrot.slane %v862, 5
      %v865 = vor.u32 %v861, %v864
      %v866 = vrot.slane %v865, 4
      %v868 = vshll.u32 %v843, 16
      %v870 = vrot.slane %v868, 5
      %v871 = vsel %vm206, %v866, %v870
      %v873 = vshrl.u32 %v844, 16
      %v875 = vrot.slane %v873, 4
      %v876 = vshll.u32 %v844, 16
      %v878 = vrot.slane %v876, 5
      %v879 = vor.u32 %v875, %v878
      %v880 = vrot.slane %v879, 4
      %v882 = vshll.u32 %v845, 16
      %v884 = vrot.slane %v882, 5
      %v885 = vsel %vm206, %v880, %v884
      %v887 = vshrl.u32 %v846, 16
      %v889 = vrot.slane %v887, 4
      %v890 = vshll.u32 %v846, 16
      %v892 = vrot.slane %v890, 5
      %v893 = vor.u32 %v889, %v892
      %v894 = vrot.slane %v893, 4
      %v896 = vshll.u32 %v847, 16
      %v898 = vrot.slane %v896, 5
      %v899 = vsel %vm206, %v894, %v898
      %v901 = vshrl.u32 %v848, 16
      %v903 = vrot.slane %v901, 4
      %v904 = vshll.u32 %v848, 16
      %v906 = vrot.slane %v904, 5
      %v907 = vor.u32 %v903, %v906
      %v908 = vrot.slane %v907, 4
      %v910 = vshll.u32 %v849, 16
      %v912 = vrot.slane %v910, 5
      %v913 = vsel %vm206, %v908, %v912
      %v915 = vshrl.u32 %v850, 16
      %v917 = vrot.slane %v915, 4
      %v918 = vshll.u32 %v850, 16
      %v920 = vrot.slane %v918, 5
      %v921 = vor.u32 %v917, %v920
      %v922 = vrot.slane %v921, 4
      %v924 = vshll.u32 %v851, 16
      %v926 = vrot.slane %v924, 5
      %v927 = vsel %vm206, %v922, %v926
      %v929 = vshrl.u32 %v852, 16
      %v931 = vrot.slane %v929, 4
      %v932 = vshll.u32 %v852, 16
      %v934 = vrot.slane %v932, 5
      %v935 = vor.u32 %v931, %v934
      %v936 = vrot.slane %v935, 4
      %v938 = vshll.u32 %v853, 16
      %v940 = vrot.slane %v938, 5
      %v941 = vsel %vm206, %v936, %v940
      %v943 = vshrl.u32 %v854, 16
      %v945 = vrot.slane %v943, 4
      %v946 = vshll.u32 %v854, 16
      %v948 = vrot.slane %v946, 5
      %v949 = vor.u32 %v945, %v948
      %v950 = vrot.slane %v949, 4
      %v952 = vshll.u32 %v855, 16
      %v954 = vrot.slane %v952, 5
      %v955 = vsel %vm206, %v950, %v954
      %v957 = vshrl.u32 %v856, 16
      %v959 = vrot.slane %v957, 4
      %v960 = vshll.u32 %v856, 16
      %v962 = vrot.slane %v960, 5
      %v963 = vor.u32 %v959, %v962
      %v964 = vrot.slane %v963, 4
      %v966 = vshll.u32 %v857, 16
      %v968 = vrot.slane %v966, 5
      %v969 = vsel %vm206, %v964, %v968
      %s970 = scalar_lea.vmem %s1, 256
      %v971 = vld [vmem:[%s970] sm:$0xf]
      %v972 = vld [vmem:[%s970 + $0x4] sm:$0xf]
      %v973 = vld [vmem:[%s970 + $0x8] sm:$0xf]
      %v974 = vld [vmem:[%s970 + $0xc] sm:$0xf]
      %v975 = vld [vmem:[%s970 + $0x10] sm:$0xf]
      %v976 = vld [vmem:[%s970 + $0x14] sm:$0xf]
      %v977 = vld [vmem:[%s970 + $0x18] sm:$0xf]
      %v978 = vld [vmem:[%s970 + $0x1c] sm:$0xf]
      %v979 = vld [vmem:[%s970 + $0x20] sm:$0xf]
      %v980 = vld [vmem:[%s970 + $0x24] sm:$0xf]
      %v981 = vld [vmem:[%s970 + $0x28] sm:$0xf]
      %v982 = vld [vmem:[%s970 + $0x2c] sm:$0xf]
      %v983 = vld [vmem:[%s970 + $0x30] sm:$0xf]
      %v984 = vld [vmem:[%s970 + $0x34] sm:$0xf]
      %v985 = vld [vmem:[%s970 + $0x38] sm:$0xf]
      %v986 = vld [vmem:[%s970 + $0x3c] sm:$0xf]
      %v987 = vunpack.c.l.b16 %v871
      %v988 = vunpack.c.l.b16 %v885
      %v989 = vunpack.c.l.b16 %v899
      %v990 = vunpack.c.l.b16 %v913
      %v991 = vunpack.c.l.b16 %v927
      %v992 = vunpack.c.l.b16 %v941
      %v993 = vunpack.c.l.b16 %v955
      %v994 = vunpack.c.l.b16 %v969
      %v995 = vpack.c.b16 %v988, %v987
      %v996 = vpack.c.b16 %v990, %v989
      %v997 = vpack.c.b16 %v992, %v991
      %v998 = vpack.c.b16 %v994, %v993
      %v1019 = vunpack.c.l.b16 %v971
      %v1020 = vunpack.c.l.b16 %v972
      %v1021 = vunpack.c.l.b16 %v973
      %v1022 = vunpack.c.l.b16 %v974
      %v1023 = vunpack.c.l.b16 %v975
      %v1024 = vunpack.c.l.b16 %v976
      %v1025 = vunpack.c.l.b16 %v977
      %v1026 = vunpack.c.l.b16 %v978
      %v1027 = vunpack.c.l.b16 %v979
      %v1028 = vunpack.c.l.b16 %v980
      %v1029 = vunpack.c.l.b16 %v981
      %v1030 = vunpack.c.l.b16 %v982
      %v1031 = vunpack.c.l.b16 %v983
      %v1032 = vunpack.c.l.b16 %v984
      %v1033 = vunpack.c.l.b16 %v985
      %v1034 = vunpack.c.l.b16 %v986
      %v1035 = vpack.c.b16 %v1020, %v1019
      %v1036 = vpack.c.b16 %v1022, %v1021
      %v1037 = vpack.c.b16 %v1024, %v1023
      %v1038 = vpack.c.b16 %v1026, %v1025
      %v1039 = vpack.c.b16 %v1028, %v1027
      %v1040 = vpack.c.b16 %v1030, %v1029
      %v1041 = vpack.c.b16 %v1032, %v1031
      %v1042 = vpack.c.b16 %v1034, %v1033
      %1051 = vmatpush.bf16.msra.mxu0 %v1042
      %1052 = vmatpush.bf16.msra.mxu0 %v1041
      %1053 = vmatpush.bf16.msra.mxu0 %v1040
      %1054 = vmatpush.bf16.msra.mxu0 %v1039
      %1055 = vmatpush.bf16.msra.mxu0 %v1038
      %1056 = vmatpush.bf16.msra.mxu0 %v1037
      %1057 = vmatpush.bf16.msra.mxu0 %v1036
      %1058 = vmatpush.bf16.msra.mxu0 %v1035
      %1059 = vmatmul.bf16.gmra.mxu0 %v995
      %v1060 = vpop.f32.mrf.mxu0
      %v1061 = vadd.f32 0.0, %v1060
      %v1062 = vpop.f32.mrf.mxu0
      %v1063 = vadd.f32 0.0, %v1062
      %1064 = vmatmul.bf16.gmra.mxu0 %v996
      %v1065 = vpop.f32.mrf.mxu0
      %v1066 = vadd.f32 0.0, %v1065
      %v1067 = vpop.f32.mrf.mxu0
      %v1068 = vadd.f32 0.0, %v1067
      %1069 = vmatmul.bf16.gmra.mxu0 %v997
      %v1070 = vpop.f32.mrf.mxu0
      %v1071 = vadd.f32 0.0, %v1070
      %v1072 = vpop.f32.mrf.mxu0
      %v1073 = vadd.f32 0.0, %v1072
      %1074 = vmatmul.bf16.gmra.mxu0 %v998
      %v1075 = vpop.f32.mrf.mxu0
      %v1076 = vadd.f32 0.0, %v1075
      %v1077 = vpop.f32.mrf.mxu0
      %v1078 = vadd.f32 0.0, %v1077
      %1079 = vdwg.mxu0
      %v1080 = vadd.f32 %v834, %v1061
      %v1081 = vadd.f32 %v835, %v1063
      %v1082 = vadd.f32 %v836, %v1066
      %v1083 = vadd.f32 %v837, %v1068
      %v1084 = vadd.f32 %v838, %v1071
      %v1085 = vadd.f32 %v839, %v1073
      %v1086 = vadd.f32 %v840, %v1076
      %v1087 = vadd.f32 %v841, %v1078
      %v1088 = vld [vmem:[%s707] sm:$0xe]
      %v1089 = vld [vmem:[%s707 + $0x8] sm:$0xe]
      %v1090 = vld [vmem:[%s707 + $0x10] sm:$0xe]
      %v1091 = vld [vmem:[%s707 + $0x18] sm:$0xe]
      %v1092 = vld [vmem:[%s707 + $0x20] sm:$0xe]
      %v1093 = vld [vmem:[%s707 + $0x28] sm:$0xe]
      %v1094 = vld [vmem:[%s707 + $0x30] sm:$0xe]
      %v1095 = vld [vmem:[%s707 + $0x38] sm:$0xe]
      %v1112 = vrot.slane %v1088, 5
      %v1113 = vrot.slane %v1112, 4
      %v1114 = vrot.slane %v843, 5
      %v1115 = vsel %vm556, %v1113, %v1114
      %v1116 = vrot.slane %v1089, 5
      %v1117 = vrot.slane %v1116, 4
      %v1118 = vrot.slane %v845, 5
      %v1119 = vsel %vm556, %v1117, %v1118
      %v1120 = vrot.slane %v1090, 5
      %v1121 = vrot.slane %v1120, 4
      %v1122 = vrot.slane %v847, 5
      %v1123 = vsel %vm556, %v1121, %v1122
      %v1124 = vrot.slane %v1091, 5
      %v1125 = vrot.slane %v1124, 4
      %v1126 = vrot.slane %v849, 5
      %v1127 = vsel %vm556, %v1125, %v1126
      %v1128 = vrot.slane %v1092, 5
      %v1129 = vrot.slane %v1128, 4
      %v1130 = vrot.slane %v851, 5
      %v1131 = vsel %vm556, %v1129, %v1130
      %v1132 = vrot.slane %v1093, 5
      %v1133 = vrot.slane %v1132, 4
      %v1134 = vrot.slane %v853, 5
      %v1135 = vsel %vm556, %v1133, %v1134
      %v1136 = vrot.slane %v1094, 5
      %v1137 = vrot.slane %v1136, 4
      %v1138 = vrot.slane %v855, 5
      %v1139 = vsel %vm556, %v1137, %v1138
      %v1140 = vrot.slane %v1095, 5
      %v1141 = vrot.slane %v1140, 4
      %v1142 = vrot.slane %v857, 5
      %v1143 = vsel %vm556, %v1141, %v1142
      %s1144 = scalar_lea.vmem %s1, 320
      %v1145 = vld [vmem:[%s1144] sm:$0xf]
      %v1146 = vld [vmem:[%s1144 + $0x4] sm:$0xf]
      %v1147 = vld [vmem:[%s1144 + $0x8] sm:$0xf]
      %v1148 = vld [vmem:[%s1144 + $0xc] sm:$0xf]
      %v1149 = vld [vmem:[%s1144 + $0x10] sm:$0xf]
      %v1150 = vld [vmem:[%s1144 + $0x14] sm:$0xf]
      %v1151 = vld [vmem:[%s1144 + $0x18] sm:$0xf]
      %v1152 = vld [vmem:[%s1144 + $0x1c] sm:$0xf]
      %v1153 = vld [vmem:[%s1144 + $0x20] sm:$0xf]
      %v1154 = vld [vmem:[%s1144 + $0x24] sm:$0xf]
      %v1155 = vld [vmem:[%s1144 + $0x28] sm:$0xf]
      %v1156 = vld [vmem:[%s1144 + $0x2c] sm:$0xf]
      %v1157 = vld [vmem:[%s1144 + $0x30] sm:$0xf]
      %v1158 = vld [vmem:[%s1144 + $0x34] sm:$0xf]
      %v1159 = vld [vmem:[%s1144 + $0x38] sm:$0xf]
      %v1160 = vld [vmem:[%s1144 + $0x3c] sm:$0xf]
      %v1161 = vunpack.c.l.b16 %v1115
      %v1162 = vunpack.c.l.b16 %v1119
      %v1163 = vunpack.c.l.b16 %v1123
      %v1164 = vunpack.c.l.b16 %v1127
      %v1165 = vunpack.c.l.b16 %v1131
      %v1166 = vunpack.c.l.b16 %v1135
      %v1167 = vunpack.c.l.b16 %v1139
      %v1168 = vunpack.c.l.b16 %v1143
      %v1169 = vpack.c.b16 %v1162, %v1161
      %v1170 = vpack.c.b16 %v1164, %v1163
      %v1171 = vpack.c.b16 %v1166, %v1165
      %v1172 = vpack.c.b16 %v1168, %v1167
      %v1193 = vunpack.c.l.b16 %v1145
      %v1194 = vunpack.c.l.b16 %v1146
      %v1195 = vunpack.c.l.b16 %v1147
      %v1196 = vunpack.c.l.b16 %v1148
      %v1197 = vunpack.c.l.b16 %v1149
      %v1198 = vunpack.c.l.b16 %v1150
      %v1199 = vunpack.c.l.b16 %v1151
      %v1200 = vunpack.c.l.b16 %v1152
      %v1201 = vunpack.c.l.b16 %v1153
      %v1202 = vunpack.c.l.b16 %v1154
      %v1203 = vunpack.c.l.b16 %v1155
      %v1204 = vunpack.c.l.b16 %v1156
      %v1205 = vunpack.c.l.b16 %v1157
      %v1206 = vunpack.c.l.b16 %v1158
      %v1207 = vunpack.c.l.b16 %v1159
      %v1208 = vunpack.c.l.b16 %v1160
      %v1209 = vpack.c.b16 %v1194, %v1193
      %v1210 = vpack.c.b16 %v1196, %v1195
      %v1211 = vpack.c.b16 %v1198, %v1197
      %v1212 = vpack.c.b16 %v1200, %v1199
      %v1213 = vpack.c.b16 %v1202, %v1201
      %v1214 = vpack.c.b16 %v1204, %v1203
      %v1215 = vpack.c.b16 %v1206, %v1205
      %v1216 = vpack.c.b16 %v1208, %v1207
      %1225 = vmatpush.bf16.msra.mxu0 %v1216
      %1226 = vmatpush.bf16.msra.mxu0 %v1215
      %1227 = vmatpush.bf16.msra.mxu0 %v1214
      %1228 = vmatpush.bf16.msra.mxu0 %v1213
      %1229 = vmatpush.bf16.msra.mxu0 %v1212
      %1230 = vmatpush.bf16.msra.mxu0 %v1211
      %1231 = vmatpush.bf16.msra.mxu0 %v1210
      %1232 = vmatpush.bf16.msra.mxu0 %v1209
      %1233 = vmatmul.bf16.gmra.mxu0 %v1169
      %v1234 = vpop.f32.mrf.mxu0
      %v1235 = vadd.f32 0.0, %v1234
      %v1236 = vpop.f32.mrf.mxu0
      %v1237 = vadd.f32 0.0, %v1236
      %1238 = vmatmul.bf16.gmra.mxu0 %v1170
      %v1239 = vpop.f32.mrf.mxu0
      %v1240 = vadd.f32 0.0, %v1239
      %v1241 = vpop.f32.mrf.mxu0
      %v1242 = vadd.f32 0.0, %v1241
      %1243 = vmatmul.bf16.gmra.mxu0 %v1171
      %v1244 = vpop.f32.mrf.mxu0
      %v1245 = vadd.f32 0.0, %v1244
      %v1246 = vpop.f32.mrf.mxu0
      %v1247 = vadd.f32 0.0, %v1246
      %1248 = vmatmul.bf16.gmra.mxu0 %v1172
      %v1249 = vpop.f32.mrf.mxu0
      %v1250 = vadd.f32 0.0, %v1249
      %v1251 = vpop.f32.mrf.mxu0
      %v1252 = vadd.f32 0.0, %v1251
      %1253 = vdwg.mxu0
      %v1254 = vadd.f32 %v1080, %v1235
      %v1255 = vadd.f32 %v1081, %v1237
      %v1256 = vadd.f32 %v1082, %v1240
      %v1257 = vadd.f32 %v1083, %v1242
      %v1258 = vadd.f32 %v1084, %v1245
      %v1259 = vadd.f32 %v1085, %v1247
      %v1260 = vadd.f32 %v1086, %v1250
      %v1261 = vadd.f32 %v1087, %v1252
      %s1262 = scalar_lea.vmem %s165, 16
      %v1263 = vld [vmem:[%s1262] sm:$0xf]
      %v1264 = vld [vmem:[%s1262 + $0x8] sm:$0xf]
      %v1265 = vld [vmem:[%s1262 + $0x10] sm:$0xf]
      %v1266 = vld [vmem:[%s1262 + $0x18] sm:$0xf]
      %v1267 = vld [vmem:[%s1262 + $0x20] sm:$0xf]
      %v1268 = vld [vmem:[%s1262 + $0x28] sm:$0xf]
      %v1269 = vld [vmem:[%s1262 + $0x30] sm:$0xf]
      %v1270 = vld [vmem:[%s1262 + $0x38] sm:$0xf]
      %s1271 = scalar_lea.vmem %s1, 384
      %v1272 = vld [vmem:[%s1271] sm:$0xf]
      %v1273 = vld [vmem:[%s1271 + $0x4] sm:$0xf]
      %v1274 = vld [vmem:[%s1271 + $0x8] sm:$0xf]
      %v1275 = vld [vmem:[%s1271 + $0xc] sm:$0xf]
      %v1276 = vld [vmem:[%s1271 + $0x10] sm:$0xf]
      %v1277 = vld [vmem:[%s1271 + $0x14] sm:$0xf]
      %v1278 = vld [vmem:[%s1271 + $0x18] sm:$0xf]
      %v1279 = vld [vmem:[%s1271 + $0x1c] sm:$0xf]
      %v1280 = vld [vmem:[%s1271 + $0x20] sm:$0xf]
      %v1281 = vld [vmem:[%s1271 + $0x24] sm:$0xf]
      %v1282 = vld [vmem:[%s1271 + $0x28] sm:$0xf]
      %v1283 = vld [vmem:[%s1271 + $0x2c] sm:$0xf]
      %v1284 = vld [vmem:[%s1271 + $0x30] sm:$0xf]
      %v1285 = vld [vmem:[%s1271 + $0x34] sm:$0xf]
      %v1286 = vld [vmem:[%s1271 + $0x38] sm:$0xf]
      %v1287 = vld [vmem:[%s1271 + $0x3c] sm:$0xf]
      %v1296 = vunpack.c.l.b16 %v1263
      %v1297 = vunpack.c.l.b16 %v1264
      %v1298 = vunpack.c.l.b16 %v1265
      %v1299 = vunpack.c.l.b16 %v1266
      %v1300 = vunpack.c.l.b16 %v1267
      %v1301 = vunpack.c.l.b16 %v1268
      %v1302 = vunpack.c.l.b16 %v1269
      %v1303 = vunpack.c.l.b16 %v1270
      %v1304 = vpack.c.b16 %v1297, %v1296
      %v1305 = vpack.c.b16 %v1299, %v1298
      %v1306 = vpack.c.b16 %v1301, %v1300
      %v1307 = vpack.c.b16 %v1303, %v1302
      %v1328 = vunpack.c.l.b16 %v1272
      %v1329 = vunpack.c.l.b16 %v1273
      %v1330 = vunpack.c.l.b16 %v1274
      %v1331 = vunpack.c.l.b16 %v1275
      %v1332 = vunpack.c.l.b16 %v1276
      %v1333 = vunpack.c.l.b16 %v1277
      %v1334 = vunpack.c.l.b16 %v1278
      %v1335 = vunpack.c.l.b16 %v1279
      %v1336 = vunpack.c.l.b16 %v1280
      %v1337 = vunpack.c.l.b16 %v1281
      %v1338 = vunpack.c.l.b16 %v1282
      %v1339 = vunpack.c.l.b16 %v1283
      %v1340 = vunpack.c.l.b16 %v1284
      %v1341 = vunpack.c.l.b16 %v1285
      %v1342 = vunpack.c.l.b16 %v1286
      %v1343 = vunpack.c.l.b16 %v1287
      %v1344 = vpack.c.b16 %v1329, %v1328
      %v1345 = vpack.c.b16 %v1331, %v1330
      %v1346 = vpack.c.b16 %v1333, %v1332
      %v1347 = vpack.c.b16 %v1335, %v1334
      %v1348 = vpack.c.b16 %v1337, %v1336
      %v1349 = vpack.c.b16 %v1339, %v1338
      %v1350 = vpack.c.b16 %v1341, %v1340
      %v1351 = vpack.c.b16 %v1343, %v1342
      %1360 = vmatpush.bf16.msra.mxu0 %v1351
      %1361 = vmatpush.bf16.msra.mxu0 %v1350
      %1362 = vmatpush.bf16.msra.mxu0 %v1349
      %1363 = vmatpush.bf16.msra.mxu0 %v1348
      %1364 = vmatpush.bf16.msra.mxu0 %v1347
      %1365 = vmatpush.bf16.msra.mxu0 %v1346
      %1366 = vmatpush.bf16.msra.mxu0 %v1345
      %1367 = vmatpush.bf16.msra.mxu0 %v1344
      %1368 = vmatmul.bf16.gmra.mxu0 %v1304
      %v1369 = vpop.f32.mrf.mxu0
      %v1370 = vadd.f32 0.0, %v1369
      %v1371 = vpop.f32.mrf.mxu0
      %v1372 = vadd.f32 0.0, %v1371
      %1373 = vmatmul.bf16.gmra.mxu0 %v1305
      %v1374 = vpop.f32.mrf.mxu0
      %v1375 = vadd.f32 0.0, %v1374
      %v1376 = vpop.f32.mrf.mxu0
      %v1377 = vadd.f32 0.0, %v1376
      %1378 = vmatmul.bf16.gmra.mxu0 %v1306
      %v1379 = vpop.f32.mrf.mxu0
      %v1380 = vadd.f32 0.0, %v1379
      %v1381 = vpop.f32.mrf.mxu0
      %v1382 = vadd.f32 0.0, %v1381
      %1383 = vmatmul.bf16.gmra.mxu0 %v1307
      %v1384 = vpop.f32.mrf.mxu0
      %v1385 = vadd.f32 0.0, %v1384
      %v1386 = vpop.f32.mrf.mxu0
      %v1387 = vadd.f32 0.0, %v1386
      %1388 = vdwg.mxu0
      %v1389 = vadd.f32 %v1254, %v1370
      %v1390 = vadd.f32 %v1255, %v1372
      %v1391 = vadd.f32 %v1256, %v1375
      %v1392 = vadd.f32 %v1257, %v1377
      %v1393 = vadd.f32 %v1258, %v1380
      %v1394 = vadd.f32 %v1259, %v1382
      %v1395 = vadd.f32 %v1260, %v1385
      %v1396 = vadd.f32 %v1261, %v1387
      %v1397 = vld [vmem:[%s1262] sm:$0xf]
      %v1398 = vld [vmem:[%s1262 + $0x4] sm:$0x1]
      %v1399 = vld [vmem:[%s1262 + $0x8] sm:$0xf]
      %v1400 = vld [vmem:[%s1262 + $0xc] sm:$0x1]
      %v1401 = vld [vmem:[%s1262 + $0x10] sm:$0xf]
      %v1402 = vld [vmem:[%s1262 + $0x14] sm:$0x1]
      %v1403 = vld [vmem:[%s1262 + $0x18] sm:$0xf]
      %v1404 = vld [vmem:[%s1262 + $0x1c] sm:$0x1]
      %v1405 = vld [vmem:[%s1262 + $0x20] sm:$0xf]
      %v1406 = vld [vmem:[%s1262 + $0x24] sm:$0x1]
      %v1407 = vld [vmem:[%s1262 + $0x28] sm:$0xf]
      %v1408 = vld [vmem:[%s1262 + $0x2c] sm:$0x1]
      %v1409 = vld [vmem:[%s1262 + $0x30] sm:$0xf]
      %v1410 = vld [vmem:[%s1262 + $0x34] sm:$0x1]
      %v1411 = vld [vmem:[%s1262 + $0x38] sm:$0xf]
      %v1412 = vld [vmem:[%s1262 + $0x3c] sm:$0x1]
      %v1414 = vshrl.u32 %v1397, 16
      %v1416 = vrot.slane %v1414, 4
      %v1417 = vshll.u32 %v1397, 16
      %v1419 = vrot.slane %v1417, 5
      %v1420 = vor.u32 %v1416, %v1419
      %v1421 = vrot.slane %v1420, 4
      %v1423 = vshll.u32 %v1398, 16
      %v1425 = vrot.slane %v1423, 5
      %v1426 = vsel %vm206, %v1421, %v1425
      %v1428 = vshrl.u32 %v1399, 16
      %v1430 = vrot.slane %v1428, 4
      %v1431 = vshll.u32 %v1399, 16
      %v1433 = vrot.slane %v1431, 5
      %v1434 = vor.u32 %v1430, %v1433
      %v1435 = vrot.slane %v1434, 4
      %v1437 = vshll.u32 %v1400, 16
      %v1439 = vrot.slane %v1437, 5
      %v1440 = vsel %vm206, %v1435, %v1439
      %v1442 = vshrl.u32 %v1401, 16
      %v1444 = vrot.slane %v1442, 4
      %v1445 = vshll.u32 %v1401, 16
      %v1447 = vrot.slane %v1445, 5
      %v1448 = vor.u32 %v1444, %v1447
      %v1449 = vrot.slane %v1448, 4
      %v1451 = vshll.u32 %v1402, 16
      %v1453 = vrot.slane %v1451, 5
      %v1454 = vsel %vm206, %v1449, %v1453
      %v1456 = vshrl.u32 %v1403, 16
      %v1458 = vrot.slane %v1456, 4
      %v1459 = vshll.u32 %v1403, 16
      %v1461 = vrot.slane %v1459, 5
      %v1462 = vor.u32 %v1458, %v1461
      %v1463 = vrot.slane %v1462, 4
      %v1465 = vshll.u32 %v1404, 16
      %v1467 = vrot.slane %v1465, 5
      %v1468 = vsel %vm206, %v1463, %v1467
      %v1470 = vshrl.u32 %v1405, 16
      %v1472 = vrot.slane %v1470, 4
      %v1473 = vshll.u32 %v1405, 16
      %v1475 = vrot.slane %v1473, 5
      %v1476 = vor.u32 %v1472, %v1475
      %v1477 = vrot.slane %v1476, 4
      %v1479 = vshll.u32 %v1406, 16
      %v1481 = vrot.slane %v1479, 5
      %v1482 = vsel %vm206, %v1477, %v1481
      %v1484 = vshrl.u32 %v1407, 16
      %v1486 = vrot.slane %v1484, 4
      %v1487 = vshll.u32 %v1407, 16
      %v1489 = vrot.slane %v1487, 5
      %v1490 = vor.u32 %v1486, %v1489
      %v1491 = vrot.slane %v1490, 4
      %v1493 = vshll.u32 %v1408, 16
      %v1495 = vrot.slane %v1493, 5
      %v1496 = vsel %vm206, %v1491, %v1495
      %v1498 = vshrl.u32 %v1409, 16
      %v1500 = vrot.slane %v1498, 4
      %v1501 = vshll.u32 %v1409, 16
      %v1503 = vrot.slane %v1501, 5
      %v1504 = vor.u32 %v1500, %v1503
      %v1505 = vrot.slane %v1504, 4
      %v1507 = vshll.u32 %v1410, 16
      %v1509 = vrot.slane %v1507, 5
      %v1510 = vsel %vm206, %v1505, %v1509
      %v1512 = vshrl.u32 %v1411, 16
      %v1514 = vrot.slane %v1512, 4
      %v1515 = vshll.u32 %v1411, 16
      %v1517 = vrot.slane %v1515, 5
      %v1518 = vor.u32 %v1514, %v1517
      %v1519 = vrot.slane %v1518, 4
      %v1521 = vshll.u32 %v1412, 16
      %v1523 = vrot.slane %v1521, 5
      %v1524 = vsel %vm206, %v1519, %v1523
      %s1525 = scalar_lea.vmem %s1, 448
      %v1526 = vld [vmem:[%s1525] sm:$0xf]
      %v1527 = vld [vmem:[%s1525 + $0x4] sm:$0xf]
      %v1528 = vld [vmem:[%s1525 + $0x8] sm:$0xf]
      %v1529 = vld [vmem:[%s1525 + $0xc] sm:$0xf]
      %v1530 = vld [vmem:[%s1525 + $0x10] sm:$0xf]
      %v1531 = vld [vmem:[%s1525 + $0x14] sm:$0xf]
      %v1532 = vld [vmem:[%s1525 + $0x18] sm:$0xf]
      %v1533 = vld [vmem:[%s1525 + $0x1c] sm:$0xf]
      %v1534 = vld [vmem:[%s1525 + $0x20] sm:$0xf]
      %v1535 = vld [vmem:[%s1525 + $0x24] sm:$0xf]
      %v1536 = vld [vmem:[%s1525 + $0x28] sm:$0xf]
      %v1537 = vld [vmem:[%s1525 + $0x2c] sm:$0xf]
      %v1538 = vld [vmem:[%s1525 + $0x30] sm:$0xf]
      %v1539 = vld [vmem:[%s1525 + $0x34] sm:$0xf]
      %v1540 = vld [vmem:[%s1525 + $0x38] sm:$0xf]
      %v1541 = vld [vmem:[%s1525 + $0x3c] sm:$0xf]
      %v1542 = vunpack.c.l.b16 %v1426
      %v1543 = vunpack.c.l.b16 %v1440
      %v1544 = vunpack.c.l.b16 %v1454
      %v1545 = vunpack.c.l.b16 %v1468
      %v1546 = vunpack.c.l.b16 %v1482
      %v1547 = vunpack.c.l.b16 %v1496
      %v1548 = vunpack.c.l.b16 %v1510
      %v1549 = vunpack.c.l.b16 %v1524
      %v1550 = vpack.c.b16 %v1543, %v1542
      %v1551 = vpack.c.b16 %v1545, %v1544
      %v1552 = vpack.c.b16 %v1547, %v1546
      %v1553 = vpack.c.b16 %v1549, %v1548
      %v1574 = vunpack.c.l.b16 %v1526
      %v1575 = vunpack.c.l.b16 %v1527
      %v1576 = vunpack.c.l.b16 %v1528
      %v1577 = vunpack.c.l.b16 %v1529
      %v1578 = vunpack.c.l.b16 %v1530
      %v1579 = vunpack.c.l.b16 %v1531
      %v1580 = vunpack.c.l.b16 %v1532
      %v1581 = vunpack.c.l.b16 %v1533
      %v1582 = vunpack.c.l.b16 %v1534
      %v1583 = vunpack.c.l.b16 %v1535
      %v1584 = vunpack.c.l.b16 %v1536
      %v1585 = vunpack.c.l.b16 %v1537
      %v1586 = vunpack.c.l.b16 %v1538
      %v1587 = vunpack.c.l.b16 %v1539
      %v1588 = vunpack.c.l.b16 %v1540
      %v1589 = vunpack.c.l.b16 %v1541
      %v1590 = vpack.c.b16 %v1575, %v1574
      %v1591 = vpack.c.b16 %v1577, %v1576
      %v1592 = vpack.c.b16 %v1579, %v1578
      %v1593 = vpack.c.b16 %v1581, %v1580
      %v1594 = vpack.c.b16 %v1583, %v1582
      %v1595 = vpack.c.b16 %v1585, %v1584
      %v1596 = vpack.c.b16 %v1587, %v1586
      %v1597 = vpack.c.b16 %v1589, %v1588
      %1606 = vmatpush.bf16.msra.mxu0 %v1597
      %1607 = vmatpush.bf16.msra.mxu0 %v1596
      %1608 = vmatpush.bf16.msra.mxu0 %v1595
      %1609 = vmatpush.bf16.msra.mxu0 %v1594
      %1610 = vmatpush.bf16.msra.mxu0 %v1593
      %1611 = vmatpush.bf16.msra.mxu0 %v1592
      %1612 = vmatpush.bf16.msra.mxu0 %v1591
      %1613 = vmatpush.bf16.msra.mxu0 %v1590
      %1614 = vmatmul.bf16.gmra.mxu0 %v1550
      %v1615 = vpop.f32.mrf.mxu0
      %v1616 = vadd.f32 0.0, %v1615
      %v1617 = vpop.f32.mrf.mxu0
      %v1618 = vadd.f32 0.0, %v1617
      %1619 = vmatmul.bf16.gmra.mxu0 %v1551
      %v1620 = vpop.f32.mrf.mxu0
      %v1621 = vadd.f32 0.0, %v1620
      %v1622 = vpop.f32.mrf.mxu0
      %v1623 = vadd.f32 0.0, %v1622
      %1624 = vmatmul.bf16.gmra.mxu0 %v1552
      %v1625 = vpop.f32.mrf.mxu0
      %v1626 = vadd.f32 0.0, %v1625
      %v1627 = vpop.f32.mrf.mxu0
      %v1628 = vadd.f32 0.0, %v1627
      %1629 = vmatmul.bf16.gmra.mxu0 %v1553
      %v1630 = vpop.f32.mrf.mxu0
      %v1631 = vadd.f32 0.0, %v1630
      %v1632 = vpop.f32.mrf.mxu0
      %v1633 = vadd.f32 0.0, %v1632
      %1634 = vdwg.mxu0
      %v1635 = vadd.f32 %v1389, %v1616
      %v1636 = vadd.f32 %v1390, %v1618
      %v1637 = vadd.f32 %v1391, %v1621
      %v1638 = vadd.f32 %v1392, %v1623
      %v1639 = vadd.f32 %v1393, %v1626
      %v1640 = vadd.f32 %v1394, %v1628
      %v1641 = vadd.f32 %v1395, %v1631
      %v1642 = vadd.f32 %v1396, %v1633
      %v1643 = vld [vmem:[%s1262] sm:$0xe]
      %v1644 = vld [vmem:[%s1262 + $0x8] sm:$0xe]
      %v1645 = vld [vmem:[%s1262 + $0x10] sm:$0xe]
      %v1646 = vld [vmem:[%s1262 + $0x18] sm:$0xe]
      %v1647 = vld [vmem:[%s1262 + $0x20] sm:$0xe]
      %v1648 = vld [vmem:[%s1262 + $0x28] sm:$0xe]
      %v1649 = vld [vmem:[%s1262 + $0x30] sm:$0xe]
      %v1650 = vld [vmem:[%s1262 + $0x38] sm:$0xe]
      %v1667 = vrot.slane %v1643, 5
      %v1668 = vrot.slane %v1667, 4
      %v1669 = vrot.slane %v1398, 5
      %v1670 = vsel %vm556, %v1668, %v1669
      %v1671 = vrot.slane %v1644, 5
      %v1672 = vrot.slane %v1671, 4
      %v1673 = vrot.slane %v1400, 5
      %v1674 = vsel %vm556, %v1672, %v1673
      %v1675 = vrot.slane %v1645, 5
      %v1676 = vrot.slane %v1675, 4
      %v1677 = vrot.slane %v1402, 5
      %v1678 = vsel %vm556, %v1676, %v1677
      %v1679 = vrot.slane %v1646, 5
      %v1680 = vrot.slane %v1679, 4
      %v1681 = vrot.slane %v1404, 5
      %v1682 = vsel %vm556, %v1680, %v1681
      %v1683 = vrot.slane %v1647, 5
      %v1684 = vrot.slane %v1683, 4
      %v1685 = vrot.slane %v1406, 5
      %v1686 = vsel %vm556, %v1684, %v1685
      %v1687 = vrot.slane %v1648, 5
      %v1688 = vrot.slane %v1687, 4
      %v1689 = vrot.slane %v1408, 5
      %v1690 = vsel %vm556, %v1688, %v1689
      %v1691 = vrot.slane %v1649, 5
      %v1692 = vrot.slane %v1691, 4
      %v1693 = vrot.slane %v1410, 5
      %v1694 = vsel %vm556, %v1692, %v1693
      %v1695 = vrot.slane %v1650, 5
      %v1696 = vrot.slane %v1695, 4
      %v1697 = vrot.slane %v1412, 5
      %v1698 = vsel %vm556, %v1696, %v1697
      %s1699 = scalar_lea.vmem %s1, 512
      %v1700 = vld [vmem:[%s1699] sm:$0xf]
      %v1701 = vld [vmem:[%s1699 + $0x4] sm:$0xf]
      %v1702 = vld [vmem:[%s1699 + $0x8] sm:$0xf]
      %v1703 = vld [vmem:[%s1699 + $0xc] sm:$0xf]
      %v1704 = vld [vmem:[%s1699 + $0x10] sm:$0xf]
      %v1705 = vld [vmem:[%s1699 + $0x14] sm:$0xf]
      %v1706 = vld [vmem:[%s1699 + $0x18] sm:$0xf]
      %v1707 = vld [vmem:[%s1699 + $0x1c] sm:$0xf]
      %v1708 = vld [vmem:[%s1699 + $0x20] sm:$0xf]
      %v1709 = vld [vmem:[%s1699 + $0x24] sm:$0xf]
      %v1710 = vld [vmem:[%s1699 + $0x28] sm:$0xf]
      %v1711 = vld [vmem:[%s1699 + $0x2c] sm:$0xf]
      %v1712 = vld [vmem:[%s1699 + $0x30] sm:$0xf]
      %v1713 = vld [vmem:[%s1699 + $0x34] sm:$0xf]
      %v1714 = vld [vmem:[%s1699 + $0x38] sm:$0xf]
      %v1715 = vld [vmem:[%s1699 + $0x3c] sm:$0xf]
      %v1716 = vunpack.c.l.b16 %v1670
      %v1717 = vunpack.c.l.b16 %v1674
      %v1718 = vunpack.c.l.b16 %v1678
      %v1719 = vunpack.c.l.b16 %v1682
      %v1720 = vunpack.c.l.b16 %v1686
      %v1721 = vunpack.c.l.b16 %v1690
      %v1722 = vunpack.c.l.b16 %v1694
      %v1723 = vunpack.c.l.b16 %v1698
      %v1724 = vpack.c.b16 %v1717, %v1716
      %v1725 = vpack.c.b16 %v1719, %v1718
      %v1726 = vpack.c.b16 %v1721, %v1720
      %v1727 = vpack.c.b16 %v1723, %v1722
      %v1748 = vunpack.c.l.b16 %v1700
      %v1749 = vunpack.c.l.b16 %v1701
      %v1750 = vunpack.c.l.b16 %v1702
      %v1751 = vunpack.c.l.b16 %v1703
      %v1752 = vunpack.c.l.b16 %v1704
      %v1753 = vunpack.c.l.b16 %v1705
      %v1754 = vunpack.c.l.b16 %v1706
      %v1755 = vunpack.c.l.b16 %v1707
      %v1756 = vunpack.c.l.b16 %v1708
      %v1757 = vunpack.c.l.b16 %v1709
      %v1758 = vunpack.c.l.b16 %v1710
      %v1759 = vunpack.c.l.b16 %v1711
      %v1760 = vunpack.c.l.b16 %v1712
      %v1761 = vunpack.c.l.b16 %v1713
      %v1762 = vunpack.c.l.b16 %v1714
      %v1763 = vunpack.c.l.b16 %v1715
      %v1764 = vpack.c.b16 %v1749, %v1748
      %v1765 = vpack.c.b16 %v1751, %v1750
      %v1766 = vpack.c.b16 %v1753, %v1752
      %v1767 = vpack.c.b16 %v1755, %v1754
      %v1768 = vpack.c.b16 %v1757, %v1756
      %v1769 = vpack.c.b16 %v1759, %v1758
      %v1770 = vpack.c.b16 %v1761, %v1760
      %v1771 = vpack.c.b16 %v1763, %v1762
      %1780 = vmatpush.bf16.msra.mxu0 %v1771
      %1781 = vmatpush.bf16.msra.mxu0 %v1770
      %1782 = vmatpush.bf16.msra.mxu0 %v1769
      %1783 = vmatpush.bf16.msra.mxu0 %v1768
      %1784 = vmatpush.bf16.msra.mxu0 %v1767
      %1785 = vmatpush.bf16.msra.mxu0 %v1766
      %1786 = vmatpush.bf16.msra.mxu0 %v1765
      %1787 = vmatpush.bf16.msra.mxu0 %v1764
      %1788 = vmatmul.bf16.gmra.mxu0 %v1724
      %v1789 = vpop.f32.mrf.mxu0
      %v1790 = vadd.f32 0.0, %v1789
      %v1791 = vpop.f32.mrf.mxu0
      %v1792 = vadd.f32 0.0, %v1791
      %1793 = vmatmul.bf16.gmra.mxu0 %v1725
      %v1794 = vpop.f32.mrf.mxu0
      %v1795 = vadd.f32 0.0, %v1794
      %v1796 = vpop.f32.mrf.mxu0
      %v1797 = vadd.f32 0.0, %v1796
      %1798 = vmatmul.bf16.gmra.mxu0 %v1726
      %v1799 = vpop.f32.mrf.mxu0
      %v1800 = vadd.f32 0.0, %v1799
      %v1801 = vpop.f32.mrf.mxu0
      %v1802 = vadd.f32 0.0, %v1801
      %1803 = vmatmul.bf16.gmra.mxu0 %v1727
      %v1804 = vpop.f32.mrf.mxu0
      %v1805 = vadd.f32 0.0, %v1804
      %v1806 = vpop.f32.mrf.mxu0
      %v1807 = vadd.f32 0.0, %v1806
      %1808 = vdwg.mxu0
      %v1809 = vadd.f32 %v1635, %v1790
      %v1810 = vadd.f32 %v1636, %v1792
      %v1811 = vadd.f32 %v1637, %v1795
      %v1812 = vadd.f32 %v1638, %v1797
      %v1813 = vadd.f32 %v1639, %v1800
      %v1814 = vadd.f32 %v1640, %v1802
      %v1815 = vadd.f32 %v1641, %v1805
      %v1816 = vadd.f32 %v1642, %v1807
      %v1818 = vperm.slane %v171, 0
      %v1820 = vadd.f32 %v1809, %v1818
      %v1821 = vadd.f32 %v1810, %v1818
      %v1822 = vadd.f32 %v1811, %v1818
      %v1823 = vadd.f32 %v1812, %v1818
      %v1824 = vadd.f32 %v1813, %v1818
      %v1825 = vadd.f32 %v1814, %v1818
      %v1826 = vadd.f32 %v1815, %v1818
      %v1827 = vadd.f32 %v1816, %v1818
      %v1828 = vmax.f32 %v1820, 0.0
      %v1829 = vmax.f32 %v1821, 0.0
      %v1830 = vmax.f32 %v1822, 0.0
      %v1831 = vmax.f32 %v1823, 0.0
      %v1832 = vmax.f32 %v1824, 0.0
      %v1833 = vmax.f32 %v1825, 0.0
      %v1834 = vmax.f32 %v1826, 0.0
      %v1835 = vmax.f32 %v1827, 0.0
      %v1836 = vpack.c.bf16 %v1828, %v1828
      %v1837 = vpack.c.bf16 %v1829, %v1829
      %v1838 = vpack.c.bf16 %v1830, %v1830
      %v1839 = vpack.c.bf16 %v1831, %v1831
      %v1840 = vpack.c.bf16 %v1832, %v1832
      %v1841 = vpack.c.bf16 %v1833, %v1833
      %v1842 = vpack.c.bf16 %v1834, %v1834
      %v1843 = vpack.c.bf16 %v1835, %v1835
      %1844 = vst [vmem:[%s170] sm:$0xf] %v1836
      %1845 = vst [vmem:[%s170 + $0x4] sm:$0xf] %v1837
      %1846 = vst [vmem:[%s170 + $0x8] sm:$0xf] %v1838
      %1847 = vst [vmem:[%s170 + $0xc] sm:$0xf] %v1839
      %1848 = vst [vmem:[%s170 + $0x10] sm:$0xf] %v1840
      %1849 = vst [vmem:[%s170 + $0x14] sm:$0xf] %v1841
      %1850 = vst [vmem:[%s170 + $0x18] sm:$0xf] %v1842
      %1851 = vst [vmem:[%s170 + $0x1c] sm:$0xf] %v1843
      %p1852 = scmp.lt.s32.totalorder %s14, 1
      %s1853 = scalar_select %p1852, %s14, 1
      %s1854 = smul.addr %s1853, 8
      %s1855 = smul.addr %s1854, 4
      %s1856 = scalar_lea.vmem %s3, %s1855
      // Predicated region
      $region33: #{goctave_forward.5} parent=31 // pred_check
        %p1857 = pneg %p100
      $region34: #{goctave_forward.5} parent=31 // pred_check_branch
        %1859 = sbr.rel (%p1857) target = $region36
      $region35: #{goctave_forward.5} parent=31 // pred_region
        _
      $region36: #{goctave_forward.5} parent=31 // pred_fallthru
        _
    $region32: #{goctave_forward.5} parent=5 // pred_fallthru
      _
    %p1860 = scmp.le.s32.totalorder 2, %s9
    // Predicated region
    $region37: #{goctave_forward.5} parent=5 // pred_check
      %p1861 = pneg %p1860
    $region38: #{goctave_forward.5} parent=5 // pred_check_branch
      %1863 = sbr.rel (%p1861) target = $region40
    $region39: #{goctave_forward.5} parent=5 // pred_region
      %s1864 = ssub.s32 %s9, 2
      // Predicated region
      $region41: #{goctave_forward.5} parent=39 // pred_check
        %p1865 = pneg %p106
      $region42: #{goctave_forward.5} parent=39 // pred_check_branch
        %1867 = sbr.rel (%p1865) target = $region44
      $region43: #{goctave_forward.5} parent=39 // pred_region
        %p1868 = scmp.lt.s32.totalorder %s15, 1
        %s1869 = scalar_select %p1868, %s15, 1
        %s1870 = smul.addr %s1869, 8
        %s1871 = smul.addr %s1870, 4
        %s1872 = scalar_lea.vmem %s3, %s1871
      $region44: #{goctave_forward.5} parent=39 // pred_fallthru
        _
    $region40: #{goctave_forward.5} parent=5 // pred_fallthru
      _
  $region6: #{goctave_forward.5} parent=0 // loop_footer
    %s13 = sadd.s32 1, %s9
  $region7: #{goctave_forward.5} parent=0 // loop_footer_branch
    %8 = sbr.rel target = $region3
  $region8: #{goctave_forward.5} parent=0 // loop_exit
    _

// kernel: goctave_forward.7
$region0: #{goctave_forward.7}
  #allocation0 [shape = 'u32[]', space=smem, size = 0x4, offset = 0x4, fixed_abs, tag = 'smem constant byte address 0x4 - core index']
  #allocation1 [shape = 'u32[72,128]{1,0:T(1,128)}', space=vmem, size = 0x9000, scoped, tag = 'internal scratch']
  %s0 = inlined_call_operand.vmem [shape: bf16[2,9,9,128], index: 0, kind: input, shape index: {}]
  %s1 = inlined_call_operand.vmem [shape: bf16[9,128,128], index: 1, kind: input, shape index: {}]
  %s2 = inlined_call_operand.vmem [shape: f32[1,128], index: 2, kind: input, shape index: {}]
  %s3 = inlined_call_operand.vmem [shape: f32[2,8,8,128], index: 3, kind: output, shape index: {0}]
  %s4 = inlined_call_operand.vmem [shape: f32[2,8,8,128], index: 4, kind: output, shape index: {1}]
  %s5 = inlined_call_operand.vmem [shape: f32[2,8,8,128], index: 5, kind: output, shape index: {2}]
  %s6 = inlined_call_operand.vmem [shape: f32[2,8,8,128], index: 6, kind: output, shape index: {3}]
  %7 = xla_tuple %s3, %s4, %s5, %s6
  %s8 = sld [smem:[#allocation0]]
  $region69: #{goctave_forward.7} parent=0
    _
  %s10 = ssub.s32 1, %s8
  %s11 = scalar_select 0, %s10, %s8
  loop: start=0, step=1, limit=4
  $region2: #{goctave_forward.7} parent=0 // loop_pre_header
    _
  $region3: #{goctave_forward.7} parent=0 // loop_header
    %s13 = sphi 0, %s17
    %p14 = scmp.ge.s32.totalorder %s13, 4
    %s23 = sphi 0, %s25
    %s26 = sphi 0, %s23
    %s27 = sphi 0, %s26
    %s43 = sphi 0, %s27
    %s47 = sphi 0, %s47
    %s49 = sphi 0, %s47
    %s50 = sphi 0, %s49
    %s64 = sphi 0, %s50
    %s68 = sphi 0, %s68
    %s70 = sphi 0, %s68
    %s71 = sphi 0, %s70
    %s85 = sphi 0, %s71
    %s91 = sphi 0, %s93
    %s94 = sphi 0, %s91
    %s95 = sphi 0, %s94
    %s111 = sphi 0, %s95
    %s117 = sphi 0, %s119
    %s120 = sphi 0, %s117
    %s121 = sphi 0, %s120
    %s137 = sphi 0, %s121
    %s143 = sphi 0, %s145
    %s146 = sphi 0, %s143
    %s147 = sphi 0, %s146
    %s163 = sphi 0, %s147
    %s169 = sphi 0, %s171
    %s172 = sphi 0, %s169
    %s173 = sphi 0, %s172
    %s189 = sphi 0, %s173
  $region4: #{goctave_forward.7} parent=0 // loop_header_branch
    %16 = sbr.rel (%p14) target = $region8
  $region5: #{goctave_forward.7} parent=0 // loop_body
    %s18 = ssub.s32 %s13, 1
    %s19 = ssub.s32 %s13, 2
    %s20 = sadd.s32 %s13, 1
    %s21 = ssub.s32 %s13, %s20
    %p22 = scmp.eq.s32.totalorder %s21, 0
    %s24 = sadd.s32 %s23, 1
    %s25 = scalar_select %p22, %s23, %s24
    %p28 = pneg %p22
    %p29 = scmp.eq.s32.totalorder %s13, 1
    %p30 = por %p28, %p29
    %p31 = scmp.ne.s32.totalorder %s23, %s26
    %p32 = scmp.eq.s32.totalorder %s13, 0
    %p33 = por %p31, %p32
    %p34 = scmp.ne.s32.totalorder %s23, %s26
    %p35 = scmp.eq.s32.totalorder %s18, 1
    %p36 = por %p34, %p35
    %p37 = scmp.ne.s32.totalorder %s26, %s27
    %p38 = scmp.eq.s32.totalorder %s18, 0
    %p39 = por %p37, %p38
    %p40 = scmp.ne.s32.totalorder %s26, %s27
    %p41 = scmp.eq.s32.totalorder %s19, 1
    %p42 = por %p40, %p41
    %p44 = scmp.ne.s32.totalorder %s27, %s43
    %p45 = scmp.eq.s32.totalorder %s19, 0
    %p46 = por %p44, %p45
    %s48 = sadd.s32 %s47, 1
    %p51 = scmp.eq.s32.totalorder %s13, 1
    %p52 = scmp.ne.s32.totalorder %s47, %s49
    %p53 = scmp.eq.s32.totalorder %s13, 0
    %p54 = por %p52, %p53
    %p55 = scmp.ne.s32.totalorder %s47, %s49
    %p56 = scmp.eq.s32.totalorder %s18, 1
    %p57 = por %p55, %p56
    %p58 = scmp.ne.s32.totalorder %s49, %s50
    %p59 = scmp.eq.s32.totalorder %s18, 0
    %p60 = por %p58, %p59
    %p61 = scmp.ne.s32.totalorder %s49, %s50
    %p62 = scmp.eq.s32.totalorder %s19, 1
    %p63 = por %p61, %p62
    %p65 = scmp.ne.s32.totalorder %s50, %s64
    %p66 = scmp.eq.s32.totalorder %s19, 0
    %p67 = por %p65, %p66
    %s69 = sadd.s32 %s68, 1
    %p72 = scmp.eq.s32.totalorder %s13, 1
    %p73 = scmp.ne.s32.totalorder %s68, %s70
    %p74 = scmp.eq.s32.totalorder %s13, 0
    %p75 = por %p73, %p74
    %p76 = scmp.ne.s32.totalorder %s68, %s70
    %p77 = scmp.eq.s32.totalorder %s18, 1
    %p78 = por %p76, %p77
    %p79 = scmp.ne.s32.totalorder %s70, %s71
    %p80 = scmp.eq.s32.totalorder %s18, 0
    %p81 = por %p79, %p80
    %p82 = scmp.ne.s32.totalorder %s70, %s71
    %p83 = scmp.eq.s32.totalorder %s19, 1
    %p84 = por %p82, %p83
    %p86 = scmp.ne.s32.totalorder %s71, %s85
    %p87 = scmp.eq.s32.totalorder %s19, 0
    %p88 = por %p86, %p87
    %s89 = ssub.s32 %s13, %s20
    %p90 = scmp.eq.s32.totalorder %s89, 0
    %s92 = sadd.s32 %s91, 1
    %s93 = scalar_select %p90, %s91, %s92
    %p96 = pneg %p90
    %p97 = scmp.eq.s32.totalorder %s13, 1
    %p98 = por %p96, %p97
    %p99 = scmp.ne.s32.totalorder %s91, %s94
    %p100 = scmp.eq.s32.totalorder %s13, 0
    %p101 = por %p99, %p100
    %p102 = scmp.ne.s32.totalorder %s91, %s94
    %p103 = scmp.eq.s32.totalorder %s18, 1
    %p104 = por %p102, %p103
    %p105 = scmp.ne.s32.totalorder %s94, %s95
    %p106 = scmp.eq.s32.totalorder %s18, 0
    %p107 = por %p105, %p106
    %p108 = scmp.ne.s32.totalorder %s94, %s95
    %p109 = scmp.eq.s32.totalorder %s19, 1
    %p110 = por %p108, %p109
    %p112 = scmp.ne.s32.totalorder %s95, %s111
    %p113 = scmp.eq.s32.totalorder %s19, 0
    %p114 = por %p112, %p113
    %s115 = ssub.s32 %s13, %s20
    %p116 = scmp.eq.s32.totalorder %s115, 0
    %s118 = sadd.s32 %s117, 1
    %s119 = scalar_select %p116, %s117, %s118
    %p122 = pneg %p116
    %p123 = scmp.eq.s32.totalorder %s13, 1
    %p124 = por %p122, %p123
    %p125 = scmp.ne.s32.totalorder %s117, %s120
    %p126 = scmp.eq.s32.totalorder %s13, 0
    %p127 = por %p125, %p126
    %p128 = scmp.ne.s32.totalorder %s117, %s120
    %p129 = scmp.eq.s32.totalorder %s18, 1
    %p130 = por %p128, %p129
    %p131 = scmp.ne.s32.totalorder %s120, %s121
    %p132 = scmp.eq.s32.totalorder %s18, 0
    %p133 = por %p131, %p132
    %p134 = scmp.ne.s32.totalorder %s120, %s121
    %p135 = scmp.eq.s32.totalorder %s19, 1
    %p136 = por %p134, %p135
    %p138 = scmp.ne.s32.totalorder %s121, %s137
    %p139 = scmp.eq.s32.totalorder %s19, 0
    %p140 = por %p138, %p139
    %s141 = ssub.s32 %s13, %s20
    %p142 = scmp.eq.s32.totalorder %s141, 0
    %s144 = sadd.s32 %s143, 1
    %s145 = scalar_select %p142, %s143, %s144
    %p148 = pneg %p142
    %p149 = scmp.eq.s32.totalorder %s13, 1
    %p150 = por %p148, %p149
    %p151 = scmp.ne.s32.totalorder %s143, %s146
    %p152 = scmp.eq.s32.totalorder %s13, 0
    %p153 = por %p151, %p152
    %p154 = scmp.ne.s32.totalorder %s143, %s146
    %p155 = scmp.eq.s32.totalorder %s18, 1
    %p156 = por %p154, %p155
    %p157 = scmp.ne.s32.totalorder %s146, %s147
    %p158 = scmp.eq.s32.totalorder %s18, 0
    %p159 = por %p157, %p158
    %p160 = scmp.ne.s32.totalorder %s146, %s147
    %p161 = scmp.eq.s32.totalorder %s19, 1
    %p162 = por %p160, %p161
    %p164 = scmp.ne.s32.totalorder %s147, %s163
    %p165 = scmp.eq.s32.totalorder %s19, 0
    %p166 = por %p164, %p165
    %s167 = ssub.s32 %s13, %s20
    %p168 = scmp.eq.s32.totalorder %s167, 0
    %s170 = sadd.s32 %s169, 1
    %s171 = scalar_select %p168, %s169, %s170
    %p174 = pneg %p168
    %p175 = scmp.eq.s32.totalorder %s13, 1
    %p176 = por %p174, %p175
    %p177 = scmp.ne.s32.totalorder %s169, %s172
    %p178 = scmp.eq.s32.totalorder %s13, 0
    %p179 = por %p177, %p178
    %p180 = scmp.ne.s32.totalorder %s169, %s172
    %p181 = scmp.eq.s32.totalorder %s18, 1
    %p182 = por %p180, %p181
    %p183 = scmp.ne.s32.totalorder %s172, %s173
    %p184 = scmp.eq.s32.totalorder %s18, 0
    %p185 = por %p183, %p184
    %p186 = scmp.ne.s32.totalorder %s172, %s173
    %p187 = scmp.eq.s32.totalorder %s19, 1
    %p188 = por %p186, %p187
    %p190 = scmp.ne.s32.totalorder %s173, %s189
    %p191 = scmp.eq.s32.totalorder %s19, 0
    %p192 = por %p190, %p191
    %p193 = scmp.le.s32.totalorder 1, %s13
    %p194 = scmp.lt.s32.totalorder %s13, 3
    %p195 = pnand %p193, %p194
    %p196 = pneg %p195
    // Predicated region
    $region9: #{goctave_forward.7} parent=5 // pred_check
      _
    $region10: #{goctave_forward.7} parent=5 // pred_check_branch
      %198 = sbr.rel (%p195) target = $region12
    $region11: #{goctave_forward.7} parent=5 // pred_region
      %s199 = ssub.s32 %s13, 1
      // Predicated region
      $region13: #{goctave_forward.7} parent=11 // pred_check
        %p200 = pneg %p60
      $region14: #{goctave_forward.7} parent=11 // pred_check_branch
        %202 = sbr.rel (%p200) target = $region16
      $region15: #{goctave_forward.7} parent=11 // pred_region
        _
      $region16: #{goctave_forward.7} parent=11 // pred_fallthru
        _
      // Predicated region
      $region17: #{goctave_forward.7} parent=11 // pred_check
        %p203 = pneg %p81
      $region18: #{goctave_forward.7} parent=11 // pred_check_branch
        %205 = sbr.rel (%p203) target = $region20
      $region19: #{goctave_forward.7} parent=11 // pred_region
        _
      $region20: #{goctave_forward.7} parent=11 // pred_fallthru
        _
    $region12: #{goctave_forward.7} parent=5 // pred_fallthru
      _
    %p206 = scmp.lt.s32.totalorder %s13, 2
    // Predicated region
    $region21: #{goctave_forward.7} parent=5 // pred_check
      %p207 = pneg %p206
    $region22: #{goctave_forward.7} parent=5 // pred_check_branch
      %209 = sbr.rel (%p207) target = $region24
    $region23: #{goctave_forward.7} parent=5 // pred_region
      // Predicated region
      $region25: #{goctave_forward.7} parent=23 // pred_check
        %p210 = pneg %p33
      $region26: #{goctave_forward.7} parent=23 // pred_check_branch
        %212 = sbr.rel (%p210) target = $region28
      $region27: #{goctave_forward.7} parent=23 // pred_region
        %p213 = scmp.lt.s32.totalorder %s13, 1
        %s214 = scalar_select %p213, %s13, 1
        %s215 = smul.addr %s214, 18
        %s216 = smul.addr %s215, 4
        %s217 = scalar_lea.vmem %s0, %s216
      $region28: #{goctave_forward.7} parent=23 // pred_fallthru
        _
    $region24: #{goctave_forward.7} parent=5 // pred_fallthru
      _
    %p218 = scmp.le.s32.totalorder 1, %s13
    %p219 = scmp.lt.s32.totalorder %s13, 3
    %p220 = pnand %p218, %p219
    %p221 = pneg %p220
    // Predicated region
    $region29: #{goctave_forward.7} parent=5 // pred_check
      _
    $region30: #{goctave_forward.7} parent=5 // pred_check_branch
      %223 = sbr.rel (%p220) target = $region32
    $region31: #{goctave_forward.7} parent=5 // pred_region
      %s224 = ssub.s32 %s13, 1
      %p225 = scmp.lt.s32.totalorder %s18, 1
      %s226 = scalar_select %p225, %s18, 1
      %s227 = smul.addr %s226, 18
      %s228 = smul.addr %s227, 4
      %s229 = scalar_lea.vmem %s0, %s228
      %p230 = pneg %p39
      %p231 = pneg %p36
      %p232 = pneg %p60
      %p233 = pneg %p57
      %p234 = pneg %p81
      %p235 = pneg %p78
      %p236 = pneg %p107
      %p237 = pneg %p104
      %p238 = scmp.lt.s32.totalorder %s18, 1
      %s239 = scalar_select %p238, %s18, 1
      %s240 = smul.addr %s239, 8
      %s241 = smul.addr %s240, 8
      %s242 = scalar_lea.vmem %s3, %s241
      %p243 = pneg %p133
      %p244 = pneg %p130
      %p245 = scmp.lt.s32.totalorder %s18, 1
      %s246 = scalar_select %p245, %s18, 1
      %s247 = smul.addr %s246, 8
      %s248 = smul.addr %s247, 8
      %s249 = scalar_lea.vmem %s4, %s248
      %p250 = pneg %p159
      %p251 = pneg %p156
      %p252 = scmp.lt.s32.totalorder %s18, 1
      %s253 = scalar_select %p252, %s18, 1
      %s254 = smul.addr %s253, 8
      %s255 = smul.addr %s254, 8
      %s256 = scalar_lea.vmem %s5, %s255
      %p257 = pneg %p185
      %p258 = pneg %p182
      %p259 = scmp.lt.s32.totalorder %s18, 1
      %s260 = scalar_select %p259, %s18, 1
      %s261 = smul.addr %s260, 8
      %s262 = smul.addr %s261, 8
      %s263 = scalar_lea.vmem %s6, %s262
      %p264 = scmp.lt.s32.totalorder %s18, 1
      %s265 = scalar_select %p264, %s18, 1
      %s266 = smul.addr %s265, 18
      %s267 = smul.addr %s266, 4
      %s268 = scalar_lea.vmem %s0, %s267
      %p269 = scmp.lt.s32.totalorder %s18, 1
      %s270 = scalar_select %p269, %s18, 1
      %s271 = smul.addr %s270, 8
      %s272 = smul.addr %s271, 8
      %s273 = scalar_lea.vmem %s3, %s272
      %p274 = scmp.lt.s32.totalorder %s18, 1
      %s275 = scalar_select %p274, %s18, 1
      %s276 = smul.addr %s275, 8
      %s277 = smul.addr %s276, 8
      %s278 = scalar_lea.vmem %s4, %s277
      %p279 = scmp.lt.s32.totalorder %s18, 1
      %s280 = scalar_select %p279, %s18, 1
      %s281 = smul.addr %s280, 8
      %s282 = smul.addr %s281, 8
      %s283 = scalar_lea.vmem %s5, %s282
      %p284 = scmp.lt.s32.totalorder %s18, 1
      %s285 = scalar_select %p284, %s18, 1
      %s286 = smul.addr %s285, 8
      %s287 = smul.addr %s286, 8
      %s288 = scalar_lea.vmem %s6, %s287
      %v289 = vld [vmem:[%s2] sm:$0x1]
      %v290 = vld [vmem:[%s268] sm:$0xf]
      %v291 = vld [vmem:[%s268 + $0x8] sm:$0xf]
      %v292 = vld [vmem:[%s268 + $0x10] sm:$0xf]
      %v293 = vld [vmem:[%s268 + $0x18] sm:$0xf]
      %v294 = vld [vmem:[%s268 + $0x20] sm:$0xf]
      %v295 = vld [vmem:[%s268 + $0x28] sm:$0xf]
      %v296 = vld [vmem:[%s268 + $0x30] sm:$0xf]
      %v297 = vld [vmem:[%s268 + $0x38] sm:$0xf]
      %s298 = scalar_lea.vmem %s1, 256
      %v299 = vld [vmem:[%s298] sm:$0xf]
      %v300 = vld [vmem:[%s298 + $0x4] sm:$0xf]
      %v301 = vld [vmem:[%s298 + $0x8] sm:$0xf]
      %v302 = vld [vmem:[%s298 + $0xc] sm:$0xf]
      %v303 = vld [vmem:[%s298 + $0x10] sm:$0xf]
      %v304 = vld [vmem:[%s298 + $0x14] sm:$0xf]
      %v305 = vld [vmem:[%s298 + $0x18] sm:$0xf]
      %v306 = vld [vmem:[%s298 + $0x1c] sm:$0xf]
      %v307 = vld [vmem:[%s298 + $0x20] sm:$0xf]
      %v308 = vld [vmem:[%s298 + $0x24] sm:$0xf]
      %v309 = vld [vmem:[%s298 + $0x28] sm:$0xf]
      %v310 = vld [vmem:[%s298 + $0x2c] sm:$0xf]
      %v311 = vld [vmem:[%s298 + $0x30] sm:$0xf]
      %v312 = vld [vmem:[%s298 + $0x34] sm:$0xf]
      %v313 = vld [vmem:[%s298 + $0x38] sm:$0xf]
      %v314 = vld [vmem:[%s298 + $0x3c] sm:$0xf]
      %v316 = vperm.slane %v289, 0
      %v326 = vunpack.c.l.b16 %v290
      %v327 = vunpack.c.l.b16 %v291
      %v328 = vunpack.c.l.b16 %v292
      %v329 = vunpack.c.l.b16 %v293
      %v330 = vunpack.c.l.b16 %v294
      %v331 = vunpack.c.l.b16 %v295
      %v332 = vunpack.c.l.b16 %v296
      %v333 = vunpack.c.l.b16 %v297
      %v334 = vpack.c.b16 %v327, %v326
      %v335 = vpack.c.b16 %v329, %v328
      %v336 = vpack.c.b16 %v331, %v330
      %v337 = vpack.c.b16 %v333, %v332
      %v358 = vunpack.c.l.b16 %v299
      %v359 = vunpack.c.l.b16 %v300
      %v360 = vunpack.c.l.b16 %v301
      %v361 = vunpack.c.l.b16 %v302
      %v362 = vunpack.c.l.b16 %v303
      %v363 = vunpack.c.l.b16 %v304
      %v364 = vunpack.c.l.b16 %v305
      %v365 = vunpack.c.l.b16 %v306
      %v366 = vunpack.c.l.b16 %v307
      %v367 = vunpack.c.l.b16 %v308
      %v368 = vunpack.c.l.b16 %v309
      %v369 = vunpack.c.l.b16 %v310
      %v370 = vunpack.c.l.b16 %v311
      %v371 = vunpack.c.l.b16 %v312
      %v372 = vunpack.c.l.b16 %v313
      %v373 = vunpack.c.l.b16 %v314
      %v374 = vpack.c.b16 %v359, %v358
      %v375 = vpack.c.b16 %v361, %v360
      %v376 = vpack.c.b16 %v363, %v362
      %v377 = vpack.c.b16 %v365, %v364
      %v378 = vpack.c.b16 %v367, %v366
      %v379 = vpack.c.b16 %v369, %v368
      %v380 = vpack.c.b16 %v371, %v370
      %v381 = vpack.c.b16 %v373, %v372
      %390 = vmatpush.bf16.msra.mxu0 %v381
      %391 = vmatpush.bf16.msra.mxu0 %v380
      %392 = vmatpush.bf16.msra.mxu0 %v379
      %393 = vmatpush.bf16.msra.mxu0 %v378
      %394 = vmatpush.bf16.msra.mxu0 %v377
      %395 = vmatpush.bf16.msra.mxu0 %v376
      %396 = vmatpush.bf16.msra.mxu0 %v375
      %397 = vmatpush.bf16.msra.mxu0 %v374
      %398 = vmatmul.bf16.gmra.mxu0 %v334
      %v399 = vpop.f32.mrf.mxu0
      %v400 = vadd.f32 %v316, %v399
      %v401 = vpop.f32.mrf.mxu0
      %v402 = vadd.f32 %v316, %v401
      %403 = vmatmul.bf16.gmra.mxu0 %v335
      %v404 = vpop.f32.mrf.mxu0
      %v405 = vadd.f32 %v316, %v404
      %v406 = vpop.f32.mrf.mxu0
      %v407 = vadd.f32 %v316, %v406
      %408 = vmatmul.bf16.gmra.mxu0 %v336
      %v409 = vpop.f32.mrf.mxu0
      %v410 = vadd.f32 %v316, %v409
      %v411 = vpop.f32.mrf.mxu0
      %v412 = vadd.f32 %v316, %v411
      %413 = vmatmul.bf16.gmra.mxu0 %v337
      %v414 = vpop.f32.mrf.mxu0
      %v415 = vadd.f32 %v316, %v414
      %v416 = vpop.f32.mrf.mxu0
      %v417 = vadd.f32 %v316, %v416
      %418 = vdwg.mxu0
      %v419 = vmax.f32 %v400, 0.0
      %v420 = vmax.f32 %v402, 0.0
      %v421 = vmax.f32 %v405, 0.0
      %v422 = vmax.f32 %v407, 0.0
      %v423 = vmax.f32 %v410, 0.0
      %v424 = vmax.f32 %v412, 0.0
      %v425 = vmax.f32 %v415, 0.0
      %v426 = vmax.f32 %v417, 0.0
      %427 = vst [vmem:[%s273] sm:$0xff] %v419
      %428 = vst [vmem:[%s273 + $0x8] sm:$0xff] %v420
      %429 = vst [vmem:[%s273 + $0x10] sm:$0xff] %v421
      %430 = vst [vmem:[%s273 + $0x18] sm:$0xff] %v422
      %431 = vst [vmem:[%s273 + $0x20] sm:$0xff] %v423
      %432 = vst [vmem:[%s273 + $0x28] sm:$0xff] %v424
      %433 = vst [vmem:[%s273 + $0x30] sm:$0xff] %v425
      %434 = vst [vmem:[%s273 + $0x38] sm:$0xff] %v426
      %v435 = vld [vmem:[%s268] sm:$0xf]
      %v436 = vld [vmem:[%s268 + $0x4] sm:$0x1]
      %v437 = vld [vmem:[%s268 + $0x8] sm:$0xf]
      %v438 = vld [vmem:[%s268 + $0xc] sm:$0x1]
      %v439 = vld [vmem:[%s268 + $0x10] sm:$0xf]
      %v440 = vld [vmem:[%s268 + $0x14] sm:$0x1]
      %v441 = vld [vmem:[%s268 + $0x18] sm:$0xf]
      %v442 = vld [vmem:[%s268 + $0x1c] sm:$0x1]
      %v443 = vld [vmem:[%s268 + $0x20] sm:$0xf]
      %v444 = vld [vmem:[%s268 + $0x24] sm:$0x1]
      %v445 = vld [vmem:[%s268 + $0x28] sm:$0xf]
      %v446 = vld [vmem:[%s268 + $0x2c] sm:$0x1]
      %v447 = vld [vmem:[%s268 + $0x30] sm:$0xf]
      %v448 = vld [vmem:[%s268 + $0x34] sm:$0x1]
      %v449 = vld [vmem:[%s268 + $0x38] sm:$0xf]
      %v450 = vld [vmem:[%s268 + $0x3c] sm:$0x1]
      %vm451 = vsmask.f32 3328
      %vm452 = vsmask.f32 7440
      %vm453 = vmor %vm451, %vm452
      %v455 = vshrl.u32 %v435, 16
      %v457 = vrot.slane %v455, 4
      %v458 = vshll.u32 %v435, 16
      %v460 = vrot.slane %v458, 5
      %v461 = vor.u32 %v457, %v460
      %v462 = vrot.slane %v461, 4
      %v464 = vshll.u32 %v436, 16
      %v466 = vrot.slane %v464, 5
      %v467 = vsel %vm453, %v462, %v466
      %v469 = vshrl.u32 %v437, 16
      %v471 = vrot.slane %v469, 4
      %v472 = vshll.u32 %v437, 16
      %v474 = vrot.slane %v472, 5
      %v475 = vor.u32 %v471, %v474
      %v476 = vrot.slane %v475, 4
      %v478 = vshll.u32 %v438, 16
      %v480 = vrot.slane %v478, 5
      %v481 = vsel %vm453, %v476, %v480
      %v483 = vshrl.u32 %v439, 16
      %v485 = vrot.slane %v483, 4
      %v486 = vshll.u32 %v439, 16
      %v488 = vrot.slane %v486, 5
      %v489 = vor.u32 %v485, %v488
      %v490 = vrot.slane %v489, 4
      %v492 = vshll.u32 %v440, 16
      %v494 = vrot.slane %v492, 5
      %v495 = vsel %vm453, %v490, %v494
      %v497 = vshrl.u32 %v441, 16
      %v499 = vrot.slane %v497, 4
      %v500 = vshll.u32 %v441, 16
      %v502 = vrot.slane %v500, 5
      %v503 = vor.u32 %v499, %v502
      %v504 = vrot.slane %v503, 4
      %v506 = vshll.u32 %v442, 16
      %v508 = vrot.slane %v506, 5
      %v509 = vsel %vm453, %v504, %v508
      %v511 = vshrl.u32 %v443, 16
      %v513 = vrot.slane %v511, 4
      %v514 = vshll.u32 %v443, 16
      %v516 = vrot.slane %v514, 5
      %v517 = vor.u32 %v513, %v516
      %v518 = vrot.slane %v517, 4
      %v520 = vshll.u32 %v444, 16
      %v522 = vrot.slane %v520, 5
      %v523 = vsel %vm453, %v518, %v522
      %v525 = vshrl.u32 %v445, 16
      %v527 = vrot.slane %v525, 4
      %v528 = vshll.u32 %v445, 16
      %v530 = vrot.slane %v528, 5
      %v531 = vor.u32 %v527, %v530
      %v532 = vrot.slane %v531, 4
      %v534 = vshll.u32 %v446, 16
      %v536 = vrot.slane %v534, 5
      %v537 = vsel %vm453, %v532, %v536
      %v539 = vshrl.u32 %v447, 16
      %v541 = vrot.slane %v539, 4
      %v542 = vshll.u32 %v447, 16
      %v544 = vrot.slane %v542, 5
      %v545 = vor.u32 %v541, %v544
      %v546 = vrot.slane %v545, 4
      %v548 = vshll.u32 %v448, 16
      %v550 = vrot.slane %v548, 5
      %v551 = vsel %vm453, %v546, %v550
      %v553 = vshrl.u32 %v449, 16
      %v555 = vrot.slane %v553, 4
      %v556 = vshll.u32 %v449, 16
      %v558 = vrot.slane %v556, 5
      %v559 = vor.u32 %v555, %v558
      %v560 = vrot.slane %v559, 4
      %v562 = vshll.u32 %v450, 16
      %v564 = vrot.slane %v562, 5
      %v565 = vsel %vm453, %v560, %v564
      %s566 = scalar_lea.vmem %s1, 192
      %v567 = vld [vmem:[%s566] sm:$0xf]
      %v568 = vld [vmem:[%s566 + $0x4] sm:$0xf]
      %v569 = vld [vmem:[%s566 + $0x8] sm:$0xf]
      %v570 = vld [vmem:[%s566 + $0xc] sm:$0xf]
      %v571 = vld [vmem:[%s566 + $0x10] sm:$0xf]
      %v572 = vld [vmem:[%s566 + $0x14] sm:$0xf]
      %v573 = vld [vmem:[%s566 + $0x18] sm:$0xf]
      %v574 = vld [vmem:[%s566 + $0x1c] sm:$0xf]
      %v575 = vld [vmem:[%s566 + $0x20] sm:$0xf]
      %v576 = vld [vmem:[%s566 + $0x24] sm:$0xf]
      %v577 = vld [vmem:[%s566 + $0x28] sm:$0xf]
      %v578 = vld [vmem:[%s566 + $0x2c] sm:$0xf]
      %v579 = vld [vmem:[%s566 + $0x30] sm:$0xf]
      %v580 = vld [vmem:[%s566 + $0x34] sm:$0xf]
      %v581 = vld [vmem:[%s566 + $0x38] sm:$0xf]
      %v582 = vld [vmem:[%s566 + $0x3c] sm:$0xf]
      %s583 = scalar_lea.vmem %s1, 320
      %v584 = vld [vmem:[%s583] sm:$0xf]
      %v585 = vld [vmem:[%s583 + $0x4] sm:$0xf]
      %v586 = vld [vmem:[%s583 + $0x8] sm:$0xf]
      %v587 = vld [vmem:[%s583 + $0xc] sm:$0xf]
      %v588 = vld [vmem:[%s583 + $0x10] sm:$0xf]
      %v589 = vld [vmem:[%s583 + $0x14] sm:$0xf]
      %v590 = vld [vmem:[%s583 + $0x18] sm:$0xf]
      %v591 = vld [vmem:[%s583 + $0x1c] sm:$0xf]
      %v592 = vld [vmem:[%s583 + $0x20] sm:$0xf]
      %v593 = vld [vmem:[%s583 + $0x24] sm:$0xf]
      %v594 = vld [vmem:[%s583 + $0x28] sm:$0xf]
      %v595 = vld [vmem:[%s583 + $0x2c] sm:$0xf]
      %v596 = vld [vmem:[%s583 + $0x30] sm:$0xf]
      %v597 = vld [vmem:[%s583 + $0x34] sm:$0xf]
      %v598 = vld [vmem:[%s583 + $0x38] sm:$0xf]
      %v599 = vld [vmem:[%s583 + $0x3c] sm:$0xf]
      %v608 = vunpack.c.l.b16 %v435
      %v609 = vunpack.c.l.b16 %v437
      %v610 = vunpack.c.l.b16 %v439
      %v611 = vunpack.c.l.b16 %v441
      %v612 = vunpack.c.l.b16 %v443
      %v613 = vunpack.c.l.b16 %v445
      %v614 = vunpack.c.l.b16 %v447
      %v615 = vunpack.c.l.b16 %v449
      %v616 = vpack.c.b16 %v609, %v608
      %v617 = vpack.c.b16 %v611, %v610
      %v618 = vpack.c.b16 %v613, %v612
      %v619 = vpack.c.b16 %v615, %v614
      %v640 = vunpack.c.l.b16 %v584
      %v641 = vunpack.c.l.b16 %v585
      %v642 = vunpack.c.l.b16 %v586
      %v643 = vunpack.c.l.b16 %v587
      %v644 = vunpack.c.l.b16 %v588
      %v645 = vunpack.c.l.b16 %v589
      %v646 = vunpack.c.l.b16 %v590
      %v647 = vunpack.c.l.b16 %v591
      %v648 = vunpack.c.l.b16 %v592
      %v649 = vunpack.c.l.b16 %v593
      %v650 = vunpack.c.l.b16 %v594
      %v651 = vunpack.c.l.b16 %v595
      %v652 = vunpack.c.l.b16 %v596
      %v653 = vunpack.c.l.b16 %v597
      %v654 = vunpack.c.l.b16 %v598
      %v655 = vunpack.c.l.b16 %v599
      %v656 = vpack.c.b16 %v641, %v640
      %v657 = vpack.c.b16 %v643, %v642
      %v658 = vpack.c.b16 %v645, %v644
      %v659 = vpack.c.b16 %v647, %v646
      %v660 = vpack.c.b16 %v649, %v648
      %v661 = vpack.c.b16 %v651, %v650
      %v662 = vpack.c.b16 %v653, %v652
      %v663 = vpack.c.b16 %v655, %v654
      %672 = vmatpush.bf16.msra.mxu0 %v663
      %673 = vmatpush.bf16.msra.mxu0 %v662
      %674 = vmatpush.bf16.msra.mxu0 %v661
      %675 = vmatpush.bf16.msra.mxu0 %v660
      %676 = vmatpush.bf16.msra.mxu0 %v659
      %677 = vmatpush.bf16.msra.mxu0 %v658
      %678 = vmatpush.bf16.msra.mxu0 %v657
      %679 = vmatpush.bf16.msra.mxu0 %v656
      %680 = vmatmul.bf16.gmra.mxu0 %v616
      %v681 = vpop.f32.mrf.mxu0
      %v682 = vadd.f32 0.0, %v681
      %v683 = vpop.f32.mrf.mxu0
      %v684 = vadd.f32 0.0, %v683
      %685 = vmatmul.bf16.gmra.mxu0 %v617
      %v686 = vpop.f32.mrf.mxu0
      %v687 = vadd.f32 0.0, %v686
      %v688 = vpop.f32.mrf.mxu0
      %v689 = vadd.f32 0.0, %v688
      %690 = vmatmul.bf16.gmra.mxu0 %v618
      %v691 = vpop.f32.mrf.mxu0
      %v692 = vadd.f32 0.0, %v691
      %v693 = vpop.f32.mrf.mxu0
      %v694 = vadd.f32 0.0, %v693
      %695 = vmatmul.bf16.gmra.mxu0 %v619
      %v696 = vpop.f32.mrf.mxu0
      %v697 = vadd.f32 0.0, %v696
      %v698 = vpop.f32.mrf.mxu0
      %v699 = vadd.f32 0.0, %v698
      %700 = vdwg.mxu0
      %v701 = vunpack.c.l.b16 %v467
      %v702 = vunpack.c.l.b16 %v481
      %v703 = vunpack.c.l.b16 %v495
      %v704 = vunpack.c.l.b16 %v509
      %v705 = vunpack.c.l.b16 %v523
      %v706 = vunpack.c.l.b16 %v537
      %v707 = vunpack.c.l.b16 %v551
      %v708 = vunpack.c.l.b16 %v565
      %v709 = vpack.c.b16 %v702, %v701
      %v710 = vpack.c.b16 %v704, %v703
      %v711 = vpack.c.b16 %v706, %v705
      %v712 = vpack.c.b16 %v708, %v707
      %v733 = vunpack.c.l.b16 %v567
      %v734 = vunpack.c.l.b16 %v568
      %v735 = vunpack.c.l.b16 %v569
      %v736 = vunpack.c.l.b16 %v570
      %v737 = vunpack.c.l.b16 %v571
      %v738 = vunpack.c.l.b16 %v572
      %v739 = vunpack.c.l.b16 %v573
      %v740 = vunpack.c.l.b16 %v574
      %v741 = vunpack.c.l.b16 %v575
      %v742 = vunpack.c.l.b16 %v576
      %v743 = vunpack.c.l.b16 %v577
      %v744 = vunpack.c.l.b16 %v578
      %v745 = vunpack.c.l.b16 %v579
      %v746 = vunpack.c.l.b16 %v580
      %v747 = vunpack.c.l.b16 %v581
      %v748 = vunpack.c.l.b16 %v582
      %v749 = vpack.c.b16 %v734, %v733
      %v750 = vpack.c.b16 %v736, %v735
      %v751 = vpack.c.b16 %v738, %v737
      %v752 = vpack.c.b16 %v740, %v739
      %v753 = vpack.c.b16 %v742, %v741
      %v754 = vpack.c.b16 %v744, %v743
      %v755 = vpack.c.b16 %v746, %v745
      %v756 = vpack.c.b16 %v748, %v747
      %765 = vmatpush.bf16.msra.mxu0 %v756
      %766 = vmatpush.bf16.msra.mxu0 %v755
      %767 = vmatpush.bf16.msra.mxu0 %v754
      %768 = vmatpush.bf16.msra.mxu0 %v753
      %769 = vmatpush.bf16.msra.mxu0 %v752
      %770 = vmatpush.bf16.msra.mxu0 %v751
      %771 = vmatpush.bf16.msra.mxu0 %v750
      %772 = vmatpush.bf16.msra.mxu0 %v749
      %773 = vmatmul.bf16.gmra.mxu0 %v709
      %v774 = vpop.f32.mrf.mxu0
      %v775 = vadd.f32 %v682, %v774
      %v776 = vpop.f32.mrf.mxu0
      %v777 = vadd.f32 %v684, %v776
      %778 = vmatmul.bf16.gmra.mxu0 %v710
      %v779 = vpop.f32.mrf.mxu0
      %v780 = vadd.f32 %v687, %v779
      %v781 = vpop.f32.mrf.mxu0
      %v782 = vadd.f32 %v689, %v781
      %783 = vmatmul.bf16.gmra.mxu0 %v711
      %v784 = vpop.f32.mrf.mxu0
      %v785 = vadd.f32 %v692, %v784
      %v786 = vpop.f32.mrf.mxu0
      %v787 = vadd.f32 %v694, %v786
      %788 = vmatmul.bf16.gmra.mxu0 %v712
      %v789 = vpop.f32.mrf.mxu0
      %v790 = vadd.f32 %v697, %v789
      %v791 = vpop.f32.mrf.mxu0
      %v792 = vadd.f32 %v699, %v791
      %793 = vdwg.mxu0
      %v794 = vadd.f32 %v775, %v316
      %v795 = vadd.f32 %v777, %v316
      %v796 = vadd.f32 %v780, %v316
      %v797 = vadd.f32 %v782, %v316
      %v798 = vadd.f32 %v785, %v316
      %v799 = vadd.f32 %v787, %v316
      %v800 = vadd.f32 %v790, %v316
      %v801 = vadd.f32 %v792, %v316
      %v802 = vmax.f32 %v794, 0.0
      %v803 = vmax.f32 %v795, 0.0
      %v804 = vmax.f32 %v796, 0.0
      %v805 = vmax.f32 %v797, 0.0
      %v806 = vmax.f32 %v798, 0.0
      %v807 = vmax.f32 %v799, 0.0
      %v808 = vmax.f32 %v800, 0.0
      %v809 = vmax.f32 %v801, 0.0
      %810 = vst [vmem:[%s278] sm:$0xff] %v802
      %811 = vst [vmem:[%s278 + $0x8] sm:$0xff] %v803
      %812 = vst [vmem:[%s278 + $0x10] sm:$0xff] %v804
      %813 = vst [vmem:[%s278 + $0x18] sm:$0xff] %v805
      %814 = vst [vmem:[%s278 + $0x20] sm:$0xff] %v806
      %815 = vst [vmem:[%s278 + $0x28] sm:$0xff] %v807
      %816 = vst [vmem:[%s278 + $0x30] sm:$0xff] %v808
      %817 = vst [vmem:[%s278 + $0x38] sm:$0xff] %v809
      %s818 = scalar_lea.vmem %s268, 8
      %v819 = vld [vmem:[%s818] sm:$0xf]
      %v820 = vld [vmem:[%s818 + $0x8] sm:$0xf]
      %v821 = vld [vmem:[%s818 + $0x10] sm:$0xf]
      %v822 = vld [vmem:[%s818 + $0x18] sm:$0xf]
      %v823 = vld [vmem:[%s818 + $0x20] sm:$0xf]
      %v824 = vld [vmem:[%s818 + $0x28] sm:$0xf]
      %v825 = vld [vmem:[%s818 + $0x30] sm:$0xf]
      %v826 = vld [vmem:[%s818 + $0x38] sm:$0xf]
      %s827 = scalar_lea.vmem %s1, 64
      %v828 = vld [vmem:[%s827] sm:$0xf]
      %v829 = vld [vmem:[%s827 + $0x4] sm:$0xf]
      %v830 = vld [vmem:[%s827 + $0x8] sm:$0xf]
      %v831 = vld [vmem:[%s827 + $0xc] sm:$0xf]
      %v832 = vld [vmem:[%s827 + $0x10] sm:$0xf]
      %v833 = vld [vmem:[%s827 + $0x14] sm:$0xf]
      %v834 = vld [vmem:[%s827 + $0x18] sm:$0xf]
      %v835 = vld [vmem:[%s827 + $0x1c] sm:$0xf]
      %v836 = vld [vmem:[%s827 + $0x20] sm:$0xf]
      %v837 = vld [vmem:[%s827 + $0x24] sm:$0xf]
      %v838 = vld [vmem:[%s827 + $0x28] sm:$0xf]
      %v839 = vld [vmem:[%s827 + $0x2c] sm:$0xf]
      %v840 = vld [vmem:[%s827 + $0x30] sm:$0xf]
      %v841 = vld [vmem:[%s827 + $0x34] sm:$0xf]
      %v842 = vld [vmem:[%s827 + $0x38] sm:$0xf]
      %v843 = vld [vmem:[%s827 + $0x3c] sm:$0xf]
      %v844 = vld [vmem:[%s268] sm:$0xf]
      %v845 = vld [vmem:[%s268 + $0x8] sm:$0xf]
      %v846 = vld [vmem:[%s268 + $0x10] sm:$0xf]
      %v847 = vld [vmem:[%s268 + $0x18] sm:$0xf]
      %v848 = vld [vmem:[%s268 + $0x20] sm:$0xf]
      %v849 = vld [vmem:[%s268 + $0x28] sm:$0xf]
      %v850 = vld [vmem:[%s268 + $0x30] sm:$0xf]
      %v851 = vld [vmem:[%s268 + $0x38] sm:$0xf]
      %s852 = scalar_lea.vmem %s1, 448
      %v853 = vld [vmem:[%s852] sm:$0xf]
      %v854 = vld [vmem:[%s852 + $0x4] sm:$0xf]
      %v855 = vld [vmem:[%s852 + $0x8] sm:$0xf]
      %v856 = vld [vmem:[%s852 + $0xc] sm:$0xf]
      %v857 = vld [vmem:[%s852 + $0x10] sm:$0xf]
      %v858 = vld [vmem:[%s852 + $0x14] sm:$0xf]
      %v859 = vld [vmem:[%s852 + $0x18] sm:$0xf]
      %v860 = vld [vmem:[%s852 + $0x1c] sm:$0xf]
      %v861 = vld [vmem:[%s852 + $0x20] sm:$0xf]
      %v862 = vld [vmem:[%s852 + $0x24] sm:$0xf]
      %v863 = vld [vmem:[%s852 + $0x28] sm:$0xf]
      %v864 = vld [vmem:[%s852 + $0x2c] sm:$0xf]
      %v865 = vld [vmem:[%s852 + $0x30] sm:$0xf]
      %v866 = vld [vmem:[%s852 + $0x34] sm:$0xf]
      %v867 = vld [vmem:[%s852 + $0x38] sm:$0xf]
      %v868 = vld [vmem:[%s852 + $0x3c] sm:$0xf]
      %v877 = vunpack.c.l.b16 %v844
      %v878 = vunpack.c.l.b16 %v845
      %v879 = vunpack.c.l.b16 %v846
      %v880 = vunpack.c.l.b16 %v847
      %v881 = vunpack.c.l.b16 %v848
      %v882 = vunpack.c.l.b16 %v849
      %v883 = vunpack.c.l.b16 %v850
      %v884 = vunpack.c.l.b16 %v851
      %v885 = vpack.c.b16 %v878, %v877
      %v886 = vpack.c.b16 %v880, %v879
      %v887 = vpack.c.b16 %v882, %v881
      %v888 = vpack.c.b16 %v884, %v883
      %v909 = vunpack.c.l.b16 %v853
      %v910 = vunpack.c.l.b16 %v854
      %v911 = vunpack.c.l.b16 %v855
      %v912 = vunpack.c.l.b16 %v856
      %v913 = vunpack.c.l.b16 %v857
      %v914 = vunpack.c.l.b16 %v858
      %v915 = vunpack.c.l.b16 %v859
      %v916 = vunpack.c.l.b16 %v860
      %v917 = vunpack.c.l.b16 %v861
      %v918 = vunpack.c.l.b16 %v862
      %v919 = vunpack.c.l.b16 %v863
      %v920 = vunpack.c.l.b16 %v864
      %v921 = vunpack.c.l.b16 %v865
      %v922 = vunpack.c.l.b16 %v866
      %v923 = vunpack.c.l.b16 %v867
      %v924 = vunpack.c.l.b16 %v868
      %v925 = vpack.c.b16 %v910, %v909
      %v926 = vpack.c.b16 %v912, %v911
      %v927 = vpack.c.b16 %v914, %v913
      %v928 = vpack.c.b16 %v916, %v915
      %v929 = vpack.c.b16 %v918, %v917
      %v930 = vpack.c.b16 %v920, %v919
      %v931 = vpack.c.b16 %v922, %v921
      %v932 = vpack.c.b16 %v924, %v923
      %941 = vmatpush.bf16.msra.mxu0 %v932
      %942 = vmatpush.bf16.msra.mxu0 %v931
      %943 = vmatpush.bf16.msra.mxu0 %v930
      %944 = vmatpush.bf16.msra.mxu0 %v929
      %945 = vmatpush.bf16.msra.mxu0 %v928
      %946 = vmatpush.bf16.msra.mxu0 %v927
      %947 = vmatpush.bf16.msra.mxu0 %v926
      %948 = vmatpush.bf16.msra.mxu0 %v925
      %949 = vmatmul.bf16.gmra.mxu0 %v885
      %v950 = vpop.f32.mrf.mxu0
      %v951 = vadd.f32 0.0, %v950
      %v952 = vpop.f32.mrf.mxu0
      %v953 = vadd.f32 0.0, %v952
      %954 = vmatmul.bf16.gmra.mxu0 %v886
      %v955 = vpop.f32.mrf.mxu0
      %v956 = vadd.f32 0.0, %v955
      %v957 = vpop.f32.mrf.mxu0
      %v958 = vadd.f32 0.0, %v957
      %959 = vmatmul.bf16.gmra.mxu0 %v887
      %v960 = vpop.f32.mrf.mxu0
      %v961 = vadd.f32 0.0, %v960
      %v962 = vpop.f32.mrf.mxu0
      %v963 = vadd.f32 0.0, %v962
      %964 = vmatmul.bf16.gmra.mxu0 %v888
      %v965 = vpop.f32.mrf.mxu0
      %v966 = vadd.f32 0.0, %v965
      %v967 = vpop.f32.mrf.mxu0
      %v968 = vadd.f32 0.0, %v967
      %969 = vdwg.mxu0
      %v978 = vunpack.c.l.b16 %v819
      %v979 = vunpack.c.l.b16 %v820
      %v980 = vunpack.c.l.b16 %v821
      %v981 = vunpack.c.l.b16 %v822
      %v982 = vunpack.c.l.b16 %v823
      %v983 = vunpack.c.l.b16 %v824
      %v984 = vunpack.c.l.b16 %v825
      %v985 = vunpack.c.l.b16 %v826
      %v986 = vpack.c.b16 %v979, %v978
      %v987 = vpack.c.b16 %v981, %v980
      %v988 = vpack.c.b16 %v983, %v982
      %v989 = vpack.c.b16 %v985, %v984
      %v1010 = vunpack.c.l.b16 %v828
      %v1011 = vunpack.c.l.b16 %v829
      %v1012 = vunpack.c.l.b16 %v830
      %v1013 = vunpack.c.l.b16 %v831
      %v1014 = vunpack.c.l.b16 %v832
      %v1015 = vunpack.c.l.b16 %v833
      %v1016 = vunpack.c.l.b16 %v834
      %v1017 = vunpack.c.l.b16 %v835
      %v1018 = vunpack.c.l.b16 %v836
      %v1019 = vunpack.c.l.b16 %v837
      %v1020 = vunpack.c.l.b16 %v838
      %v1021 = vunpack.c.l.b16 %v839
      %v1022 = vunpack.c.l.b16 %v840
      %v1023 = vunpack.c.l.b16 %v841
      %v1024 = vunpack.c.l.b16 %v842
      %v1025 = vunpack.c.l.b16 %v843
      %v1026 = vpack.c.b16 %v1011, %v1010
      %v1027 = vpack.c.b16 %v1013, %v1012
      %v1028 = vpack.c.b16 %v1015, %v1014
      %v1029 = vpack.c.b16 %v1017, %v1016
      %v1030 = vpack.c.b16 %v1019, %v1018
      %v1031 = vpack.c.b16 %v1021, %v1020
      %v1032 = vpack.c.b16 %v1023, %v1022
      %v1033 = vpack.c.b16 %v1025, %v1024
      %1042 = vmatpush.bf16.msra.mxu0 %v1033
      %1043 = vmatpush.bf16.msra.mxu0 %v1032
      %1044 = vmatpush.bf16.msra.mxu0 %v1031
      %1045 = vmatpush.bf16.msra.mxu0 %v1030
      %1046 = vmatpush.bf16.msra.mxu0 %v1029
      %1047 = vmatpush.bf16.msra.mxu0 %v1028
      %1048 = vmatpush.bf16.msra.mxu0 %v1027
      %1049 = vmatpush.bf16.msra.mxu0 %v1026
      %1050 = vmatmul.bf16.gmra.mxu0 %v986
      %v1051 = vpop.f32.mrf.mxu0
      %v1052 = vadd.f32 %v951, %v1051
      %v1053 = vpop.f32.mrf.mxu0
      %v1054 = vadd.f32 %v953, %v1053
      %1055 = vmatmul.bf16.gmra.mxu0 %v987
      %v1056 = vpop.f32.mrf.mxu0
      %v1057 = vadd.f32 %v956, %v1056
      %v1058 = vpop.f32.mrf.mxu0
      %v1059 = vadd.f32 %v958, %v1058
      %1060 = vmatmul.bf16.gmra.mxu0 %v988
      %v1061 = vpop.f32.mrf.mxu0
      %v1062 = vadd.f32 %v961, %v1061
      %v1063 = vpop.f32.mrf.mxu0
      %v1064 = vadd.f32 %v963, %v1063
      %1065 = vmatmul.bf16.gmra.mxu0 %v989
      %v1066 = vpop.f32.mrf.mxu0
      %v1067 = vadd.f32 %v966, %v1066
      %v1068 = vpop.f32.mrf.mxu0
      %v1069 = vadd.f32 %v968, %v1068
      %1070 = vdwg.mxu0
      %v1071 = vadd.f32 %v1052, %v316
      %v1072 = vadd.f32 %v1054, %v316
      %v1073 = vadd.f32 %v1057, %v316
      %v1074 = vadd.f32 %v1059, %v316
      %v1075 = vadd.f32 %v1062, %v316
      %v1076 = vadd.f32 %v1064, %v316
      %v1077 = vadd.f32 %v1067, %v316
      %v1078 = vadd.f32 %v1069, %v316
      %v1079 = vmax.f32 %v1071, 0.0
      %v1080 = vmax.f32 %v1072, 0.0
      %v1081 = vmax.f32 %v1073, 0.0
      %v1082 = vmax.f32 %v1074, 0.0
      %v1083 = vmax.f32 %v1075, 0.0
      %v1084 = vmax.f32 %v1076, 0.0
      %v1085 = vmax.f32 %v1077, 0.0
      %v1086 = vmax.f32 %v1078, 0.0
      %1087 = vst [vmem:[%s283] sm:$0xff] %v1079
      %1088 = vst [vmem:[%s283 + $0x8] sm:$0xff] %v1080
      %1089 = vst [vmem:[%s283 + $0x10] sm:$0xff] %v1081
      %1090 = vst [vmem:[%s283 + $0x18] sm:$0xff] %v1082
      %1091 = vst [vmem:[%s283 + $0x20] sm:$0xff] %v1083
      %1092 = vst [vmem:[%s283 + $0x28] sm:$0xff] %v1084
      %1093 = vst [vmem:[%s283 + $0x30] sm:$0xff] %v1085
      %1094 = vst [vmem:[%s283 + $0x38] sm:$0xff] %v1086
      %v1095 = vld [vmem:[%s818] sm:$0xf]
      %v1096 = vld [vmem:[%s818 + $0x4] sm:$0x1]
      %v1097 = vld [vmem:[%s818 + $0x8] sm:$0xf]
      %v1098 = vld [vmem:[%s818 + $0xc] sm:$0x1]
      %v1099 = vld [vmem:[%s818 + $0x10] sm:$0xf]
      %v1100 = vld [vmem:[%s818 + $0x14] sm:$0x1]
      %v1101 = vld [vmem:[%s818 + $0x18] sm:$0xf]
      %v1102 = vld [vmem:[%s818 + $0x1c] sm:$0x1]
      %v1103 = vld [vmem:[%s818 + $0x20] sm:$0xf]
      %v1104 = vld [vmem:[%s818 + $0x24] sm:$0x1]
      %v1105 = vld [vmem:[%s818 + $0x28] sm:$0xf]
      %v1106 = vld [vmem:[%s818 + $0x2c] sm:$0x1]
      %v1107 = vld [vmem:[%s818 + $0x30] sm:$0xf]
      %v1108 = vld [vmem:[%s818 + $0x34] sm:$0x1]
      %v1109 = vld [vmem:[%s818 + $0x38] sm:$0xf]
      %v1110 = vld [vmem:[%s818 + $0x3c] sm:$0x1]
      %v1112 = vshrl.u32 %v1095, 16
      %v1114 = vrot.slane %v1112, 4
      %v1115 = vshll.u32 %v1095, 16
      %v1117 = vrot.slane %v1115, 5
      %v1118 = vor.u32 %v1114, %v1117
      %v1119 = vrot.slane %v1118, 4
      %v1121 = vshll.u32 %v1096, 16
      %v1123 = vrot.slane %v1121, 5
      %v1124 = vsel %vm453, %v1119, %v1123
      %v1126 = vshrl.u32 %v1097, 16
      %v1128 = vrot.slane %v1126, 4
      %v1129 = vshll.u32 %v1097, 16
      %v1131 = vrot.slane %v1129, 5
      %v1132 = vor.u32 %v1128, %v1131
      %v1133 = vrot.slane %v1132, 4
      %v1135 = vshll.u32 %v1098, 16
      %v1137 = vrot.slane %v1135, 5
      %v1138 = vsel %vm453, %v1133, %v1137
      %v1140 = vshrl.u32 %v1099, 16
      %v1142 = vrot.slane %v1140, 4
      %v1143 = vshll.u32 %v1099, 16
      %v1145 = vrot.slane %v1143, 5
      %v1146 = vor.u32 %v1142, %v1145
      %v1147 = vrot.slane %v1146, 4
      %v1149 = vshll.u32 %v1100, 16
      %v1151 = vrot.slane %v1149, 5
      %v1152 = vsel %vm453, %v1147, %v1151
      %v1154 = vshrl.u32 %v1101, 16
      %v1156 = vrot.slane %v1154, 4
      %v1157 = vshll.u32 %v1101, 16
      %v1159 = vrot.slane %v1157, 5
      %v1160 = vor.u32 %v1156, %v1159
      %v1161 = vrot.slane %v1160, 4
      %v1163 = vshll.u32 %v1102, 16
      %v1165 = vrot.slane %v1163, 5
      %v1166 = vsel %vm453, %v1161, %v1165
      %v1168 = vshrl.u32 %v1103, 16
      %v1170 = vrot.slane %v1168, 4
      %v1171 = vshll.u32 %v1103, 16
      %v1173 = vrot.slane %v1171, 5
      %v1174 = vor.u32 %v1170, %v1173
      %v1175 = vrot.slane %v1174, 4
      %v1177 = vshll.u32 %v1104, 16
      %v1179 = vrot.slane %v1177, 5
      %v1180 = vsel %vm453, %v1175, %v1179
      %v1182 = vshrl.u32 %v1105, 16
      %v1184 = vrot.slane %v1182, 4
      %v1185 = vshll.u32 %v1105, 16
      %v1187 = vrot.slane %v1185, 5
      %v1188 = vor.u32 %v1184, %v1187
      %v1189 = vrot.slane %v1188, 4
      %v1191 = vshll.u32 %v1106, 16
      %v1193 = vrot.slane %v1191, 5
      %v1194 = vsel %vm453, %v1189, %v1193
      %v1196 = vshrl.u32 %v1107, 16
      %v1198 = vrot.slane %v1196, 4
      %v1199 = vshll.u32 %v1107, 16
      %v1201 = vrot.slane %v1199, 5
      %v1202 = vor.u32 %v1198, %v1201
      %v1203 = vrot.slane %v1202, 4
      %v1205 = vshll.u32 %v1108, 16
      %v1207 = vrot.slane %v1205, 5
      %v1208 = vsel %vm453, %v1203, %v1207
      %v1210 = vshrl.u32 %v1109, 16
      %v1212 = vrot.slane %v1210, 4
      %v1213 = vshll.u32 %v1109, 16
      %v1215 = vrot.slane %v1213, 5
      %v1216 = vor.u32 %v1212, %v1215
      %v1217 = vrot.slane %v1216, 4
      %v1219 = vshll.u32 %v1110, 16
      %v1221 = vrot.slane %v1219, 5
      %v1222 = vsel %vm453, %v1217, %v1221
      %v1223 = vld [vmem:[%s1] sm:$0xf]
      %v1224 = vld [vmem:[%s1 + $0x4] sm:$0xf]
      %v1225 = vld [vmem:[%s1 + $0x8] sm:$0xf]
      %v1226 = vld [vmem:[%s1 + $0xc] sm:$0xf]
      %v1227 = vld [vmem:[%s1 + $0x10] sm:$0xf]
      %v1228 = vld [vmem:[%s1 + $0x14] sm:$0xf]
      %v1229 = vld [vmem:[%s1 + $0x18] sm:$0xf]
      %v1230 = vld [vmem:[%s1 + $0x1c] sm:$0xf]
      %v1231 = vld [vmem:[%s1 + $0x20] sm:$0xf]
      %v1232 = vld [vmem:[%s1 + $0x24] sm:$0xf]
      %v1233 = vld [vmem:[%s1 + $0x28] sm:$0xf]
      %v1234 = vld [vmem:[%s1 + $0x2c] sm:$0xf]
      %v1235 = vld [vmem:[%s1 + $0x30] sm:$0xf]
      %v1236 = vld [vmem:[%s1 + $0x34] sm:$0xf]
      %v1237 = vld [vmem:[%s1 + $0x38] sm:$0xf]
      %v1238 = vld [vmem:[%s1 + $0x3c] sm:$0xf]
      %s1239 = scalar_lea.vmem %s1, 128
      %v1240 = vld [vmem:[%s1239] sm:$0xf]
      %v1241 = vld [vmem:[%s1239 + $0x4] sm:$0xf]
      %v1242 = vld [vmem:[%s1239 + $0x8] sm:$0xf]
      %v1243 = vld [vmem:[%s1239 + $0xc] sm:$0xf]
      %v1244 = vld [vmem:[%s1239 + $0x10] sm:$0xf]
      %v1245 = vld [vmem:[%s1239 + $0x14] sm:$0xf]
      %v1246 = vld [vmem:[%s1239 + $0x18] sm:$0xf]
      %v1247 = vld [vmem:[%s1239 + $0x1c] sm:$0xf]
      %v1248 = vld [vmem:[%s1239 + $0x20] sm:$0xf]
      %v1249 = vld [vmem:[%s1239 + $0x24] sm:$0xf]
      %v1250 = vld [vmem:[%s1239 + $0x28] sm:$0xf]
      %v1251 = vld [vmem:[%s1239 + $0x2c] sm:$0xf]
      %v1252 = vld [vmem:[%s1239 + $0x30] sm:$0xf]
      %v1253 = vld [vmem:[%s1239 + $0x34] sm:$0xf]
      %v1254 = vld [vmem:[%s1239 + $0x38] sm:$0xf]
      %v1255 = vld [vmem:[%s1239 + $0x3c] sm:$0xf]
      %v1264 = vunpack.c.l.b16 %v1095
      %v1265 = vunpack.c.l.b16 %v1097
      %v1266 = vunpack.c.l.b16 %v1099
      %v1267 = vunpack.c.l.b16 %v1101
      %v1268 = vunpack.c.l.b16 %v1103
      %v1269 = vunpack.c.l.b16 %v1105
      %v1270 = vunpack.c.l.b16 %v1107
      %v1271 = vunpack.c.l.b16 %v1109
      %v1272 = vpack.c.b16 %v1265, %v1264
      %v1273 = vpack.c.b16 %v1267, %v1266
      %v1274 = vpack.c.b16 %v1269, %v1268
      %v1275 = vpack.c.b16 %v1271, %v1270
      %v1296 = vunpack.c.l.b16 %v1240
      %v1297 = vunpack.c.l.b16 %v1241
      %v1298 = vunpack.c.l.b16 %v1242
      %v1299 = vunpack.c.l.b16 %v1243
      %v1300 = vunpack.c.l.b16 %v1244
      %v1301 = vunpack.c.l.b16 %v1245
      %v1302 = vunpack.c.l.b16 %v1246
      %v1303 = vunpack.c.l.b16 %v1247
      %v1304 = vunpack.c.l.b16 %v1248
      %v1305 = vunpack.c.l.b16 %v1249
      %v1306 = vunpack.c.l.b16 %v1250
      %v1307 = vunpack.c.l.b16 %v1251
      %v1308 = vunpack.c.l.b16 %v1252
      %v1309 = vunpack.c.l.b16 %v1253
      %v1310 = vunpack.c.l.b16 %v1254
      %v1311 = vunpack.c.l.b16 %v1255
      %v1312 = vpack.c.b16 %v1297, %v1296
      %v1313 = vpack.c.b16 %v1299, %v1298
      %v1314 = vpack.c.b16 %v1301, %v1300
      %v1315 = vpack.c.b16 %v1303, %v1302
      %v1316 = vpack.c.b16 %v1305, %v1304
      %v1317 = vpack.c.b16 %v1307, %v1306
      %v1318 = vpack.c.b16 %v1309, %v1308
      %v1319 = vpack.c.b16 %v1311, %v1310
      %1328 = vmatpush.bf16.msra.mxu0 %v1319
      %1329 = vmatpush.bf16.msra.mxu0 %v1318
      %1330 = vmatpush.bf16.msra.mxu0 %v1317
      %1331 = vmatpush.bf16.msra.mxu0 %v1316
      %1332 = vmatpush.bf16.msra.mxu0 %v1315
      %1333 = vmatpush.bf16.msra.mxu0 %v1314
      %1334 = vmatpush.bf16.msra.mxu0 %v1313
      %1335 = vmatpush.bf16.msra.mxu0 %v1312
      %1336 = vmatmul.bf16.gmra.mxu0 %v1272
      %v1337 = vpop.f32.mrf.mxu0
      %v1338 = vadd.f32 0.0, %v1337
      %v1339 = vpop.f32.mrf.mxu0
      %v1340 = vadd.f32 0.0, %v1339
      %1341 = vmatmul.bf16.gmra.mxu0 %v1273
      %v1342 = vpop.f32.mrf.mxu0
      %v1343 = vadd.f32 0.0, %v1342
      %v1344 = vpop.f32.mrf.mxu0
      %v1345 = vadd.f32 0.0, %v1344
      %1346 = vmatmul.bf16.gmra.mxu0 %v1274
      %v1347 = vpop.f32.mrf.mxu0
      %v1348 = vadd.f32 0.0, %v1347
      %v1349 = vpop.f32.mrf.mxu0
      %v1350 = vadd.f32 0.0, %v1349
      %1351 = vmatmul.bf16.gmra.mxu0 %v1275
      %v1352 = vpop.f32.mrf.mxu0
      %v1353 = vadd.f32 0.0, %v1352
      %v1354 = vpop.f32.mrf.mxu0
      %v1355 = vadd.f32 0.0, %v1354
      %1356 = vdwg.mxu0
      %v1357 = vunpack.c.l.b16 %v1124
      %v1358 = vunpack.c.l.b16 %v1138
      %v1359 = vunpack.c.l.b16 %v1152
      %v1360 = vunpack.c.l.b16 %v1166
      %v1361 = vunpack.c.l.b16 %v1180
      %v1362 = vunpack.c.l.b16 %v1194
      %v1363 = vunpack.c.l.b16 %v1208
      %v1364 = vunpack.c.l.b16 %v1222
      %v1365 = vpack.c.b16 %v1358, %v1357
      %v1366 = vpack.c.b16 %v1360, %v1359
      %v1367 = vpack.c.b16 %v1362, %v1361
      %v1368 = vpack.c.b16 %v1364, %v1363
      %v1389 = vunpack.c.l.b16 %v1223
      %v1390 = vunpack.c.l.b16 %v1224
      %v1391 = vunpack.c.l.b16 %v1225
      %v1392 = vunpack.c.l.b16 %v1226
      %v1393 = vunpack.c.l.b16 %v1227
      %v1394 = vunpack.c.l.b16 %v1228
      %v1395 = vunpack.c.l.b16 %v1229
      %v1396 = vunpack.c.l.b16 %v1230
      %v1397 = vunpack.c.l.b16 %v1231
      %v1398 = vunpack.c.l.b16 %v1232
      %v1399 = vunpack.c.l.b16 %v1233
      %v1400 = vunpack.c.l.b16 %v1234
      %v1401 = vunpack.c.l.b16 %v1235
      %v1402 = vunpack.c.l.b16 %v1236
      %v1403 = vunpack.c.l.b16 %v1237
      %v1404 = vunpack.c.l.b16 %v1238
      %v1405 = vpack.c.b16 %v1390, %v1389
      %v1406 = vpack.c.b16 %v1392, %v1391
      %v1407 = vpack.c.b16 %v1394, %v1393
      %v1408 = vpack.c.b16 %v1396, %v1395
      %v1409 = vpack.c.b16 %v1398, %v1397
      %v1410 = vpack.c.b16 %v1400, %v1399
      %v1411 = vpack.c.b16 %v1402, %v1401
      %v1412 = vpack.c.b16 %v1404, %v1403
      %1421 = vmatpush.bf16.msra.mxu0 %v1412
      %1422 = vmatpush.bf16.msra.mxu0 %v1411
      %1423 = vmatpush.bf16.msra.mxu0 %v1410
      %1424 = vmatpush.bf16.msra.mxu0 %v1409
      %1425 = vmatpush.bf16.msra.mxu0 %v1408
      %1426 = vmatpush.bf16.msra.mxu0 %v1407
      %1427 = vmatpush.bf16.msra.mxu0 %v1406
      %1428 = vmatpush.bf16.msra.mxu0 %v1405
      %1429 = vmatmul.bf16.gmra.mxu0 %v1365
      %v1430 = vpop.f32.mrf.mxu0
      %v1431 = vadd.f32 %v1338, %v1430
      %v1432 = vpop.f32.mrf.mxu0
      %v1433 = vadd.f32 %v1340, %v1432
      %1434 = vmatmul.bf16.gmra.mxu0 %v1366
      %v1435 = vpop.f32.mrf.mxu0
      %v1436 = vadd.f32 %v1343, %v1435
      %v1437 = vpop.f32.mrf.mxu0
      %v1438 = vadd.f32 %v1345, %v1437
      %1439 = vmatmul.bf16.gmra.mxu0 %v1367
      %v1440 = vpop.f32.mrf.mxu0
      %v1441 = vadd.f32 %v1348, %v1440
      %v1442 = vpop.f32.mrf.mxu0
      %v1443 = vadd.f32 %v1350, %v1442
      %1444 = vmatmul.bf16.gmra.mxu0 %v1368
      %v1445 = vpop.f32.mrf.mxu0
      %v1446 = vadd.f32 %v1353, %v1445
      %v1447 = vpop.f32.mrf.mxu0
      %v1448 = vadd.f32 %v1355, %v1447
      %1449 = vdwg.mxu0
      %v1450 = vld [vmem:[%s268] sm:$0xf]
      %v1451 = vld [vmem:[%s268 + $0x4] sm:$0x1]
      %v1452 = vld [vmem:[%s268 + $0x8] sm:$0xf]
      %v1453 = vld [vmem:[%s268 + $0xc] sm:$0x1]
      %v1454 = vld [vmem:[%s268 + $0x10] sm:$0xf]
      %v1455 = vld [vmem:[%s268 + $0x14] sm:$0x1]
      %v1456 = vld [vmem:[%s268 + $0x18] sm:$0xf]
      %v1457 = vld [vmem:[%s268 + $0x1c] sm:$0x1]
      %v1458 = vld [vmem:[%s268 + $0x20] sm:$0xf]
      %v1459 = vld [vmem:[%s268 + $0x24] sm:$0x1]
      %v1460 = vld [vmem:[%s268 + $0x28] sm:$0xf]
      %v1461 = vld [vmem:[%s268 + $0x2c] sm:$0x1]
      %v1462 = vld [vmem:[%s268 + $0x30] sm:$0xf]
      %v1463 = vld [vmem:[%s268 + $0x34] sm:$0x1]
      %v1464 = vld [vmem:[%s268 + $0x38] sm:$0xf]
      %v1465 = vld [vmem:[%s268 + $0x3c] sm:$0x1]
      %v1467 = vshrl.u32 %v1450, 16
      %v1469 = vrot.slane %v1467, 4
      %v1470 = vshll.u32 %v1450, 16
      %v1472 = vrot.slane %v1470, 5
      %v1473 = vor.u32 %v1469, %v1472
      %v1474 = vrot.slane %v1473, 4
      %v1476 = vshll.u32 %v1451, 16
      %v1478 = vrot.slane %v1476, 5
      %v1479 = vsel %vm453, %v1474, %v1478
      %v1481 = vshrl.u32 %v1452, 16
      %v1483 = vrot.slane %v1481, 4
      %v1484 = vshll.u32 %v1452, 16
      %v1486 = vrot.slane %v1484, 5
      %v1487 = vor.u32 %v1483, %v1486
      %v1488 = vrot.slane %v1487, 4
      %v1490 = vshll.u32 %v1453, 16
      %v1492 = vrot.slane %v1490, 5
      %v1493 = vsel %vm453, %v1488, %v1492
      %v1495 = vshrl.u32 %v1454, 16
      %v1497 = vrot.slane %v1495, 4
      %v1498 = vshll.u32 %v1454, 16
      %v1500 = vrot.slane %v1498, 5
      %v1501 = vor.u32 %v1497, %v1500
      %v1502 = vrot.slane %v1501, 4
      %v1504 = vshll.u32 %v1455, 16
      %v1506 = vrot.slane %v1504, 5
      %v1507 = vsel %vm453, %v1502, %v1506
      %v1509 = vshrl.u32 %v1456, 16
      %v1511 = vrot.slane %v1509, 4
      %v1512 = vshll.u32 %v1456, 16
      %v1514 = vrot.slane %v1512, 5
      %v1515 = vor.u32 %v1511, %v1514
      %v1516 = vrot.slane %v1515, 4
      %v1518 = vshll.u32 %v1457, 16
      %v1520 = vrot.slane %v1518, 5
      %v1521 = vsel %vm453, %v1516, %v1520
      %v1523 = vshrl.u32 %v1458, 16
      %v1525 = vrot.slane %v1523, 4
      %v1526 = vshll.u32 %v1458, 16
      %v1528 = vrot.slane %v1526, 5
      %v1529 = vor.u32 %v1525, %v1528
      %v1530 = vrot.slane %v1529, 4
      %v1532 = vshll.u32 %v1459, 16
      %v1534 = vrot.slane %v1532, 5
      %v1535 = vsel %vm453, %v1530, %v1534
      %v1537 = vshrl.u32 %v1460, 16
      %v1539 = vrot.slane %v1537, 4
      %v1540 = vshll.u32 %v1460, 16
      %v1542 = vrot.slane %v1540, 5
      %v1543 = vor.u32 %v1539, %v1542
      %v1544 = vrot.slane %v1543, 4
      %v1546 = vshll.u32 %v1461, 16
      %v1548 = vrot.slane %v1546, 5
      %v1549 = vsel %vm453, %v1544, %v1548
      %v1551 = vshrl.u32 %v1462, 16
      %v1553 = vrot.slane %v1551, 4
      %v1554 = vshll.u32 %v1462, 16
      %v1556 = vrot.slane %v1554, 5
      %v1557 = vor.u32 %v1553, %v1556
      %v1558 = vrot.slane %v1557, 4
      %v1560 = vshll.u32 %v1463, 16
      %v1562 = vrot.slane %v1560, 5
      %v1563 = vsel %vm453, %v1558, %v1562
      %v1565 = vshrl.u32 %v1464, 16
      %v1567 = vrot.slane %v1565, 4
      %v1568 = vshll.u32 %v1464, 16
      %v1570 = vrot.slane %v1568, 5
      %v1571 = vor.u32 %v1567, %v1570
      %v1572 = vrot.slane %v1571, 4
      %v1574 = vshll.u32 %v1465, 16
      %v1576 = vrot.slane %v1574, 5
      %v1577 = vsel %vm453, %v1572, %v1576
      %s1578 = scalar_lea.vmem %s1, 384
      %v1579 = vld [vmem:[%s1578] sm:$0xf]
      %v1580 = vld [vmem:[%s1578 + $0x4] sm:$0xf]
      %v1581 = vld [vmem:[%s1578 + $0x8] sm:$0xf]
      %v1582 = vld [vmem:[%s1578 + $0xc] sm:$0xf]
      %v1583 = vld [vmem:[%s1578 + $0x10] sm:$0xf]
      %v1584 = vld [vmem:[%s1578 + $0x14] sm:$0xf]
      %v1585 = vld [vmem:[%s1578 + $0x18] sm:$0xf]
      %v1586 = vld [vmem:[%s1578 + $0x1c] sm:$0xf]
      %v1587 = vld [vmem:[%s1578 + $0x20] sm:$0xf]
      %v1588 = vld [vmem:[%s1578 + $0x24] sm:$0xf]
      %v1589 = vld [vmem:[%s1578 + $0x28] sm:$0xf]
      %v1590 = vld [vmem:[%s1578 + $0x2c] sm:$0xf]
      %v1591 = vld [vmem:[%s1578 + $0x30] sm:$0xf]
      %v1592 = vld [vmem:[%s1578 + $0x34] sm:$0xf]
      %v1593 = vld [vmem:[%s1578 + $0x38] sm:$0xf]
      %v1594 = vld [vmem:[%s1578 + $0x3c] sm:$0xf]
      %v1595 = vunpack.c.l.b16 %v1479
      %v1596 = vunpack.c.l.b16 %v1493
      %v1597 = vunpack.c.l.b16 %v1507
      %v1598 = vunpack.c.l.b16 %v1521
      %v1599 = vunpack.c.l.b16 %v1535
      %v1600 = vunpack.c.l.b16 %v1549
      %v1601 = vunpack.c.l.b16 %v1563
      %v1602 = vunpack.c.l.b16 %v1577
      %v1603 = vpack.c.b16 %v1596, %v1595
      %v1604 = vpack.c.b16 %v1598, %v1597
      %v1605 = vpack.c.b16 %v1600, %v1599
      %v1606 = vpack.c.b16 %v1602, %v1601
      %v1627 = vunpack.c.l.b16 %v1579
      %v1628 = vunpack.c.l.b16 %v1580
      %v1629 = vunpack.c.l.b16 %v1581
      %v1630 = vunpack.c.l.b16 %v1582
      %v1631 = vunpack.c.l.b16 %v1583
      %v1632 = vunpack.c.l.b16 %v1584
      %v1633 = vunpack.c.l.b16 %v1585
      %v1634 = vunpack.c.l.b16 %v1586
      %v1635 = vunpack.c.l.b16 %v1587
      %v1636 = vunpack.c.l.b16 %v1588
      %v1637 = vunpack.c.l.b16 %v1589
      %v1638 = vunpack.c.l.b16 %v1590
      %v1639 = vunpack.c.l.b16 %v1591
      %v1640 = vunpack.c.l.b16 %v1592
      %v1641 = vunpack.c.l.b16 %v1593
      %v1642 = vunpack.c.l.b16 %v1594
      %v1643 = vpack.c.b16 %v1628, %v1627
      %v1644 = vpack.c.b16 %v1630, %v1629
      %v1645 = vpack.c.b16 %v1632, %v1631
      %v1646 = vpack.c.b16 %v1634, %v1633
      %v1647 = vpack.c.b16 %v1636, %v1635
      %v1648 = vpack.c.b16 %v1638, %v1637
      %v1649 = vpack.c.b16 %v1640, %v1639
      %v1650 = vpack.c.b16 %v1642, %v1641
      %1659 = vmatpush.bf16.msra.mxu0 %v1650
      %1660 = vmatpush.bf16.msra.mxu0 %v1649
      %1661 = vmatpush.bf16.msra.mxu0 %v1648
      %1662 = vmatpush.bf16.msra.mxu0 %v1647
      %1663 = vmatpush.bf16.msra.mxu0 %v1646
      %1664 = vmatpush.bf16.msra.mxu0 %v1645
      %1665 = vmatpush.bf16.msra.mxu0 %v1644
      %1666 = vmatpush.bf16.msra.mxu0 %v1643
      %1667 = vmatmul.bf16.gmra.mxu0 %v1603
      %v1668 = vpop.f32.mrf.mxu0
      %v1669 = vadd.f32 0.0, %v1668
      %v1670 = vpop.f32.mrf.mxu0
      %v1671 = vadd.f32 0.0, %v1670
      %1672 = vmatmul.bf16.gmra.mxu0 %v1604
      %v1673 = vpop.f32.mrf.mxu0
      %v1674 = vadd.f32 0.0, %v1673
      %v1675 = vpop.f32.mrf.mxu0
      %v1676 = vadd.f32 0.0, %v1675
      %1677 = vmatmul.bf16.gmra.mxu0 %v1605
      %v1678 = vpop.f32.mrf.mxu0
      %v1679 = vadd.f32 0.0, %v1678
      %v1680 = vpop.f32.mrf.mxu0
      %v1681 = vadd.f32 0.0, %v1680
      %1682 = vmatmul.bf16.gmra.mxu0 %v1606
      %v1683 = vpop.f32.mrf.mxu0
      %v1684 = vadd.f32 0.0, %v1683
      %v1685 = vpop.f32.mrf.mxu0
      %v1686 = vadd.f32 0.0, %v1685
      %1687 = vdwg.mxu0
      %v1688 = vadd.f32 %v1431, %v1669
      %v1689 = vadd.f32 %v1433, %v1671
      %v1690 = vadd.f32 %v1436, %v1674
      %v1691 = vadd.f32 %v1438, %v1676
      %v1692 = vadd.f32 %v1441, %v1679
      %v1693 = vadd.f32 %v1443, %v1681
      %v1694 = vadd.f32 %v1446, %v1684
      %v1695 = vadd.f32 %v1448, %v1686
      %v1696 = vld [vmem:[%s268] sm:$0xf]
      %v1697 = vld [vmem:[%s268 + $0x8] sm:$0xf]
      %v1698 = vld [vmem:[%s268 + $0x10] sm:$0xf]
      %v1699 = vld [vmem:[%s268 + $0x18] sm:$0xf]
      %v1700 = vld [vmem:[%s268 + $0x20] sm:$0xf]
      %v1701 = vld [vmem:[%s268 + $0x28] sm:$0xf]
      %v1702 = vld [vmem:[%s268 + $0x30] sm:$0xf]
      %v1703 = vld [vmem:[%s268 + $0x38] sm:$0xf]
      %s1704 = scalar_lea.vmem %s1, 512
      %v1705 = vld [vmem:[%s1704] sm:$0xf]
      %v1706 = vld [vmem:[%s1704 + $0x4] sm:$0xf]
      %v1707 = vld [vmem:[%s1704 + $0x8] sm:$0xf]
      %v1708 = vld [vmem:[%s1704 + $0xc] sm:$0xf]
      %v1709 = vld [vmem:[%s1704 + $0x10] sm:$0xf]
      %v1710 = vld [vmem:[%s1704 + $0x14] sm:$0xf]
      %v1711 = vld [vmem:[%s1704 + $0x18] sm:$0xf]
      %v1712 = vld [vmem:[%s1704 + $0x1c] sm:$0xf]
      %v1713 = vld [vmem:[%s1704 + $0x20] sm:$0xf]
      %v1714 = vld [vmem:[%s1704 + $0x24] sm:$0xf]
      %v1715 = vld [vmem:[%s1704 + $0x28] sm:$0xf]
      %v1716 = vld [vmem:[%s1704 + $0x2c] sm:$0xf]
      %v1717 = vld [vmem:[%s1704 + $0x30] sm:$0xf]
      %v1718 = vld [vmem:[%s1704 + $0x34] sm:$0xf]
      %v1719 = vld [vmem:[%s1704 + $0x38] sm:$0xf]
      %v1720 = vld [vmem:[%s1704 + $0x3c] sm:$0xf]
      %v1729 = vunpack.c.l.b16 %v1696
      %v1730 = vunpack.c.l.b16 %v1697
      %v1731 = vunpack.c.l.b16 %v1698
      %v1732 = vunpack.c.l.b16 %v1699
      %v1733 = vunpack.c.l.b16 %v1700
      %v1734 = vunpack.c.l.b16 %v1701
      %v1735 = vunpack.c.l.b16 %v1702
      %v1736 = vunpack.c.l.b16 %v1703
      %v1737 = vpack.c.b16 %v1730, %v1729
      %v1738 = vpack.c.b16 %v1732, %v1731
      %v1739 = vpack.c.b16 %v1734, %v1733
      %v1740 = vpack.c.b16 %v1736, %v1735
      %v1761 = vunpack.c.l.b16 %v1705
      %v1762 = vunpack.c.l.b16 %v1706
      %v1763 = vunpack.c.l.b16 %v1707
      %v1764 = vunpack.c.l.b16 %v1708
      %v1765 = vunpack.c.l.b16 %v1709
      %v1766 = vunpack.c.l.b16 %v1710
      %v1767 = vunpack.c.l.b16 %v1711
      %v1768 = vunpack.c.l.b16 %v1712
      %v1769 = vunpack.c.l.b16 %v1713
      %v1770 = vunpack.c.l.b16 %v1714
      %v1771 = vunpack.c.l.b16 %v1715
      %v1772 = vunpack.c.l.b16 %v1716
      %v1773 = vunpack.c.l.b16 %v1717
      %v1774 = vunpack.c.l.b16 %v1718
      %v1775 = vunpack.c.l.b16 %v1719
      %v1776 = vunpack.c.l.b16 %v1720
      %v1777 = vpack.c.b16 %v1762, %v1761
      %v1778 = vpack.c.b16 %v1764, %v1763
      %v1779 = vpack.c.b16 %v1766, %v1765
      %v1780 = vpack.c.b16 %v1768, %v1767
      %v1781 = vpack.c.b16 %v1770, %v1769
      %v1782 = vpack.c.b16 %v1772, %v1771
      %v1783 = vpack.c.b16 %v1774, %v1773
      %v1784 = vpack.c.b16 %v1776, %v1775
      %1793 = vmatpush.bf16.msra.mxu0 %v1784
      %1794 = vmatpush.bf16.msra.mxu0 %v1783
      %1795 = vmatpush.bf16.msra.mxu0 %v1782
      %1796 = vmatpush.bf16.msra.mxu0 %v1781
      %1797 = vmatpush.bf16.msra.mxu0 %v1780
      %1798 = vmatpush.bf16.msra.mxu0 %v1779
      %1799 = vmatpush.bf16.msra.mxu0 %v1778
      %1800 = vmatpush.bf16.msra.mxu0 %v1777
      %1801 = vmatmul.bf16.gmra.mxu0 %v1737
      %v1802 = vpop.f32.mrf.mxu0
      %v1803 = vadd.f32 0.0, %v1802
      %v1804 = vpop.f32.mrf.mxu0
      %v1805 = vadd.f32 0.0, %v1804
      %1806 = vmatmul.bf16.gmra.mxu0 %v1738
      %v1807 = vpop.f32.mrf.mxu0
      %v1808 = vadd.f32 0.0, %v1807
      %v1809 = vpop.f32.mrf.mxu0
      %v1810 = vadd.f32 0.0, %v1809
      %1811 = vmatmul.bf16.gmra.mxu0 %v1739
      %v1812 = vpop.f32.mrf.mxu0
      %v1813 = vadd.f32 0.0, %v1812
      %v1814 = vpop.f32.mrf.mxu0
      %v1815 = vadd.f32 0.0, %v1814
      %1816 = vmatmul.bf16.gmra.mxu0 %v1740
      %v1817 = vpop.f32.mrf.mxu0
      %v1818 = vadd.f32 0.0, %v1817
      %v1819 = vpop.f32.mrf.mxu0
      %v1820 = vadd.f32 0.0, %v1819
      %1821 = vdwg.mxu0
      %v1822 = vadd.f32 %v1688, %v1803
      %v1823 = vadd.f32 %v1689, %v1805
      %v1824 = vadd.f32 %v1690, %v1808
      %v1825 = vadd.f32 %v1691, %v1810
      %v1826 = vadd.f32 %v1692, %v1813
      %v1827 = vadd.f32 %v1693, %v1815
      %v1828 = vadd.f32 %v1694, %v1818
      %v1829 = vadd.f32 %v1695, %v1820
      %v1830 = vadd.f32 %v1822, %v316
      %v1831 = vadd.f32 %v1823, %v316
      %v1832 = vadd.f32 %v1824, %v316
      %v1833 = vadd.f32 %v1825, %v316
      %v1834 = vadd.f32 %v1826, %v316
      %v1835 = vadd.f32 %v1827, %v316
      %v1836 = vadd.f32 %v1828, %v316
      %v1837 = vadd.f32 %v1829, %v316
      %v1838 = vmax.f32 %v1830, 0.0
      %v1839 = vmax.f32 %v1831, 0.0
      %v1840 = vmax.f32 %v1832, 0.0
      %v1841 = vmax.f32 %v1833, 0.0
      %v1842 = vmax.f32 %v1834, 0.0
      %v1843 = vmax.f32 %v1835, 0.0
      %v1844 = vmax.f32 %v1836, 0.0
      %v1845 = vmax.f32 %v1837, 0.0
      %1846 = vst [vmem:[%s288] sm:$0xff] %v1838
      %1847 = vst [vmem:[%s288 + $0x8] sm:$0xff] %v1839
      %1848 = vst [vmem:[%s288 + $0x10] sm:$0xff] %v1840
      %1849 = vst [vmem:[%s288 + $0x18] sm:$0xff] %v1841
      %1850 = vst [vmem:[%s288 + $0x20] sm:$0xff] %v1842
      %1851 = vst [vmem:[%s288 + $0x28] sm:$0xff] %v1843
      %1852 = vst [vmem:[%s288 + $0x30] sm:$0xff] %v1844
      %1853 = vst [vmem:[%s288 + $0x38] sm:$0xff] %v1845
      %p1854 = scmp.lt.s32.totalorder %s18, 1
      %s1855 = scalar_select %p1854, %s18, 1
      %s1856 = smul.addr %s1855, 8
      %s1857 = smul.addr %s1856, 8
      %s1858 = scalar_lea.vmem %s3, %s1857
      %p1859 = scmp.lt.s32.totalorder %s18, 1
      %s1860 = scalar_select %p1859, %s18, 1
      %s1861 = smul.addr %s1860, 8
      %s1862 = smul.addr %s1861, 8
      %s1863 = scalar_lea.vmem %s4, %s1862
      %p1864 = scmp.lt.s32.totalorder %s18, 1
      %s1865 = scalar_select %p1864, %s18, 1
      %s1866 = smul.addr %s1865, 8
      %s1867 = smul.addr %s1866, 8
      %s1868 = scalar_lea.vmem %s5, %s1867
      %p1869 = scmp.lt.s32.totalorder %s18, 1
      %s1870 = scalar_select %p1869, %s18, 1
      %s1871 = smul.addr %s1870, 8
      %s1872 = smul.addr %s1871, 8
      %s1873 = scalar_lea.vmem %s6, %s1872
      // Predicated region
      $region33: #{goctave_forward.7} parent=31 // pred_check
        %p1874 = pneg %p104
      $region34: #{goctave_forward.7} parent=31 // pred_check_branch
        %1876 = sbr.rel (%p1874) target = $region36
      $region35: #{goctave_forward.7} parent=31 // pred_region
        _
      $region36: #{goctave_forward.7} parent=31 // pred_fallthru
        _
      // Predicated region
      $region37: #{goctave_forward.7} parent=31 // pred_check
        %p1877 = pneg %p130
      $region38: #{goctave_forward.7} parent=31 // pred_check_branch
        %1879 = sbr.rel (%p1877) target = $region40
      $region39: #{goctave_forward.7} parent=31 // pred_region
        _
      $region40: #{goctave_forward.7} parent=31 // pred_fallthru
        _
      // Predicated region
      $region41: #{goctave_forward.7} parent=31 // pred_check
        %p1880 = pneg %p156
      $region42: #{goctave_forward.7} parent=31 // pred_check_branch
        %1882 = sbr.rel (%p1880) target = $region44
      $region43: #{goctave_forward.7} parent=31 // pred_region
        _
      $region44: #{goctave_forward.7} parent=31 // pred_fallthru
        _
      // Predicated region
      $region45: #{goctave_forward.7} parent=31 // pred_check
        %p1883 = pneg %p182
      $region46: #{goctave_forward.7} parent=31 // pred_check_branch
        %1885 = sbr.rel (%p1883) target = $region48
      $region47: #{goctave_forward.7} parent=31 // pred_region
        _
      $region48: #{goctave_forward.7} parent=31 // pred_fallthru
        _
    $region32: #{goctave_forward.7} parent=5 // pred_fallthru
      _
    %p1886 = scmp.le.s32.totalorder 2, %s13
    // Predicated region
    $region49: #{goctave_forward.7} parent=5 // pred_check
      %p1887 = pneg %p1886
    $region50: #{goctave_forward.7} parent=5 // pred_check_branch
      %1889 = sbr.rel (%p1887) target = $region52
    $region51: #{goctave_forward.7} parent=5 // pred_region
      %s1890 = ssub.s32 %s13, 2
      // Predicated region
      $region53: #{goctave_forward.7} parent=51 // pred_check
        %p1891 = pneg %p110
      $region54: #{goctave_forward.7} parent=51 // pred_check_branch
        %1893 = sbr.rel (%p1891) target = $region56
      $region55: #{goctave_forward.7} parent=51 // pred_region
        %p1894 = scmp.lt.s32.totalorder %s19, 1
        %s1895 = scalar_select %p1894, %s19, 1
        %s1896 = smul.addr %s1895, 8
        %s1897 = smul.addr %s1896, 8
        %s1898 = scalar_lea.vmem %s3, %s1897
      $region56: #{goctave_forward.7} parent=51 // pred_fallthru
        _
      // Predicated region
      $region57: #{goctave_forward.7} parent=51 // pred_check
        %p1899 = pneg %p136
      $region58: #{goctave_forward.7} parent=51 // pred_check_branch
        %1901 = sbr.rel (%p1899) target = $region60
      $region59: #{goctave_forward.7} parent=51 // pred_region
        %p1902 = scmp.lt.s32.totalorder %s19, 1
        %s1903 = scalar_select %p1902, %s19, 1
        %s1904 = smul.addr %s1903, 8
        %s1905 = smul.addr %s1904, 8
        %s1906 = scalar_lea.vmem %s4, %s1905
      $region60: #{goctave_forward.7} parent=51 // pred_fallthru
        _
      // Predicated region
      $region61: #{goctave_forward.7} parent=51 // pred_check
        %p1907 = pneg %p162
      $region62: #{goctave_forward.7} parent=51 // pred_check_branch
        %1909 = sbr.rel (%p1907) target = $region64
      $region63: #{goctave_forward.7} parent=51 // pred_region
        %p1910 = scmp.lt.s32.totalorder %s19, 1
        %s1911 = scalar_select %p1910, %s19, 1
        %s1912 = smul.addr %s1911, 8
        %s1913 = smul.addr %s1912, 8
        %s1914 = scalar_lea.vmem %s5, %s1913
      $region64: #{goctave_forward.7} parent=51 // pred_fallthru
        _
      // Predicated region
      $region65: #{goctave_forward.7} parent=51 // pred_check
        %p1915 = pneg %p188
      $region66: #{goctave_forward.7} parent=51 // pred_check_branch
        %1917 = sbr.rel (%p1915) target = $region68
      $region67: #{goctave_forward.7} parent=51 // pred_region
        %p1918 = scmp.lt.s32.totalorder %s19, 1
        %s1919 = scalar_select %p1918, %s19, 1
        %s1920 = smul.addr %s1919, 8
        %s1921 = smul.addr %s1920, 8
        %s1922 = scalar_lea.vmem %s6, %s1921
      $region68: #{goctave_forward.7} parent=51 // pred_fallthru
        _
    $region52: #{goctave_forward.7} parent=5 // pred_fallthru
      _
  $region6: #{goctave_forward.7} parent=0 // loop_footer
    %s17 = sadd.s32 1, %s13
  $region7: #{goctave_forward.7} parent=0 // loop_footer_branch
    %12 = sbr.rel target = $region3
  $region8: #{goctave_forward.7} parent=0 // loop_exit
    _

// kernel: goctave_forward.6
$region0: #{goctave_forward.6}
  #allocation0 [shape = 'u32[]', space=smem, size = 0x4, offset = 0x4, fixed_abs, tag = 'smem constant byte address 0x4 - core index']
  #allocation1 [shape = 'u32[72,128]{1,0:T(1,128)}', space=vmem, size = 0x9000, scoped, tag = 'internal scratch']
  %s0 = inlined_call_operand.vmem [shape: bf16[8,9,9,128], index: 0, kind: input, shape index: {}]
  %s1 = inlined_call_operand.vmem [shape: bf16[9,128,128], index: 1, kind: input, shape index: {}]
  %s2 = inlined_call_operand.vmem [shape: f32[1,128], index: 2, kind: input, shape index: {}]
  %s3 = inlined_call_operand.vmem [shape: bf16[2,8,8,128], index: 3, kind: input, shape index: {}]
  %s4 = inlined_call_operand.vmem [shape: f32[2,8,8,128], index: 4, kind: output, shape index: {}]
  %s5 = sld [smem:[#allocation0]]
  $region49: #{goctave_forward.6} parent=0
    _
  %s7 = ssub.s32 1, %s5
  %s8 = scalar_select 0, %s7, %s5
  loop: start=0, step=1, limit=4
  $region2: #{goctave_forward.6} parent=0 // loop_pre_header
    _
  $region3: #{goctave_forward.6} parent=0 // loop_header
    %s10 = sphi 0, %s14
    %p11 = scmp.ge.s32.totalorder %s10, 4
    %s20 = sphi 0, %s22
    %s23 = sphi 0, %s20
    %s24 = sphi 0, %s23
    %s40 = sphi 0, %s24
    %s44 = sphi 0, %s44
    %s46 = sphi 0, %s44
    %s47 = sphi 0, %s46
    %s61 = sphi 0, %s47
    %s65 = sphi 0, %s65
    %s67 = sphi 0, %s65
    %s68 = sphi 0, %s67
    %s82 = sphi 0, %s68
    %s88 = sphi 0, %s90
    %s91 = sphi 0, %s88
    %s92 = sphi 0, %s91
    %s108 = sphi 0, %s92
    %s114 = sphi 0, %s116
    %s117 = sphi 0, %s114
    %s118 = sphi 0, %s117
    %s134 = sphi 0, %s118
  $region4: #{goctave_forward.6} parent=0 // loop_header_branch
    %13 = sbr.rel (%p11) target = $region8
  $region5: #{goctave_forward.6} parent=0 // loop_body
    %s15 = ssub.s32 %s10, 1
    %s16 = ssub.s32 %s10, 2
    %s17 = sadd.s32 %s10, 1
    %s18 = ssub.s32 %s10, %s17
    %p19 = scmp.eq.s32.totalorder %s18, 0
    %s21 = sadd.s32 %s20, 1
    %s22 = scalar_select %p19, %s20, %s21
    %p25 = pneg %p19
    %p26 = scmp.eq.s32.totalorder %s10, 1
    %p27 = por %p25, %p26
    %p28 = scmp.ne.s32.totalorder %s20, %s23
    %p29 = scmp.eq.s32.totalorder %s10, 0
    %p30 = por %p28, %p29
    %p31 = scmp.ne.s32.totalorder %s20, %s23
    %p32 = scmp.eq.s32.totalorder %s15, 1
    %p33 = por %p31, %p32
    %p34 = scmp.ne.s32.totalorder %s23, %s24
    %p35 = scmp.eq.s32.totalorder %s15, 0
    %p36 = por %p34, %p35
    %p37 = scmp.ne.s32.totalorder %s23, %s24
    %p38 = scmp.eq.s32.totalorder %s16, 1
    %p39 = por %p37, %p38
    %p41 = scmp.ne.s32.totalorder %s24, %s40
    %p42 = scmp.eq.s32.totalorder %s16, 0
    %p43 = por %p41, %p42
    %s45 = sadd.s32 %s44, 1
    %p48 = scmp.eq.s32.totalorder %s10, 1
    %p49 = scmp.ne.s32.totalorder %s44, %s46
    %p50 = scmp.eq.s32.totalorder %s10, 0
    %p51 = por %p49, %p50
    %p52 = scmp.ne.s32.totalorder %s44, %s46
    %p53 = scmp.eq.s32.totalorder %s15, 1
    %p54 = por %p52, %p53
    %p55 = scmp.ne.s32.totalorder %s46, %s47
    %p56 = scmp.eq.s32.totalorder %s15, 0
    %p57 = por %p55, %p56
    %p58 = scmp.ne.s32.totalorder %s46, %s47
    %p59 = scmp.eq.s32.totalorder %s16, 1
    %p60 = por %p58, %p59
    %p62 = scmp.ne.s32.totalorder %s47, %s61
    %p63 = scmp.eq.s32.totalorder %s16, 0
    %p64 = por %p62, %p63
    %s66 = sadd.s32 %s65, 1
    %p69 = scmp.eq.s32.totalorder %s10, 1
    %p70 = scmp.ne.s32.totalorder %s65, %s67
    %p71 = scmp.eq.s32.totalorder %s10, 0
    %p72 = por %p70, %p71
    %p73 = scmp.ne.s32.totalorder %s65, %s67
    %p74 = scmp.eq.s32.totalorder %s15, 1
    %p75 = por %p73, %p74
    %p76 = scmp.ne.s32.totalorder %s67, %s68
    %p77 = scmp.eq.s32.totalorder %s15, 0
    %p78 = por %p76, %p77
    %p79 = scmp.ne.s32.totalorder %s67, %s68
    %p80 = scmp.eq.s32.totalorder %s16, 1
    %p81 = por %p79, %p80
    %p83 = scmp.ne.s32.totalorder %s68, %s82
    %p84 = scmp.eq.s32.totalorder %s16, 0
    %p85 = por %p83, %p84
    %s86 = ssub.s32 %s10, %s17
    %p87 = scmp.eq.s32.totalorder %s86, 0
    %s89 = sadd.s32 %s88, 1
    %s90 = scalar_select %p87, %s88, %s89
    %p93 = pneg %p87
    %p94 = scmp.eq.s32.totalorder %s10, 1
    %p95 = por %p93, %p94
    %p96 = scmp.ne.s32.totalorder %s88, %s91
    %p97 = scmp.eq.s32.totalorder %s10, 0
    %p98 = por %p96, %p97
    %p99 = scmp.ne.s32.totalorder %s88, %s91
    %p100 = scmp.eq.s32.totalorder %s15, 1
    %p101 = por %p99, %p100
    %p102 = scmp.ne.s32.totalorder %s91, %s92
    %p103 = scmp.eq.s32.totalorder %s15, 0
    %p104 = por %p102, %p103
    %p105 = scmp.ne.s32.totalorder %s91, %s92
    %p106 = scmp.eq.s32.totalorder %s16, 1
    %p107 = por %p105, %p106
    %p109 = scmp.ne.s32.totalorder %s92, %s108
    %p110 = scmp.eq.s32.totalorder %s16, 0
    %p111 = por %p109, %p110
    %s112 = ssub.s32 %s10, %s17
    %p113 = scmp.eq.s32.totalorder %s112, 0
    %s115 = sadd.s32 %s114, 1
    %s116 = scalar_select %p113, %s114, %s115
    %p119 = pneg %p113
    %p120 = scmp.eq.s32.totalorder %s10, 1
    %p121 = por %p119, %p120
    %p122 = scmp.ne.s32.totalorder %s114, %s117
    %p123 = scmp.eq.s32.totalorder %s10, 0
    %p124 = por %p122, %p123
    %p125 = scmp.ne.s32.totalorder %s114, %s117
    %p126 = scmp.eq.s32.totalorder %s15, 1
    %p127 = por %p125, %p126
    %p128 = scmp.ne.s32.totalorder %s117, %s118
    %p129 = scmp.eq.s32.totalorder %s15, 0
    %p130 = por %p128, %p129
    %p131 = scmp.ne.s32.totalorder %s117, %s118
    %p132 = scmp.eq.s32.totalorder %s16, 1
    %p133 = por %p131, %p132
    %p135 = scmp.ne.s32.totalorder %s118, %s134
    %p136 = scmp.eq.s32.totalorder %s16, 0
    %p137 = por %p135, %p136
    %p138 = scmp.le.s32.totalorder 1, %s10
    %p139 = scmp.lt.s32.totalorder %s10, 3
    %p140 = pnand %p138, %p139
    %p141 = pneg %p140
    // Predicated region
    $region9: #{goctave_forward.6} parent=5 // pred_check
      _
    $region10: #{goctave_forward.6} parent=5 // pred_check_branch
      %143 = sbr.rel (%p140) target = $region12
    $region11: #{goctave_forward.6} parent=5 // pred_region
      %s144 = ssub.s32 %s10, 1
      // Predicated region
      $region13: #{goctave_forward.6} parent=11 // pred_check
        %p145 = pneg %p57
      $region14: #{goctave_forward.6} parent=11 // pred_check_branch
        %147 = sbr.rel (%p145) target = $region16
      $region15: #{goctave_forward.6} parent=11 // pred_region
        _
      $region16: #{goctave_forward.6} parent=11 // pred_fallthru
        _
      // Predicated region
      $region17: #{goctave_forward.6} parent=11 // pred_check
        %p148 = pneg %p78
      $region18: #{goctave_forward.6} parent=11 // pred_check_branch
        %150 = sbr.rel (%p148) target = $region20
      $region19: #{goctave_forward.6} parent=11 // pred_region
        _
      $region20: #{goctave_forward.6} parent=11 // pred_fallthru
        _
    $region12: #{goctave_forward.6} parent=5 // pred_fallthru
      _
    %p151 = scmp.lt.s32.totalorder %s10, 2
    // Predicated region
    $region21: #{goctave_forward.6} parent=5 // pred_check
      %p152 = pneg %p151
    $region22: #{goctave_forward.6} parent=5 // pred_check_branch
      %154 = sbr.rel (%p152) target = $region24
    $region23: #{goctave_forward.6} parent=5 // pred_region
      // Predicated region
      $region25: #{goctave_forward.6} parent=23 // pred_check
        %p155 = pneg %p30
      $region26: #{goctave_forward.6} parent=23 // pred_check_branch
        %157 = sbr.rel (%p155) target = $region28
      $region27: #{goctave_forward.6} parent=23 // pred_region
        %s158 = smul.u32 4, %s10
        %p159 = scmp.lt.s32.totalorder %s158, 7
        %s160 = scalar_select %p159, %s158, 7
        %s161 = smul.addr %s160, 18
        %s162 = smul.addr %s161, 4
        %s163 = scalar_lea.vmem %s0, %s162
        %s164 = smul.u32 4, %s10
      $region28: #{goctave_forward.6} parent=23 // pred_fallthru
        _
      // Predicated region
      $region29: #{goctave_forward.6} parent=23 // pred_check
        %p165 = pneg %p98
      $region30: #{goctave_forward.6} parent=23 // pred_check_branch
        %167 = sbr.rel (%p165) target = $region32
      $region31: #{goctave_forward.6} parent=23 // pred_region
        %p168 = scmp.lt.s32.totalorder %s10, 1
        %s169 = scalar_select %p168, %s10, 1
        %s170 = smul.addr %s169, 8
        %s171 = smul.addr %s170, 4
        %s172 = scalar_lea.vmem %s3, %s171
      $region32: #{goctave_forward.6} parent=23 // pred_fallthru
        _
    $region24: #{goctave_forward.6} parent=5 // pred_fallthru
      _
    %p173 = scmp.le.s32.totalorder 1, %s10
    %p174 = scmp.lt.s32.totalorder %s10, 3
    %p175 = pnand %p173, %p174
    %p176 = pneg %p175
    // Predicated region
    $region33: #{goctave_forward.6} parent=5 // pred_check
      _
    $region34: #{goctave_forward.6} parent=5 // pred_check_branch
      %178 = sbr.rel (%p175) target = $region36
    $region35: #{goctave_forward.6} parent=5 // pred_region
      %s179 = ssub.s32 %s10, 1
      %s180 = smul.u32 4, %s15
      %p181 = scmp.lt.s32.totalorder %s180, 7
      %s182 = scalar_select %p181, %s180, 7
      %s183 = smul.addr %s182, 18
      %s184 = smul.addr %s183, 4
      %s185 = scalar_lea.vmem %s0, %s184
      %p186 = pneg %p36
      %p187 = pneg %p33
      %p188 = pneg %p57
      %p189 = pneg %p54
      %p190 = pneg %p78
      %p191 = pneg %p75
      %p192 = scmp.lt.s32.totalorder %s15, 1
      %s193 = scalar_select %p192, %s15, 1
      %s194 = smul.addr %s193, 8
      %s195 = smul.addr %s194, 4
      %s196 = scalar_lea.vmem %s3, %s195
      %p197 = pneg %p104
      %p198 = pneg %p101
      %p199 = pneg %p130
      %p200 = pneg %p127
      %p201 = scmp.lt.s32.totalorder %s15, 1
      %s202 = scalar_select %p201, %s15, 1
      %s203 = smul.addr %s202, 8
      %s204 = smul.addr %s203, 8
      %s205 = scalar_lea.vmem %s4, %s204
      %s206 = smul.u32 4, %s15
      %p207 = scmp.lt.s32.totalorder %s206, 7
      %s208 = scalar_select %p207, %s206, 7
      %s209 = smul.addr %s208, 18
      %s210 = smul.addr %s209, 4
      %s211 = scalar_lea.vmem %s0, %s210
      %s212 = smul.u32 4, %s15
      %p213 = scmp.lt.s32.totalorder %s15, 1
      %s214 = scalar_select %p213, %s15, 1
      %s215 = smul.addr %s214, 8
      %s216 = smul.addr %s215, 4
      %s217 = scalar_lea.vmem %s3, %s216
      %p218 = scmp.lt.s32.totalorder %s15, 1
      %s219 = scalar_select %p218, %s15, 1
      %s220 = smul.addr %s219, 8
      %s221 = smul.addr %s220, 8
      %s222 = scalar_lea.vmem %s4, %s221
      %v223 = vld [vmem:[%s2] sm:$0x1]
      %v224 = vld [vmem:[%s211] sm:$0xf]
      %v225 = vld [vmem:[%s211 + $0x8] sm:$0xf]
      %v226 = vld [vmem:[%s211 + $0x10] sm:$0xf]
      %v227 = vld [vmem:[%s211 + $0x18] sm:$0xf]
      %v228 = vld [vmem:[%s211 + $0x20] sm:$0xf]
      %v229 = vld [vmem:[%s211 + $0x28] sm:$0xf]
      %v230 = vld [vmem:[%s211 + $0x30] sm:$0xf]
      %v231 = vld [vmem:[%s211 + $0x38] sm:$0xf]
      %v232 = vld [vmem:[%s1] sm:$0xf]
      %v233 = vld [vmem:[%s1 + $0x4] sm:$0xf]
      %v234 = vld [vmem:[%s1 + $0x8] sm:$0xf]
      %v235 = vld [vmem:[%s1 + $0xc] sm:$0xf]
      %v236 = vld [vmem:[%s1 + $0x10] sm:$0xf]
      %v237 = vld [vmem:[%s1 + $0x14] sm:$0xf]
      %v238 = vld [vmem:[%s1 + $0x18] sm:$0xf]
      %v239 = vld [vmem:[%s1 + $0x1c] sm:$0xf]
      %v240 = vld [vmem:[%s1 + $0x20] sm:$0xf]
      %v241 = vld [vmem:[%s1 + $0x24] sm:$0xf]
      %v242 = vld [vmem:[%s1 + $0x28] sm:$0xf]
      %v243 = vld [vmem:[%s1 + $0x2c] sm:$0xf]
      %v244 = vld [vmem:[%s1 + $0x30] sm:$0xf]
      %v245 = vld [vmem:[%s1 + $0x34] sm:$0xf]
      %v246 = vld [vmem:[%s1 + $0x38] sm:$0xf]
      %v247 = vld [vmem:[%s1 + $0x3c] sm:$0xf]
      %s248 = scalar_lea.vmem %s211, 72
      %v249 = vld [vmem:[%s248] sm:$0xf]
      %v250 = vld [vmem:[%s248 + $0x8] sm:$0xf]
      %v251 = vld [vmem:[%s248 + $0x10] sm:$0xf]
      %v252 = vld [vmem:[%s248 + $0x18] sm:$0xf]
      %v253 = vld [vmem:[%s248 + $0x20] sm:$0xf]
      %v254 = vld [vmem:[%s248 + $0x28] sm:$0xf]
      %v255 = vld [vmem:[%s248 + $0x30] sm:$0xf]
      %v256 = vld [vmem:[%s248 + $0x38] sm:$0xf]
      %s257 = scalar_lea.vmem %s1, 64
      %v258 = vld [vmem:[%s257] sm:$0xf]
      %v259 = vld [vmem:[%s257 + $0x4] sm:$0xf]
      %v260 = vld [vmem:[%s257 + $0x8] sm:$0xf]
      %v261 = vld [vmem:[%s257 + $0xc] sm:$0xf]
      %v262 = vld [vmem:[%s257 + $0x10] sm:$0xf]
      %v263 = vld [vmem:[%s257 + $0x14] sm:$0xf]
      %v264 = vld [vmem:[%s257 + $0x18] sm:$0xf]
      %v265 = vld [vmem:[%s257 + $0x1c] sm:$0xf]
      %v266 = vld [vmem:[%s257 + $0x20] sm:$0xf]
      %v267 = vld [vmem:[%s257 + $0x24] sm:$0xf]
      %v268 = vld [vmem:[%s257 + $0x28] sm:$0xf]
      %v269 = vld [vmem:[%s257 + $0x2c] sm:$0xf]
      %v270 = vld [vmem:[%s257 + $0x30] sm:$0xf]
      %v271 = vld [vmem:[%s257 + $0x34] sm:$0xf]
      %v272 = vld [vmem:[%s257 + $0x38] sm:$0xf]
      %v273 = vld [vmem:[%s257 + $0x3c] sm:$0xf]
      %v282 = vunpack.c.l.b16 %v249
      %v283 = vunpack.c.l.b16 %v250
      %v284 = vunpack.c.l.b16 %v251
      %v285 = vunpack.c.l.b16 %v252
      %v286 = vunpack.c.l.b16 %v253
      %v287 = vunpack.c.l.b16 %v254
      %v288 = vunpack.c.l.b16 %v255
      %v289 = vunpack.c.l.b16 %v256
      %v290 = vpack.c.b16 %v283, %v282
      %v291 = vpack.c.b16 %v285, %v284
      %v292 = vpack.c.b16 %v287, %v286
      %v293 = vpack.c.b16 %v289, %v288
      %v314 = vunpack.c.l.b16 %v258
      %v315 = vunpack.c.l.b16 %v259
      %v316 = vunpack.c.l.b16 %v260
      %v317 = vunpack.c.l.b16 %v261
      %v318 = vunpack.c.l.b16 %v262
      %v319 = vunpack.c.l.b16 %v263
      %v320 = vunpack.c.l.b16 %v264
      %v321 = vunpack.c.l.b16 %v265
      %v322 = vunpack.c.l.b16 %v266
      %v323 = vunpack.c.l.b16 %v267
      %v324 = vunpack.c.l.b16 %v268
      %v325 = vunpack.c.l.b16 %v269
      %v326 = vunpack.c.l.b16 %v270
      %v327 = vunpack.c.l.b16 %v271
      %v328 = vunpack.c.l.b16 %v272
      %v329 = vunpack.c.l.b16 %v273
      %v330 = vpack.c.b16 %v315, %v314
      %v331 = vpack.c.b16 %v317, %v316
      %v332 = vpack.c.b16 %v319, %v318
      %v333 = vpack.c.b16 %v321, %v320
      %v334 = vpack.c.b16 %v323, %v322
      %v335 = vpack.c.b16 %v325, %v324
      %v336 = vpack.c.b16 %v327, %v326
      %v337 = vpack.c.b16 %v329, %v328
      %346 = vmatpush.bf16.msra.mxu0 %v337
      %347 = vmatpush.bf16.msra.mxu0 %v336
      %348 = vmatpush.bf16.msra.mxu0 %v335
      %349 = vmatpush.bf16.msra.mxu0 %v334
      %350 = vmatpush.bf16.msra.mxu0 %v333
      %351 = vmatpush.bf16.msra.mxu0 %v332
      %352 = vmatpush.bf16.msra.mxu0 %v331
      %353 = vmatpush.bf16.msra.mxu0 %v330
      %354 = vmatmul.bf16.gmra.mxu0 %v290
      %v355 = vpop.f32.mrf.mxu0
      %v356 = vadd.f32 0.0, %v355
      %v357 = vpop.f32.mrf.mxu0
      %v358 = vadd.f32 0.0, %v357
      %359 = vmatmul.bf16.gmra.mxu0 %v291
      %v360 = vpop.f32.mrf.mxu0
      %v361 = vadd.f32 0.0, %v360
      %v362 = vpop.f32.mrf.mxu0
      %v363 = vadd.f32 0.0, %v362
      %364 = vmatmul.bf16.gmra.mxu0 %v292
      %v365 = vpop.f32.mrf.mxu0
      %v366 = vadd.f32 0.0, %v365
      %v367 = vpop.f32.mrf.mxu0
      %v368 = vadd.f32 0.0, %v367
      %369 = vmatmul.bf16.gmra.mxu0 %v293
      %v370 = vpop.f32.mrf.mxu0
      %v371 = vadd.f32 0.0, %v370
      %v372 = vpop.f32.mrf.mxu0
      %v373 = vadd.f32 0.0, %v372
      %374 = vdwg.mxu0
      %v383 = vunpack.c.l.b16 %v224
      %v384 = vunpack.c.l.b16 %v225
      %v385 = vunpack.c.l.b16 %v226
      %v386 = vunpack.c.l.b16 %v227
      %v387 = vunpack.c.l.b16 %v228
      %v388 = vunpack.c.l.b16 %v229
      %v389 = vunpack.c.l.b16 %v230
      %v390 = vunpack.c.l.b16 %v231
      %v391 = vpack.c.b16 %v384, %v383
      %v392 = vpack.c.b16 %v386, %v385
      %v393 = vpack.c.b16 %v388, %v387
      %v394 = vpack.c.b16 %v390, %v389
      %v415 = vunpack.c.l.b16 %v232
      %v416 = vunpack.c.l.b16 %v233
      %v417 = vunpack.c.l.b16 %v234
      %v418 = vunpack.c.l.b16 %v235
      %v419 = vunpack.c.l.b16 %v236
      %v420 = vunpack.c.l.b16 %v237
      %v421 = vunpack.c.l.b16 %v238
      %v422 = vunpack.c.l.b16 %v239
      %v423 = vunpack.c.l.b16 %v240
      %v424 = vunpack.c.l.b16 %v241
      %v425 = vunpack.c.l.b16 %v242
      %v426 = vunpack.c.l.b16 %v243
      %v427 = vunpack.c.l.b16 %v244
      %v428 = vunpack.c.l.b16 %v245
      %v429 = vunpack.c.l.b16 %v246
      %v430 = vunpack.c.l.b16 %v247
      %v431 = vpack.c.b16 %v416, %v415
      %v432 = vpack.c.b16 %v418, %v417
      %v433 = vpack.c.b16 %v420, %v419
      %v434 = vpack.c.b16 %v422, %v421
      %v435 = vpack.c.b16 %v424, %v423
      %v436 = vpack.c.b16 %v426, %v425
      %v437 = vpack.c.b16 %v428, %v427
      %v438 = vpack.c.b16 %v430, %v429
      %447 = vmatpush.bf16.msra.mxu0 %v438
      %448 = vmatpush.bf16.msra.mxu0 %v437
      %449 = vmatpush.bf16.msra.mxu0 %v436
      %450 = vmatpush.bf16.msra.mxu0 %v435
      %451 = vmatpush.bf16.msra.mxu0 %v434
      %452 = vmatpush.bf16.msra.mxu0 %v433
      %453 = vmatpush.bf16.msra.mxu0 %v432
      %454 = vmatpush.bf16.msra.mxu0 %v431
      %455 = vmatmul.bf16.gmra.mxu0 %v391
      %v456 = vpop.f32.mrf.mxu0
      %v457 = vadd.f32 %v356, %v456
      %v458 = vpop.f32.mrf.mxu0
      %v459 = vadd.f32 %v358, %v458
      %460 = vmatmul.bf16.gmra.mxu0 %v392
      %v461 = vpop.f32.mrf.mxu0
      %v462 = vadd.f32 %v361, %v461
      %v463 = vpop.f32.mrf.mxu0
      %v464 = vadd.f32 %v363, %v463
      %465 = vmatmul.bf16.gmra.mxu0 %v393
      %v466 = vpop.f32.mrf.mxu0
      %v467 = vadd.f32 %v366, %v466
      %v468 = vpop.f32.mrf.mxu0
      %v469 = vadd.f32 %v368, %v468
      %470 = vmatmul.bf16.gmra.mxu0 %v394
      %v471 = vpop.f32.mrf.mxu0
      %v472 = vadd.f32 %v371, %v471
      %v473 = vpop.f32.mrf.mxu0
      %v474 = vadd.f32 %v373, %v473
      %475 = vdwg.mxu0
      %v476 = vld [vmem:[%s211] sm:$0xf]
      %v477 = vld [vmem:[%s211 + $0x4] sm:$0x1]
      %v478 = vld [vmem:[%s211 + $0x8] sm:$0xf]
      %v479 = vld [vmem:[%s211 + $0xc] sm:$0x1]
      %v480 = vld [vmem:[%s211 + $0x10] sm:$0xf]
      %v481 = vld [vmem:[%s211 + $0x14] sm:$0x1]
      %v482 = vld [vmem:[%s211 + $0x18] sm:$0xf]
      %v483 = vld [vmem:[%s211 + $0x1c] sm:$0x1]
      %v484 = vld [vmem:[%s211 + $0x20] sm:$0xf]
      %v485 = vld [vmem:[%s211 + $0x24] sm:$0x1]
      %v486 = vld [vmem:[%s211 + $0x28] sm:$0xf]
      %v487 = vld [vmem:[%s211 + $0x2c] sm:$0x1]
      %v488 = vld [vmem:[%s211 + $0x30] sm:$0xf]
      %v489 = vld [vmem:[%s211 + $0x34] sm:$0x1]
      %v490 = vld [vmem:[%s211 + $0x38] sm:$0xf]
      %v491 = vld [vmem:[%s211 + $0x3c] sm:$0x1]
      %vm492 = vsmask.f32 3328
      %vm493 = vsmask.f32 7440
      %vm494 = vmor %vm492, %vm493
      %v496 = vshrl.u32 %v476, 16
      %v498 = vrot.slane %v496, 4
      %v499 = vshll.u32 %v476, 16
      %v501 = vrot.slane %v499, 5
      %v502 = vor.u32 %v498, %v501
      %v503 = vrot.slane %v502, 4
      %v505 = vshll.u32 %v477, 16
      %v507 = vrot.slane %v505, 5
      %v508 = vsel %vm494, %v503, %v507
      %v510 = vshrl.u32 %v478, 16
      %v512 = vrot.slane %v510, 4
      %v513 = vshll.u32 %v478, 16
      %v515 = vrot.slane %v513, 5
      %v516 = vor.u32 %v512, %v515
      %v517 = vrot.slane %v516, 4
      %v519 = vshll.u32 %v479, 16
      %v521 = vrot.slane %v519, 5
      %v522 = vsel %vm494, %v517, %v521
      %v524 = vshrl.u32 %v480, 16
      %v526 = vrot.slane %v524, 4
      %v527 = vshll.u32 %v480, 16
      %v529 = vrot.slane %v527, 5
      %v530 = vor.u32 %v526, %v529
      %v531 = vrot.slane %v530, 4
      %v533 = vshll.u32 %v481, 16
      %v535 = vrot.slane %v533, 5
      %v536 = vsel %vm494, %v531, %v535
      %v538 = vshrl.u32 %v482, 16
      %v540 = vrot.slane %v538, 4
      %v541 = vshll.u32 %v482, 16
      %v543 = vrot.slane %v541, 5
      %v544 = vor.u32 %v540, %v543
      %v545 = vrot.slane %v544, 4
      %v547 = vshll.u32 %v483, 16
      %v549 = vrot.slane %v547, 5
      %v550 = vsel %vm494, %v545, %v549
      %v552 = vshrl.u32 %v484, 16
      %v554 = vrot.slane %v552, 4
      %v555 = vshll.u32 %v484, 16
      %v557 = vrot.slane %v555, 5
      %v558 = vor.u32 %v554, %v557
      %v559 = vrot.slane %v558, 4
      %v561 = vshll.u32 %v485, 16
      %v563 = vrot.slane %v561, 5
      %v564 = vsel %vm494, %v559, %v563
      %v566 = vshrl.u32 %v486, 16
      %v568 = vrot.slane %v566, 4
      %v569 = vshll.u32 %v486, 16
      %v571 = vrot.slane %v569, 5
      %v572 = vor.u32 %v568, %v571
      %v573 = vrot.slane %v572, 4
      %v575 = vshll.u32 %v487, 16
      %v577 = vrot.slane %v575, 5
      %v578 = vsel %vm494, %v573, %v577
      %v580 = vshrl.u32 %v488, 16
      %v582 = vrot.slane %v580, 4
      %v583 = vshll.u32 %v488, 16
      %v585 = vrot.slane %v583, 5
      %v586 = vor.u32 %v582, %v585
      %v587 = vrot.slane %v586, 4
      %v589 = vshll.u32 %v489, 16
      %v591 = vrot.slane %v589, 5
      %v592 = vsel %vm494, %v587, %v591
      %v594 = vshrl.u32 %v490, 16
      %v596 = vrot.slane %v594, 4
      %v597 = vshll.u32 %v490, 16
      %v599 = vrot.slane %v597, 5
      %v600 = vor.u32 %v596, %v599
      %v601 = vrot.slane %v600, 4
      %v603 = vshll.u32 %v491, 16
      %v605 = vrot.slane %v603, 5
      %v606 = vsel %vm494, %v601, %v605
      %s607 = scalar_lea.vmem %s1, 128
      %v608 = vld [vmem:[%s607] sm:$0xf]
      %v609 = vld [vmem:[%s607 + $0x4] sm:$0xf]
      %v610 = vld [vmem:[%s607 + $0x8] sm:$0xf]
      %v611 = vld [vmem:[%s607 + $0xc] sm:$0xf]
      %v612 = vld [vmem:[%s607 + $0x10] sm:$0xf]
      %v613 = vld [vmem:[%s607 + $0x14] sm:$0xf]
      %v614 = vld [vmem:[%s607 + $0x18] sm:$0xf]
      %v615 = vld [vmem:[%s607 + $0x1c] sm:$0xf]
      %v616 = vld [vmem:[%s607 + $0x20] sm:$0xf]
      %v617 = vld [vmem:[%s607 + $0x24] sm:$0xf]
      %v618 = vld [vmem:[%s607 + $0x28] sm:$0xf]
      %v619 = vld [vmem:[%s607 + $0x2c] sm:$0xf]
      %v620 = vld [vmem:[%s607 + $0x30] sm:$0xf]
      %v621 = vld [vmem:[%s607 + $0x34] sm:$0xf]
      %v622 = vld [vmem:[%s607 + $0x38] sm:$0xf]
      %v623 = vld [vmem:[%s607 + $0x3c] sm:$0xf]
      %v624 = vunpack.c.l.b16 %v508
      %v625 = vunpack.c.l.b16 %v522
      %v626 = vunpack.c.l.b16 %v536
      %v627 = vunpack.c.l.b16 %v550
      %v628 = vunpack.c.l.b16 %v564
      %v629 = vunpack.c.l.b16 %v578
      %v630 = vunpack.c.l.b16 %v592
      %v631 = vunpack.c.l.b16 %v606
      %v632 = vpack.c.b16 %v625, %v624
      %v633 = vpack.c.b16 %v627, %v626
      %v634 = vpack.c.b16 %v629, %v628
      %v635 = vpack.c.b16 %v631, %v630
      %v656 = vunpack.c.l.b16 %v608
      %v657 = vunpack.c.l.b16 %v609
      %v658 = vunpack.c.l.b16 %v610
      %v659 = vunpack.c.l.b16 %v611
      %v660 = vunpack.c.l.b16 %v612
      %v661 = vunpack.c.l.b16 %v613
      %v662 = vunpack.c.l.b16 %v614
      %v663 = vunpack.c.l.b16 %v615
      %v664 = vunpack.c.l.b16 %v616
      %v665 = vunpack.c.l.b16 %v617
      %v666 = vunpack.c.l.b16 %v618
      %v667 = vunpack.c.l.b16 %v619
      %v668 = vunpack.c.l.b16 %v620
      %v669 = vunpack.c.l.b16 %v621
      %v670 = vunpack.c.l.b16 %v622
      %v671 = vunpack.c.l.b16 %v623
      %v672 = vpack.c.b16 %v657, %v656
      %v673 = vpack.c.b16 %v659, %v658
      %v674 = vpack.c.b16 %v661, %v660
      %v675 = vpack.c.b16 %v663, %v662
      %v676 = vpack.c.b16 %v665, %v664
      %v677 = vpack.c.b16 %v667, %v666
      %v678 = vpack.c.b16 %v669, %v668
      %v679 = vpack.c.b16 %v671, %v670
      %688 = vmatpush.bf16.msra.mxu0 %v679
      %689 = vmatpush.bf16.msra.mxu0 %v678
      %690 = vmatpush.bf16.msra.mxu0 %v677
      %691 = vmatpush.bf16.msra.mxu0 %v676
      %692 = vmatpush.bf16.msra.mxu0 %v675
      %693 = vmatpush.bf16.msra.mxu0 %v674
      %694 = vmatpush.bf16.msra.mxu0 %v673
      %695 = vmatpush.bf16.msra.mxu0 %v672
      %696 = vmatmul.bf16.gmra.mxu0 %v632
      %v697 = vpop.f32.mrf.mxu0
      %v698 = vadd.f32 0.0, %v697
      %v699 = vpop.f32.mrf.mxu0
      %v700 = vadd.f32 0.0, %v699
      %701 = vmatmul.bf16.gmra.mxu0 %v633
      %v702 = vpop.f32.mrf.mxu0
      %v703 = vadd.f32 0.0, %v702
      %v704 = vpop.f32.mrf.mxu0
      %v705 = vadd.f32 0.0, %v704
      %706 = vmatmul.bf16.gmra.mxu0 %v634
      %v707 = vpop.f32.mrf.mxu0
      %v708 = vadd.f32 0.0, %v707
      %v709 = vpop.f32.mrf.mxu0
      %v710 = vadd.f32 0.0, %v709
      %711 = vmatmul.bf16.gmra.mxu0 %v635
      %v712 = vpop.f32.mrf.mxu0
      %v713 = vadd.f32 0.0, %v712
      %v714 = vpop.f32.mrf.mxu0
      %v715 = vadd.f32 0.0, %v714
      %716 = vdwg.mxu0
      %v717 = vadd.f32 %v457, %v698
      %v718 = vadd.f32 %v459, %v700
      %v719 = vadd.f32 %v462, %v703
      %v720 = vadd.f32 %v464, %v705
      %v721 = vadd.f32 %v467, %v708
      %v722 = vadd.f32 %v469, %v710
      %v723 = vadd.f32 %v472, %v713
      %v724 = vadd.f32 %v474, %v715
      %s725 = scalar_lea.vmem %s211, 144
      %v726 = vld [vmem:[%s725] sm:$0xf]
      %v727 = vld [vmem:[%s725 + $0x8] sm:$0xf]
      %v728 = vld [vmem:[%s725 + $0x10] sm:$0xf]
      %v729 = vld [vmem:[%s725 + $0x18] sm:$0xf]
      %v730 = vld [vmem:[%s725 + $0x20] sm:$0xf]
      %v731 = vld [vmem:[%s725 + $0x28] sm:$0xf]
      %v732 = vld [vmem:[%s725 + $0x30] sm:$0xf]
      %v733 = vld [vmem:[%s725 + $0x38] sm:$0xf]
      %s734 = scalar_lea.vmem %s1, 192
      %v735 = vld [vmem:[%s734] sm:$0xf]
      %v736 = vld [vmem:[%s734 + $0x4] sm:$0xf]
      %v737 = vld [vmem:[%s734 + $0x8] sm:$0xf]
      %v738 = vld [vmem:[%s734 + $0xc] sm:$0xf]
      %v739 = vld [vmem:[%s734 + $0x10] sm:$0xf]
      %v740 = vld [vmem:[%s734 + $0x14] sm:$0xf]
      %v741 = vld [vmem:[%s734 + $0x18] sm:$0xf]
      %v742 = vld [vmem:[%s734 + $0x1c] sm:$0xf]
      %v743 = vld [vmem:[%s734 + $0x20] sm:$0xf]
      %v744 = vld [vmem:[%s734 + $0x24] sm:$0xf]
      %v745 = vld [vmem:[%s734 + $0x28] sm:$0xf]
      %v746 = vld [vmem:[%s734 + $0x2c] sm:$0xf]
      %v747 = vld [vmem:[%s734 + $0x30] sm:$0xf]
      %v748 = vld [vmem:[%s734 + $0x34] sm:$0xf]
      %v749 = vld [vmem:[%s734 + $0x38] sm:$0xf]
      %v750 = vld [vmem:[%s734 + $0x3c] sm:$0xf]
      %v759 = vunpack.c.l.b16 %v726
      %v760 = vunpack.c.l.b16 %v727
      %v761 = vunpack.c.l.b16 %v728
      %v762 = vunpack.c.l.b16 %v729
      %v763 = vunpack.c.l.b16 %v730
      %v764 = vunpack.c.l.b16 %v731
      %v765 = vunpack.c.l.b16 %v732
      %v766 = vunpack.c.l.b16 %v733
      %v767 = vpack.c.b16 %v760, %v759
      %v768 = vpack.c.b16 %v762, %v761
      %v769 = vpack.c.b16 %v764, %v763
      %v770 = vpack.c.b16 %v766, %v765
      %v791 = vunpack.c.l.b16 %v735
      %v792 = vunpack.c.l.b16 %v736
      %v793 = vunpack.c.l.b16 %v737
      %v794 = vunpack.c.l.b16 %v738
      %v795 = vunpack.c.l.b16 %v739
      %v796 = vunpack.c.l.b16 %v740
      %v797 = vunpack.c.l.b16 %v741
      %v798 = vunpack.c.l.b16 %v742
      %v799 = vunpack.c.l.b16 %v743
      %v800 = vunpack.c.l.b16 %v744
      %v801 = vunpack.c.l.b16 %v745
      %v802 = vunpack.c.l.b16 %v746
      %v803 = vunpack.c.l.b16 %v747
      %v804 = vunpack.c.l.b16 %v748
      %v805 = vunpack.c.l.b16 %v749
      %v806 = vunpack.c.l.b16 %v750
      %v807 = vpack.c.b16 %v792, %v791
      %v808 = vpack.c.b16 %v794, %v793
      %v809 = vpack.c.b16 %v796, %v795
      %v810 = vpack.c.b16 %v798, %v797
      %v811 = vpack.c.b16 %v800, %v799
      %v812 = vpack.c.b16 %v802, %v801
      %v813 = vpack.c.b16 %v804, %v803
      %v814 = vpack.c.b16 %v806, %v805
      %823 = vmatpush.bf16.msra.mxu0 %v814
      %824 = vmatpush.bf16.msra.mxu0 %v813
      %825 = vmatpush.bf16.msra.mxu0 %v812
      %826 = vmatpush.bf16.msra.mxu0 %v811
      %827 = vmatpush.bf16.msra.mxu0 %v810
      %828 = vmatpush.bf16.msra.mxu0 %v809
      %829 = vmatpush.bf16.msra.mxu0 %v808
      %830 = vmatpush.bf16.msra.mxu0 %v807
      %831 = vmatmul.bf16.gmra.mxu0 %v767
      %v832 = vpop.f32.mrf.mxu0
      %v833 = vadd.f32 0.0, %v832
      %v834 = vpop.f32.mrf.mxu0
      %v835 = vadd.f32 0.0, %v834
      %836 = vmatmul.bf16.gmra.mxu0 %v768
      %v837 = vpop.f32.mrf.mxu0
      %v838 = vadd.f32 0.0, %v837
      %v839 = vpop.f32.mrf.mxu0
      %v840 = vadd.f32 0.0, %v839
      %841 = vmatmul.bf16.gmra.mxu0 %v769
      %v842 = vpop.f32.mrf.mxu0
      %v843 = vadd.f32 0.0, %v842
      %v844 = vpop.f32.mrf.mxu0
      %v845 = vadd.f32 0.0, %v844
      %846 = vmatmul.bf16.gmra.mxu0 %v770
      %v847 = vpop.f32.mrf.mxu0
      %v848 = vadd.f32 0.0, %v847
      %v849 = vpop.f32.mrf.mxu0
      %v850 = vadd.f32 0.0, %v849
      %851 = vdwg.mxu0
      %v852 = vadd.f32 %v717, %v833
      %v853 = vadd.f32 %v718, %v835
      %v854 = vadd.f32 %v719, %v838
      %v855 = vadd.f32 %v720, %v840
      %v856 = vadd.f32 %v721, %v843
      %v857 = vadd.f32 %v722, %v845
      %v858 = vadd.f32 %v723, %v848
      %v859 = vadd.f32 %v724, %v850
      %s860 = scalar_lea.vmem %s211, 216
      %v861 = vld [vmem:[%s860] sm:$0xf]
      %v862 = vld [vmem:[%s860 + $0x8] sm:$0xf]
      %v863 = vld [vmem:[%s860 + $0x10] sm:$0xf]
      %v864 = vld [vmem:[%s860 + $0x18] sm:$0xf]
      %v865 = vld [vmem:[%s860 + $0x20] sm:$0xf]
      %v866 = vld [vmem:[%s860 + $0x28] sm:$0xf]
      %v867 = vld [vmem:[%s860 + $0x30] sm:$0xf]
      %v868 = vld [vmem:[%s860 + $0x38] sm:$0xf]
      %s869 = scalar_lea.vmem %s1, 256
      %v870 = vld [vmem:[%s869] sm:$0xf]
      %v871 = vld [vmem:[%s869 + $0x4] sm:$0xf]
      %v872 = vld [vmem:[%s869 + $0x8] sm:$0xf]
      %v873 = vld [vmem:[%s869 + $0xc] sm:$0xf]
      %v874 = vld [vmem:[%s869 + $0x10] sm:$0xf]
      %v875 = vld [vmem:[%s869 + $0x14] sm:$0xf]
      %v876 = vld [vmem:[%s869 + $0x18] sm:$0xf]
      %v877 = vld [vmem:[%s869 + $0x1c] sm:$0xf]
      %v878 = vld [vmem:[%s869 + $0x20] sm:$0xf]
      %v879 = vld [vmem:[%s869 + $0x24] sm:$0xf]
      %v880 = vld [vmem:[%s869 + $0x28] sm:$0xf]
      %v881 = vld [vmem:[%s869 + $0x2c] sm:$0xf]
      %v882 = vld [vmem:[%s869 + $0x30] sm:$0xf]
      %v883 = vld [vmem:[%s869 + $0x34] sm:$0xf]
      %v884 = vld [vmem:[%s869 + $0x38] sm:$0xf]
      %v885 = vld [vmem:[%s869 + $0x3c] sm:$0xf]
      %v894 = vunpack.c.l.b16 %v861
      %v895 = vunpack.c.l.b16 %v862
      %v896 = vunpack.c.l.b16 %v863
      %v897 = vunpack.c.l.b16 %v864
      %v898 = vunpack.c.l.b16 %v865
      %v899 = vunpack.c.l.b16 %v866
      %v900 = vunpack.c.l.b16 %v867
      %v901 = vunpack.c.l.b16 %v868
      %v902 = vpack.c.b16 %v895, %v894
      %v903 = vpack.c.b16 %v897, %v896
      %v904 = vpack.c.b16 %v899, %v898
      %v905 = vpack.c.b16 %v901, %v900
      %v926 = vunpack.c.l.b16 %v870
      %v927 = vunpack.c.l.b16 %v871
      %v928 = vunpack.c.l.b16 %v872
      %v929 = vunpack.c.l.b16 %v873
      %v930 = vunpack.c.l.b16 %v874
      %v931 = vunpack.c.l.b16 %v875
      %v932 = vunpack.c.l.b16 %v876
      %v933 = vunpack.c.l.b16 %v877
      %v934 = vunpack.c.l.b16 %v878
      %v935 = vunpack.c.l.b16 %v879
      %v936 = vunpack.c.l.b16 %v880
      %v937 = vunpack.c.l.b16 %v881
      %v938 = vunpack.c.l.b16 %v882
      %v939 = vunpack.c.l.b16 %v883
      %v940 = vunpack.c.l.b16 %v884
      %v941 = vunpack.c.l.b16 %v885
      %v942 = vpack.c.b16 %v927, %v926
      %v943 = vpack.c.b16 %v929, %v928
      %v944 = vpack.c.b16 %v931, %v930
      %v945 = vpack.c.b16 %v933, %v932
      %v946 = vpack.c.b16 %v935, %v934
      %v947 = vpack.c.b16 %v937, %v936
      %v948 = vpack.c.b16 %v939, %v938
      %v949 = vpack.c.b16 %v941, %v940
      %958 = vmatpush.bf16.msra.mxu0 %v949
      %959 = vmatpush.bf16.msra.mxu0 %v948
      %960 = vmatpush.bf16.msra.mxu0 %v947
      %961 = vmatpush.bf16.msra.mxu0 %v946
      %962 = vmatpush.bf16.msra.mxu0 %v945
      %963 = vmatpush.bf16.msra.mxu0 %v944
      %964 = vmatpush.bf16.msra.mxu0 %v943
      %965 = vmatpush.bf16.msra.mxu0 %v942
      %966 = vmatmul.bf16.gmra.mxu0 %v902
      %v967 = vpop.f32.mrf.mxu0
      %v968 = vadd.f32 0.0, %v967
      %v969 = vpop.f32.mrf.mxu0
      %v970 = vadd.f32 0.0, %v969
      %971 = vmatmul.bf16.gmra.mxu0 %v903
      %v972 = vpop.f32.mrf.mxu0
      %v973 = vadd.f32 0.0, %v972
      %v974 = vpop.f32.mrf.mxu0
      %v975 = vadd.f32 0.0, %v974
      %976 = vmatmul.bf16.gmra.mxu0 %v904
      %v977 = vpop.f32.mrf.mxu0
      %v978 = vadd.f32 0.0, %v977
      %v979 = vpop.f32.mrf.mxu0
      %v980 = vadd.f32 0.0, %v979
      %981 = vmatmul.bf16.gmra.mxu0 %v905
      %v982 = vpop.f32.mrf.mxu0
      %v983 = vadd.f32 0.0, %v982
      %v984 = vpop.f32.mrf.mxu0
      %v985 = vadd.f32 0.0, %v984
      %986 = vdwg.mxu0
      %v987 = vadd.f32 %v852, %v968
      %v988 = vadd.f32 %v853, %v970
      %v989 = vadd.f32 %v854, %v973
      %v990 = vadd.f32 %v855, %v975
      %v991 = vadd.f32 %v856, %v978
      %v992 = vadd.f32 %v857, %v980
      %v993 = vadd.f32 %v858, %v983
      %v994 = vadd.f32 %v859, %v985
      %v995 = vld [vmem:[%s725] sm:$0xf]
      %v996 = vld [vmem:[%s725 + $0x4] sm:$0x1]
      %v997 = vld [vmem:[%s725 + $0x8] sm:$0xf]
      %v998 = vld [vmem:[%s725 + $0xc] sm:$0x1]
      %v999 = vld [vmem:[%s725 + $0x10] sm:$0xf]
      %v1000 = vld [vmem:[%s725 + $0x14] sm:$0x1]
      %v1001 = vld [vmem:[%s725 + $0x18] sm:$0xf]
      %v1002 = vld [vmem:[%s725 + $0x1c] sm:$0x1]
      %v1003 = vld [vmem:[%s725 + $0x20] sm:$0xf]
      %v1004 = vld [vmem:[%s725 + $0x24] sm:$0x1]
      %v1005 = vld [vmem:[%s725 + $0x28] sm:$0xf]
      %v1006 = vld [vmem:[%s725 + $0x2c] sm:$0x1]
      %v1007 = vld [vmem:[%s725 + $0x30] sm:$0xf]
      %v1008 = vld [vmem:[%s725 + $0x34] sm:$0x1]
      %v1009 = vld [vmem:[%s725 + $0x38] sm:$0xf]
      %v1010 = vld [vmem:[%s725 + $0x3c] sm:$0x1]
      %v1012 = vshrl.u32 %v995, 16
      %v1014 = vrot.slane %v1012, 4
      %v1015 = vshll.u32 %v995, 16
      %v1017 = vrot.slane %v1015, 5
      %v1018 = vor.u32 %v1014, %v1017
      %v1019 = vrot.slane %v1018, 4
      %v1021 = vshll.u32 %v996, 16
      %v1023 = vrot.slane %v1021, 5
      %v1024 = vsel %vm494, %v1019, %v1023
      %v1026 = vshrl.u32 %v997, 16
      %v1028 = vrot.slane %v1026, 4
      %v1029 = vshll.u32 %v997, 16
      %v1031 = vrot.slane %v1029, 5
      %v1032 = vor.u32 %v1028, %v1031
      %v1033 = vrot.slane %v1032, 4
      %v1035 = vshll.u32 %v998, 16
      %v1037 = vrot.slane %v1035, 5
      %v1038 = vsel %vm494, %v1033, %v1037
      %v1040 = vshrl.u32 %v999, 16
      %v1042 = vrot.slane %v1040, 4
      %v1043 = vshll.u32 %v999, 16
      %v1045 = vrot.slane %v1043, 5
      %v1046 = vor.u32 %v1042, %v1045
      %v1047 = vrot.slane %v1046, 4
      %v1049 = vshll.u32 %v1000, 16
      %v1051 = vrot.slane %v1049, 5
      %v1052 = vsel %vm494, %v1047, %v1051
      %v1054 = vshrl.u32 %v1001, 16
      %v1056 = vrot.slane %v1054, 4
      %v1057 = vshll.u32 %v1001, 16
      %v1059 = vrot.slane %v1057, 5
      %v1060 = vor.u32 %v1056, %v1059
      %v1061 = vrot.slane %v1060, 4
      %v1063 = vshll.u32 %v1002, 16
      %v1065 = vrot.slane %v1063, 5
      %v1066 = vsel %vm494, %v1061, %v1065
      %v1068 = vshrl.u32 %v1003, 16
      %v1070 = vrot.slane %v1068, 4
      %v1071 = vshll.u32 %v1003, 16
      %v1073 = vrot.slane %v1071, 5
      %v1074 = vor.u32 %v1070, %v1073
      %v1075 = vrot.slane %v1074, 4
      %v1077 = vshll.u32 %v1004, 16
      %v1079 = vrot.slane %v1077, 5
      %v1080 = vsel %vm494, %v1075, %v1079
      %v1082 = vshrl.u32 %v1005, 16
      %v1084 = vrot.slane %v1082, 4
      %v1085 = vshll.u32 %v1005, 16
      %v1087 = vrot.slane %v1085, 5
      %v1088 = vor.u32 %v1084, %v1087
      %v1089 = vrot.slane %v1088, 4
      %v1091 = vshll.u32 %v1006, 16
      %v1093 = vrot.slane %v1091, 5
      %v1094 = vsel %vm494, %v1089, %v1093
      %v1096 = vshrl.u32 %v1007, 16
      %v1098 = vrot.slane %v1096, 4
      %v1099 = vshll.u32 %v1007, 16
      %v1101 = vrot.slane %v1099, 5
      %v1102 = vor.u32 %v1098, %v1101
      %v1103 = vrot.slane %v1102, 4
      %v1105 = vshll.u32 %v1008, 16
      %v1107 = vrot.slane %v1105, 5
      %v1108 = vsel %vm494, %v1103, %v1107
      %v1110 = vshrl.u32 %v1009, 16
      %v1112 = vrot.slane %v1110, 4
      %v1113 = vshll.u32 %v1009, 16
      %v1115 = vrot.slane %v1113, 5
      %v1116 = vor.u32 %v1112, %v1115
      %v1117 = vrot.slane %v1116, 4
      %v1119 = vshll.u32 %v1010, 16
      %v1121 = vrot.slane %v1119, 5
      %v1122 = vsel %vm494, %v1117, %v1121
      %s1123 = scalar_lea.vmem %s1, 320
      %v1124 = vld [vmem:[%s1123] sm:$0xf]
      %v1125 = vld [vmem:[%s1123 + $0x4] sm:$0xf]
      %v1126 = vld [vmem:[%s1123 + $0x8] sm:$0xf]
      %v1127 = vld [vmem:[%s1123 + $0xc] sm:$0xf]
      %v1128 = vld [vmem:[%s1123 + $0x10] sm:$0xf]
      %v1129 = vld [vmem:[%s1123 + $0x14] sm:$0xf]
      %v1130 = vld [vmem:[%s1123 + $0x18] sm:$0xf]
      %v1131 = vld [vmem:[%s1123 + $0x1c] sm:$0xf]
      %v1132 = vld [vmem:[%s1123 + $0x20] sm:$0xf]
      %v1133 = vld [vmem:[%s1123 + $0x24] sm:$0xf]
      %v1134 = vld [vmem:[%s1123 + $0x28] sm:$0xf]
      %v1135 = vld [vmem:[%s1123 + $0x2c] sm:$0xf]
      %v1136 = vld [vmem:[%s1123 + $0x30] sm:$0xf]
      %v1137 = vld [vmem:[%s1123 + $0x34] sm:$0xf]
      %v1138 = vld [vmem:[%s1123 + $0x38] sm:$0xf]
      %v1139 = vld [vmem:[%s1123 + $0x3c] sm:$0xf]
      %v1140 = vunpack.c.l.b16 %v1024
      %v1141 = vunpack.c.l.b16 %v1038
      %v1142 = vunpack.c.l.b16 %v1052
      %v1143 = vunpack.c.l.b16 %v1066
      %v1144 = vunpack.c.l.b16 %v1080
      %v1145 = vunpack.c.l.b16 %v1094
      %v1146 = vunpack.c.l.b16 %v1108
      %v1147 = vunpack.c.l.b16 %v1122
      %v1148 = vpack.c.b16 %v1141, %v1140
      %v1149 = vpack.c.b16 %v1143, %v1142
      %v1150 = vpack.c.b16 %v1145, %v1144
      %v1151 = vpack.c.b16 %v1147, %v1146
      %v1172 = vunpack.c.l.b16 %v1124
      %v1173 = vunpack.c.l.b16 %v1125
      %v1174 = vunpack.c.l.b16 %v1126
      %v1175 = vunpack.c.l.b16 %v1127
      %v1176 = vunpack.c.l.b16 %v1128
      %v1177 = vunpack.c.l.b16 %v1129
      %v1178 = vunpack.c.l.b16 %v1130
      %v1179 = vunpack.c.l.b16 %v1131
      %v1180 = vunpack.c.l.b16 %v1132
      %v1181 = vunpack.c.l.b16 %v1133
      %v1182 = vunpack.c.l.b16 %v1134
      %v1183 = vunpack.c.l.b16 %v1135
      %v1184 = vunpack.c.l.b16 %v1136
      %v1185 = vunpack.c.l.b16 %v1137
      %v1186 = vunpack.c.l.b16 %v1138
      %v1187 = vunpack.c.l.b16 %v1139
      %v1188 = vpack.c.b16 %v1173, %v1172
      %v1189 = vpack.c.b16 %v1175, %v1174
      %v1190 = vpack.c.b16 %v1177, %v1176
      %v1191 = vpack.c.b16 %v1179, %v1178
      %v1192 = vpack.c.b16 %v1181, %v1180
      %v1193 = vpack.c.b16 %v1183, %v1182
      %v1194 = vpack.c.b16 %v1185, %v1184
      %v1195 = vpack.c.b16 %v1187, %v1186
      %1204 = vmatpush.bf16.msra.mxu0 %v1195
      %1205 = vmatpush.bf16.msra.mxu0 %v1194
      %1206 = vmatpush.bf16.msra.mxu0 %v1193
      %1207 = vmatpush.bf16.msra.mxu0 %v1192
      %1208 = vmatpush.bf16.msra.mxu0 %v1191
      %1209 = vmatpush.bf16.msra.mxu0 %v1190
      %1210 = vmatpush.bf16.msra.mxu0 %v1189
      %1211 = vmatpush.bf16.msra.mxu0 %v1188
      %1212 = vmatmul.bf16.gmra.mxu0 %v1148
      %v1213 = vpop.f32.mrf.mxu0
      %v1214 = vadd.f32 0.0, %v1213
      %v1215 = vpop.f32.mrf.mxu0
      %v1216 = vadd.f32 0.0, %v1215
      %1217 = vmatmul.bf16.gmra.mxu0 %v1149
      %v1218 = vpop.f32.mrf.mxu0
      %v1219 = vadd.f32 0.0, %v1218
      %v1220 = vpop.f32.mrf.mxu0
      %v1221 = vadd.f32 0.0, %v1220
      %1222 = vmatmul.bf16.gmra.mxu0 %v1150
      %v1223 = vpop.f32.mrf.mxu0
      %v1224 = vadd.f32 0.0, %v1223
      %v1225 = vpop.f32.mrf.mxu0
      %v1226 = vadd.f32 0.0, %v1225
      %1227 = vmatmul.bf16.gmra.mxu0 %v1151
      %v1228 = vpop.f32.mrf.mxu0
      %v1229 = vadd.f32 0.0, %v1228
      %v1230 = vpop.f32.mrf.mxu0
      %v1231 = vadd.f32 0.0, %v1230
      %1232 = vdwg.mxu0
      %v1233 = vadd.f32 %v987, %v1214
      %v1234 = vadd.f32 %v988, %v1216
      %v1235 = vadd.f32 %v989, %v1219
      %v1236 = vadd.f32 %v990, %v1221
      %v1237 = vadd.f32 %v991, %v1224
      %v1238 = vadd.f32 %v992, %v1226
      %v1239 = vadd.f32 %v993, %v1229
      %v1240 = vadd.f32 %v994, %v1231
      %s1241 = scalar_lea.vmem %s211, 8
      %v1242 = vld [vmem:[%s1241] sm:$0xf]
      %v1243 = vld [vmem:[%s1241 + $0x8] sm:$0xf]
      %v1244 = vld [vmem:[%s1241 + $0x10] sm:$0xf]
      %v1245 = vld [vmem:[%s1241 + $0x18] sm:$0xf]
      %v1246 = vld [vmem:[%s1241 + $0x20] sm:$0xf]
      %v1247 = vld [vmem:[%s1241 + $0x28] sm:$0xf]
      %v1248 = vld [vmem:[%s1241 + $0x30] sm:$0xf]
      %v1249 = vld [vmem:[%s1241 + $0x38] sm:$0xf]
      %s1250 = scalar_lea.vmem %s1, 384
      %v1251 = vld [vmem:[%s1250] sm:$0xf]
      %v1252 = vld [vmem:[%s1250 + $0x4] sm:$0xf]
      %v1253 = vld [vmem:[%s1250 + $0x8] sm:$0xf]
      %v1254 = vld [vmem:[%s1250 + $0xc] sm:$0xf]
      %v1255 = vld [vmem:[%s1250 + $0x10] sm:$0xf]
      %v1256 = vld [vmem:[%s1250 + $0x14] sm:$0xf]
      %v1257 = vld [vmem:[%s1250 + $0x18] sm:$0xf]
      %v1258 = vld [vmem:[%s1250 + $0x1c] sm:$0xf]
      %v1259 = vld [vmem:[%s1250 + $0x20] sm:$0xf]
      %v1260 = vld [vmem:[%s1250 + $0x24] sm:$0xf]
      %v1261 = vld [vmem:[%s1250 + $0x28] sm:$0xf]
      %v1262 = vld [vmem:[%s1250 + $0x2c] sm:$0xf]
      %v1263 = vld [vmem:[%s1250 + $0x30] sm:$0xf]
      %v1264 = vld [vmem:[%s1250 + $0x34] sm:$0xf]
      %v1265 = vld [vmem:[%s1250 + $0x38] sm:$0xf]
      %v1266 = vld [vmem:[%s1250 + $0x3c] sm:$0xf]
      %v1275 = vunpack.c.l.b16 %v1242
      %v1276 = vunpack.c.l.b16 %v1243
      %v1277 = vunpack.c.l.b16 %v1244
      %v1278 = vunpack.c.l.b16 %v1245
      %v1279 = vunpack.c.l.b16 %v1246
      %v1280 = vunpack.c.l.b16 %v1247
      %v1281 = vunpack.c.l.b16 %v1248
      %v1282 = vunpack.c.l.b16 %v1249
      %v1283 = vpack.c.b16 %v1276, %v1275
      %v1284 = vpack.c.b16 %v1278, %v1277
      %v1285 = vpack.c.b16 %v1280, %v1279
      %v1286 = vpack.c.b16 %v1282, %v1281
      %v1307 = vunpack.c.l.b16 %v1251
      %v1308 = vunpack.c.l.b16 %v1252
      %v1309 = vunpack.c.l.b16 %v1253
      %v1310 = vunpack.c.l.b16 %v1254
      %v1311 = vunpack.c.l.b16 %v1255
      %v1312 = vunpack.c.l.b16 %v1256
      %v1313 = vunpack.c.l.b16 %v1257
      %v1314 = vunpack.c.l.b16 %v1258
      %v1315 = vunpack.c.l.b16 %v1259
      %v1316 = vunpack.c.l.b16 %v1260
      %v1317 = vunpack.c.l.b16 %v1261
      %v1318 = vunpack.c.l.b16 %v1262
      %v1319 = vunpack.c.l.b16 %v1263
      %v1320 = vunpack.c.l.b16 %v1264
      %v1321 = vunpack.c.l.b16 %v1265
      %v1322 = vunpack.c.l.b16 %v1266
      %v1323 = vpack.c.b16 %v1308, %v1307
      %v1324 = vpack.c.b16 %v1310, %v1309
      %v1325 = vpack.c.b16 %v1312, %v1311
      %v1326 = vpack.c.b16 %v1314, %v1313
      %v1327 = vpack.c.b16 %v1316, %v1315
      %v1328 = vpack.c.b16 %v1318, %v1317
      %v1329 = vpack.c.b16 %v1320, %v1319
      %v1330 = vpack.c.b16 %v1322, %v1321
      %1339 = vmatpush.bf16.msra.mxu0 %v1330
      %1340 = vmatpush.bf16.msra.mxu0 %v1329
      %1341 = vmatpush.bf16.msra.mxu0 %v1328
      %1342 = vmatpush.bf16.msra.mxu0 %v1327
      %1343 = vmatpush.bf16.msra.mxu0 %v1326
      %1344 = vmatpush.bf16.msra.mxu0 %v1325
      %1345 = vmatpush.bf16.msra.mxu0 %v1324
      %1346 = vmatpush.bf16.msra.mxu0 %v1323
      %1347 = vmatmul.bf16.gmra.mxu0 %v1283
      %v1348 = vpop.f32.mrf.mxu0
      %v1349 = vadd.f32 0.0, %v1348
      %v1350 = vpop.f32.mrf.mxu0
      %v1351 = vadd.f32 0.0, %v1350
      %1352 = vmatmul.bf16.gmra.mxu0 %v1284
      %v1353 = vpop.f32.mrf.mxu0
      %v1354 = vadd.f32 0.0, %v1353
      %v1355 = vpop.f32.mrf.mxu0
      %v1356 = vadd.f32 0.0, %v1355
      %1357 = vmatmul.bf16.gmra.mxu0 %v1285
      %v1358 = vpop.f32.mrf.mxu0
      %v1359 = vadd.f32 0.0, %v1358
      %v1360 = vpop.f32.mrf.mxu0
      %v1361 = vadd.f32 0.0, %v1360
      %1362 = vmatmul.bf16.gmra.mxu0 %v1286
      %v1363 = vpop.f32.mrf.mxu0
      %v1364 = vadd.f32 0.0, %v1363
      %v1365 = vpop.f32.mrf.mxu0
      %v1366 = vadd.f32 0.0, %v1365
      %1367 = vdwg.mxu0
      %v1368 = vadd.f32 %v1233, %v1349
      %v1369 = vadd.f32 %v1234, %v1351
      %v1370 = vadd.f32 %v1235, %v1354
      %v1371 = vadd.f32 %v1236, %v1356
      %v1372 = vadd.f32 %v1237, %v1359
      %v1373 = vadd.f32 %v1238, %v1361
      %v1374 = vadd.f32 %v1239, %v1364
      %v1375 = vadd.f32 %v1240, %v1366
      %s1376 = scalar_lea.vmem %s211, 80
      %v1377 = vld [vmem:[%s1376] sm:$0xf]
      %v1378 = vld [vmem:[%s1376 + $0x8] sm:$0xf]
      %v1379 = vld [vmem:[%s1376 + $0x10] sm:$0xf]
      %v1380 = vld [vmem:[%s1376 + $0x18] sm:$0xf]
      %v1381 = vld [vmem:[%s1376 + $0x20] sm:$0xf]
      %v1382 = vld [vmem:[%s1376 + $0x28] sm:$0xf]
      %v1383 = vld [vmem:[%s1376 + $0x30] sm:$0xf]
      %v1384 = vld [vmem:[%s1376 + $0x38] sm:$0xf]
      %s1385 = scalar_lea.vmem %s1, 448
      %v1386 = vld [vmem:[%s1385] sm:$0xf]
      %v1387 = vld [vmem:[%s1385 + $0x4] sm:$0xf]
      %v1388 = vld [vmem:[%s1385 + $0x8] sm:$0xf]
      %v1389 = vld [vmem:[%s1385 + $0xc] sm:$0xf]
      %v1390 = vld [vmem:[%s1385 + $0x10] sm:$0xf]
      %v1391 = vld [vmem:[%s1385 + $0x14] sm:$0xf]
      %v1392 = vld [vmem:[%s1385 + $0x18] sm:$0xf]
      %v1393 = vld [vmem:[%s1385 + $0x1c] sm:$0xf]
      %v1394 = vld [vmem:[%s1385 + $0x20] sm:$0xf]
      %v1395 = vld [vmem:[%s1385 + $0x24] sm:$0xf]
      %v1396 = vld [vmem:[%s1385 + $0x28] sm:$0xf]
      %v1397 = vld [vmem:[%s1385 + $0x2c] sm:$0xf]
      %v1398 = vld [vmem:[%s1385 + $0x30] sm:$0xf]
      %v1399 = vld [vmem:[%s1385 + $0x34] sm:$0xf]
      %v1400 = vld [vmem:[%s1385 + $0x38] sm:$0xf]
      %v1401 = vld [vmem:[%s1385 + $0x3c] sm:$0xf]
      %v1410 = vunpack.c.l.b16 %v1377
      %v1411 = vunpack.c.l.b16 %v1378
      %v1412 = vunpack.c.l.b16 %v1379
      %v1413 = vunpack.c.l.b16 %v1380
      %v1414 = vunpack.c.l.b16 %v1381
      %v1415 = vunpack.c.l.b16 %v1382
      %v1416 = vunpack.c.l.b16 %v1383
      %v1417 = vunpack.c.l.b16 %v1384
      %v1418 = vpack.c.b16 %v1411, %v1410
      %v1419 = vpack.c.b16 %v1413, %v1412
      %v1420 = vpack.c.b16 %v1415, %v1414
      %v1421 = vpack.c.b16 %v1417, %v1416
      %v1442 = vunpack.c.l.b16 %v1386
      %v1443 = vunpack.c.l.b16 %v1387
      %v1444 = vunpack.c.l.b16 %v1388
      %v1445 = vunpack.c.l.b16 %v1389
      %v1446 = vunpack.c.l.b16 %v1390
      %v1447 = vunpack.c.l.b16 %v1391
      %v1448 = vunpack.c.l.b16 %v1392
      %v1449 = vunpack.c.l.b16 %v1393
      %v1450 = vunpack.c.l.b16 %v1394
      %v1451 = vunpack.c.l.b16 %v1395
      %v1452 = vunpack.c.l.b16 %v1396
      %v1453 = vunpack.c.l.b16 %v1397
      %v1454 = vunpack.c.l.b16 %v1398
      %v1455 = vunpack.c.l.b16 %v1399
      %v1456 = vunpack.c.l.b16 %v1400
      %v1457 = vunpack.c.l.b16 %v1401
      %v1458 = vpack.c.b16 %v1443, %v1442
      %v1459 = vpack.c.b16 %v1445, %v1444
      %v1460 = vpack.c.b16 %v1447, %v1446
      %v1461 = vpack.c.b16 %v1449, %v1448
      %v1462 = vpack.c.b16 %v1451, %v1450
      %v1463 = vpack.c.b16 %v1453, %v1452
      %v1464 = vpack.c.b16 %v1455, %v1454
      %v1465 = vpack.c.b16 %v1457, %v1456
      %1474 = vmatpush.bf16.msra.mxu0 %v1465
      %1475 = vmatpush.bf16.msra.mxu0 %v1464
      %1476 = vmatpush.bf16.msra.mxu0 %v1463
      %1477 = vmatpush.bf16.msra.mxu0 %v1462
      %1478 = vmatpush.bf16.msra.mxu0 %v1461
      %1479 = vmatpush.bf16.msra.mxu0 %v1460
      %1480 = vmatpush.bf16.msra.mxu0 %v1459
      %1481 = vmatpush.bf16.msra.mxu0 %v1458
      %1482 = vmatmul.bf16.gmra.mxu0 %v1418
      %v1483 = vpop.f32.mrf.mxu0
      %v1484 = vadd.f32 0.0, %v1483
      %v1485 = vpop.f32.mrf.mxu0
      %v1486 = vadd.f32 0.0, %v1485
      %1487 = vmatmul.bf16.gmra.mxu0 %v1419
      %v1488 = vpop.f32.mrf.mxu0
      %v1489 = vadd.f32 0.0, %v1488
      %v1490 = vpop.f32.mrf.mxu0
      %v1491 = vadd.f32 0.0, %v1490
      %1492 = vmatmul.bf16.gmra.mxu0 %v1420
      %v1493 = vpop.f32.mrf.mxu0
      %v1494 = vadd.f32 0.0, %v1493
      %v1495 = vpop.f32.mrf.mxu0
      %v1496 = vadd.f32 0.0, %v1495
      %1497 = vmatmul.bf16.gmra.mxu0 %v1421
      %v1498 = vpop.f32.mrf.mxu0
      %v1499 = vadd.f32 0.0, %v1498
      %v1500 = vpop.f32.mrf.mxu0
      %v1501 = vadd.f32 0.0, %v1500
      %1502 = vdwg.mxu0
      %v1503 = vadd.f32 %v1368, %v1484
      %v1504 = vadd.f32 %v1369, %v1486
      %v1505 = vadd.f32 %v1370, %v1489
      %v1506 = vadd.f32 %v1371, %v1491
      %v1507 = vadd.f32 %v1372, %v1494
      %v1508 = vadd.f32 %v1373, %v1496
      %v1509 = vadd.f32 %v1374, %v1499
      %v1510 = vadd.f32 %v1375, %v1501
      %v1511 = vld [vmem:[%s1241] sm:$0xf]
      %v1512 = vld [vmem:[%s1241 + $0x4] sm:$0x1]
      %v1513 = vld [vmem:[%s1241 + $0x8] sm:$0xf]
      %v1514 = vld [vmem:[%s1241 + $0xc] sm:$0x1]
      %v1515 = vld [vmem:[%s1241 + $0x10] sm:$0xf]
      %v1516 = vld [vmem:[%s1241 + $0x14] sm:$0x1]
      %v1517 = vld [vmem:[%s1241 + $0x18] sm:$0xf]
      %v1518 = vld [vmem:[%s1241 + $0x1c] sm:$0x1]
      %v1519 = vld [vmem:[%s1241 + $0x20] sm:$0xf]
      %v1520 = vld [vmem:[%s1241 + $0x24] sm:$0x1]
      %v1521 = vld [vmem:[%s1241 + $0x28] sm:$0xf]
      %v1522 = vld [vmem:[%s1241 + $0x2c] sm:$0x1]
      %v1523 = vld [vmem:[%s1241 + $0x30] sm:$0xf]
      %v1524 = vld [vmem:[%s1241 + $0x34] sm:$0x1]
      %v1525 = vld [vmem:[%s1241 + $0x38] sm:$0xf]
      %v1526 = vld [vmem:[%s1241 + $0x3c] sm:$0x1]
      %v1528 = vshrl.u32 %v1511, 16
      %v1530 = vrot.slane %v1528, 4
      %v1531 = vshll.u32 %v1511, 16
      %v1533 = vrot.slane %v1531, 5
      %v1534 = vor.u32 %v1530, %v1533
      %v1535 = vrot.slane %v1534, 4
      %v1537 = vshll.u32 %v1512, 16
      %v1539 = vrot.slane %v1537, 5
      %v1540 = vsel %vm494, %v1535, %v1539
      %v1542 = vshrl.u32 %v1513, 16
      %v1544 = vrot.slane %v1542, 4
      %v1545 = vshll.u32 %v1513, 16
      %v1547 = vrot.slane %v1545, 5
      %v1548 = vor.u32 %v1544, %v1547
      %v1549 = vrot.slane %v1548, 4
      %v1551 = vshll.u32 %v1514, 16
      %v1553 = vrot.slane %v1551, 5
      %v1554 = vsel %vm494, %v1549, %v1553
      %v1556 = vshrl.u32 %v1515, 16
      %v1558 = vrot.slane %v1556, 4
      %v1559 = vshll.u32 %v1515, 16
      %v1561 = vrot.slane %v1559, 5
      %v1562 = vor.u32 %v1558, %v1561
      %v1563 = vrot.slane %v1562, 4
      %v1565 = vshll.u32 %v1516, 16
      %v1567 = vrot.slane %v1565, 5
      %v1568 = vsel %vm494, %v1563, %v1567
      %v1570 = vshrl.u32 %v1517, 16
      %v1572 = vrot.slane %v1570, 4
      %v1573 = vshll.u32 %v1517, 16
      %v1575 = vrot.slane %v1573, 5
      %v1576 = vor.u32 %v1572, %v1575
      %v1577 = vrot.slane %v1576, 4
      %v1579 = vshll.u32 %v1518, 16
      %v1581 = vrot.slane %v1579, 5
      %v1582 = vsel %vm494, %v1577, %v1581
      %v1584 = vshrl.u32 %v1519, 16
      %v1586 = vrot.slane %v1584, 4
      %v1587 = vshll.u32 %v1519, 16
      %v1589 = vrot.slane %v1587, 5
      %v1590 = vor.u32 %v1586, %v1589
      %v1591 = vrot.slane %v1590, 4
      %v1593 = vshll.u32 %v1520, 16
      %v1595 = vrot.slane %v1593, 5
      %v1596 = vsel %vm494, %v1591, %v1595
      %v1598 = vshrl.u32 %v1521, 16
      %v1600 = vrot.slane %v1598, 4
      %v1601 = vshll.u32 %v1521, 16
      %v1603 = vrot.slane %v1601, 5
      %v1604 = vor.u32 %v1600, %v1603
      %v1605 = vrot.slane %v1604, 4
      %v1607 = vshll.u32 %v1522, 16
      %v1609 = vrot.slane %v1607, 5
      %v1610 = vsel %vm494, %v1605, %v1609
      %v1612 = vshrl.u32 %v1523, 16
      %v1614 = vrot.slane %v1612, 4
      %v1615 = vshll.u32 %v1523, 16
      %v1617 = vrot.slane %v1615, 5
      %v1618 = vor.u32 %v1614, %v1617
      %v1619 = vrot.slane %v1618, 4
      %v1621 = vshll.u32 %v1524, 16
      %v1623 = vrot.slane %v1621, 5
      %v1624 = vsel %vm494, %v1619, %v1623
      %v1626 = vshrl.u32 %v1525, 16
      %v1628 = vrot.slane %v1626, 4
      %v1629 = vshll.u32 %v1525, 16
      %v1631 = vrot.slane %v1629, 5
      %v1632 = vor.u32 %v1628, %v1631
      %v1633 = vrot.slane %v1632, 4
      %v1635 = vshll.u32 %v1526, 16
      %v1637 = vrot.slane %v1635, 5
      %v1638 = vsel %vm494, %v1633, %v1637
      %s1639 = scalar_lea.vmem %s1, 512
      %v1640 = vld [vmem:[%s1639] sm:$0xf]
      %v1641 = vld [vmem:[%s1639 + $0x4] sm:$0xf]
      %v1642 = vld [vmem:[%s1639 + $0x8] sm:$0xf]
      %v1643 = vld [vmem:[%s1639 + $0xc] sm:$0xf]
      %v1644 = vld [vmem:[%s1639 + $0x10] sm:$0xf]
      %v1645 = vld [vmem:[%s1639 + $0x14] sm:$0xf]
      %v1646 = vld [vmem:[%s1639 + $0x18] sm:$0xf]
      %v1647 = vld [vmem:[%s1639 + $0x1c] sm:$0xf]
      %v1648 = vld [vmem:[%s1639 + $0x20] sm:$0xf]
      %v1649 = vld [vmem:[%s1639 + $0x24] sm:$0xf]
      %v1650 = vld [vmem:[%s1639 + $0x28] sm:$0xf]
      %v1651 = vld [vmem:[%s1639 + $0x2c] sm:$0xf]
      %v1652 = vld [vmem:[%s1639 + $0x30] sm:$0xf]
      %v1653 = vld [vmem:[%s1639 + $0x34] sm:$0xf]
      %v1654 = vld [vmem:[%s1639 + $0x38] sm:$0xf]
      %v1655 = vld [vmem:[%s1639 + $0x3c] sm:$0xf]
      %v1656 = vunpack.c.l.b16 %v1540
      %v1657 = vunpack.c.l.b16 %v1554
      %v1658 = vunpack.c.l.b16 %v1568
      %v1659 = vunpack.c.l.b16 %v1582
      %v1660 = vunpack.c.l.b16 %v1596
      %v1661 = vunpack.c.l.b16 %v1610
      %v1662 = vunpack.c.l.b16 %v1624
      %v1663 = vunpack.c.l.b16 %v1638
      %v1664 = vpack.c.b16 %v1657, %v1656
      %v1665 = vpack.c.b16 %v1659, %v1658
      %v1666 = vpack.c.b16 %v1661, %v1660
      %v1667 = vpack.c.b16 %v1663, %v1662
      %v1688 = vunpack.c.l.b16 %v1640
      %v1689 = vunpack.c.l.b16 %v1641
      %v1690 = vunpack.c.l.b16 %v1642
      %v1691 = vunpack.c.l.b16 %v1643
      %v1692 = vunpack.c.l.b16 %v1644
      %v1693 = vunpack.c.l.b16 %v1645
      %v1694 = vunpack.c.l.b16 %v1646
      %v1695 = vunpack.c.l.b16 %v1647
      %v1696 = vunpack.c.l.b16 %v1648
      %v1697 = vunpack.c.l.b16 %v1649
      %v1698 = vunpack.c.l.b16 %v1650
      %v1699 = vunpack.c.l.b16 %v1651
      %v1700 = vunpack.c.l.b16 %v1652
      %v1701 = vunpack.c.l.b16 %v1653
      %v1702 = vunpack.c.l.b16 %v1654
      %v1703 = vunpack.c.l.b16 %v1655
      %v1704 = vpack.c.b16 %v1689, %v1688
      %v1705 = vpack.c.b16 %v1691, %v1690
      %v1706 = vpack.c.b16 %v1693, %v1692
      %v1707 = vpack.c.b16 %v1695, %v1694
      %v1708 = vpack.c.b16 %v1697, %v1696
      %v1709 = vpack.c.b16 %v1699, %v1698
      %v1710 = vpack.c.b16 %v1701, %v1700
      %v1711 = vpack.c.b16 %v1703, %v1702
      %1720 = vmatpush.bf16.msra.mxu0 %v1711
      %1721 = vmatpush.bf16.msra.mxu0 %v1710
      %1722 = vmatpush.bf16.msra.mxu0 %v1709
      %1723 = vmatpush.bf16.msra.mxu0 %v1708
      %1724 = vmatpush.bf16.msra.mxu0 %v1707
      %1725 = vmatpush.bf16.msra.mxu0 %v1706
      %1726 = vmatpush.bf16.msra.mxu0 %v1705
      %1727 = vmatpush.bf16.msra.mxu0 %v1704
      %1728 = vmatmul.bf16.gmra.mxu0 %v1664
      %v1729 = vpop.f32.mrf.mxu0
      %v1730 = vadd.f32 0.0, %v1729
      %v1731 = vpop.f32.mrf.mxu0
      %v1732 = vadd.f32 0.0, %v1731
      %1733 = vmatmul.bf16.gmra.mxu0 %v1665
      %v1734 = vpop.f32.mrf.mxu0
      %v1735 = vadd.f32 0.0, %v1734
      %v1736 = vpop.f32.mrf.mxu0
      %v1737 = vadd.f32 0.0, %v1736
      %1738 = vmatmul.bf16.gmra.mxu0 %v1666
      %v1739 = vpop.f32.mrf.mxu0
      %v1740 = vadd.f32 0.0, %v1739
      %v1741 = vpop.f32.mrf.mxu0
      %v1742 = vadd.f32 0.0, %v1741
      %1743 = vmatmul.bf16.gmra.mxu0 %v1667
      %v1744 = vpop.f32.mrf.mxu0
      %v1745 = vadd.f32 0.0, %v1744
      %v1746 = vpop.f32.mrf.mxu0
      %v1747 = vadd.f32 0.0, %v1746
      %1748 = vdwg.mxu0
      %v1749 = vadd.f32 %v1503, %v1730
      %v1750 = vadd.f32 %v1504, %v1732
      %v1751 = vadd.f32 %v1505, %v1735
      %v1752 = vadd.f32 %v1506, %v1737
      %v1753 = vadd.f32 %v1507, %v1740
      %v1754 = vadd.f32 %v1508, %v1742
      %v1755 = vadd.f32 %v1509, %v1745
      %v1756 = vadd.f32 %v1510, %v1747
      %v1758 = vperm.slane %v223, 0
      %v1760 = vadd.f32 %v1749, %v1758
      %v1761 = vadd.f32 %v1750, %v1758
      %v1762 = vadd.f32 %v1751, %v1758
      %v1763 = vadd.f32 %v1752, %v1758
      %v1764 = vadd.f32 %v1753, %v1758
      %v1765 = vadd.f32 %v1754, %v1758
      %v1766 = vadd.f32 %v1755, %v1758
      %v1767 = vadd.f32 %v1756, %v1758
      %v1768 = vmax.f32 %v1760, 0.0
      %v1769 = vmax.f32 %v1761, 0.0
      %v1770 = vmax.f32 %v1762, 0.0
      %v1771 = vmax.f32 %v1763, 0.0
      %v1772 = vmax.f32 %v1764, 0.0
      %v1773 = vmax.f32 %v1765, 0.0
      %v1774 = vmax.f32 %v1766, 0.0
      %v1775 = vmax.f32 %v1767, 0.0
      %v1776 = vld [vmem:[%s217] sm:$0xf]
      %v1777 = vld [vmem:[%s217 + $0x4] sm:$0xf]
      %v1778 = vld [vmem:[%s217 + $0x8] sm:$0xf]
      %v1779 = vld [vmem:[%s217 + $0xc] sm:$0xf]
      %v1780 = vld [vmem:[%s217 + $0x10] sm:$0xf]
      %v1781 = vld [vmem:[%s217 + $0x14] sm:$0xf]
      %v1782 = vld [vmem:[%s217 + $0x18] sm:$0xf]
      %v1783 = vld [vmem:[%s217 + $0x1c] sm:$0xf]
      %v1784 = vunpack.c.l.bf16 %v1776
      %v1785 = vunpack.c.l.bf16 %v1777
      %v1786 = vunpack.c.l.bf16 %v1778
      %v1787 = vunpack.c.l.bf16 %v1779
      %v1788 = vunpack.c.l.bf16 %v1780
      %v1789 = vunpack.c.l.bf16 %v1781
      %v1790 = vunpack.c.l.bf16 %v1782
      %v1791 = vunpack.c.l.bf16 %v1783
      %v1792 = vadd.f32 %v1768, %v1784
      %v1793 = vadd.f32 %v1769, %v1785
      %v1794 = vadd.f32 %v1770, %v1786
      %v1795 = vadd.f32 %v1771, %v1787
      %v1796 = vadd.f32 %v1772, %v1788
      %v1797 = vadd.f32 %v1773, %v1789
      %v1798 = vadd.f32 %v1774, %v1790
      %v1799 = vadd.f32 %v1775, %v1791
      %1800 = vst [vmem:[%s222] sm:$0xff] %v1792
      %1801 = vst [vmem:[%s222 + $0x8] sm:$0xff] %v1793
      %1802 = vst [vmem:[%s222 + $0x10] sm:$0xff] %v1794
      %1803 = vst [vmem:[%s222 + $0x18] sm:$0xff] %v1795
      %1804 = vst [vmem:[%s222 + $0x20] sm:$0xff] %v1796
      %1805 = vst [vmem:[%s222 + $0x28] sm:$0xff] %v1797
      %1806 = vst [vmem:[%s222 + $0x30] sm:$0xff] %v1798
      %1807 = vst [vmem:[%s222 + $0x38] sm:$0xff] %v1799
      %p1808 = scmp.lt.s32.totalorder %s15, 1
      %s1809 = scalar_select %p1808, %s15, 1
      %s1810 = smul.addr %s1809, 8
      %s1811 = smul.addr %s1810, 8
      %s1812 = scalar_lea.vmem %s4, %s1811
      // Predicated region
      $region37: #{goctave_forward.6} parent=35 // pred_check
        %p1813 = pneg %p127
      $region38: #{goctave_forward.6} parent=35 // pred_check_branch
        %1815 = sbr.rel (%p1813) target = $region40
      $region39: #{goctave_forward.6} parent=35 // pred_region
        _
      $region40: #{goctave_forward.6} parent=35 // pred_fallthru
        _
    $region36: #{goctave_forward.6} parent=5 // pred_fallthru
      _
    %p1816 = scmp.le.s32.totalorder 2, %s10
    // Predicated region
    $region41: #{goctave_forward.6} parent=5 // pred_check
      %p1817 = pneg %p1816
    $region42: #{goctave_forward.6} parent=5 // pred_check_branch
      %1819 = sbr.rel (%p1817) target = $region44
    $region43: #{goctave_forward.6} parent=5 // pred_region
      %s1820 = ssub.s32 %s10, 2
      // Predicated region
      $region45: #{goctave_forward.6} parent=43 // pred_check
        %p1821 = pneg %p133
      $region46: #{goctave_forward.6} parent=43 // pred_check_branch
        %1823 = sbr.rel (%p1821) target = $region48
      $region47: #{goctave_forward.6} parent=43 // pred_region
        %p1824 = scmp.lt.s32.totalorder %s16, 1
        %s1825 = scalar_select %p1824, %s16, 1
        %s1826 = smul.addr %s1825, 8
        %s1827 = smul.addr %s1826, 8
        %s1828 = scalar_lea.vmem %s4, %s1827
      $region48: #{goctave_forward.6} parent=43 // pred_fallthru
        _
    $region44: #{goctave_forward.6} parent=5 // pred_fallthru
      _
  $region6: #{goctave_forward.6} parent=0 // loop_footer
    %s14 = sadd.s32 1, %s10
  $region7: #{goctave_forward.6} parent=0 // loop_footer_branch
    %9 = sbr.rel target = $region3
  $region8: #{goctave_forward.6} parent=0 // loop_exit
    _

// kernel: goctave_forward.4
$region0: #{goctave_forward.4}
  #allocation0 [shape = 'u32[]', space=smem, size = 0x4, offset = 0x4, fixed_abs, tag = 'smem constant byte address 0x4 - core index']
  #allocation1 [shape = 'u32[72,128]{1,0:T(1,128)}', space=vmem, size = 0x9000, scoped, tag = 'internal scratch']
  %s0 = inlined_call_operand.vmem [shape: bf16[2,17,18,128], index: 0, kind: input, shape index: {}]
  %s1 = inlined_call_operand.vmem [shape: bf16[9,128,128], index: 1, kind: input, shape index: {}]
  %s2 = inlined_call_operand.vmem [shape: f32[1,128], index: 2, kind: input, shape index: {}]
  %s3 = inlined_call_operand.vmem [shape: bf16[2,15,16,128], index: 3, kind: output, shape index: {}]
  %s4 = sld [smem:[#allocation0]]
  $region45: #{goctave_forward.4} parent=0
    _
  %s6 = ssub.s32 1, %s4
  %s7 = scalar_select 0, %s6, %s4
  loop: start=0, step=1, limit=4
  $region2: #{goctave_forward.4} parent=0 // loop_pre_header
    _
  $region3: #{goctave_forward.4} parent=0 // loop_header
    %s9 = sphi 0, %s13
    %p10 = scmp.ge.s32.totalorder %s9, 4
    %s19 = sphi 0, %s21
    %s22 = sphi 0, %s19
    %s23 = sphi 0, %s22
    %s39 = sphi 0, %s23
    %s43 = sphi 0, %s43
    %s45 = sphi 0, %s43
    %s46 = sphi 0, %s45
    %s60 = sphi 0, %s46
    %s64 = sphi 0, %s64
    %s66 = sphi 0, %s64
    %s67 = sphi 0, %s66
    %s81 = sphi 0, %s67
    %s87 = sphi 0, %s89
    %s90 = sphi 0, %s87
    %s91 = sphi 0, %s90
    %s107 = sphi 0, %s91
  $region4: #{goctave_forward.4} parent=0 // loop_header_branch
    %12 = sbr.rel (%p10) target = $region8
  $region5: #{goctave_forward.4} parent=0 // loop_body
    %s14 = ssub.s32 %s9, 1
    %s15 = ssub.s32 %s9, 2
    %s16 = sadd.s32 %s9, 1
    %s17 = ssub.s32 %s9, %s16
    %p18 = scmp.eq.s32.totalorder %s17, 0
    %s20 = sadd.s32 %s19, 1
    %s21 = scalar_select %p18, %s19, %s20
    %p24 = pneg %p18
    %p25 = scmp.eq.s32.totalorder %s9, 1
    %p26 = por %p24, %p25
    %p27 = scmp.ne.s32.totalorder %s19, %s22
    %p28 = scmp.eq.s32.totalorder %s9, 0
    %p29 = por %p27, %p28
    %p30 = scmp.ne.s32.totalorder %s19, %s22
    %p31 = scmp.eq.s32.totalorder %s14, 1
    %p32 = por %p30, %p31
    %p33 = scmp.ne.s32.totalorder %s22, %s23
    %p34 = scmp.eq.s32.totalorder %s14, 0
    %p35 = por %p33, %p34
    %p36 = scmp.ne.s32.totalorder %s22, %s23
    %p37 = scmp.eq.s32.totalorder %s15, 1
    %p38 = por %p36, %p37
    %p40 = scmp.ne.s32.totalorder %s23, %s39
    %p41 = scmp.eq.s32.totalorder %s15, 0
    %p42 = por %p40, %p41
    %s44 = sadd.s32 %s43, 1
    %p47 = scmp.eq.s32.totalorder %s9, 1
    %p48 = scmp.ne.s32.totalorder %s43, %s45
    %p49 = scmp.eq.s32.totalorder %s9, 0
    %p50 = por %p48, %p49
    %p51 = scmp.ne.s32.totalorder %s43, %s45
    %p52 = scmp.eq.s32.totalorder %s14, 1
    %p53 = por %p51, %p52
    %p54 = scmp.ne.s32.totalorder %s45, %s46
    %p55 = scmp.eq.s32.totalorder %s14, 0
    %p56 = por %p54, %p55
    %p57 = scmp.ne.s32.totalorder %s45, %s46
    %p58 = scmp.eq.s32.totalorder %s15, 1
    %p59 = por %p57, %p58
    %p61 = scmp.ne.s32.totalorder %s46, %s60
    %p62 = scmp.eq.s32.totalorder %s15, 0
    %p63 = por %p61, %p62
    %s65 = sadd.s32 %s64, 1
    %p68 = scmp.eq.s32.totalorder %s9, 1
    %p69 = scmp.ne.s32.totalorder %s64, %s66
    %p70 = scmp.eq.s32.totalorder %s9, 0
    %p71 = por %p69, %p70
    %p72 = scmp.ne.s32.totalorder %s64, %s66
    %p73 = scmp.eq.s32.totalorder %s14, 1
    %p74 = por %p72, %p73
    %p75 = scmp.ne.s32.totalorder %s66, %s67
    %p76 = scmp.eq.s32.totalorder %s14, 0
    %p77 = por %p75, %p76
    %p78 = scmp.ne.s32.totalorder %s66, %s67
    %p79 = scmp.eq.s32.totalorder %s15, 1
    %p80 = por %p78, %p79
    %p82 = scmp.ne.s32.totalorder %s67, %s81
    %p83 = scmp.eq.s32.totalorder %s15, 0
    %p84 = por %p82, %p83
    %s85 = ssub.s32 %s9, %s16
    %p86 = scmp.eq.s32.totalorder %s85, 0
    %s88 = sadd.s32 %s87, 1
    %s89 = scalar_select %p86, %s87, %s88
    %p92 = pneg %p86
    %p93 = scmp.eq.s32.totalorder %s9, 1
    %p94 = por %p92, %p93
    %p95 = scmp.ne.s32.totalorder %s87, %s90
    %p96 = scmp.eq.s32.totalorder %s9, 0
    %p97 = por %p95, %p96
    %p98 = scmp.ne.s32.totalorder %s87, %s90
    %p99 = scmp.eq.s32.totalorder %s14, 1
    %p100 = por %p98, %p99
    %p101 = scmp.ne.s32.totalorder %s90, %s91
    %p102 = scmp.eq.s32.totalorder %s14, 0
    %p103 = por %p101, %p102
    %p104 = scmp.ne.s32.totalorder %s90, %s91
    %p105 = scmp.eq.s32.totalorder %s15, 1
    %p106 = por %p104, %p105
    %p108 = scmp.ne.s32.totalorder %s91, %s107
    %p109 = scmp.eq.s32.totalorder %s15, 0
    %p110 = por %p108, %p109
    %p111 = scmp.le.s32.totalorder 1, %s9
    %p112 = scmp.lt.s32.totalorder %s9, 3
    %p113 = pnand %p111, %p112
    %p114 = pneg %p113
    // Predicated region
    $region9: #{goctave_forward.4} parent=5 // pred_check
      _
    $region10: #{goctave_forward.4} parent=5 // pred_check_branch
      %116 = sbr.rel (%p113) target = $region12
    $region11: #{goctave_forward.4} parent=5 // pred_region
      %s117 = ssub.s32 %s9, 1
      // Predicated region
      $region13: #{goctave_forward.4} parent=11 // pred_check
        %p118 = pneg %p56
      $region14: #{goctave_forward.4} parent=11 // pred_check_branch
        %120 = sbr.rel (%p118) target = $region16
      $region15: #{goctave_forward.4} parent=11 // pred_region
        _
      $region16: #{goctave_forward.4} parent=11 // pred_fallthru
        _
      // Predicated region
      $region17: #{goctave_forward.4} parent=11 // pred_check
        %p121 = pneg %p77
      $region18: #{goctave_forward.4} parent=11 // pred_check_branch
        %123 = sbr.rel (%p121) target = $region20
      $region19: #{goctave_forward.4} parent=11 // pred_region
        _
      $region20: #{goctave_forward.4} parent=11 // pred_fallthru
        _
    $region12: #{goctave_forward.4} parent=5 // pred_fallthru
      _
    %p124 = scmp.lt.s32.totalorder %s9, 2
    // Predicated region
    $region21: #{goctave_forward.4} parent=5 // pred_check
      %p125 = pneg %p124
    $region22: #{goctave_forward.4} parent=5 // pred_check_branch
      %127 = sbr.rel (%p125) target = $region24
    $region23: #{goctave_forward.4} parent=5 // pred_region
      // Predicated region
      $region25: #{goctave_forward.4} parent=23 // pred_check
        %p128 = pneg %p29
      $region26: #{goctave_forward.4} parent=23 // pred_check_branch
        %130 = sbr.rel (%p128) target = $region28
      $region27: #{goctave_forward.4} parent=23 // pred_region
        %p131 = scmp.lt.s32.totalorder %s9, 1
        %s132 = scalar_select %p131, %s9, 1
        %s133 = smul.addr %s132, 51
        %s134 = smul.addr %s133, 4
        %s135 = scalar_lea.vmem %s0, %s134
      $region28: #{goctave_forward.4} parent=23 // pred_fallthru
        _
    $region24: #{goctave_forward.4} parent=5 // pred_fallthru
      _
    %p136 = scmp.le.s32.totalorder 1, %s9
    %p137 = scmp.lt.s32.totalorder %s9, 3
    %p138 = pnand %p136, %p137
    %p139 = pneg %p138
    // Predicated region
    $region29: #{goctave_forward.4} parent=5 // pred_check
      _
    $region30: #{goctave_forward.4} parent=5 // pred_check_branch
      %141 = sbr.rel (%p138) target = $region32
    $region31: #{goctave_forward.4} parent=5 // pred_region
      %s142 = ssub.s32 %s9, 1
      %p143 = scmp.lt.s32.totalorder %s14, 1
      %s144 = scalar_select %p143, %s14, 1
      %s145 = smul.addr %s144, 51
      %s146 = smul.addr %s145, 4
      %s147 = scalar_lea.vmem %s0, %s146
      %p148 = pneg %p35
      %p149 = pneg %p32
      %p150 = pneg %p56
      %p151 = pneg %p53
      %p152 = pneg %p77
      %p153 = pneg %p74
      %p154 = pneg %p103
      %p155 = pneg %p100
      %p156 = scmp.lt.s32.totalorder %s14, 1
      %s157 = scalar_select %p156, %s14, 1
      %s158 = smul.addr %s157, 30
      %s159 = smul.addr %s158, 4
      %s160 = scalar_lea.vmem %s3, %s159
      %p161 = scmp.lt.s32.totalorder %s14, 1
      %s162 = scalar_select %p161, %s14, 1
      %s163 = smul.addr %s162, 51
      %s164 = smul.addr %s163, 4
      %s165 = scalar_lea.vmem %s0, %s164
      %p166 = scmp.lt.s32.totalorder %s14, 1
      %s167 = scalar_select %p166, %s14, 1
      %s168 = smul.addr %s167, 30
      %s169 = smul.addr %s168, 4
      %s170 = scalar_lea.vmem %s3, %s169
      %v171 = vld [vmem:[%s2] sm:$0x1]
      %v172 = vld [vmem:[%s165] sm:$0xf]
      %v173 = vld [vmem:[%s165 + $0x4] sm:$0xf]
      %v174 = vld [vmem:[%s165 + $0xc] sm:$0xf]
      %v175 = vld [vmem:[%s165 + $0x10] sm:$0xf]
      %v176 = vld [vmem:[%s165 + $0x18] sm:$0xf]
      %v177 = vld [vmem:[%s165 + $0x1c] sm:$0xf]
      %v178 = vld [vmem:[%s165 + $0x24] sm:$0xf]
      %v179 = vld [vmem:[%s165 + $0x28] sm:$0xf]
      %v180 = vld [vmem:[%s165 + $0x30] sm:$0xf]
      %v181 = vld [vmem:[%s165 + $0x34] sm:$0xf]
      %v182 = vld [vmem:[%s165 + $0x3c] sm:$0xf]
      %v183 = vld [vmem:[%s165 + $0x40] sm:$0xf]
      %v184 = vld [vmem:[%s165 + $0x48] sm:$0xf]
      %v185 = vld [vmem:[%s165 + $0x4c] sm:$0xf]
      %v186 = vld [vmem:[%s165 + $0x54] sm:$0xf]
      %v187 = vld [vmem:[%s165 + $0x58] sm:$0xf]
      %v188 = vld [vmem:[%s165 + $0x60] sm:$0xf]
      %v189 = vld [vmem:[%s165 + $0x64] sm:$0xf]
      %v190 = vld [vmem:[%s165 + $0x6c] sm:$0xf]
      %v191 = vld [vmem:[%s165 + $0x70] sm:$0xf]
      %v192 = vld [vmem:[%s165 + $0x78] sm:$0xf]
      %v193 = vld [vmem:[%s165 + $0x7c] sm:$0xf]
      %v194 = vld [vmem:[%s165 + $0x84] sm:$0xf]
      %v195 = vld [vmem:[%s165 + $0x88] sm:$0xf]
      %v196 = vld [vmem:[%s165 + $0x90] sm:$0xf]
      %v197 = vld [vmem:[%s165 + $0x94] sm:$0xf]
      %v198 = vld [vmem:[%s165 + $0x9c] sm:$0xf]
      %v199 = vld [vmem:[%s165 + $0xa0] sm:$0xf]
      %v200 = vld [vmem:[%s165 + $0xa8] sm:$0xf]
      %v201 = vld [vmem:[%s165 + $0xac] sm:$0xf]
      %v202 = vld [vmem:[%s1] sm:$0xf]
      %v203 = vld [vmem:[%s1 + $0x4] sm:$0xf]
      %v204 = vld [vmem:[%s1 + $0x8] sm:$0xf]
      %v205 = vld [vmem:[%s1 + $0xc] sm:$0xf]
      %v206 = vld [vmem:[%s1 + $0x10] sm:$0xf]
      %v207 = vld [vmem:[%s1 + $0x14] sm:$0xf]
      %v208 = vld [vmem:[%s1 + $0x18] sm:$0xf]
      %v209 = vld [vmem:[%s1 + $0x1c] sm:$0xf]
      %v210 = vld [vmem:[%s1 + $0x20] sm:$0xf]
      %v211 = vld [vmem:[%s1 + $0x24] sm:$0xf]
      %v212 = vld [vmem:[%s1 + $0x28] sm:$0xf]
      %v213 = vld [vmem:[%s1 + $0x2c] sm:$0xf]
      %v214 = vld [vmem:[%s1 + $0x30] sm:$0xf]
      %v215 = vld [vmem:[%s1 + $0x34] sm:$0xf]
      %v216 = vld [vmem:[%s1 + $0x38] sm:$0xf]
      %v217 = vld [vmem:[%s1 + $0x3c] sm:$0xf]
      %v218 = vld [vmem:[%s165 + $0x8] sm:$0x1]
      %v219 = vld [vmem:[%s165 + $0x14] sm:$0x1]
      %v220 = vld [vmem:[%s165 + $0x20] sm:$0x1]
      %v221 = vld [vmem:[%s165 + $0x2c] sm:$0x1]
      %v222 = vld [vmem:[%s165 + $0x38] sm:$0x1]
      %v223 = vld [vmem:[%s165 + $0x44] sm:$0x1]
      %v224 = vld [vmem:[%s165 + $0x50] sm:$0x1]
      %v225 = vld [vmem:[%s165 + $0x5c] sm:$0x1]
      %v226 = vld [vmem:[%s165 + $0x68] sm:$0x1]
      %v227 = vld [vmem:[%s165 + $0x74] sm:$0x1]
      %v228 = vld [vmem:[%s165 + $0x80] sm:$0x1]
      %v229 = vld [vmem:[%s165 + $0x8c] sm:$0x1]
      %v230 = vld [vmem:[%s165 + $0x98] sm:$0x1]
      %v231 = vld [vmem:[%s165 + $0xa4] sm:$0x1]
      %v232 = vld [vmem:[%s165 + $0xb0] sm:$0x1]
      %vm233 = vsmask.f32 3328
      %vm234 = vsmask.f32 7440
      %vm235 = vmor %vm233, %vm234
      %v237 = vshrl.u32 %v172, 16
      %v239 = vrot.slane %v237, 4
      %v240 = vshll.u32 %v172, 16
      %v242 = vrot.slane %v240, 5
      %v243 = vor.u32 %v239, %v242
      %v244 = vrot.slane %v243, 4
      %v246 = vshll.u32 %v173, 16
      %v248 = vrot.slane %v246, 5
      %v249 = vsel %vm235, %v244, %v248
      %v250 = vshrl.u32 %v173, 16
      %v252 = vrot.slane %v250, 4
      %v253 = vor.u32 %v252, %v248
      %v254 = vrot.slane %v253, 4
      %v256 = vshll.u32 %v218, 16
      %v258 = vrot.slane %v256, 5
      %v259 = vsel %vm235, %v254, %v258
      %v261 = vshrl.u32 %v174, 16
      %v263 = vrot.slane %v261, 4
      %v264 = vshll.u32 %v174, 16
      %v266 = vrot.slane %v264, 5
      %v267 = vor.u32 %v263, %v266
      %v268 = vrot.slane %v267, 4
      %v270 = vshll.u32 %v175, 16
      %v272 = vrot.slane %v270, 5
      %v273 = vsel %vm235, %v268, %v272
      %v274 = vshrl.u32 %v175, 16
      %v276 = vrot.slane %v274, 4
      %v277 = vor.u32 %v276, %v272
      %v278 = vrot.slane %v277, 4
      %v280 = vshll.u32 %v219, 16
      %v282 = vrot.slane %v280, 5
      %v283 = vsel %vm235, %v278, %v282
      %v285 = vshrl.u32 %v176, 16
      %v287 = vrot.slane %v285, 4
      %v288 = vshll.u32 %v176, 16
      %v290 = vrot.slane %v288, 5
      %v291 = vor.u32 %v287, %v290
      %v292 = vrot.slane %v291, 4
      %v294 = vshll.u32 %v177, 16
      %v296 = vrot.slane %v294, 5
      %v297 = vsel %vm235, %v292, %v296
      %v298 = vshrl.u32 %v177, 16
      %v300 = vrot.slane %v298, 4
      %v301 = vor.u32 %v300, %v296
      %v302 = vrot.slane %v301, 4
      %v304 = vshll.u32 %v220, 16
      %v306 = vrot.slane %v304, 5
      %v307 = vsel %vm235, %v302, %v306
      %v309 = vshrl.u32 %v178, 16
      %v311 = vrot.slane %v309, 4
      %v312 = vshll.u32 %v178, 16
      %v314 = vrot.slane %v312, 5
      %v315 = vor.u32 %v311, %v314
      %v316 = vrot.slane %v315, 4
      %v318 = vshll.u32 %v179, 16
      %v320 = vrot.slane %v318, 5
      %v321 = vsel %vm235, %v316, %v320
      %v322 = vshrl.u32 %v179, 16
      %v324 = vrot.slane %v322, 4
      %v325 = vor.u32 %v324, %v320
      %v326 = vrot.slane %v325, 4
      %v328 = vshll.u32 %v221, 16
      %v330 = vrot.slane %v328, 5
      %v331 = vsel %vm235, %v326, %v330
      %v333 = vshrl.u32 %v180, 16
      %v335 = vrot.slane %v333, 4
      %v336 = vshll.u32 %v180, 16
      %v338 = vrot.slane %v336, 5
      %v339 = vor.u32 %v335, %v338
      %v340 = vrot.slane %v339, 4
      %v342 = vshll.u32 %v181, 16
      %v344 = vrot.slane %v342, 5
      %v345 = vsel %vm235, %v340, %v344
      %v346 = vshrl.u32 %v181, 16
      %v348 = vrot.slane %v346, 4
      %v349 = vor.u32 %v348, %v344
      %v350 = vrot.slane %v349, 4
      %v352 = vshll.u32 %v222, 16
      %v354 = vrot.slane %v352, 5
      %v355 = vsel %vm235, %v350, %v354
      %v357 = vshrl.u32 %v182, 16
      %v359 = vrot.slane %v357, 4
      %v360 = vshll.u32 %v182, 16
      %v362 = vrot.slane %v360, 5
      %v363 = vor.u32 %v359, %v362
      %v364 = vrot.slane %v363, 4
      %v366 = vshll.u32 %v183, 16
      %v368 = vrot.slane %v366, 5
      %v369 = vsel %vm235, %v364, %v368
      %v370 = vshrl.u32 %v183, 16
      %v372 = vrot.slane %v370, 4
      %v373 = vor.u32 %v372, %v368
      %v374 = vrot.slane %v373, 4
      %v376 = vshll.u32 %v223, 16
      %v378 = vrot.slane %v376, 5
      %v379 = vsel %vm235, %v374, %v378
      %v381 = vshrl.u32 %v184, 16
      %v383 = vrot.slane %v381, 4
      %v384 = vshll.u32 %v184, 16
      %v386 = vrot.slane %v384, 5
      %v387 = vor.u32 %v383, %v386
      %v388 = vrot.slane %v387, 4
      %v390 = vshll.u32 %v185, 16
      %v392 = vrot.slane %v390, 5
      %v393 = vsel %vm235, %v388, %v392
      %v394 = vshrl.u32 %v185, 16
      %v396 = vrot.slane %v394, 4
      %v397 = vor.u32 %v396, %v392
      %v398 = vrot.slane %v397, 4
      %v400 = vshll.u32 %v224, 16
      %v402 = vrot.slane %v400, 5
      %v403 = vsel %vm235, %v398, %v402
      %v405 = vshrl.u32 %v186, 16
      %v407 = vrot.slane %v405, 4
      %v408 = vshll.u32 %v186, 16
      %v410 = vrot.slane %v408, 5
      %v411 = vor.u32 %v407, %v410
      %v412 = vrot.slane %v411, 4
      %v414 = vshll.u32 %v187, 16
      %v416 = vrot.slane %v414, 5
      %v417 = vsel %vm235, %v412, %v416
      %v418 = vshrl.u32 %v187, 16
      %v420 = vrot.slane %v418, 4
      %v421 = vor.u32 %v420, %v416
      %v422 = vrot.slane %v421, 4
      %v424 = vshll.u32 %v225, 16
      %v426 = vrot.slane %v424, 5
      %v427 = vsel %vm235, %v422, %v426
      %v429 = vshrl.u32 %v188, 16
      %v431 = vrot.slane %v429, 4
      %v432 = vshll.u32 %v188, 16
      %v434 = vrot.slane %v432, 5
      %v435 = vor.u32 %v431, %v434
      %v436 = vrot.slane %v435, 4
      %v438 = vshll.u32 %v189, 16
      %v440 = vrot.slane %v438, 5
      %v441 = vsel %vm235, %v436, %v440
      %v442 = vshrl.u32 %v189, 16
      %v444 = vrot.slane %v442, 4
      %v445 = vor.u32 %v444, %v440
      %v446 = vrot.slane %v445, 4
      %v448 = vshll.u32 %v226, 16
      %v450 = vrot.slane %v448, 5
      %v451 = vsel %vm235, %v446, %v450
      %v453 = vshrl.u32 %v190, 16
      %v455 = vrot.slane %v453, 4
      %v456 = vshll.u32 %v190, 16
      %v458 = vrot.slane %v456, 5
      %v459 = vor.u32 %v455, %v458
      %v460 = vrot.slane %v459, 4
      %v462 = vshll.u32 %v191, 16
      %v464 = vrot.slane %v462, 5
      %v465 = vsel %vm235, %v460, %v464
      %v466 = vshrl.u32 %v191, 16
      %v468 = vrot.slane %v466, 4
      %v469 = vor.u32 %v468, %v464
      %v470 = vrot.slane %v469, 4
      %v472 = vshll.u32 %v227, 16
      %v474 = vrot.slane %v472, 5
      %v475 = vsel %vm235, %v470, %v474
      %v477 = vshrl.u32 %v192, 16
      %v479 = vrot.slane %v477, 4
      %v480 = vshll.u32 %v192, 16
      %v482 = vrot.slane %v480, 5
      %v483 = vor.u32 %v479, %v482
      %v484 = vrot.slane %v483, 4
      %v486 = vshll.u32 %v193, 16
      %v488 = vrot.slane %v486, 5
      %v489 = vsel %vm235, %v484, %v488
      %v490 = vshrl.u32 %v193, 16
      %v492 = vrot.slane %v490, 4
      %v493 = vor.u32 %v492, %v488
      %v494 = vrot.slane %v493, 4
      %v496 = vshll.u32 %v228, 16
      %v498 = vrot.slane %v496, 5
      %v499 = vsel %vm235, %v494, %v498
      %v501 = vshrl.u32 %v194, 16
      %v503 = vrot.slane %v501, 4
      %v504 = vshll.u32 %v194, 16
      %v506 = vrot.slane %v504, 5
      %v507 = vor.u32 %v503, %v506
      %v508 = vrot.slane %v507, 4
      %v510 = vshll.u32 %v195, 16
      %v512 = vrot.slane %v510, 5
      %v513 = vsel %vm235, %v508, %v512
      %v514 = vshrl.u32 %v195, 16
      %v516 = vrot.slane %v514, 4
      %v517 = vor.u32 %v516, %v512
      %v518 = vrot.slane %v517, 4
      %v520 = vshll.u32 %v229, 16
      %v522 = vrot.slane %v520, 5
      %v523 = vsel %vm235, %v518, %v522
      %v525 = vshrl.u32 %v196, 16
      %v527 = vrot.slane %v525, 4
      %v528 = vshll.u32 %v196, 16
      %v530 = vrot.slane %v528, 5
      %v531 = vor.u32 %v527, %v530
      %v532 = vrot.slane %v531, 4
      %v534 = vshll.u32 %v197, 16
      %v536 = vrot.slane %v534, 5
      %v537 = vsel %vm235, %v532, %v536
      %v538 = vshrl.u32 %v197, 16
      %v540 = vrot.slane %v538, 4
      %v541 = vor.u32 %v540, %v536
      %v542 = vrot.slane %v541, 4
      %v544 = vshll.u32 %v230, 16
      %v546 = vrot.slane %v544, 5
      %v547 = vsel %vm235, %v542, %v546
      %v549 = vshrl.u32 %v198, 16
      %v551 = vrot.slane %v549, 4
      %v552 = vshll.u32 %v198, 16
      %v554 = vrot.slane %v552, 5
      %v555 = vor.u32 %v551, %v554
      %v556 = vrot.slane %v555, 4
      %v558 = vshll.u32 %v199, 16
      %v560 = vrot.slane %v558, 5
      %v561 = vsel %vm235, %v556, %v560
      %v562 = vshrl.u32 %v199, 16
      %v564 = vrot.slane %v562, 4
      %v565 = vor.u32 %v564, %v560
      %v566 = vrot.slane %v565, 4
      %v568 = vshll.u32 %v231, 16
      %v570 = vrot.slane %v568, 5
      %v571 = vsel %vm235, %v566, %v570
      %v573 = vshrl.u32 %v200, 16
      %v575 = vrot.slane %v573, 4
      %v576 = vshll.u32 %v200, 16
      %v578 = vrot.slane %v576, 5
      %v579 = vor.u32 %v575, %v578
      %v580 = vrot.slane %v579, 4
      %v582 = vshll.u32 %v201, 16
      %v584 = vrot.slane %v582, 5
      %v585 = vsel %vm235, %v580, %v584
      %v586 = vshrl.u32 %v201, 16
      %v588 = vrot.slane %v586, 4
      %v589 = vor.u32 %v588, %v584
      %v590 = vrot.slane %v589, 4
      %v592 = vshll.u32 %v232, 16
      %v594 = vrot.slane %v592, 5
      %v595 = vsel %vm235, %v590, %v594
      %s596 = scalar_lea.vmem %s1, 64
      %v597 = vld [vmem:[%s596] sm:$0xf]
      %v598 = vld [vmem:[%s596 + $0x4] sm:$0xf]
      %v599 = vld [vmem:[%s596 + $0x8] sm:$0xf]
      %v600 = vld [vmem:[%s596 + $0xc] sm:$0xf]
      %v601 = vld [vmem:[%s596 + $0x10] sm:$0xf]
      %v602 = vld [vmem:[%s596 + $0x14] sm:$0xf]
      %v603 = vld [vmem:[%s596 + $0x18] sm:$0xf]
      %v604 = vld [vmem:[%s596 + $0x1c] sm:$0xf]
      %v605 = vld [vmem:[%s596 + $0x20] sm:$0xf]
      %v606 = vld [vmem:[%s596 + $0x24] sm:$0xf]
      %v607 = vld [vmem:[%s596 + $0x28] sm:$0xf]
      %v608 = vld [vmem:[%s596 + $0x2c] sm:$0xf]
      %v609 = vld [vmem:[%s596 + $0x30] sm:$0xf]
      %v610 = vld [vmem:[%s596 + $0x34] sm:$0xf]
      %v611 = vld [vmem:[%s596 + $0x38] sm:$0xf]
      %v612 = vld [vmem:[%s596 + $0x3c] sm:$0xf]
      %v613 = vunpack.c.l.b16 %v249
      %v614 = vunpack.c.l.b16 %v259
      %v615 = vunpack.c.l.b16 %v273
      %v616 = vunpack.c.l.b16 %v283
      %v617 = vunpack.c.l.b16 %v297
      %v618 = vunpack.c.l.b16 %v307
      %v619 = vunpack.c.l.b16 %v321
      %v620 = vunpack.c.l.b16 %v331
      %v621 = vunpack.c.l.b16 %v345
      %v622 = vunpack.c.l.b16 %v355
      %v623 = vunpack.c.l.b16 %v369
      %v624 = vunpack.c.l.b16 %v379
      %v625 = vunpack.c.l.b16 %v393
      %v626 = vunpack.c.l.b16 %v403
      %v627 = vunpack.c.l.b16 %v417
      %v628 = vunpack.c.l.b16 %v427
      %v629 = vunpack.c.l.b16 %v441
      %v630 = vunpack.c.l.b16 %v451
      %v631 = vunpack.c.l.b16 %v465
      %v632 = vunpack.c.l.b16 %v475
      %v633 = vunpack.c.l.b16 %v489
      %v634 = vunpack.c.l.b16 %v499
      %v635 = vunpack.c.l.b16 %v513
      %v636 = vunpack.c.l.b16 %v523
      %v637 = vunpack.c.l.b16 %v537
      %v638 = vunpack.c.l.b16 %v547
      %v639 = vunpack.c.l.b16 %v561
      %v640 = vunpack.c.l.b16 %v571
      %v641 = vunpack.c.l.b16 %v585
      %v642 = vunpack.c.l.b16 %v595
      %v643 = vpack.c.b16 %v614, %v613
      %v644 = vpack.c.b16 %v616, %v615
      %v645 = vpack.c.b16 %v618, %v617
      %v646 = vpack.c.b16 %v620, %v619
      %v647 = vpack.c.b16 %v622, %v621
      %v648 = vpack.c.b16 %v624, %v623
      %v649 = vpack.c.b16 %v626, %v625
      %v650 = vpack.c.b16 %v628, %v627
      %v651 = vpack.c.b16 %v630, %v629
      %v652 = vpack.c.b16 %v632, %v631
      %v653 = vpack.c.b16 %v634, %v633
      %v654 = vpack.c.b16 %v636, %v635
      %v655 = vpack.c.b16 %v638, %v637
      %v656 = vpack.c.b16 %v640, %v639
      %v657 = vpack.c.b16 %v642, %v641
      %v689 = vunpack.c.l.b16 %v597
      %v690 = vunpack.c.l.b16 %v598
      %v691 = vunpack.c.l.b16 %v599
      %v692 = vunpack.c.l.b16 %v600
      %v693 = vunpack.c.l.b16 %v601
      %v694 = vunpack.c.l.b16 %v602
      %v695 = vunpack.c.l.b16 %v603
      %v696 = vunpack.c.l.b16 %v604
      %v697 = vunpack.c.l.b16 %v605
      %v698 = vunpack.c.l.b16 %v606
      %v699 = vunpack.c.l.b16 %v607
      %v700 = vunpack.c.l.b16 %v608
      %v701 = vunpack.c.l.b16 %v609
      %v702 = vunpack.c.l.b16 %v610
      %v703 = vunpack.c.l.b16 %v611
      %v704 = vunpack.c.l.b16 %v612
      %v705 = vpack.c.b16 %v690, %v689
      %v706 = vpack.c.b16 %v692, %v691
      %v707 = vpack.c.b16 %v694, %v693
      %v708 = vpack.c.b16 %v696, %v695
      %v709 = vpack.c.b16 %v698, %v697
      %v710 = vpack.c.b16 %v700, %v699
      %v711 = vpack.c.b16 %v702, %v701
      %v712 = vpack.c.b16 %v704, %v703
      %721 = vmatpush.bf16.msra.mxu0 %v712
      %722 = vmatpush.bf16.msra.mxu0 %v711
      %723 = vmatpush.bf16.msra.mxu0 %v710
      %724 = vmatpush.bf16.msra.mxu0 %v709
      %725 = vmatpush.bf16.msra.mxu0 %v708
      %726 = vmatpush.bf16.msra.mxu0 %v707
      %727 = vmatpush.bf16.msra.mxu0 %v706
      %728 = vmatpush.bf16.msra.mxu0 %v705
      %729 = vmatmul.bf16.gmra.mxu0 %v643
      %v730 = vpop.f32.mrf.mxu0
      %v731 = vadd.f32 0.0, %v730
      %v732 = vpop.f32.mrf.mxu0
      %v733 = vadd.f32 0.0, %v732
      %734 = vmatmul.bf16.gmra.mxu0 %v644
      %v735 = vpop.f32.mrf.mxu0
      %v736 = vadd.f32 0.0, %v735
      %v737 = vpop.f32.mrf.mxu0
      %v738 = vadd.f32 0.0, %v737
      %739 = vmatmul.bf16.gmra.mxu0 %v645
      %v740 = vpop.f32.mrf.mxu0
      %v741 = vadd.f32 0.0, %v740
      %v742 = vpop.f32.mrf.mxu0
      %v743 = vadd.f32 0.0, %v742
      %744 = vmatmul.bf16.gmra.mxu0 %v646
      %v745 = vpop.f32.mrf.mxu0
      %v746 = vadd.f32 0.0, %v745
      %v747 = vpop.f32.mrf.mxu0
      %v748 = vadd.f32 0.0, %v747
      %749 = vmatmul.bf16.gmra.mxu0 %v647
      %v750 = vpop.f32.mrf.mxu0
      %v751 = vadd.f32 0.0, %v750
      %v752 = vpop.f32.mrf.mxu0
      %v753 = vadd.f32 0.0, %v752
      %754 = vmatmul.bf16.gmra.mxu0 %v648
      %v755 = vpop.f32.mrf.mxu0
      %v756 = vadd.f32 0.0, %v755
      %v757 = vpop.f32.mrf.mxu0
      %v758 = vadd.f32 0.0, %v757
      %759 = vmatmul.bf16.gmra.mxu0 %v649
      %v760 = vpop.f32.mrf.mxu0
      %v761 = vadd.f32 0.0, %v760
      %v762 = vpop.f32.mrf.mxu0
      %v763 = vadd.f32 0.0, %v762
      %764 = vmatmul.bf16.gmra.mxu0 %v650
      %v765 = vpop.f32.mrf.mxu0
      %v766 = vadd.f32 0.0, %v765
      %v767 = vpop.f32.mrf.mxu0
      %v768 = vadd.f32 0.0, %v767
      %769 = vmatmul.bf16.gmra.mxu0 %v651
      %v770 = vpop.f32.mrf.mxu0
      %v771 = vadd.f32 0.0, %v770
      %v772 = vpop.f32.mrf.mxu0
      %v773 = vadd.f32 0.0, %v772
      %774 = vmatmul.bf16.gmra.mxu0 %v652
      %v775 = vpop.f32.mrf.mxu0
      %v776 = vadd.f32 0.0, %v775
      %v777 = vpop.f32.mrf.mxu0
      %v778 = vadd.f32 0.0, %v777
      %779 = vmatmul.bf16.gmra.mxu0 %v653
      %v780 = vpop.f32.mrf.mxu0
      %v781 = vadd.f32 0.0, %v780
      %v782 = vpop.f32.mrf.mxu0
      %v783 = vadd.f32 0.0, %v782
      %784 = vmatmul.bf16.gmra.mxu0 %v654
      %v785 = vpop.f32.mrf.mxu0
      %v786 = vadd.f32 0.0, %v785
      %v787 = vpop.f32.mrf.mxu0
      %v788 = vadd.f32 0.0, %v787
      %789 = vmatmul.bf16.gmra.mxu0 %v655
      %v790 = vpop.f32.mrf.mxu0
      %v791 = vadd.f32 0.0, %v790
      %v792 = vpop.f32.mrf.mxu0
      %v793 = vadd.f32 0.0, %v792
      %794 = vmatmul.bf16.gmra.mxu0 %v656
      %v795 = vpop.f32.mrf.mxu0
      %v796 = vadd.f32 0.0, %v795
      %v797 = vpop.f32.mrf.mxu0
      %v798 = vadd.f32 0.0, %v797
      %799 = vmatmul.bf16.gmra.mxu0 %v657
      %v800 = vpop.f32.mrf.mxu0
      %v801 = vadd.f32 0.0, %v800
      %v802 = vpop.f32.mrf.mxu0
      %v803 = vadd.f32 0.0, %v802
      %804 = vdwg.mxu0
      %v835 = vunpack.c.l.b16 %v172
      %v836 = vunpack.c.l.b16 %v173
      %v837 = vunpack.c.l.b16 %v174
      %v838 = vunpack.c.l.b16 %v175
      %v839 = vunpack.c.l.b16 %v176
      %v840 = vunpack.c.l.b16 %v177
      %v841 = vunpack.c.l.b16 %v178
      %v842 = vunpack.c.l.b16 %v179
      %v843 = vunpack.c.l.b16 %v180
      %v844 = vunpack.c.l.b16 %v181
      %v845 = vunpack.c.l.b16 %v182
      %v846 = vunpack.c.l.b16 %v183
      %v847 = vunpack.c.l.b16 %v184
      %v848 = vunpack.c.l.b16 %v185
      %v849 = vunpack.c.l.b16 %v186
      %v850 = vunpack.c.l.b16 %v187
      %v851 = vunpack.c.l.b16 %v188
      %v852 = vunpack.c.l.b16 %v189
      %v853 = vunpack.c.l.b16 %v190
      %v854 = vunpack.c.l.b16 %v191
      %v855 = vunpack.c.l.b16 %v192
      %v856 = vunpack.c.l.b16 %v193
      %v857 = vunpack.c.l.b16 %v194
      %v858 = vunpack.c.l.b16 %v195
      %v859 = vunpack.c.l.b16 %v196
      %v860 = vunpack.c.l.b16 %v197
      %v861 = vunpack.c.l.b16 %v198
      %v862 = vunpack.c.l.b16 %v199
      %v863 = vunpack.c.l.b16 %v200
      %v864 = vunpack.c.l.b16 %v201
      %v865 = vpack.c.b16 %v836, %v835
      %v866 = vpack.c.b16 %v838, %v837
      %v867 = vpack.c.b16 %v840, %v839
      %v868 = vpack.c.b16 %v842, %v841
      %v869 = vpack.c.b16 %v844, %v843
      %v870 = vpack.c.b16 %v846, %v845
      %v871 = vpack.c.b16 %v848, %v847
      %v872 = vpack.c.b16 %v850, %v849
      %v873 = vpack.c.b16 %v852, %v851
      %v874 = vpack.c.b16 %v854, %v853
      %v875 = vpack.c.b16 %v856, %v855
      %v876 = vpack.c.b16 %v858, %v857
      %v877 = vpack.c.b16 %v860, %v859
      %v878 = vpack.c.b16 %v862, %v861
      %v879 = vpack.c.b16 %v864, %v863
      %v911 = vunpack.c.l.b16 %v202
      %v912 = vunpack.c.l.b16 %v203
      %v913 = vunpack.c.l.b16 %v204
      %v914 = vunpack.c.l.b16 %v205
      %v915 = vunpack.c.l.b16 %v206
      %v916 = vunpack.c.l.b16 %v207
      %v917 = vunpack.c.l.b16 %v208
      %v918 = vunpack.c.l.b16 %v209
      %v919 = vunpack.c.l.b16 %v210
      %v920 = vunpack.c.l.b16 %v211
      %v921 = vunpack.c.l.b16 %v212
      %v922 = vunpack.c.l.b16 %v213
      %v923 = vunpack.c.l.b16 %v214
      %v924 = vunpack.c.l.b16 %v215
      %v925 = vunpack.c.l.b16 %v216
      %v926 = vunpack.c.l.b16 %v217
      %v927 = vpack.c.b16 %v912, %v911
      %v928 = vpack.c.b16 %v914, %v913
      %v929 = vpack.c.b16 %v916, %v915
      %v930 = vpack.c.b16 %v918, %v917
      %v931 = vpack.c.b16 %v920, %v919
      %v932 = vpack.c.b16 %v922, %v921
      %v933 = vpack.c.b16 %v924, %v923
      %v934 = vpack.c.b16 %v926, %v925
      %943 = vmatpush.bf16.msra.mxu0 %v934
      %944 = vmatpush.bf16.msra.mxu0 %v933
      %945 = vmatpush.bf16.msra.mxu0 %v932
      %946 = vmatpush.bf16.msra.mxu0 %v931
      %947 = vmatpush.bf16.msra.mxu0 %v930
      %948 = vmatpush.bf16.msra.mxu0 %v929
      %949 = vmatpush.bf16.msra.mxu0 %v928
      %950 = vmatpush.bf16.msra.mxu0 %v927
      %951 = vmatmul.bf16.gmra.mxu0 %v865
      %v952 = vpop.f32.mrf.mxu0
      %v953 = vadd.f32 %v731, %v952
      %v954 = vpop.f32.mrf.mxu0
      %v955 = vadd.f32 %v733, %v954
      %956 = vmatmul.bf16.gmra.mxu0 %v866
      %v957 = vpop.f32.mrf.mxu0
      %v958 = vadd.f32 %v736, %v957
      %v959 = vpop.f32.mrf.mxu0
      %v960 = vadd.f32 %v738, %v959
      %961 = vmatmul.bf16.gmra.mxu0 %v867
      %v962 = vpop.f32.mrf.mxu0
      %v963 = vadd.f32 %v741, %v962
      %v964 = vpop.f32.mrf.mxu0
      %v965 = vadd.f32 %v743, %v964
      %966 = vmatmul.bf16.gmra.mxu0 %v868
      %v967 = vpop.f32.mrf.mxu0
      %v968 = vadd.f32 %v746, %v967
      %v969 = vpop.f32.mrf.mxu0
      %v970 = vadd.f32 %v748, %v969
      %971 = vmatmul.bf16.gmra.mxu0 %v869
      %v972 = vpop.f32.mrf.mxu0
      %v973 = vadd.f32 %v751, %v972
      %v974 = vpop.f32.mrf.mxu0
      %v975 = vadd.f32 %v753, %v974
      %976 = vmatmul.bf16.gmra.mxu0 %v870
      %v977 = vpop.f32.mrf.mxu0
      %v978 = vadd.f32 %v756, %v977
      %v979 = vpop.f32.mrf.mxu0
      %v980 = vadd.f32 %v758, %v979
      %981 = vmatmul.bf16.gmra.mxu0 %v871
      %v982 = vpop.f32.mrf.mxu0
      %v983 = vadd.f32 %v761, %v982
      %v984 = vpop.f32.mrf.mxu0
      %v985 = vadd.f32 %v763, %v984
      %986 = vmatmul.bf16.gmra.mxu0 %v872
      %v987 = vpop.f32.mrf.mxu0
      %v988 = vadd.f32 %v766, %v987
      %v989 = vpop.f32.mrf.mxu0
      %v990 = vadd.f32 %v768, %v989
      %991 = vmatmul.bf16.gmra.mxu0 %v873
      %v992 = vpop.f32.mrf.mxu0
      %v993 = vadd.f32 %v771, %v992
      %v994 = vpop.f32.mrf.mxu0
      %v995 = vadd.f32 %v773, %v994
      %996 = vmatmul.bf16.gmra.mxu0 %v874
      %v997 = vpop.f32.mrf.mxu0
      %v998 = vadd.f32 %v776, %v997
      %v999 = vpop.f32.mrf.mxu0
      %v1000 = vadd.f32 %v778, %v999
      %1001 = vmatmul.bf16.gmra.mxu0 %v875
      %v1002 = vpop.f32.mrf.mxu0
      %v1003 = vadd.f32 %v781, %v1002
      %v1004 = vpop.f32.mrf.mxu0
      %v1005 = vadd.f32 %v783, %v1004
      %1006 = vmatmul.bf16.gmra.mxu0 %v876
      %v1007 = vpop.f32.mrf.mxu0
      %v1008 = vadd.f32 %v786, %v1007
      %v1009 = vpop.f32.mrf.mxu0
      %v1010 = vadd.f32 %v788, %v1009
      %1011 = vmatmul.bf16.gmra.mxu0 %v877
      %v1012 = vpop.f32.mrf.mxu0
      %v1013 = vadd.f32 %v791, %v1012
      %v1014 = vpop.f32.mrf.mxu0
      %v1015 = vadd.f32 %v793, %v1014
      %1016 = vmatmul.bf16.gmra.mxu0 %v878
      %v1017 = vpop.f32.mrf.mxu0
      %v1018 = vadd.f32 %v796, %v1017
      %v1019 = vpop.f32.mrf.mxu0
      %v1020 = vadd.f32 %v798, %v1019
      %1021 = vmatmul.bf16.gmra.mxu0 %v879
      %v1022 = vpop.f32.mrf.mxu0
      %v1023 = vadd.f32 %v801, %v1022
      %v1024 = vpop.f32.mrf.mxu0
      %v1025 = vadd.f32 %v803, %v1024
      %1026 = vdwg.mxu0
      %v1027 = vld [vmem:[%s165] sm:$0xe]
      %v1028 = vld [vmem:[%s165 + $0xc] sm:$0xe]
      %v1029 = vld [vmem:[%s165 + $0x18] sm:$0xe]
      %v1030 = vld [vmem:[%s165 + $0x24] sm:$0xe]
      %v1031 = vld [vmem:[%s165 + $0x30] sm:$0xe]
      %v1032 = vld [vmem:[%s165 + $0x3c] sm:$0xe]
      %v1033 = vld [vmem:[%s165 + $0x48] sm:$0xe]
      %v1034 = vld [vmem:[%s165 + $0x54] sm:$0xe]
      %v1035 = vld [vmem:[%s165 + $0x60] sm:$0xe]
      %v1036 = vld [vmem:[%s165 + $0x6c] sm:$0xe]
      %v1037 = vld [vmem:[%s165 + $0x78] sm:$0xe]
      %v1038 = vld [vmem:[%s165 + $0x84] sm:$0xe]
      %v1039 = vld [vmem:[%s165 + $0x90] sm:$0xe]
      %v1040 = vld [vmem:[%s165 + $0x9c] sm:$0xe]
      %v1041 = vld [vmem:[%s165 + $0xa8] sm:$0xe]
      %vm1072 = vcmask 1042432
      %vm1073 = vcmask 1046532
      %vm1074 = vmor %vm1072, %vm1073
      %v1075 = vrot.slane %v1027, 5
      %v1076 = vrot.slane %v1075, 4
      %v1077 = vrot.slane %v173, 5
      %v1078 = vsel %vm1074, %v1076, %v1077
      %v1079 = vrot.slane %v1077, 4
      %v1080 = vrot.slane %v218, 5
      %v1081 = vsel %vm1074, %v1079, %v1080
      %v1082 = vrot.slane %v1028, 5
      %v1083 = vrot.slane %v1082, 4
      %v1084 = vrot.slane %v175, 5
      %v1085 = vsel %vm1074, %v1083, %v1084
      %v1086 = vrot.slane %v1084, 4
      %v1087 = vrot.slane %v219, 5
      %v1088 = vsel %vm1074, %v1086, %v1087
      %v1089 = vrot.slane %v1029, 5
      %v1090 = vrot.slane %v1089, 4
      %v1091 = vrot.slane %v177, 5
      %v1092 = vsel %vm1074, %v1090, %v1091
      %v1093 = vrot.slane %v1091, 4
      %v1094 = vrot.slane %v220, 5
      %v1095 = vsel %vm1074, %v1093, %v1094
      %v1096 = vrot.slane %v1030, 5
      %v1097 = vrot.slane %v1096, 4
      %v1098 = vrot.slane %v179, 5
      %v1099 = vsel %vm1074, %v1097, %v1098
      %v1100 = vrot.slane %v1098, 4
      %v1101 = vrot.slane %v221, 5
      %v1102 = vsel %vm1074, %v1100, %v1101
      %v1103 = vrot.slane %v1031, 5
      %v1104 = vrot.slane %v1103, 4
      %v1105 = vrot.slane %v181, 5
      %v1106 = vsel %vm1074, %v1104, %v1105
      %v1107 = vrot.slane %v1105, 4
      %v1108 = vrot.slane %v222, 5
      %v1109 = vsel %vm1074, %v1107, %v1108
      %v1110 = vrot.slane %v1032, 5
      %v1111 = vrot.slane %v1110, 4
      %v1112 = vrot.slane %v183, 5
      %v1113 = vsel %vm1074, %v1111, %v1112
      %v1114 = vrot.slane %v1112, 4
      %v1115 = vrot.slane %v223, 5
      %v1116 = vsel %vm1074, %v1114, %v1115
      %v1117 = vrot.slane %v1033, 5
      %v1118 = vrot.slane %v1117, 4
      %v1119 = vrot.slane %v185, 5
      %v1120 = vsel %vm1074, %v1118, %v1119
      %v1121 = vrot.slane %v1119, 4
      %v1122 = vrot.slane %v224, 5
      %v1123 = vsel %vm1074, %v1121, %v1122
      %v1124 = vrot.slane %v1034, 5
      %v1125 = vrot.slane %v1124, 4
      %v1126 = vrot.slane %v187, 5
      %v1127 = vsel %vm1074, %v1125, %v1126
      %v1128 = vrot.slane %v1126, 4
      %v1129 = vrot.slane %v225, 5
      %v1130 = vsel %vm1074, %v1128, %v1129
      %v1131 = vrot.slane %v1035, 5
      %v1132 = vrot.slane %v1131, 4
      %v1133 = vrot.slane %v189, 5
      %v1134 = vsel %vm1074, %v1132, %v1133
      %v1135 = vrot.slane %v1133, 4
      %v1136 = vrot.slane %v226, 5
      %v1137 = vsel %vm1074, %v1135, %v1136
      %v1138 = vrot.slane %v1036, 5
      %v1139 = vrot.slane %v1138, 4
      %v1140 = vrot.slane %v191, 5
      %v1141 = vsel %vm1074, %v1139, %v1140
      %v1142 = vrot.slane %v1140, 4
      %v1143 = vrot.slane %v227, 5
      %v1144 = vsel %vm1074, %v1142, %v1143
      %v1145 = vrot.slane %v1037, 5
      %v1146 = vrot.slane %v1145, 4
      %v1147 = vrot.slane %v193, 5
      %v1148 = vsel %vm1074, %v1146, %v1147
      %v1149 = vrot.slane %v1147, 4
      %v1150 = vrot.slane %v228, 5
      %v1151 = vsel %vm1074, %v1149, %v1150
      %v1152 = vrot.slane %v1038, 5
      %v1153 = vrot.slane %v1152, 4
      %v1154 = vrot.slane %v195, 5
      %v1155 = vsel %vm1074, %v1153, %v1154
      %v1156 = vrot.slane %v1154, 4
      %v1157 = vrot.slane %v229, 5
      %v1158 = vsel %vm1074, %v1156, %v1157
      %v1159 = vrot.slane %v1039, 5
      %v1160 = vrot.slane %v1159, 4
      %v1161 = vrot.slane %v197, 5
      %v1162 = vsel %vm1074, %v1160, %v1161
      %v1163 = vrot.slane %v1161, 4
      %v1164 = vrot.slane %v230, 5
      %v1165 = vsel %vm1074, %v1163, %v1164
      %v1166 = vrot.slane %v1040, 5
      %v1167 = vrot.slane %v1166, 4
      %v1168 = vrot.slane %v199, 5
      %v1169 = vsel %vm1074, %v1167, %v1168
      %v1170 = vrot.slane %v1168, 4
      %v1171 = vrot.slane %v231, 5
      %v1172 = vsel %vm1074, %v1170, %v1171
      %v1173 = vrot.slane %v1041, 5
      %v1174 = vrot.slane %v1173, 4
      %v1175 = vrot.slane %v201, 5
      %v1176 = vsel %vm1074, %v1174, %v1175
      %v1177 = vrot.slane %v1175, 4
      %v1178 = vrot.slane %v232, 5
      %v1179 = vsel %vm1074, %v1177, %v1178
      %s1180 = scalar_lea.vmem %s1, 128
      %v1181 = vld [vmem:[%s1180] sm:$0xf]
      %v1182 = vld [vmem:[%s1180 + $0x4] sm:$0xf]
      %v1183 = vld [vmem:[%s1180 + $0x8] sm:$0xf]
      %v1184 = vld [vmem:[%s1180 + $0xc] sm:$0xf]
      %v1185 = vld [vmem:[%s1180 + $0x10] sm:$0xf]
      %v1186 = vld [vmem:[%s1180 + $0x14] sm:$0xf]
      %v1187 = vld [vmem:[%s1180 + $0x18] sm:$0xf]
      %v1188 = vld [vmem:[%s1180 + $0x1c] sm:$0xf]
      %v1189 = vld [vmem:[%s1180 + $0x20] sm:$0xf]
      %v1190 = vld [vmem:[%s1180 + $0x24] sm:$0xf]
      %v1191 = vld [vmem:[%s1180 + $0x28] sm:$0xf]
      %v1192 = vld [vmem:[%s1180 + $0x2c] sm:$0xf]
      %v1193 = vld [vmem:[%s1180 + $0x30] sm:$0xf]
      %v1194 = vld [vmem:[%s1180 + $0x34] sm:$0xf]
      %v1195 = vld [vmem:[%s1180 + $0x38] sm:$0xf]
      %v1196 = vld [vmem:[%s1180 + $0x3c] sm:$0xf]
      %v1197 = vunpack.c.l.b16 %v1078
      %v1198 = vunpack.c.l.b16 %v1081
      %v1199 = vunpack.c.l.b16 %v1085
      %v1200 = vunpack.c.l.b16 %v1088
      %v1201 = vunpack.c.l.b16 %v1092
      %v1202 = vunpack.c.l.b16 %v1095
      %v1203 = vunpack.c.l.b16 %v1099
      %v1204 = vunpack.c.l.b16 %v1102
      %v1205 = vunpack.c.l.b16 %v1106
      %v1206 = vunpack.c.l.b16 %v1109
      %v1207 = vunpack.c.l.b16 %v1113
      %v1208 = vunpack.c.l.b16 %v1116
      %v1209 = vunpack.c.l.b16 %v1120
      %v1210 = vunpack.c.l.b16 %v1123
      %v1211 = vunpack.c.l.b16 %v1127
      %v1212 = vunpack.c.l.b16 %v1130
      %v1213 = vunpack.c.l.b16 %v1134
      %v1214 = vunpack.c.l.b16 %v1137
      %v1215 = vunpack.c.l.b16 %v1141
      %v1216 = vunpack.c.l.b16 %v1144
      %v1217 = vunpack.c.l.b16 %v1148
      %v1218 = vunpack.c.l.b16 %v1151
      %v1219 = vunpack.c.l.b16 %v1155
      %v1220 = vunpack.c.l.b16 %v1158
      %v1221 = vunpack.c.l.b16 %v1162
      %v1222 = vunpack.c.l.b16 %v1165
      %v1223 = vunpack.c.l.b16 %v1169
      %v1224 = vunpack.c.l.b16 %v1172
      %v1225 = vunpack.c.l.b16 %v1176
      %v1226 = vunpack.c.l.b16 %v1179
      %v1227 = vpack.c.b16 %v1198, %v1197
      %v1228 = vpack.c.b16 %v1200, %v1199
      %v1229 = vpack.c.b16 %v1202, %v1201
      %v1230 = vpack.c.b16 %v1204, %v1203
      %v1231 = vpack.c.b16 %v1206, %v1205
      %v1232 = vpack.c.b16 %v1208, %v1207
      %v1233 = vpack.c.b16 %v1210, %v1209
      %v1234 = vpack.c.b16 %v1212, %v1211
      %v1235 = vpack.c.b16 %v1214, %v1213
      %v1236 = vpack.c.b16 %v1216, %v1215
      %v1237 = vpack.c.b16 %v1218, %v1217
      %v1238 = vpack.c.b16 %v1220, %v1219
      %v1239 = vpack.c.b16 %v1222, %v1221
      %v1240 = vpack.c.b16 %v1224, %v1223
      %v1241 = vpack.c.b16 %v1226, %v1225
      %v1273 = vunpack.c.l.b16 %v1181
      %v1274 = vunpack.c.l.b16 %v1182
      %v1275 = vunpack.c.l.b16 %v1183
      %v1276 = vunpack.c.l.b16 %v1184
      %v1277 = vunpack.c.l.b16 %v1185
      %v1278 = vunpack.c.l.b16 %v1186
      %v1279 = vunpack.c.l.b16 %v1187
      %v1280 = vunpack.c.l.b16 %v1188
      %v1281 = vunpack.c.l.b16 %v1189
      %v1282 = vunpack.c.l.b16 %v1190
      %v1283 = vunpack.c.l.b16 %v1191
      %v1284 = vunpack.c.l.b16 %v1192
      %v1285 = vunpack.c.l.b16 %v1193
      %v1286 = vunpack.c.l.b16 %v1194
      %v1287 = vunpack.c.l.b16 %v1195
      %v1288 = vunpack.c.l.b16 %v1196
      %v1289 = vpack.c.b16 %v1274, %v1273
      %v1290 = vpack.c.b16 %v1276, %v1275
      %v1291 = vpack.c.b16 %v1278, %v1277
      %v1292 = vpack.c.b16 %v1280, %v1279
      %v1293 = vpack.c.b16 %v1282, %v1281
      %v1294 = vpack.c.b16 %v1284, %v1283
      %v1295 = vpack.c.b16 %v1286, %v1285
      %v1296 = vpack.c.b16 %v1288, %v1287
      %1305 = vmatpush.bf16.msra.mxu0 %v1296
      %1306 = vmatpush.bf16.msra.mxu0 %v1295
      %1307 = vmatpush.bf16.msra.mxu0 %v1294
      %1308 = vmatpush.bf16.msra.mxu0 %v1293
      %1309 = vmatpush.bf16.msra.mxu0 %v1292
      %1310 = vmatpush.bf16.msra.mxu0 %v1291
      %1311 = vmatpush.bf16.msra.mxu0 %v1290
      %1312 = vmatpush.bf16.msra.mxu0 %v1289
      %1313 = vmatmul.bf16.gmra.mxu0 %v1227
      %v1314 = vpop.f32.mrf.mxu0
      %v1315 = vadd.f32 0.0, %v1314
      %v1316 = vpop.f32.mrf.mxu0
      %v1317 = vadd.f32 0.0, %v1316
      %1318 = vmatmul.bf16.gmra.mxu0 %v1228
      %v1319 = vpop.f32.mrf.mxu0
      %v1320 = vadd.f32 0.0, %v1319
      %v1321 = vpop.f32.mrf.mxu0
      %v1322 = vadd.f32 0.0, %v1321
      %1323 = vmatmul.bf16.gmra.mxu0 %v1229
      %v1324 = vpop.f32.mrf.mxu0
      %v1325 = vadd.f32 0.0, %v1324
      %v1326 = vpop.f32.mrf.mxu0
      %v1327 = vadd.f32 0.0, %v1326
      %1328 = vmatmul.bf16.gmra.mxu0 %v1230
      %v1329 = vpop.f32.mrf.mxu0
      %v1330 = vadd.f32 0.0, %v1329
      %v1331 = vpop.f32.mrf.mxu0
      %v1332 = vadd.f32 0.0, %v1331
      %1333 = vmatmul.bf16.gmra.mxu0 %v1231
      %v1334 = vpop.f32.mrf.mxu0
      %v1335 = vadd.f32 0.0, %v1334
      %v1336 = vpop.f32.mrf.mxu0
      %v1337 = vadd.f32 0.0, %v1336
      %1338 = vmatmul.bf16.gmra.mxu0 %v1232
      %v1339 = vpop.f32.mrf.mxu0
      %v1340 = vadd.f32 0.0, %v1339
      %v1341 = vpop.f32.mrf.mxu0
      %v1342 = vadd.f32 0.0, %v1341
      %1343 = vmatmul.bf16.gmra.mxu0 %v1233
      %v1344 = vpop.f32.mrf.mxu0
      %v1345 = vadd.f32 0.0, %v1344
      %v1346 = vpop.f32.mrf.mxu0
      %v1347 = vadd.f32 0.0, %v1346
      %1348 = vmatmul.bf16.gmra.mxu0 %v1234
      %v1349 = vpop.f32.mrf.mxu0
      %v1350 = vadd.f32 0.0, %v1349
      %v1351 = vpop.f32.mrf.mxu0
      %v1352 = vadd.f32 0.0, %v1351
      %1353 = vmatmul.bf16.gmra.mxu0 %v1235
      %v1354 = vpop.f32.mrf.mxu0
      %v1355 = vadd.f32 0.0, %v1354
      %v1356 = vpop.f32.mrf.mxu0
      %v1357 = vadd.f32 0.0, %v1356
      %1358 = vmatmul.bf16.gmra.mxu0 %v1236
      %v1359 = vpop.f32.mrf.mxu0
      %v1360 = vadd.f32 0.0, %v1359
      %v1361 = vpop.f32.mrf.mxu0
      %v1362 = vadd.f32 0.0, %v1361
      %1363 = vmatmul.bf16.gmra.mxu0 %v1237
      %v1364 = vpop.f32.mrf.mxu0
      %v1365 = vadd.f32 0.0, %v1364
      %v1366 = vpop.f32.mrf.mxu0
      %v1367 = vadd.f32 0.0, %v1366
      %1368 = vmatmul.bf16.gmra.mxu0 %v1238
      %v1369 = vpop.f32.mrf.mxu0
      %v1370 = vadd.f32 0.0, %v1369
      %v1371 = vpop.f32.mrf.mxu0
      %v1372 = vadd.f32 0.0, %v1371
      %1373 = vmatmul.bf16.gmra.mxu0 %v1239
      %v1374 = vpop.f32.mrf.mxu0
      %v1375 = vadd.f32 0.0, %v1374
      %v1376 = vpop.f32.mrf.mxu0
      %v1377 = vadd.f32 0.0, %v1376
      %1378 = vmatmul.bf16.gmra.mxu0 %v1240
      %v1379 = vpop.f32.mrf.mxu0
      %v1380 = vadd.f32 0.0, %v1379
      %v1381 = vpop.f32.mrf.mxu0
      %v1382 = vadd.f32 0.0, %v1381
      %1383 = vmatmul.bf16.gmra.mxu0 %v1241
      %v1384 = vpop.f32.mrf.mxu0
      %v1385 = vadd.f32 0.0, %v1384
      %v1386 = vpop.f32.mrf.mxu0
      %v1387 = vadd.f32 0.0, %v1386
      %1388 = vdwg.mxu0
      %v1389 = vadd.f32 %v953, %v1315
      %v1390 = vadd.f32 %v955, %v1317
      %v1391 = vadd.f32 %v958, %v1320
      %v1392 = vadd.f32 %v960, %v1322
      %v1393 = vadd.f32 %v963, %v1325
      %v1394 = vadd.f32 %v965, %v1327
      %v1395 = vadd.f32 %v968, %v1330
      %v1396 = vadd.f32 %v970, %v1332
      %v1397 = vadd.f32 %v973, %v1335
      %v1398 = vadd.f32 %v975, %v1337
      %v1399 = vadd.f32 %v978, %v1340
      %v1400 = vadd.f32 %v980, %v1342
      %v1401 = vadd.f32 %v983, %v1345
      %v1402 = vadd.f32 %v985, %v1347
      %v1403 = vadd.f32 %v988, %v1350
      %v1404 = vadd.f32 %v990, %v1352
      %v1405 = vadd.f32 %v993, %v1355
      %v1406 = vadd.f32 %v995, %v1357
      %v1407 = vadd.f32 %v998, %v1360
      %v1408 = vadd.f32 %v1000, %v1362
      %v1409 = vadd.f32 %v1003, %v1365
      %v1410 = vadd.f32 %v1005, %v1367
      %v1411 = vadd.f32 %v1008, %v1370
      %v1412 = vadd.f32 %v1010, %v1372
      %v1413 = vadd.f32 %v1013, %v1375
      %v1414 = vadd.f32 %v1015, %v1377
      %v1415 = vadd.f32 %v1018, %v1380
      %v1416 = vadd.f32 %v1020, %v1382
      %v1417 = vadd.f32 %v1023, %v1385
      %v1418 = vadd.f32 %v1025, %v1387
      %s1419 = scalar_lea.vmem %s165, 12
      %v1420 = vld [vmem:[%s1419] sm:$0xf]
      %v1421 = vld [vmem:[%s1419 + $0x4] sm:$0xf]
      %v1422 = vld [vmem:[%s1419 + $0xc] sm:$0xf]
      %v1423 = vld [vmem:[%s1419 + $0x10] sm:$0xf]
      %v1424 = vld [vmem:[%s1419 + $0x18] sm:$0xf]
      %v1425 = vld [vmem:[%s1419 + $0x1c] sm:$0xf]
      %v1426 = vld [vmem:[%s1419 + $0x24] sm:$0xf]
      %v1427 = vld [vmem:[%s1419 + $0x28] sm:$0xf]
      %v1428 = vld [vmem:[%s1419 + $0x30] sm:$0xf]
      %v1429 = vld [vmem:[%s1419 + $0x34] sm:$0xf]
      %v1430 = vld [vmem:[%s1419 + $0x3c] sm:$0xf]
      %v1431 = vld [vmem:[%s1419 + $0x40] sm:$0xf]
      %v1432 = vld [vmem:[%s1419 + $0x48] sm:$0xf]
      %v1433 = vld [vmem:[%s1419 + $0x4c] sm:$0xf]
      %v1434 = vld [vmem:[%s1419 + $0x54] sm:$0xf]
      %v1435 = vld [vmem:[%s1419 + $0x58] sm:$0xf]
      %v1436 = vld [vmem:[%s1419 + $0x60] sm:$0xf]
      %v1437 = vld [vmem:[%s1419 + $0x64] sm:$0xf]
      %v1438 = vld [vmem:[%s1419 + $0x6c] sm:$0xf]
      %v1439 = vld [vmem:[%s1419 + $0x70] sm:$0xf]
      %v1440 = vld [vmem:[%s1419 + $0x78] sm:$0xf]
      %v1441 = vld [vmem:[%s1419 + $0x7c] sm:$0xf]
      %v1442 = vld [vmem:[%s1419 + $0x84] sm:$0xf]
      %v1443 = vld [vmem:[%s1419 + $0x88] sm:$0xf]
      %v1444 = vld [vmem:[%s1419 + $0x90] sm:$0xf]
      %v1445 = vld [vmem:[%s1419 + $0x94] sm:$0xf]
      %v1446 = vld [vmem:[%s1419 + $0x9c] sm:$0xf]
      %v1447 = vld [vmem:[%s1419 + $0xa0] sm:$0xf]
      %v1448 = vld [vmem:[%s1419 + $0xa8] sm:$0xf]
      %v1449 = vld [vmem:[%s1419 + $0xac] sm:$0xf]
      %s1450 = scalar_lea.vmem %s1, 192
      %v1451 = vld [vmem:[%s1450] sm:$0xf]
      %v1452 = vld [vmem:[%s1450 + $0x4] sm:$0xf]
      %v1453 = vld [vmem:[%s1450 + $0x8] sm:$0xf]
      %v1454 = vld [vmem:[%s1450 + $0xc] sm:$0xf]
      %v1455 = vld [vmem:[%s1450 + $0x10] sm:$0xf]
      %v1456 = vld [vmem:[%s1450 + $0x14] sm:$0xf]
      %v1457 = vld [vmem:[%s1450 + $0x18] sm:$0xf]
      %v1458 = vld [vmem:[%s1450 + $0x1c] sm:$0xf]
      %v1459 = vld [vmem:[%s1450 + $0x20] sm:$0xf]
      %v1460 = vld [vmem:[%s1450 + $0x24] sm:$0xf]
      %v1461 = vld [vmem:[%s1450 + $0x28] sm:$0xf]
      %v1462 = vld [vmem:[%s1450 + $0x2c] sm:$0xf]
      %v1463 = vld [vmem:[%s1450 + $0x30] sm:$0xf]
      %v1464 = vld [vmem:[%s1450 + $0x34] sm:$0xf]
      %v1465 = vld [vmem:[%s1450 + $0x38] sm:$0xf]
      %v1466 = vld [vmem:[%s1450 + $0x3c] sm:$0xf]
      %v1497 = vunpack.c.l.b16 %v1420
      %v1498 = vunpack.c.l.b16 %v1421
      %v1499 = vunpack.c.l.b16 %v1422
      %v1500 = vunpack.c.l.b16 %v1423
      %v1501 = vunpack.c.l.b16 %v1424
      %v1502 = vunpack.c.l.b16 %v1425
      %v1503 = vunpack.c.l.b16 %v1426
      %v1504 = vunpack.c.l.b16 %v1427
      %v1505 = vunpack.c.l.b16 %v1428
      %v1506 = vunpack.c.l.b16 %v1429
      %v1507 = vunpack.c.l.b16 %v1430
      %v1508 = vunpack.c.l.b16 %v1431
      %v1509 = vunpack.c.l.b16 %v1432
      %v1510 = vunpack.c.l.b16 %v1433
      %v1511 = vunpack.c.l.b16 %v1434
      %v1512 = vunpack.c.l.b16 %v1435
      %v1513 = vunpack.c.l.b16 %v1436
      %v1514 = vunpack.c.l.b16 %v1437
      %v1515 = vunpack.c.l.b16 %v1438
      %v1516 = vunpack.c.l.b16 %v1439
      %v1517 = vunpack.c.l.b16 %v1440
      %v1518 = vunpack.c.l.b16 %v1441
      %v1519 = vunpack.c.l.b16 %v1442
      %v1520 = vunpack.c.l.b16 %v1443
      %v1521 = vunpack.c.l.b16 %v1444
      %v1522 = vunpack.c.l.b16 %v1445
      %v1523 = vunpack.c.l.b16 %v1446
      %v1524 = vunpack.c.l.b16 %v1447
      %v1525 = vunpack.c.l.b16 %v1448
      %v1526 = vunpack.c.l.b16 %v1449
      %v1527 = vpack.c.b16 %v1498, %v1497
      %v1528 = vpack.c.b16 %v1500, %v1499
      %v1529 = vpack.c.b16 %v1502, %v1501
      %v1530 = vpack.c.b16 %v1504, %v1503
      %v1531 = vpack.c.b16 %v1506, %v1505
      %v1532 = vpack.c.b16 %v1508, %v1507
      %v1533 = vpack.c.b16 %v1510, %v1509
      %v1534 = vpack.c.b16 %v1512, %v1511
      %v1535 = vpack.c.b16 %v1514, %v1513
      %v1536 = vpack.c.b16 %v1516, %v1515
      %v1537 = vpack.c.b16 %v1518, %v1517
      %v1538 = vpack.c.b16 %v1520, %v1519
      %v1539 = vpack.c.b16 %v1522, %v1521
      %v1540 = vpack.c.b16 %v1524, %v1523
      %v1541 = vpack.c.b16 %v1526, %v1525
      %v1573 = vunpack.c.l.b16 %v1451
      %v1574 = vunpack.c.l.b16 %v1452
      %v1575 = vunpack.c.l.b16 %v1453
      %v1576 = vunpack.c.l.b16 %v1454
      %v1577 = vunpack.c.l.b16 %v1455
      %v1578 = vunpack.c.l.b16 %v1456
      %v1579 = vunpack.c.l.b16 %v1457
      %v1580 = vunpack.c.l.b16 %v1458
      %v1581 = vunpack.c.l.b16 %v1459
      %v1582 = vunpack.c.l.b16 %v1460
      %v1583 = vunpack.c.l.b16 %v1461
      %v1584 = vunpack.c.l.b16 %v1462
      %v1585 = vunpack.c.l.b16 %v1463
      %v1586 = vunpack.c.l.b16 %v1464
      %v1587 = vunpack.c.l.b16 %v1465
      %v1588 = vunpack.c.l.b16 %v1466
      %v1589 = vpack.c.b16 %v1574, %v1573
      %v1590 = vpack.c.b16 %v1576, %v1575
      %v1591 = vpack.c.b16 %v1578, %v1577
      %v1592 = vpack.c.b16 %v1580, %v1579
      %v1593 = vpack.c.b16 %v1582, %v1581
      %v1594 = vpack.c.b16 %v1584, %v1583
      %v1595 = vpack.c.b16 %v1586, %v1585
      %v1596 = vpack.c.b16 %v1588, %v1587
      %1605 = vmatpush.bf16.msra.mxu0 %v1596
      %1606 = vmatpush.bf16.msra.mxu0 %v1595
      %1607 = vmatpush.bf16.msra.mxu0 %v1594
      %1608 = vmatpush.bf16.msra.mxu0 %v1593
      %1609 = vmatpush.bf16.msra.mxu0 %v1592
      %1610 = vmatpush.bf16.msra.mxu0 %v1591
      %1611 = vmatpush.bf16.msra.mxu0 %v1590
      %1612 = vmatpush.bf16.msra.mxu0 %v1589
      %1613 = vmatmul.bf16.gmra.mxu0 %v1527
      %v1614 = vpop.f32.mrf.mxu0
      %v1615 = vadd.f32 0.0, %v1614
      %v1616 = vpop.f32.mrf.mxu0
      %v1617 = vadd.f32 0.0, %v1616
      %1618 = vmatmul.bf16.gmra.mxu0 %v1528
      %v1619 = vpop.f32.mrf.mxu0
      %v1620 = vadd.f32 0.0, %v1619
      %v1621 = vpop.f32.mrf.mxu0
      %v1622 = vadd.f32 0.0, %v1621
      %1623 = vmatmul.bf16.gmra.mxu0 %v1529
      %v1624 = vpop.f32.mrf.mxu0
      %v1625 = vadd.f32 0.0, %v1624
      %v1626 = vpop.f32.mrf.mxu0
      %v1627 = vadd.f32 0.0, %v1626
      %1628 = vmatmul.bf16.gmra.mxu0 %v1530
      %v1629 = vpop.f32.mrf.mxu0
      %v1630 = vadd.f32 0.0, %v1629
      %v1631 = vpop.f32.mrf.mxu0
      %v1632 = vadd.f32 0.0, %v1631
      %1633 = vmatmul.bf16.gmra.mxu0 %v1531
      %v1634 = vpop.f32.mrf.mxu0
      %v1635 = vadd.f32 0.0, %v1634
      %v1636 = vpop.f32.mrf.mxu0
      %v1637 = vadd.f32 0.0, %v1636
      %1638 = vmatmul.bf16.gmra.mxu0 %v1532
      %v1639 = vpop.f32.mrf.mxu0
      %v1640 = vadd.f32 0.0, %v1639
      %v1641 = vpop.f32.mrf.mxu0
      %v1642 = vadd.f32 0.0, %v1641
      %1643 = vmatmul.bf16.gmra.mxu0 %v1533
      %v1644 = vpop.f32.mrf.mxu0
      %v1645 = vadd.f32 0.0, %v1644
      %v1646 = vpop.f32.mrf.mxu0
      %v1647 = vadd.f32 0.0, %v1646
      %1648 = vmatmul.bf16.gmra.mxu0 %v1534
      %v1649 = vpop.f32.mrf.mxu0
      %v1650 = vadd.f32 0.0, %v1649
      %v1651 = vpop.f32.mrf.mxu0
      %v1652 = vadd.f32 0.0, %v1651
      %1653 = vmatmul.bf16.gmra.mxu0 %v1535
      %v1654 = vpop.f32.mrf.mxu0
      %v1655 = vadd.f32 0.0, %v1654
      %v1656 = vpop.f32.mrf.mxu0
      %v1657 = vadd.f32 0.0, %v1656
      %1658 = vmatmul.bf16.gmra.mxu0 %v1536
      %v1659 = vpop.f32.mrf.mxu0
      %v1660 = vadd.f32 0.0, %v1659
      %v1661 = vpop.f32.mrf.mxu0
      %v1662 = vadd.f32 0.0, %v1661
      %1663 = vmatmul.bf16.gmra.mxu0 %v1537
      %v1664 = vpop.f32.mrf.mxu0
      %v1665 = vadd.f32 0.0, %v1664
      %v1666 = vpop.f32.mrf.mxu0
      %v1667 = vadd.f32 0.0, %v1666
      %1668 = vmatmul.bf16.gmra.mxu0 %v1538
      %v1669 = vpop.f32.mrf.mxu0
      %v1670 = vadd.f32 0.0, %v1669
      %v1671 = vpop.f32.mrf.mxu0
      %v1672 = vadd.f32 0.0, %v1671
      %1673 = vmatmul.bf16.gmra.mxu0 %v1539
      %v1674 = vpop.f32.mrf.mxu0
      %v1675 = vadd.f32 0.0, %v1674
      %v1676 = vpop.f32.mrf.mxu0
      %v1677 = vadd.f32 0.0, %v1676
      %1678 = vmatmul.bf16.gmra.mxu0 %v1540
      %v1679 = vpop.f32.mrf.mxu0
      %v1680 = vadd.f32 0.0, %v1679
      %v1681 = vpop.f32.mrf.mxu0
      %v1682 = vadd.f32 0.0, %v1681
      %1683 = vmatmul.bf16.gmra.mxu0 %v1541
      %v1684 = vpop.f32.mrf.mxu0
      %v1685 = vadd.f32 0.0, %v1684
      %v1686 = vpop.f32.mrf.mxu0
      %v1687 = vadd.f32 0.0, %v1686
      %1688 = vdwg.mxu0
      %v1689 = vadd.f32 %v1389, %v1615
      %v1690 = vadd.f32 %v1390, %v1617
      %v1691 = vadd.f32 %v1391, %v1620
      %v1692 = vadd.f32 %v1392, %v1622
      %v1693 = vadd.f32 %v1393, %v1625
      %v1694 = vadd.f32 %v1394, %v1627
      %v1695 = vadd.f32 %v1395, %v1630
      %v1696 = vadd.f32 %v1396, %v1632
      %v1697 = vadd.f32 %v1397, %v1635
      %v1698 = vadd.f32 %v1398, %v1637
      %v1699 = vadd.f32 %v1399, %v1640
      %v1700 = vadd.f32 %v1400, %v1642
      %v1701 = vadd.f32 %v1401, %v1645
      %v1702 = vadd.f32 %v1402, %v1647
      %v1703 = vadd.f32 %v1403, %v1650
      %v1704 = vadd.f32 %v1404, %v1652
      %v1705 = vadd.f32 %v1405, %v1655
      %v1706 = vadd.f32 %v1406, %v1657
      %v1707 = vadd.f32 %v1407, %v1660
      %v1708 = vadd.f32 %v1408, %v1662
      %v1709 = vadd.f32 %v1409, %v1665
      %v1710 = vadd.f32 %v1410, %v1667
      %v1711 = vadd.f32 %v1411, %v1670
      %v1712 = vadd.f32 %v1412, %v1672
      %v1713 = vadd.f32 %v1413, %v1675
      %v1714 = vadd.f32 %v1414, %v1677
      %v1715 = vadd.f32 %v1415, %v1680
      %v1716 = vadd.f32 %v1416, %v1682
      %v1717 = vadd.f32 %v1417, %v1685
      %v1718 = vadd.f32 %v1418, %v1687
      %v1719 = vld [vmem:[%s1419] sm:$0xf]
      %v1720 = vld [vmem:[%s1419 + $0x4] sm:$0xf]
      %v1721 = vld [vmem:[%s1419 + $0x8] sm:$0x1]
      %v1722 = vld [vmem:[%s1419 + $0xc] sm:$0xf]
      %v1723 = vld [vmem:[%s1419 + $0x10] sm:$0xf]
      %v1724 = vld [vmem:[%s1419 + $0x14] sm:$0x1]
      %v1725 = vld [vmem:[%s1419 + $0x18] sm:$0xf]
      %v1726 = vld [vmem:[%s1419 + $0x1c] sm:$0xf]
      %v1727 = vld [vmem:[%s1419 + $0x20] sm:$0x1]
      %v1728 = vld [vmem:[%s1419 + $0x24] sm:$0xf]
      %v1729 = vld [vmem:[%s1419 + $0x28] sm:$0xf]
      %v1730 = vld [vmem:[%s1419 + $0x2c] sm:$0x1]
      %v1731 = vld [vmem:[%s1419 + $0x30] sm:$0xf]
      %v1732 = vld [vmem:[%s1419 + $0x34] sm:$0xf]
      %v1733 = vld [vmem:[%s1419 + $0x38] sm:$0x1]
      %v1734 = vld [vmem:[%s1419 + $0x3c] sm:$0xf]
      %v1735 = vld [vmem:[%s1419 + $0x40] sm:$0xf]
      %v1736 = vld [vmem:[%s1419 + $0x44] sm:$0x1]
      %v1737 = vld [vmem:[%s1419 + $0x48] sm:$0xf]
      %v1738 = vld [vmem:[%s1419 + $0x4c] sm:$0xf]
      %v1739 = vld [vmem:[%s1419 + $0x50] sm:$0x1]
      %v1740 = vld [vmem:[%s1419 + $0x54] sm:$0xf]
      %v1741 = vld [vmem:[%s1419 + $0x58] sm:$0xf]
      %v1742 = vld [vmem:[%s1419 + $0x5c] sm:$0x1]
      %v1743 = vld [vmem:[%s1419 + $0x60] sm:$0xf]
      %v1744 = vld [vmem:[%s1419 + $0x64] sm:$0xf]
      %v1745 = vld [vmem:[%s1419 + $0x68] sm:$0x1]
      %v1746 = vld [vmem:[%s1419 + $0x6c] sm:$0xf]
      %v1747 = vld [vmem:[%s1419 + $0x70] sm:$0xf]
      %v1748 = vld [vmem:[%s1419 + $0x74] sm:$0x1]
      %v1749 = vld [vmem:[%s1419 + $0x78] sm:$0xf]
      %v1750 = vld [vmem:[%s1419 + $0x7c] sm:$0xf]
      %v1751 = vld [vmem:[%s1419 + $0x80] sm:$0x1]
      %v1752 = vld [vmem:[%s1419 + $0x84] sm:$0xf]
      %v1753 = vld [vmem:[%s1419 + $0x88] sm:$0xf]
      %v1754 = vld [vmem:[%s1419 + $0x8c] sm:$0x1]
      %v1755 = vld [vmem:[%s1419 + $0x90] sm:$0xf]
      %v1756 = vld [vmem:[%s1419 + $0x94] sm:$0xf]
      %v1757 = vld [vmem:[%s1419 + $0x98] sm:$0x1]
      %v1758 = vld [vmem:[%s1419 + $0x9c] sm:$0xf]
      %v1759 = vld [vmem:[%s1419 + $0xa0] sm:$0xf]
      %v1760 = vld [vmem:[%s1419 + $0xa4] sm:$0x1]
      %v1761 = vld [vmem:[%s1419 + $0xa8] sm:$0xf]
      %v1762 = vld [vmem:[%s1419 + $0xac] sm:$0xf]
      %v1763 = vld [vmem:[%s1419 + $0xb0] sm:$0x1]
      %v1765 = vshrl.u32 %v1719, 16
      %v1767 = vrot.slane %v1765, 4
      %v1768 = vshll.u32 %v1719, 16
      %v1770 = vrot.slane %v1768, 5
      %v1771 = vor.u32 %v1767, %v1770
      %v1772 = vrot.slane %v1771, 4
      %v1774 = vshll.u32 %v1720, 16
      %v1776 = vrot.slane %v1774, 5
      %v1777 = vsel %vm235, %v1772, %v1776
      %v1778 = vshrl.u32 %v1720, 16
      %v1780 = vrot.slane %v1778, 4
      %v1781 = vor.u32 %v1780, %v1776
      %v1782 = vrot.slane %v1781, 4
      %v1784 = vshll.u32 %v1721, 16
      %v1786 = vrot.slane %v1784, 5
      %v1787 = vsel %vm235, %v1782, %v1786
      %v1789 = vshrl.u32 %v1722, 16
      %v1791 = vrot.slane %v1789, 4
      %v1792 = vshll.u32 %v1722, 16
      %v1794 = vrot.slane %v1792, 5
      %v1795 = vor.u32 %v1791, %v1794
      %v1796 = vrot.slane %v1795, 4
      %v1798 = vshll.u32 %v1723, 16
      %v1800 = vrot.slane %v1798, 5
      %v1801 = vsel %vm235, %v1796, %v1800
      %v1802 = vshrl.u32 %v1723, 16
      %v1804 = vrot.slane %v1802, 4
      %v1805 = vor.u32 %v1804, %v1800
      %v1806 = vrot.slane %v1805, 4
      %v1808 = vshll.u32 %v1724, 16
      %v1810 = vrot.slane %v1808, 5
      %v1811 = vsel %vm235, %v1806, %v1810
      %v1813 = vshrl.u32 %v1725, 16
      %v1815 = vrot.slane %v1813, 4
      %v1816 = vshll.u32 %v1725, 16
      %v1818 = vrot.slane %v1816, 5
      %v1819 = vor.u32 %v1815, %v1818
      %v1820 = vrot.slane %v1819, 4
      %v1822 = vshll.u32 %v1726, 16
      %v1824 = vrot.slane %v1822, 5
      %v1825 = vsel %vm235, %v1820, %v1824
      %v1826 = vshrl.u32 %v1726, 16
      %v1828 = vrot.slane %v1826, 4
      %v1829 = vor.u32 %v1828, %v1824
      %v1830 = vrot.slane %v1829, 4
      %v1832 = vshll.u32 %v1727, 16
      %v1834 = vrot.slane %v1832, 5
      %v1835 = vsel %vm235, %v1830, %v1834
      %v1837 = vshrl.u32 %v1728, 16
      %v1839 = vrot.slane %v1837, 4
      %v1840 = vshll.u32 %v1728, 16
      %v1842 = vrot.slane %v1840, 5
      %v1843 = vor.u32 %v1839, %v1842
      %v1844 = vrot.slane %v1843, 4
      %v1846 = vshll.u32 %v1729, 16
      %v1848 = vrot.slane %v1846, 5
      %v1849 = vsel %vm235, %v1844, %v1848
      %v1850 = vshrl.u32 %v1729, 16
      %v1852 = vrot.slane %v1850, 4
      %v1853 = vor.u32 %v1852, %v1848
      %v1854 = vrot.slane %v1853, 4
      %v1856 = vshll.u32 %v1730, 16
      %v1858 = vrot.slane %v1856, 5
      %v1859 = vsel %vm235, %v1854, %v1858
      %v1861 = vshrl.u32 %v1731, 16
      %v1863 = vrot.slane %v1861, 4
      %v1864 = vshll.u32 %v1731, 16
      %v1866 = vrot.slane %v1864, 5
      %v1867 = vor.u32 %v1863, %v1866
      %v1868 = vrot.slane %v1867, 4
      %v1870 = vshll.u32 %v1732, 16
      %v1872 = vrot.slane %v1870, 5
      %v1873 = vsel %vm235, %v1868, %v1872
      %v1874 = vshrl.u32 %v1732, 16
      %v1876 = vrot.slane %v1874, 4
      %v1877 = vor.u32 %v1876, %v1872
      %v1878 = vrot.slane %v1877, 4
      %v1880 = vshll.u32 %v1733, 16
      %v1882 = vrot.slane %v1880, 5
      %v1883 = vsel %vm235, %v1878, %v1882
      %v1885 = vshrl.u32 %v1734, 16
      %v1887 = vrot.slane %v1885, 4
      %v1888 = vshll.u32 %v1734, 16
      %v1890 = vrot.slane %v1888, 5
      %v1891 = vor.u32 %v1887, %v1890
      %v1892 = vrot.slane %v1891, 4
      %v1894 = vshll.u32 %v1735, 16
      %v1896 = vrot.slane %v1894, 5
      %v1897 = vsel %vm235, %v1892, %v1896
      %v1898 = vshrl.u32 %v1735, 16
      %v1900 = vrot.slane %v1898, 4
      %v1901 = vor.u32 %v1900, %v1896
      %v1902 = vrot.slane %v1901, 4
      %v1904 = vshll.u32 %v1736, 16
      %v1906 = vrot.slane %v1904, 5
      %v1907 = vsel %vm235, %v1902, %v1906
      %v1909 = vshrl.u32 %v1737, 16
      %v1911 = vrot.slane %v1909, 4
      %v1912 = vshll.u32 %v1737, 16
      %v1914 = vrot.slane %v1912, 5
      %v1915 = vor.u32 %v1911, %v1914
      %v1916 = vrot.slane %v1915, 4
      %v1918 = vshll.u32 %v1738, 16
      %v1920 = vrot.slane %v1918, 5
      %v1921 = vsel %vm235, %v1916, %v1920
      %v1922 = vshrl.u32 %v1738, 16
      %v1924 = vrot.slane %v1922, 4
      %v1925 = vor.u32 %v1924, %v1920
      %v1926 = vrot.slane %v1925, 4
      %v1928 = vshll.u32 %v1739, 16
      %v1930 = vrot.slane %v1928, 5
      %v1931 = vsel %vm235, %v1926, %v1930
      %v1933 = vshrl.u32 %v1740, 16
      %v1935 = vrot.slane %v1933, 4
      %v1936 = vshll.u32 %v1740, 16
      %v1938 = vrot.slane %v1936, 5
      %v1939 = vor.u32 %v1935, %v1938
      %v1940 = vrot.slane %v1939, 4
      %v1942 = vshll.u32 %v1741, 16
      %v1944 = vrot.slane %v1942, 5
      %v1945 = vsel %vm235, %v1940, %v1944
      %v1946 = vshrl.u32 %v1741, 16
      %v1948 = vrot.slane %v1946, 4
      %v1949 = vor.u32 %v1948, %v1944
      %v1950 = vrot.slane %v1949, 4
      %v1952 = vshll.u32 %v1742, 16
      %v1954 = vrot.slane %v1952, 5
      %v1955 = vsel %vm235, %v1950, %v1954
      %v1957 = vshrl.u32 %v1743, 16
      %v1959 = vrot.slane %v1957, 4
      %v1960 = vshll.u32 %v1743, 16
      %v1962 = vrot.slane %v1960, 5
      %v1963 = vor.u32 %v1959, %v1962
      %v1964 = vrot.slane %v1963, 4
      %v1966 = vshll.u32 %v1744, 16
      %v1968 = vrot.slane %v1966, 5
      %v1969 = vsel %vm235, %v1964, %v1968
      %v1970 = vshrl.u32 %v1744, 16
      %v1972 = vrot.slane %v1970, 4
      %v1973 = vor.u32 %v1972, %v1968
      %v1974 = vrot.slane %v1973, 4
      %v1976 = vshll.u32 %v1745, 16
      %v1978 = vrot.slane %v1976, 5
      %v1979 = vsel %vm235, %v1974, %v1978
      %v1981 = vshrl.u32 %v1746, 16
      %v1983 = vrot.slane %v1981, 4
      %v1984 = vshll.u32 %v1746, 16
      %v1986 = vrot.slane %v1984, 5
      %v1987 = vor.u32 %v1983, %v1986
      %v1988 = vrot.slane %v1987, 4
      %v1990 = vshll.u32 %v1747, 16
      %v1992 = vrot.slane %v1990, 5
      %v1993 = vsel %vm235, %v1988, %v1992
      %v1994 = vshrl.u32 %v1747, 16
      %v1996 = vrot.slane %v1994, 4
      %v1997 = vor.u32 %v1996, %v1992
      %v1998 = vrot.slane %v1997, 4
      %v2000 = vshll.u32 %v1748, 16
      %v2002 = vrot.slane %v2000, 5
      %v2003 = vsel %vm235, %v1998, %v2002
      %v2005 = vshrl.u32 %v1749, 16
      %v2007 = vrot.slane %v2005, 4
      %v2008 = vshll.u32 %v1749, 16
      %v2010 = vrot.slane %v2008, 5
      %v2011 = vor.u32 %v2007, %v2010
      %v2012 = vrot.slane %v2011, 4
      %v2014 = vshll.u32 %v1750, 16
      %v2016 = vrot.slane %v2014, 5
      %v2017 = vsel %vm235, %v2012, %v2016
      %v2018 = vshrl.u32 %v1750, 16
      %v2020 = vrot.slane %v2018, 4
      %v2021 = vor.u32 %v2020, %v2016
      %v2022 = vrot.slane %v2021, 4
      %v2024 = vshll.u32 %v1751, 16
      %v2026 = vrot.slane %v2024, 5
      %v2027 = vsel %vm235, %v2022, %v2026
      %v2029 = vshrl.u32 %v1752, 16
      %v2031 = vrot.slane %v2029, 4
      %v2032 = vshll.u32 %v1752, 16
      %v2034 = vrot.slane %v2032, 5
      %v2035 = vor.u32 %v2031, %v2034
      %v2036 = vrot.slane %v2035, 4
      %v2038 = vshll.u32 %v1753, 16
      %v2040 = vrot.slane %v2038, 5
      %v2041 = vsel %vm235, %v2036, %v2040
      %v2042 = vshrl.u32 %v1753, 16
      %v2044 = vrot.slane %v2042, 4
      %v2045 = vor.u32 %v2044, %v2040
      %v2046 = vrot.slane %v2045, 4
      %v2048 = vshll.u32 %v1754, 16
      %v2050 = vrot.slane %v2048, 5
      %v2051 = vsel %vm235, %v2046, %v2050
      %v2053 = vshrl.u32 %v1755, 16
      %v2055 = vrot.slane %v2053, 4
      %v2056 = vshll.u32 %v1755, 16
      %v2058 = vrot.slane %v2056, 5
      %v2059 = vor.u32 %v2055, %v2058
      %v2060 = vrot.slane %v2059, 4
      %v2062 = vshll.u32 %v1756, 16
      %v2064 = vrot.slane %v2062, 5
      %v2065 = vsel %vm235, %v2060, %v2064
      %v2066 = vshrl.u32 %v1756, 16
      %v2068 = vrot.slane %v2066, 4
      %v2069 = vor.u32 %v2068, %v2064
      %v2070 = vrot.slane %v2069, 4
      %v2072 = vshll.u32 %v1757, 16
      %v2074 = vrot.slane %v2072, 5
      %v2075 = vsel %vm235, %v2070, %v2074
      %v2077 = vshrl.u32 %v1758, 16
      %v2079 = vrot.slane %v2077, 4
      %v2080 = vshll.u32 %v1758, 16
      %v2082 = vrot.slane %v2080, 5
      %v2083 = vor.u32 %v2079, %v2082
      %v2084 = vrot.slane %v2083, 4
      %v2086 = vshll.u32 %v1759, 16
      %v2088 = vrot.slane %v2086, 5
      %v2089 = vsel %vm235, %v2084, %v2088
      %v2090 = vshrl.u32 %v1759, 16
      %v2092 = vrot.slane %v2090, 4
      %v2093 = vor.u32 %v2092, %v2088
      %v2094 = vrot.slane %v2093, 4
      %v2096 = vshll.u32 %v1760, 16
      %v2098 = vrot.slane %v2096, 5
      %v2099 = vsel %vm235, %v2094, %v2098
      %v2101 = vshrl.u32 %v1761, 16
      %v2103 = vrot.slane %v2101, 4
      %v2104 = vshll.u32 %v1761, 16
      %v2106 = vrot.slane %v2104, 5
      %v2107 = vor.u32 %v2103, %v2106
      %v2108 = vrot.slane %v2107, 4
      %v2110 = vshll.u32 %v1762, 16
      %v2112 = vrot.slane %v2110, 5
      %v2113 = vsel %vm235, %v2108, %v2112
      %v2114 = vshrl.u32 %v1762, 16
      %v2116 = vrot.slane %v2114, 4
      %v2117 = vor.u32 %v2116, %v2112
      %v2118 = vrot.slane %v2117, 4
      %v2120 = vshll.u32 %v1763, 16
      %v2122 = vrot.slane %v2120, 5
      %v2123 = vsel %vm235, %v2118, %v2122
      %s2124 = scalar_lea.vmem %s1, 256
      %v2125 = vld [vmem:[%s2124] sm:$0xf]
      %v2126 = vld [vmem:[%s2124 + $0x4] sm:$0xf]
      %v2127 = vld [vmem:[%s2124 + $0x8] sm:$0xf]
      %v2128 = vld [vmem:[%s2124 + $0xc] sm:$0xf]
      %v2129 = vld [vmem:[%s2124 + $0x10] sm:$0xf]
      %v2130 = vld [vmem:[%s2124 + $0x14] sm:$0xf]
      %v2131 = vld [vmem:[%s2124 + $0x18] sm:$0xf]
      %v2132 = vld [vmem:[%s2124 + $0x1c] sm:$0xf]
      %v2133 = vld [vmem:[%s2124 + $0x20] sm:$0xf]
      %v2134 = vld [vmem:[%s2124 + $0x24] sm:$0xf]
      %v2135 = vld [vmem:[%s2124 + $0x28] sm:$0xf]
      %v2136 = vld [vmem:[%s2124 + $0x2c] sm:$0xf]
      %v2137 = vld [vmem:[%s2124 + $0x30] sm:$0xf]
      %v2138 = vld [vmem:[%s2124 + $0x34] sm:$0xf]
      %v2139 = vld [vmem:[%s2124 + $0x38] sm:$0xf]
      %v2140 = vld [vmem:[%s2124 + $0x3c] sm:$0xf]
      %v2141 = vunpack.c.l.b16 %v1777
      %v2142 = vunpack.c.l.b16 %v1787
      %v2143 = vunpack.c.l.b16 %v1801
      %v2144 = vunpack.c.l.b16 %v1811
      %v2145 = vunpack.c.l.b16 %v1825
      %v2146 = vunpack.c.l.b16 %v1835
      %v2147 = vunpack.c.l.b16 %v1849
      %v2148 = vunpack.c.l.b16 %v1859
      %v2149 = vunpack.c.l.b16 %v1873
      %v2150 = vunpack.c.l.b16 %v1883
      %v2151 = vunpack.c.l.b16 %v1897
      %v2152 = vunpack.c.l.b16 %v1907
      %v2153 = vunpack.c.l.b16 %v1921
      %v2154 = vunpack.c.l.b16 %v1931
      %v2155 = vunpack.c.l.b16 %v1945
      %v2156 = vunpack.c.l.b16 %v1955
      %v2157 = vunpack.c.l.b16 %v1969
      %v2158 = vunpack.c.l.b16 %v1979
      %v2159 = vunpack.c.l.b16 %v1993
      %v2160 = vunpack.c.l.b16 %v2003
      %v2161 = vunpack.c.l.b16 %v2017
      %v2162 = vunpack.c.l.b16 %v2027
      %v2163 = vunpack.c.l.b16 %v2041
      %v2164 = vunpack.c.l.b16 %v2051
      %v2165 = vunpack.c.l.b16 %v2065
      %v2166 = vunpack.c.l.b16 %v2075
      %v2167 = vunpack.c.l.b16 %v2089
      %v2168 = vunpack.c.l.b16 %v2099
      %v2169 = vunpack.c.l.b16 %v2113
      %v2170 = vunpack.c.l.b16 %v2123
      %v2171 = vpack.c.b16 %v2142, %v2141
      %v2172 = vpack.c.b16 %v2144, %v2143
      %v2173 = vpack.c.b16 %v2146, %v2145
      %v2174 = vpack.c.b16 %v2148, %v2147
      %v2175 = vpack.c.b16 %v2150, %v2149
      %v2176 = vpack.c.b16 %v2152, %v2151
      %v2177 = vpack.c.b16 %v2154, %v2153
      %v2178 = vpack.c.b16 %v2156, %v2155
      %v2179 = vpack.c.b16 %v2158, %v2157
      %v2180 = vpack.c.b16 %v2160, %v2159
      %v2181 = vpack.c.b16 %v2162, %v2161
      %v2182 = vpack.c.b16 %v2164, %v2163
      %v2183 = vpack.c.b16 %v2166, %v2165
      %v2184 = vpack.c.b16 %v2168, %v2167
      %v2185 = vpack.c.b16 %v2170, %v2169
      %v2217 = vunpack.c.l.b16 %v2125
      %v2218 = vunpack.c.l.b16 %v2126
      %v2219 = vunpack.c.l.b16 %v2127
      %v2220 = vunpack.c.l.b16 %v2128
      %v2221 = vunpack.c.l.b16 %v2129
      %v2222 = vunpack.c.l.b16 %v2130
      %v2223 = vunpack.c.l.b16 %v2131
      %v2224 = vunpack.c.l.b16 %v2132
      %v2225 = vunpack.c.l.b16 %v2133
      %v2226 = vunpack.c.l.b16 %v2134
      %v2227 = vunpack.c.l.b16 %v2135
      %v2228 = vunpack.c.l.b16 %v2136
      %v2229 = vunpack.c.l.b16 %v2137
      %v2230 = vunpack.c.l.b16 %v2138
      %v2231 = vunpack.c.l.b16 %v2139
      %v2232 = vunpack.c.l.b16 %v2140
      %v2233 = vpack.c.b16 %v2218, %v2217
      %v2234 = vpack.c.b16 %v2220, %v2219
      %v2235 = vpack.c.b16 %v2222, %v2221
      %v2236 = vpack.c.b16 %v2224, %v2223
      %v2237 = vpack.c.b16 %v2226, %v2225
      %v2238 = vpack.c.b16 %v2228, %v2227
      %v2239 = vpack.c.b16 %v2230, %v2229
      %v2240 = vpack.c.b16 %v2232, %v2231
      %2249 = vmatpush.bf16.msra.mxu0 %v2240
      %2250 = vmatpush.bf16.msra.mxu0 %v2239
      %2251 = vmatpush.bf16.msra.mxu0 %v2238
      %2252 = vmatpush.bf16.msra.mxu0 %v2237
      %2253 = vmatpush.bf16.msra.mxu0 %v2236
      %2254 = vmatpush.bf16.msra.mxu0 %v2235
      %2255 = vmatpush.bf16.msra.mxu0 %v2234
      %2256 = vmatpush.bf16.msra.mxu0 %v2233
      %2257 = vmatmul.bf16.gmra.mxu0 %v2171
      %v2258 = vpop.f32.mrf.mxu0
      %v2259 = vadd.f32 0.0, %v2258
      %v2260 = vpop.f32.mrf.mxu0
      %v2261 = vadd.f32 0.0, %v2260
      %2262 = vmatmul.bf16.gmra.mxu0 %v2172
      %v2263 = vpop.f32.mrf.mxu0
      %v2264 = vadd.f32 0.0, %v2263
      %v2265 = vpop.f32.mrf.mxu0
      %v2266 = vadd.f32 0.0, %v2265
      %2267 = vmatmul.bf16.gmra.mxu0 %v2173
      %v2268 = vpop.f32.mrf.mxu0
      %v2269 = vadd.f32 0.0, %v2268
      %v2270 = vpop.f32.mrf.mxu0
      %v2271 = vadd.f32 0.0, %v2270
      %2272 = vmatmul.bf16.gmra.mxu0 %v2174
      %v2273 = vpop.f32.mrf.mxu0
      %v2274 = vadd.f32 0.0, %v2273
      %v2275 = vpop.f32.mrf.mxu0
      %v2276 = vadd.f32 0.0, %v2275
      %2277 = vmatmul.bf16.gmra.mxu0 %v2175
      %v2278 = vpop.f32.mrf.mxu0
      %v2279 = vadd.f32 0.0, %v2278
      %v2280 = vpop.f32.mrf.mxu0
      %v2281 = vadd.f32 0.0, %v2280
      %2282 = vmatmul.bf16.gmra.mxu0 %v2176
      %v2283 = vpop.f32.mrf.mxu0
      %v2284 = vadd.f32 0.0, %v2283
      %v2285 = vpop.f32.mrf.mxu0
      %v2286 = vadd.f32 0.0, %v2285
      %2287 = vmatmul.bf16.gmra.mxu0 %v2177
      %v2288 = vpop.f32.mrf.mxu0
      %v2289 = vadd.f32 0.0, %v2288
      %v2290 = vpop.f32.mrf.mxu0
      %v2291 = vadd.f32 0.0, %v2290
      %2292 = vmatmul.bf16.gmra.mxu0 %v2178
      %v2293 = vpop.f32.mrf.mxu0
      %v2294 = vadd.f32 0.0, %v2293
      %v2295 = vpop.f32.mrf.mxu0
      %v2296 = vadd.f32 0.0, %v2295
      %2297 = vmatmul.bf16.gmra.mxu0 %v2179
      %v2298 = vpop.f32.mrf.mxu0
      %v2299 = vadd.f32 0.0, %v2298
      %v2300 = vpop.f32.mrf.mxu0
      %v2301 = vadd.f32 0.0, %v2300
      %2302 = vmatmul.bf16.gmra.mxu0 %v2180
      %v2303 = vpop.f32.mrf.mxu0
      %v2304 = vadd.f32 0.0, %v2303
      %v2305 = vpop.f32.mrf.mxu0
      %v2306 = vadd.f32 0.0, %v2305
      %2307 = vmatmul.bf16.gmra.mxu0 %v2181
      %v2308 = vpop.f32.mrf.mxu0
      %v2309 = vadd.f32 0.0, %v2308
      %v2310 = vpop.f32.mrf.mxu0
      %v2311 = vadd.f32 0.0, %v2310
      %2312 = vmatmul.bf16.gmra.mxu0 %v2182
      %v2313 = vpop.f32.mrf.mxu0
      %v2314 = vadd.f32 0.0, %v2313
      %v2315 = vpop.f32.mrf.mxu0
      %v2316 = vadd.f32 0.0, %v2315
      %2317 = vmatmul.bf16.gmra.mxu0 %v2183
      %v2318 = vpop.f32.mrf.mxu0
      %v2319 = vadd.f32 0.0, %v2318
      %v2320 = vpop.f32.mrf.mxu0
      %v2321 = vadd.f32 0.0, %v2320
      %2322 = vmatmul.bf16.gmra.mxu0 %v2184
      %v2323 = vpop.f32.mrf.mxu0
      %v2324 = vadd.f32 0.0, %v2323
      %v2325 = vpop.f32.mrf.mxu0
      %v2326 = vadd.f32 0.0, %v2325
      %2327 = vmatmul.bf16.gmra.mxu0 %v2185
      %v2328 = vpop.f32.mrf.mxu0
      %v2329 = vadd.f32 0.0, %v2328
      %v2330 = vpop.f32.mrf.mxu0
      %v2331 = vadd.f32 0.0, %v2330
      %2332 = vdwg.mxu0
      %v2333 = vadd.f32 %v1689, %v2259
      %v2334 = vadd.f32 %v1690, %v2261
      %v2335 = vadd.f32 %v1691, %v2264
      %v2336 = vadd.f32 %v1692, %v2266
      %v2337 = vadd.f32 %v1693, %v2269
      %v2338 = vadd.f32 %v1694, %v2271
      %v2339 = vadd.f32 %v1695, %v2274
      %v2340 = vadd.f32 %v1696, %v2276
      %v2341 = vadd.f32 %v1697, %v2279
      %v2342 = vadd.f32 %v1698, %v2281
      %v2343 = vadd.f32 %v1699, %v2284
      %v2344 = vadd.f32 %v1700, %v2286
      %v2345 = vadd.f32 %v1701, %v2289
      %v2346 = vadd.f32 %v1702, %v2291
      %v2347 = vadd.f32 %v1703, %v2294
      %v2348 = vadd.f32 %v1704, %v2296
      %v2349 = vadd.f32 %v1705, %v2299
      %v2350 = vadd.f32 %v1706, %v2301
      %v2351 = vadd.f32 %v1707, %v2304
      %v2352 = vadd.f32 %v1708, %v2306
      %v2353 = vadd.f32 %v1709, %v2309
      %v2354 = vadd.f32 %v1710, %v2311
      %v2355 = vadd.f32 %v1711, %v2314
      %v2356 = vadd.f32 %v1712, %v2316
      %v2357 = vadd.f32 %v1713, %v2319
      %v2358 = vadd.f32 %v1714, %v2321
      %v2359 = vadd.f32 %v1715, %v2324
      %v2360 = vadd.f32 %v1716, %v2326
      %v2361 = vadd.f32 %v1717, %v2329
      %v2362 = vadd.f32 %v1718, %v2331
      %v2363 = vld [vmem:[%s1419] sm:$0xe]
      %v2364 = vld [vmem:[%s1419 + $0xc] sm:$0xe]
      %v2365 = vld [vmem:[%s1419 + $0x18] sm:$0xe]
      %v2366 = vld [vmem:[%s1419 + $0x24] sm:$0xe]
      %v2367 = vld [vmem:[%s1419 + $0x30] sm:$0xe]
      %v2368 = vld [vmem:[%s1419 + $0x3c] sm:$0xe]
      %v2369 = vld [vmem:[%s1419 + $0x48] sm:$0xe]
      %v2370 = vld [vmem:[%s1419 + $0x54] sm:$0xe]
      %v2371 = vld [vmem:[%s1419 + $0x60] sm:$0xe]
      %v2372 = vld [vmem:[%s1419 + $0x6c] sm:$0xe]
      %v2373 = vld [vmem:[%s1419 + $0x78] sm:$0xe]
      %v2374 = vld [vmem:[%s1419 + $0x84] sm:$0xe]
      %v2375 = vld [vmem:[%s1419 + $0x90] sm:$0xe]
      %v2376 = vld [vmem:[%s1419 + $0x9c] sm:$0xe]
      %v2377 = vld [vmem:[%s1419 + $0xa8] sm:$0xe]
      %v2423 = vrot.slane %v2363, 5
      %v2424 = vrot.slane %v2423, 4
      %v2425 = vrot.slane %v1720, 5
      %v2426 = vsel %vm1074, %v2424, %v2425
      %v2427 = vrot.slane %v2425, 4
      %v2428 = vrot.slane %v1721, 5
      %v2429 = vsel %vm1074, %v2427, %v2428
      %v2430 = vrot.slane %v2364, 5
      %v2431 = vrot.slane %v2430, 4
      %v2432 = vrot.slane %v1723, 5
      %v2433 = vsel %vm1074, %v2431, %v2432
      %v2434 = vrot.slane %v2432, 4
      %v2435 = vrot.slane %v1724, 5
      %v2436 = vsel %vm1074, %v2434, %v2435
      %v2437 = vrot.slane %v2365, 5
      %v2438 = vrot.slane %v2437, 4
      %v2439 = vrot.slane %v1726, 5
      %v2440 = vsel %vm1074, %v2438, %v2439
      %v2441 = vrot.slane %v2439, 4
      %v2442 = vrot.slane %v1727, 5
      %v2443 = vsel %vm1074, %v2441, %v2442
      %v2444 = vrot.slane %v2366, 5
      %v2445 = vrot.slane %v2444, 4
      %v2446 = vrot.slane %v1729, 5
      %v2447 = vsel %vm1074, %v2445, %v2446
      %v2448 = vrot.slane %v2446, 4
      %v2449 = vrot.slane %v1730, 5
      %v2450 = vsel %vm1074, %v2448, %v2449
      %v2451 = vrot.slane %v2367, 5
      %v2452 = vrot.slane %v2451, 4
      %v2453 = vrot.slane %v1732, 5
      %v2454 = vsel %vm1074, %v2452, %v2453
      %v2455 = vrot.slane %v2453, 4
      %v2456 = vrot.slane %v1733, 5
      %v2457 = vsel %vm1074, %v2455, %v2456
      %v2458 = vrot.slane %v2368, 5
      %v2459 = vrot.slane %v2458, 4
      %v2460 = vrot.slane %v1735, 5
      %v2461 = vsel %vm1074, %v2459, %v2460
      %v2462 = vrot.slane %v2460, 4
      %v2463 = vrot.slane %v1736, 5
      %v2464 = vsel %vm1074, %v2462, %v2463
      %v2465 = vrot.slane %v2369, 5
      %v2466 = vrot.slane %v2465, 4
      %v2467 = vrot.slane %v1738, 5
      %v2468 = vsel %vm1074, %v2466, %v2467
      %v2469 = vrot.slane %v2467, 4
      %v2470 = vrot.slane %v1739, 5
      %v2471 = vsel %vm1074, %v2469, %v2470
      %v2472 = vrot.slane %v2370, 5
      %v2473 = vrot.slane %v2472, 4
      %v2474 = vrot.slane %v1741, 5
      %v2475 = vsel %vm1074, %v2473, %v2474
      %v2476 = vrot.slane %v2474, 4
      %v2477 = vrot.slane %v1742, 5
      %v2478 = vsel %vm1074, %v2476, %v2477
      %v2479 = vrot.slane %v2371, 5
      %v2480 = vrot.slane %v2479, 4
      %v2481 = vrot.slane %v1744, 5
      %v2482 = vsel %vm1074, %v2480, %v2481
      %v2483 = vrot.slane %v2481, 4
      %v2484 = vrot.slane %v1745, 5
      %v2485 = vsel %vm1074, %v2483, %v2484
      %v2486 = vrot.slane %v2372, 5
      %v2487 = vrot.slane %v2486, 4
      %v2488 = vrot.slane %v1747, 5
      %v2489 = vsel %vm1074, %v2487, %v2488
      %v2490 = vrot.slane %v2488, 4
      %v2491 = vrot.slane %v1748, 5
      %v2492 = vsel %vm1074, %v2490, %v2491
      %v2493 = vrot.slane %v2373, 5
      %v2494 = vrot.slane %v2493, 4
      %v2495 = vrot.slane %v1750, 5
      %v2496 = vsel %vm1074, %v2494, %v2495
      %v2497 = vrot.slane %v2495, 4
      %v2498 = vrot.slane %v1751, 5
      %v2499 = vsel %vm1074, %v2497, %v2498
      %v2500 = vrot.slane %v2374, 5
      %v2501 = vrot.slane %v2500, 4
      %v2502 = vrot.slane %v1753, 5
      %v2503 = vsel %vm1074, %v2501, %v2502
      %v2504 = vrot.slane %v2502, 4
      %v2505 = vrot.slane %v1754, 5
      %v2506 = vsel %vm1074, %v2504, %v2505
      %v2507 = vrot.slane %v2375, 5
      %v2508 = vrot.slane %v2507, 4
      %v2509 = vrot.slane %v1756, 5
      %v2510 = vsel %vm1074, %v2508, %v2509
      %v2511 = vrot.slane %v2509, 4
      %v2512 = vrot.slane %v1757, 5
      %v2513 = vsel %vm1074, %v2511, %v2512
      %v2514 = vrot.slane %v2376, 5
      %v2515 = vrot.slane %v2514, 4
      %v2516 = vrot.slane %v1759, 5
      %v2517 = vsel %vm1074, %v2515, %v2516
      %v2518 = vrot.slane %v2516, 4
      %v2519 = vrot.slane %v1760, 5
      %v2520 = vsel %vm1074, %v2518, %v2519
      %v2521 = vrot.slane %v2377, 5
      %v2522 = vrot.slane %v2521, 4
      %v2523 = vrot.slane %v1762, 5
      %v2524 = vsel %vm1074, %v2522, %v2523
      %v2525 = vrot.slane %v2523, 4
      %v2526 = vrot.slane %v1763, 5
      %v2527 = vsel %vm1074, %v2525, %v2526
      %s2528 = scalar_lea.vmem %s1, 320
      %v2529 = vld [vmem:[%s2528] sm:$0xf]
      %v2530 = vld [vmem:[%s2528 + $0x4] sm:$0xf]
      %v2531 = vld [vmem:[%s2528 + $0x8] sm:$0xf]
      %v2532 = vld [vmem:[%s2528 + $0xc] sm:$0xf]
      %v2533 = vld [vmem:[%s2528 + $0x10] sm:$0xf]
      %v2534 = vld [vmem:[%s2528 + $0x14] sm:$0xf]
      %v2535 = vld [vmem:[%s2528 + $0x18] sm:$0xf]
      %v2536 = vld [vmem:[%s2528 + $0x1c] sm:$0xf]
      %v2537 = vld [vmem:[%s2528 + $0x20] sm:$0xf]
      %v2538 = vld [vmem:[%s2528 + $0x24] sm:$0xf]
      %v2539 = vld [vmem:[%s2528 + $0x28] sm:$0xf]
      %v2540 = vld [vmem:[%s2528 + $0x2c] sm:$0xf]
      %v2541 = vld [vmem:[%s2528 + $0x30] sm:$0xf]
      %v2542 = vld [vmem:[%s2528 + $0x34] sm:$0xf]
      %v2543 = vld [vmem:[%s2528 + $0x38] sm:$0xf]
      %v2544 = vld [vmem:[%s2528 + $0x3c] sm:$0xf]
      %v2545 = vunpack.c.l.b16 %v2426
      %v2546 = vunpack.c.l.b16 %v2429
      %v2547 = vunpack.c.l.b16 %v2433
      %v2548 = vunpack.c.l.b16 %v2436
      %v2549 = vunpack.c.l.b16 %v2440
      %v2550 = vunpack.c.l.b16 %v2443
      %v2551 = vunpack.c.l.b16 %v2447
      %v2552 = vunpack.c.l.b16 %v2450
      %v2553 = vunpack.c.l.b16 %v2454
      %v2554 = vunpack.c.l.b16 %v2457
      %v2555 = vunpack.c.l.b16 %v2461
      %v2556 = vunpack.c.l.b16 %v2464
      %v2557 = vunpack.c.l.b16 %v2468
      %v2558 = vunpack.c.l.b16 %v2471
      %v2559 = vunpack.c.l.b16 %v2475
      %v2560 = vunpack.c.l.b16 %v2478
      %v2561 = vunpack.c.l.b16 %v2482
      %v2562 = vunpack.c.l.b16 %v2485
      %v2563 = vunpack.c.l.b16 %v2489
      %v2564 = vunpack.c.l.b16 %v2492
      %v2565 = vunpack.c.l.b16 %v2496
      %v2566 = vunpack.c.l.b16 %v2499
      %v2567 = vunpack.c.l.b16 %v2503
      %v2568 = vunpack.c.l.b16 %v2506
      %v2569 = vunpack.c.l.b16 %v2510
      %v2570 = vunpack.c.l.b16 %v2513
      %v2571 = vunpack.c.l.b16 %v2517
      %v2572 = vunpack.c.l.b16 %v2520
      %v2573 = vunpack.c.l.b16 %v2524
      %v2574 = vunpack.c.l.b16 %v2527
      %v2575 = vpack.c.b16 %v2546, %v2545
      %v2576 = vpack.c.b16 %v2548, %v2547
      %v2577 = vpack.c.b16 %v2550, %v2549
      %v2578 = vpack.c.b16 %v2552, %v2551
      %v2579 = vpack.c.b16 %v2554, %v2553
      %v2580 = vpack.c.b16 %v2556, %v2555
      %v2581 = vpack.c.b16 %v2558, %v2557
      %v2582 = vpack.c.b16 %v2560, %v2559
      %v2583 = vpack.c.b16 %v2562, %v2561
      %v2584 = vpack.c.b16 %v2564, %v2563
      %v2585 = vpack.c.b16 %v2566, %v2565
      %v2586 = vpack.c.b16 %v2568, %v2567
      %v2587 = vpack.c.b16 %v2570, %v2569
      %v2588 = vpack.c.b16 %v2572, %v2571
      %v2589 = vpack.c.b16 %v2574, %v2573
      %v2621 = vunpack.c.l.b16 %v2529
      %v2622 = vunpack.c.l.b16 %v2530
      %v2623 = vunpack.c.l.b16 %v2531
      %v2624 = vunpack.c.l.b16 %v2532
      %v2625 = vunpack.c.l.b16 %v2533
      %v2626 = vunpack.c.l.b16 %v2534
      %v2627 = vunpack.c.l.b16 %v2535
      %v2628 = vunpack.c.l.b16 %v2536
      %v2629 = vunpack.c.l.b16 %v2537
      %v2630 = vunpack.c.l.b16 %v2538
      %v2631 = vunpack.c.l.b16 %v2539
      %v2632 = vunpack.c.l.b16 %v2540
      %v2633 = vunpack.c.l.b16 %v2541
      %v2634 = vunpack.c.l.b16 %v2542
      %v2635 = vunpack.c.l.b16 %v2543
      %v2636 = vunpack.c.l.b16 %v2544
      %v2637 = vpack.c.b16 %v2622, %v2621
      %v2638 = vpack.c.b16 %v2624, %v2623
      %v2639 = vpack.c.b16 %v2626, %v2625
      %v2640 = vpack.c.b16 %v2628, %v2627
      %v2641 = vpack.c.b16 %v2630, %v2629
      %v2642 = vpack.c.b16 %v2632, %v2631
      %v2643 = vpack.c.b16 %v2634, %v2633
      %v2644 = vpack.c.b16 %v2636, %v2635
      %2653 = vmatpush.bf16.msra.mxu0 %v2644
      %2654 = vmatpush.bf16.msra.mxu0 %v2643
      %2655 = vmatpush.bf16.msra.mxu0 %v2642
      %2656 = vmatpush.bf16.msra.mxu0 %v2641
      %2657 = vmatpush.bf16.msra.mxu0 %v2640
      %2658 = vmatpush.bf16.msra.mxu0 %v2639
      %2659 = vmatpush.bf16.msra.mxu0 %v2638
      %2660 = vmatpush.bf16.msra.mxu0 %v2637
      %2661 = vmatmul.bf16.gmra.mxu0 %v2575
      %v2662 = vpop.f32.mrf.mxu0
      %v2663 = vadd.f32 0.0, %v2662
      %v2664 = vpop.f32.mrf.mxu0
      %v2665 = vadd.f32 0.0, %v2664
      %2666 = vmatmul.bf16.gmra.mxu0 %v2576
      %v2667 = vpop.f32.mrf.mxu0
      %v2668 = vadd.f32 0.0, %v2667
      %v2669 = vpop.f32.mrf.mxu0
      %v2670 = vadd.f32 0.0, %v2669
      %2671 = vmatmul.bf16.gmra.mxu0 %v2577
      %v2672 = vpop.f32.mrf.mxu0
      %v2673 = vadd.f32 0.0, %v2672
      %v2674 = vpop.f32.mrf.mxu0
      %v2675 = vadd.f32 0.0, %v2674
      %2676 = vmatmul.bf16.gmra.mxu0 %v2578
      %v2677 = vpop.f32.mrf.mxu0
      %v2678 = vadd.f32 0.0, %v2677
      %v2679 = vpop.f32.mrf.mxu0
      %v2680 = vadd.f32 0.0, %v2679
      %2681 = vmatmul.bf16.gmra.mxu0 %v2579
      %v2682 = vpop.f32.mrf.mxu0
      %v2683 = vadd.f32 0.0, %v2682
      %v2684 = vpop.f32.mrf.mxu0
      %v2685 = vadd.f32 0.0, %v2684
      %2686 = vmatmul.bf16.gmra.mxu0 %v2580
      %v2687 = vpop.f32.mrf.mxu0
      %v2688 = vadd.f32 0.0, %v2687
      %v2689 = vpop.f32.mrf.mxu0
      %v2690 = vadd.f32 0.0, %v2689
      %2691 = vmatmul.bf16.gmra.mxu0 %v2581
      %v2692 = vpop.f32.mrf.mxu0
      %v2693 = vadd.f32 0.0, %v2692
      %v2694 = vpop.f32.mrf.mxu0
      %v2695 = vadd.f32 0.0, %v2694
      %2696 = vmatmul.bf16.gmra.mxu0 %v2582
      %v2697 = vpop.f32.mrf.mxu0
      %v2698 = vadd.f32 0.0, %v2697
      %v2699 = vpop.f32.mrf.mxu0
      %v2700 = vadd.f32 0.0, %v2699
      %2701 = vmatmul.bf16.gmra.mxu0 %v2583
      %v2702 = vpop.f32.mrf.mxu0
      %v2703 = vadd.f32 0.0, %v2702
      %v2704 = vpop.f32.mrf.mxu0
      %v2705 = vadd.f32 0.0, %v2704
      %2706 = vmatmul.bf16.gmra.mxu0 %v2584
      %v2707 = vpop.f32.mrf.mxu0
      %v2708 = vadd.f32 0.0, %v2707
      %v2709 = vpop.f32.mrf.mxu0
      %v2710 = vadd.f32 0.0, %v2709
      %2711 = vmatmul.bf16.gmra.mxu0 %v2585
      %v2712 = vpop.f32.mrf.mxu0
      %v2713 = vadd.f32 0.0, %v2712
      %v2714 = vpop.f32.mrf.mxu0
      %v2715 = vadd.f32 0.0, %v2714
      %2716 = vmatmul.bf16.gmra.mxu0 %v2586
      %v2717 = vpop.f32.mrf.mxu0
      %v2718 = vadd.f32 0.0, %v2717
      %v2719 = vpop.f32.mrf.mxu0
      %v2720 = vadd.f32 0.0, %v2719
      %2721 = vmatmul.bf16.gmra.mxu0 %v2587
      %v2722 = vpop.f32.mrf.mxu0
      %v2723 = vadd.f32 0.0, %v2722
      %v2724 = vpop.f32.mrf.mxu0
      %v2725 = vadd.f32 0.0, %v2724
      %2726 = vmatmul.bf16.gmra.mxu0 %v2588
      %v2727 = vpop.f32.mrf.mxu0
      %v2728 = vadd.f32 0.0, %v2727
      %v2729 = vpop.f32.mrf.mxu0
      %v2730 = vadd.f32 0.0, %v2729
      %2731 = vmatmul.bf16.gmra.mxu0 %v2589
      %v2732 = vpop.f32.mrf.mxu0
      %v2733 = vadd.f32 0.0, %v2732
      %v2734 = vpop.f32.mrf.mxu0
      %v2735 = vadd.f32 0.0, %v2734
      %2736 = vdwg.mxu0
      %v2737 = vadd.f32 %v2333, %v2663
      %v2738 = vadd.f32 %v2334, %v2665
      %v2739 = vadd.f32 %v2335, %v2668
      %v2740 = vadd.f32 %v2336, %v2670
      %v2741 = vadd.f32 %v2337, %v2673
      %v2742 = vadd.f32 %v2338, %v2675
      %v2743 = vadd.f32 %v2339, %v2678
      %v2744 = vadd.f32 %v2340, %v2680
      %v2745 = vadd.f32 %v2341, %v2683
      %v2746 = vadd.f32 %v2342, %v2685
      %v2747 = vadd.f32 %v2343, %v2688
      %v2748 = vadd.f32 %v2344, %v2690
      %v2749 = vadd.f32 %v2345, %v2693
      %v2750 = vadd.f32 %v2346, %v2695
      %v2751 = vadd.f32 %v2347, %v2698
      %v2752 = vadd.f32 %v2348, %v2700
      %v2753 = vadd.f32 %v2349, %v2703
      %v2754 = vadd.f32 %v2350, %v2705
      %v2755 = vadd.f32 %v2351, %v2708
      %v2756 = vadd.f32 %v2352, %v2710
      %v2757 = vadd.f32 %v2353, %v2713
      %v2758 = vadd.f32 %v2354, %v2715
      %v2759 = vadd.f32 %v2355, %v2718
      %v2760 = vadd.f32 %v2356, %v2720
      %v2761 = vadd.f32 %v2357, %v2723
      %v2762 = vadd.f32 %v2358, %v2725
      %v2763 = vadd.f32 %v2359, %v2728
      %v2764 = vadd.f32 %v2360, %v2730
      %v2765 = vadd.f32 %v2361, %v2733
      %v2766 = vadd.f32 %v2362, %v2735
      %s2767 = scalar_lea.vmem %s165, 24
      %v2768 = vld [vmem:[%s2767] sm:$0xf]
      %v2769 = vld [vmem:[%s2767 + $0x4] sm:$0xf]
      %v2770 = vld [vmem:[%s2767 + $0xc] sm:$0xf]
      %v2771 = vld [vmem:[%s2767 + $0x10] sm:$0xf]
      %v2772 = vld [vmem:[%s2767 + $0x18] sm:$0xf]
      %v2773 = vld [vmem:[%s2767 + $0x1c] sm:$0xf]
      %v2774 = vld [vmem:[%s2767 + $0x24] sm:$0xf]
      %v2775 = vld [vmem:[%s2767 + $0x28] sm:$0xf]
      %v2776 = vld [vmem:[%s2767 + $0x30] sm:$0xf]
      %v2777 = vld [vmem:[%s2767 + $0x34] sm:$0xf]
      %v2778 = vld [vmem:[%s2767 + $0x3c] sm:$0xf]
      %v2779 = vld [vmem:[%s2767 + $0x40] sm:$0xf]
      %v2780 = vld [vmem:[%s2767 + $0x48] sm:$0xf]
      %v2781 = vld [vmem:[%s2767 + $0x4c] sm:$0xf]
      %v2782 = vld [vmem:[%s2767 + $0x54] sm:$0xf]
      %v2783 = vld [vmem:[%s2767 + $0x58] sm:$0xf]
      %v2784 = vld [vmem:[%s2767 + $0x60] sm:$0xf]
      %v2785 = vld [vmem:[%s2767 + $0x64] sm:$0xf]
      %v2786 = vld [vmem:[%s2767 + $0x6c] sm:$0xf]
      %v2787 = vld [vmem:[%s2767 + $0x70] sm:$0xf]
      %v2788 = vld [vmem:[%s2767 + $0x78] sm:$0xf]
      %v2789 = vld [vmem:[%s2767 + $0x7c] sm:$0xf]
      %v2790 = vld [vmem:[%s2767 + $0x84] sm:$0xf]
      %v2791 = vld [vmem:[%s2767 + $0x88] sm:$0xf]
      %v2792 = vld [vmem:[%s2767 + $0x90] sm:$0xf]
      %v2793 = vld [vmem:[%s2767 + $0x94] sm:$0xf]
      %v2794 = vld [vmem:[%s2767 + $0x9c] sm:$0xf]
      %v2795 = vld [vmem:[%s2767 + $0xa0] sm:$0xf]
      %v2796 = vld [vmem:[%s2767 + $0xa8] sm:$0xf]
      %v2797 = vld [vmem:[%s2767 + $0xac] sm:$0xf]
      %s2798 = scalar_lea.vmem %s1, 384
      %v2799 = vld [vmem:[%s2798] sm:$0xf]
      %v2800 = vld [vmem:[%s2798 + $0x4] sm:$0xf]
      %v2801 = vld [vmem:[%s2798 + $0x8] sm:$0xf]
      %v2802 = vld [vmem:[%s2798 + $0xc] sm:$0xf]
      %v2803 = vld [vmem:[%s2798 + $0x10] sm:$0xf]
      %v2804 = vld [vmem:[%s2798 + $0x14] sm:$0xf]
      %v2805 = vld [vmem:[%s2798 + $0x18] sm:$0xf]
      %v2806 = vld [vmem:[%s2798 + $0x1c] sm:$0xf]
      %v2807 = vld [vmem:[%s2798 + $0x20] sm:$0xf]
      %v2808 = vld [vmem:[%s2798 + $0x24] sm:$0xf]
      %v2809 = vld [vmem:[%s2798 + $0x28] sm:$0xf]
      %v2810 = vld [vmem:[%s2798 + $0x2c] sm:$0xf]
      %v2811 = vld [vmem:[%s2798 + $0x30] sm:$0xf]
      %v2812 = vld [vmem:[%s2798 + $0x34] sm:$0xf]
      %v2813 = vld [vmem:[%s2798 + $0x38] sm:$0xf]
      %v2814 = vld [vmem:[%s2798 + $0x3c] sm:$0xf]
      %v2845 = vunpack.c.l.b16 %v2768
      %v2846 = vunpack.c.l.b16 %v2769
      %v2847 = vunpack.c.l.b16 %v2770
      %v2848 = vunpack.c.l.b16 %v2771
      %v2849 = vunpack.c.l.b16 %v2772
      %v2850 = vunpack.c.l.b16 %v2773
      %v2851 = vunpack.c.l.b16 %v2774
      %v2852 = vunpack.c.l.b16 %v2775
      %v2853 = vunpack.c.l.b16 %v2776
      %v2854 = vunpack.c.l.b16 %v2777
      %v2855 = vunpack.c.l.b16 %v2778
      %v2856 = vunpack.c.l.b16 %v2779
      %v2857 = vunpack.c.l.b16 %v2780
      %v2858 = vunpack.c.l.b16 %v2781
      %v2859 = vunpack.c.l.b16 %v2782
      %v2860 = vunpack.c.l.b16 %v2783
      %v2861 = vunpack.c.l.b16 %v2784
      %v2862 = vunpack.c.l.b16 %v2785
      %v2863 = vunpack.c.l.b16 %v2786
      %v2864 = vunpack.c.l.b16 %v2787
      %v2865 = vunpack.c.l.b16 %v2788
      %v2866 = vunpack.c.l.b16 %v2789
      %v2867 = vunpack.c.l.b16 %v2790
      %v2868 = vunpack.c.l.b16 %v2791
      %v2869 = vunpack.c.l.b16 %v2792
      %v2870 = vunpack.c.l.b16 %v2793
      %v2871 = vunpack.c.l.b16 %v2794
      %v2872 = vunpack.c.l.b16 %v2795
      %v2873 = vunpack.c.l.b16 %v2796
      %v2874 = vunpack.c.l.b16 %v2797
      %v2875 = vpack.c.b16 %v2846, %v2845
      %v2876 = vpack.c.b16 %v2848, %v2847
      %v2877 = vpack.c.b16 %v2850, %v2849
      %v2878 = vpack.c.b16 %v2852, %v2851
      %v2879 = vpack.c.b16 %v2854, %v2853
      %v2880 = vpack.c.b16 %v2856, %v2855
      %v2881 = vpack.c.b16 %v2858, %v2857
      %v2882 = vpack.c.b16 %v2860, %v2859
      %v2883 = vpack.c.b16 %v2862, %v2861
      %v2884 = vpack.c.b16 %v2864, %v2863
      %v2885 = vpack.c.b16 %v2866, %v2865
      %v2886 = vpack.c.b16 %v2868, %v2867
      %v2887 = vpack.c.b16 %v2870, %v2869
      %v2888 = vpack.c.b16 %v2872, %v2871
      %v2889 = vpack.c.b16 %v2874, %v2873
      %v2921 = vunpack.c.l.b16 %v2799
      %v2922 = vunpack.c.l.b16 %v2800
      %v2923 = vunpack.c.l.b16 %v2801
      %v2924 = vunpack.c.l.b16 %v2802
      %v2925 = vunpack.c.l.b16 %v2803
      %v2926 = vunpack.c.l.b16 %v2804
      %v2927 = vunpack.c.l.b16 %v2805
      %v2928 = vunpack.c.l.b16 %v2806
      %v2929 = vunpack.c.l.b16 %v2807
      %v2930 = vunpack.c.l.b16 %v2808
      %v2931 = vunpack.c.l.b16 %v2809
      %v2932 = vunpack.c.l.b16 %v2810
      %v2933 = vunpack.c.l.b16 %v2811
      %v2934 = vunpack.c.l.b16 %v2812
      %v2935 = vunpack.c.l.b16 %v2813
      %v2936 = vunpack.c.l.b16 %v2814
      %v2937 = vpack.c.b16 %v2922, %v2921
      %v2938 = vpack.c.b16 %v2924, %v2923
      %v2939 = vpack.c.b16 %v2926, %v2925
      %v2940 = vpack.c.b16 %v2928, %v2927
      %v2941 = vpack.c.b16 %v2930, %v2929
      %v2942 = vpack.c.b16 %v2932, %v2931
      %v2943 = vpack.c.b16 %v2934, %v2933
      %v2944 = vpack.c.b16 %v2936, %v2935
      %2953 = vmatpush.bf16.msra.mxu0 %v2944
      %2954 = vmatpush.bf16.msra.mxu0 %v2943
      %2955 = vmatpush.bf16.msra.mxu0 %v2942
      %2956 = vmatpush.bf16.msra.mxu0 %v2941
      %2957 = vmatpush.bf16.msra.mxu0 %v2940
      %2958 = vmatpush.bf16.msra.mxu0 %v2939
      %2959 = vmatpush.bf16.msra.mxu0 %v2938
      %2960 = vmatpush.bf16.msra.mxu0 %v2937
      %2961 = vmatmul.bf16.gmra.mxu0 %v2875
      %v2962 = vpop.f32.mrf.mxu0
      %v2963 = vadd.f32 0.0, %v2962
      %v2964 = vpop.f32.mrf.mxu0
      %v2965 = vadd.f32 0.0, %v2964
      %2966 = vmatmul.bf16.gmra.mxu0 %v2876
      %v2967 = vpop.f32.mrf.mxu0
      %v2968 = vadd.f32 0.0, %v2967
      %v2969 = vpop.f32.mrf.mxu0
      %v2970 = vadd.f32 0.0, %v2969
      %2971 = vmatmul.bf16.gmra.mxu0 %v2877
      %v2972 = vpop.f32.mrf.mxu0
      %v2973 = vadd.f32 0.0, %v2972
      %v2974 = vpop.f32.mrf.mxu0
      %v2975 = vadd.f32 0.0, %v2974
      %2976 = vmatmul.bf16.gmra.mxu0 %v2878
      %v2977 = vpop.f32.mrf.mxu0
      %v2978 = vadd.f32 0.0, %v2977
      %v2979 = vpop.f32.mrf.mxu0
      %v2980 = vadd.f32 0.0, %v2979
      %2981 = vmatmul.bf16.gmra.mxu0 %v2879
      %v2982 = vpop.f32.mrf.mxu0
      %v2983 = vadd.f32 0.0, %v2982
      %v2984 = vpop.f32.mrf.mxu0
      %v2985 = vadd.f32 0.0, %v2984
      %2986 = vmatmul.bf16.gmra.mxu0 %v2880
      %v2987 = vpop.f32.mrf.mxu0
      %v2988 = vadd.f32 0.0, %v2987
      %v2989 = vpop.f32.mrf.mxu0
      %v2990 = vadd.f32 0.0, %v2989
      %2991 = vmatmul.bf16.gmra.mxu0 %v2881
      %v2992 = vpop.f32.mrf.mxu0
      %v2993 = vadd.f32 0.0, %v2992
      %v2994 = vpop.f32.mrf.mxu0
      %v2995 = vadd.f32 0.0, %v2994
      %2996 = vmatmul.bf16.gmra.mxu0 %v2882
      %v2997 = vpop.f32.mrf.mxu0
      %v2998 = vadd.f32 0.0, %v2997
      %v2999 = vpop.f32.mrf.mxu0
      %v3000 = vadd.f32 0.0, %v2999
      %3001 = vmatmul.bf16.gmra.mxu0 %v2883
      %v3002 = vpop.f32.mrf.mxu0
      %v3003 = vadd.f32 0.0, %v3002
      %v3004 = vpop.f32.mrf.mxu0
      %v3005 = vadd.f32 0.0, %v3004
      %3006 = vmatmul.bf16.gmra.mxu0 %v2884
      %v3007 = vpop.f32.mrf.mxu0
      %v3008 = vadd.f32 0.0, %v3007
      %v3009 = vpop.f32.mrf.mxu0
      %v3010 = vadd.f32 0.0, %v3009
      %3011 = vmatmul.bf16.gmra.mxu0 %v2885
      %v3012 = vpop.f32.mrf.mxu0
      %v3013 = vadd.f32 0.0, %v3012
      %v3014 = vpop.f32.mrf.mxu0
      %v3015 = vadd.f32 0.0, %v3014
      %3016 = vmatmul.bf16.gmra.mxu0 %v2886
      %v3017 = vpop.f32.mrf.mxu0
      %v3018 = vadd.f32 0.0, %v3017
      %v3019 = vpop.f32.mrf.mxu0
      %v3020 = vadd.f32 0.0, %v3019
      %3021 = vmatmul.bf16.gmra.mxu0 %v2887
      %v3022 = vpop.f32.mrf.mxu0
      %v3023 = vadd.f32 0.0, %v3022
      %v3024 = vpop.f32.mrf.mxu0
      %v3025 = vadd.f32 0.0, %v3024
      %3026 = vmatmul.bf16.gmra.mxu0 %v2888
      %v3027 = vpop.f32.mrf.mxu0
      %v3028 = vadd.f32 0.0, %v3027
      %v3029 = vpop.f32.mrf.mxu0
      %v3030 = vadd.f32 0.0, %v3029
      %3031 = vmatmul.bf16.gmra.mxu0 %v2889
      %v3032 = vpop.f32.mrf.mxu0
      %v3033 = vadd.f32 0.0, %v3032
      %v3034 = vpop.f32.mrf.mxu0
      %v3035 = vadd.f32 0.0, %v3034
      %3036 = vdwg.mxu0
      %v3037 = vadd.f32 %v2737, %v2963
      %v3038 = vadd.f32 %v2738, %v2965
      %v3039 = vadd.f32 %v2739, %v2968
      %v3040 = vadd.f32 %v2740, %v2970
      %v3041 = vadd.f32 %v2741, %v2973
      %v3042 = vadd.f32 %v2742, %v2975
      %v3043 = vadd.f32 %v2743, %v2978
      %v3044 = vadd.f32 %v2744, %v2980
      %v3045 = vadd.f32 %v2745, %v2983
      %v3046 = vadd.f32 %v2746, %v2985
      %v3047 = vadd.f32 %v2747, %v2988
      %v3048 = vadd.f32 %v2748, %v2990
      %v3049 = vadd.f32 %v2749, %v2993
      %v3050 = vadd.f32 %v2750, %v2995
      %v3051 = vadd.f32 %v2751, %v2998
      %v3052 = vadd.f32 %v2752, %v3000
      %v3053 = vadd.f32 %v2753, %v3003
      %v3054 = vadd.f32 %v2754, %v3005
      %v3055 = vadd.f32 %v2755, %v3008
      %v3056 = vadd.f32 %v2756, %v3010
      %v3057 = vadd.f32 %v2757, %v3013
      %v3058 = vadd.f32 %v2758, %v3015
      %v3059 = vadd.f32 %v2759, %v3018
      %v3060 = vadd.f32 %v2760, %v3020
      %v3061 = vadd.f32 %v2761, %v3023
      %v3062 = vadd.f32 %v2762, %v3025
      %v3063 = vadd.f32 %v2763, %v3028
      %v3064 = vadd.f32 %v2764, %v3030
      %v3065 = vadd.f32 %v2765, %v3033
      %v3066 = vadd.f32 %v2766, %v3035
      %v3067 = vld [vmem:[%s2767] sm:$0xf]
      %v3068 = vld [vmem:[%s2767 + $0x4] sm:$0xf]
      %v3069 = vld [vmem:[%s2767 + $0x8] sm:$0x1]
      %v3070 = vld [vmem:[%s2767 + $0xc] sm:$0xf]
      %v3071 = vld [vmem:[%s2767 + $0x10] sm:$0xf]
      %v3072 = vld [vmem:[%s2767 + $0x14] sm:$0x1]
      %v3073 = vld [vmem:[%s2767 + $0x18] sm:$0xf]
      %v3074 = vld [vmem:[%s2767 + $0x1c] sm:$0xf]
      %v3075 = vld [vmem:[%s2767 + $0x20] sm:$0x1]
      %v3076 = vld [vmem:[%s2767 + $0x24] sm:$0xf]
      %v3077 = vld [vmem:[%s2767 + $0x28] sm:$0xf]
      %v3078 = vld [vmem:[%s2767 + $0x2c] sm:$0x1]
      %v3079 = vld [vmem:[%s2767 + $0x30] sm:$0xf]
      %v3080 = vld [vmem:[%s2767 + $0x34] sm:$0xf]
      %v3081 = vld [vmem:[%s2767 + $0x38] sm:$0x1]
      %v3082 = vld [vmem:[%s2767 + $0x3c] sm:$0xf]
      %v3083 = vld [vmem:[%s2767 + $0x40] sm:$0xf]
      %v3084 = vld [vmem:[%s2767 + $0x44] sm:$0x1]
      %v3085 = vld [vmem:[%s2767 + $0x48] sm:$0xf]
      %v3086 = vld [vmem:[%s2767 + $0x4c] sm:$0xf]
      %v3087 = vld [vmem:[%s2767 + $0x50] sm:$0x1]
      %v3088 = vld [vmem:[%s2767 + $0x54] sm:$0xf]
      %v3089 = vld [vmem:[%s2767 + $0x58] sm:$0xf]
      %v3090 = vld [vmem:[%s2767 + $0x5c] sm:$0x1]
      %v3091 = vld [vmem:[%s2767 + $0x60] sm:$0xf]
      %v3092 = vld [vmem:[%s2767 + $0x64] sm:$0xf]
      %v3093 = vld [vmem:[%s2767 + $0x68] sm:$0x1]
      %v3094 = vld [vmem:[%s2767 + $0x6c] sm:$0xf]
      %v3095 = vld [vmem:[%s2767 + $0x70] sm:$0xf]
      %v3096 = vld [vmem:[%s2767 + $0x74] sm:$0x1]
      %v3097 = vld [vmem:[%s2767 + $0x78] sm:$0xf]
      %v3098 = vld [vmem:[%s2767 + $0x7c] sm:$0xf]
      %v3099 = vld [vmem:[%s2767 + $0x80] sm:$0x1]
      %v3100 = vld [vmem:[%s2767 + $0x84] sm:$0xf]
      %v3101 = vld [vmem:[%s2767 + $0x88] sm:$0xf]
      %v3102 = vld [vmem:[%s2767 + $0x8c] sm:$0x1]
      %v3103 = vld [vmem:[%s2767 + $0x90] sm:$0xf]
      %v3104 = vld [vmem:[%s2767 + $0x94] sm:$0xf]
      %v3105 = vld [vmem:[%s2767 + $0x98] sm:$0x1]
      %v3106 = vld [vmem:[%s2767 + $0x9c] sm:$0xf]
      %v3107 = vld [vmem:[%s2767 + $0xa0] sm:$0xf]
      %v3108 = vld [vmem:[%s2767 + $0xa4] sm:$0x1]
      %v3109 = vld [vmem:[%s2767 + $0xa8] sm:$0xf]
      %v3110 = vld [vmem:[%s2767 + $0xac] sm:$0xf]
      %v3111 = vld [vmem:[%s2767 + $0xb0] sm:$0x1]
      %v3113 = vshrl.u32 %v3067, 16
      %v3115 = vrot.slane %v3113, 4
      %v3116 = vshll.u32 %v3067, 16
      %v3118 = vrot.slane %v3116, 5
      %v3119 = vor.u32 %v3115, %v3118
      %v3120 = vrot.slane %v3119, 4
      %v3122 = vshll.u32 %v3068, 16
      %v3124 = vrot.slane %v3122, 5
      %v3125 = vsel %vm235, %v3120, %v3124
      %v3126 = vshrl.u32 %v3068, 16
      %v3128 = vrot.slane %v3126, 4
      %v3129 = vor.u32 %v3128, %v3124
      %v3130 = vrot.slane %v3129, 4
      %v3132 = vshll.u32 %v3069, 16
      %v3134 = vrot.slane %v3132, 5
      %v3135 = vsel %vm235, %v3130, %v3134
      %v3137 = vshrl.u32 %v3070, 16
      %v3139 = vrot.slane %v3137, 4
      %v3140 = vshll.u32 %v3070, 16
      %v3142 = vrot.slane %v3140, 5
      %v3143 = vor.u32 %v3139, %v3142
      %v3144 = vrot.slane %v3143, 4
      %v3146 = vshll.u32 %v3071, 16
      %v3148 = vrot.slane %v3146, 5
      %v3149 = vsel %vm235, %v3144, %v3148
      %v3150 = vshrl.u32 %v3071, 16
      %v3152 = vrot.slane %v3150, 4
      %v3153 = vor.u32 %v3152, %v3148
      %v3154 = vrot.slane %v3153, 4
      %v3156 = vshll.u32 %v3072, 16
      %v3158 = vrot.slane %v3156, 5
      %v3159 = vsel %vm235, %v3154, %v3158
      %v3161 = vshrl.u32 %v3073, 16
      %v3163 = vrot.slane %v3161, 4
      %v3164 = vshll.u32 %v3073, 16
      %v3166 = vrot.slane %v3164, 5
      %v3167 = vor.u32 %v3163, %v3166
      %v3168 = vrot.slane %v3167, 4
      %v3170 = vshll.u32 %v3074, 16
      %v3172 = vrot.slane %v3170, 5
      %v3173 = vsel %vm235, %v3168, %v3172
      %v3174 = vshrl.u32 %v3074, 16
      %v3176 = vrot.slane %v3174, 4
      %v3177 = vor.u32 %v3176, %v3172
      %v3178 = vrot.slane %v3177, 4
      %v3180 = vshll.u32 %v3075, 16
      %v3182 = vrot.slane %v3180, 5
      %v3183 = vsel %vm235, %v3178, %v3182
      %v3185 = vshrl.u32 %v3076, 16
      %v3187 = vrot.slane %v3185, 4
      %v3188 = vshll.u32 %v3076, 16
      %v3190 = vrot.slane %v3188, 5
      %v3191 = vor.u32 %v3187, %v3190
      %v3192 = vrot.slane %v3191, 4
      %v3194 = vshll.u32 %v3077, 16
      %v3196 = vrot.slane %v3194, 5
      %v3197 = vsel %vm235, %v3192, %v3196
      %v3198 = vshrl.u32 %v3077, 16
      %v3200 = vrot.slane %v3198, 4
      %v3201 = vor.u32 %v3200, %v3196
      %v3202 = vrot.slane %v3201, 4
      %v3204 = vshll.u32 %v3078, 16
      %v3206 = vrot.slane %v3204, 5
      %v3207 = vsel %vm235, %v3202, %v3206
      %v3209 = vshrl.u32 %v3079, 16
      %v3211 = vrot.slane %v3209, 4
      %v3212 = vshll.u32 %v3079, 16
      %v3214 = vrot.slane %v3212, 5
      %v3215 = vor.u32 %v3211, %v3214
      %v3216 = vrot.slane %v3215, 4
      %v3218 = vshll.u32 %v3080, 16
      %v3220 = vrot.slane %v3218, 5
      %v3221 = vsel %vm235, %v3216, %v3220
      %v3222 = vshrl.u32 %v3080, 16
      %v3224 = vrot.slane %v3222, 4
      %v3225 = vor.u32 %v3224, %v3220
      %v3226 = vrot.slane %v3225, 4
      %v3228 = vshll.u32 %v3081, 16
      %v3230 = vrot.slane %v3228, 5
      %v3231 = vsel %vm235, %v3226, %v3230
      %v3233 = vshrl.u32 %v3082, 16
      %v3235 = vrot.slane %v3233, 4
      %v3236 = vshll.u32 %v3082, 16
      %v3238 = vrot.slane %v3236, 5
      %v3239 = vor.u32 %v3235, %v3238
      %v3240 = vrot.slane %v3239, 4
      %v3242 = vshll.u32 %v3083, 16
      %v3244 = vrot.slane %v3242, 5
      %v3245 = vsel %vm235, %v3240, %v3244
      %v3246 = vshrl.u32 %v3083, 16
      %v3248 = vrot.slane %v3246, 4
      %v3249 = vor.u32 %v3248, %v3244
      %v3250 = vrot.slane %v3249, 4
      %v3252 = vshll.u32 %v3084, 16
      %v3254 = vrot.slane %v3252, 5
      %v3255 = vsel %vm235, %v3250, %v3254
      %v3257 = vshrl.u32 %v3085, 16
      %v3259 = vrot.slane %v3257, 4
      %v3260 = vshll.u32 %v3085, 16
      %v3262 = vrot.slane %v3260, 5
      %v3263 = vor.u32 %v3259, %v3262
      %v3264 = vrot.slane %v3263, 4
      %v3266 = vshll.u32 %v3086, 16
      %v3268 = vrot.slane %v3266, 5
      %v3269 = vsel %vm235, %v3264, %v3268
      %v3270 = vshrl.u32 %v3086, 16
      %v3272 = vrot.slane %v3270, 4
      %v3273 = vor.u32 %v3272, %v3268
      %v3274 = vrot.slane %v3273, 4
      %v3276 = vshll.u32 %v3087, 16
      %v3278 = vrot.slane %v3276, 5
      %v3279 = vsel %vm235, %v3274, %v3278
      %v3281 = vshrl.u32 %v3088, 16
      %v3283 = vrot.slane %v3281, 4
      %v3284 = vshll.u32 %v3088, 16
      %v3286 = vrot.slane %v3284, 5
      %v3287 = vor.u32 %v3283, %v3286
      %v3288 = vrot.slane %v3287, 4
      %v3290 = vshll.u32 %v3089, 16
      %v3292 = vrot.slane %v3290, 5
      %v3293 = vsel %vm235, %v3288, %v3292
      %v3294 = vshrl.u32 %v3089, 16
      %v3296 = vrot.slane %v3294, 4
      %v3297 = vor.u32 %v3296, %v3292
      %v3298 = vrot.slane %v3297, 4
      %v3300 = vshll.u32 %v3090, 16
      %v3302 = vrot.slane %v3300, 5
      %v3303 = vsel %vm235, %v3298, %v3302
      %v3305 = vshrl.u32 %v3091, 16
      %v3307 = vrot.slane %v3305, 4
      %v3308 = vshll.u32 %v3091, 16
      %v3310 = vrot.slane %v3308, 5
      %v3311 = vor.u32 %v3307, %v3310
      %v3312 = vrot.slane %v3311, 4
      %v3314 = vshll.u32 %v3092, 16
      %v3316 = vrot.slane %v3314, 5
      %v3317 = vsel %vm235, %v3312, %v3316
      %v3318 = vshrl.u32 %v3092, 16
      %v3320 = vrot.slane %v3318, 4
      %v3321 = vor.u32 %v3320, %v3316
      %v3322 = vrot.slane %v3321, 4
      %v3324 = vshll.u32 %v3093, 16
      %v3326 = vrot.slane %v3324, 5
      %v3327 = vsel %vm235, %v3322, %v3326
      %v3329 = vshrl.u32 %v3094, 16
      %v3331 = vrot.slane %v3329, 4
      %v3332 = vshll.u32 %v3094, 16
      %v3334 = vrot.slane %v3332, 5
      %v3335 = vor.u32 %v3331, %v3334
      %v3336 = vrot.slane %v3335, 4
      %v3338 = vshll.u32 %v3095, 16
      %v3340 = vrot.slane %v3338, 5
      %v3341 = vsel %vm235, %v3336, %v3340
      %v3342 = vshrl.u32 %v3095, 16
      %v3344 = vrot.slane %v3342, 4
      %v3345 = vor.u32 %v3344, %v3340
      %v3346 = vrot.slane %v3345, 4
      %v3348 = vshll.u32 %v3096, 16
      %v3350 = vrot.slane %v3348, 5
      %v3351 = vsel %vm235, %v3346, %v3350
      %v3353 = vshrl.u32 %v3097, 16
      %v3355 = vrot.slane %v3353, 4
      %v3356 = vshll.u32 %v3097, 16
      %v3358 = vrot.slane %v3356, 5
      %v3359 = vor.u32 %v3355, %v3358
      %v3360 = vrot.slane %v3359, 4
      %v3362 = vshll.u32 %v3098, 16
      %v3364 = vrot.slane %v3362, 5
      %v3365 = vsel %vm235, %v3360, %v3364
      %v3366 = vshrl.u32 %v3098, 16
      %v3368 = vrot.slane %v3366, 4
      %v3369 = vor.u32 %v3368, %v3364
      %v3370 = vrot.slane %v3369, 4
      %v3372 = vshll.u32 %v3099, 16
      %v3374 = vrot.slane %v3372, 5
      %v3375 = vsel %vm235, %v3370, %v3374
      %v3377 = vshrl.u32 %v3100, 16
      %v3379 = vrot.slane %v3377, 4
      %v3380 = vshll.u32 %v3100, 16
      %v3382 = vrot.slane %v3380, 5
      %v3383 = vor.u32 %v3379, %v3382
      %v3384 = vrot.slane %v3383, 4
      %v3386 = vshll.u32 %v3101, 16
      %v3388 = vrot.slane %v3386, 5
      %v3389 = vsel %vm235, %v3384, %v3388
      %v3390 = vshrl.u32 %v3101, 16
      %v3392 = vrot.slane %v3390, 4
      %v3393 = vor.u32 %v3392, %v3388
      %v3394 = vrot.slane %v3393, 4
      %v3396 = vshll.u32 %v3102, 16
      %v3398 = vrot.slane %v3396, 5
      %v3399 = vsel %vm235, %v3394, %v3398
      %v3401 = vshrl.u32 %v3103, 16
      %v3403 = vrot.slane %v3401, 4
      %v3404 = vshll.u32 %v3103, 16
      %v3406 = vrot.slane %v3404, 5
      %v3407 = vor.u32 %v3403, %v3406
      %v3408 = vrot.slane %v3407, 4
      %v3410 = vshll.u32 %v3104, 16
      %v3412 = vrot.slane %v3410, 5
      %v3413 = vsel %vm235, %v3408, %v3412
      %v3414 = vshrl.u32 %v3104, 16
      %v3416 = vrot.slane %v3414, 4
      %v3417 = vor.u32 %v3416, %v3412
      %v3418 = vrot.slane %v3417, 4
      %v3420 = vshll.u32 %v3105, 16
      %v3422 = vrot.slane %v3420, 5
      %v3423 = vsel %vm235, %v3418, %v3422
      %v3425 = vshrl.u32 %v3106, 16
      %v3427 = vrot.slane %v3425, 4
      %v3428 = vshll.u32 %v3106, 16
      %v3430 = vrot.slane %v3428, 5
      %v3431 = vor.u32 %v3427, %v3430
      %v3432 = vrot.slane %v3431, 4
      %v3434 = vshll.u32 %v3107, 16
      %v3436 = vrot.slane %v3434, 5
      %v3437 = vsel %vm235, %v3432, %v3436
      %v3438 = vshrl.u32 %v3107, 16
      %v3440 = vrot.slane %v3438, 4
      %v3441 = vor.u32 %v3440, %v3436
      %v3442 = vrot.slane %v3441, 4
      %v3444 = vshll.u32 %v3108, 16
      %v3446 = vrot.slane %v3444, 5
      %v3447 = vsel %vm235, %v3442, %v3446
      %v3449 = vshrl.u32 %v3109, 16
      %v3451 = vrot.slane %v3449, 4
      %v3452 = vshll.u32 %v3109, 16
      %v3454 = vrot.slane %v3452, 5
      %v3455 = vor.u32 %v3451, %v3454
      %v3456 = vrot.slane %v3455, 4
      %v3458 = vshll.u32 %v3110, 16
      %v3460 = vrot.slane %v3458, 5
      %v3461 = vsel %vm235, %v3456, %v3460
      %v3462 = vshrl.u32 %v3110, 16
      %v3464 = vrot.slane %v3462, 4
      %v3465 = vor.u32 %v3464, %v3460
      %v3466 = vrot.slane %v3465, 4
      %v3468 = vshll.u32 %v3111, 16
      %v3470 = vrot.slane %v3468, 5
      %v3471 = vsel %vm235, %v3466, %v3470
      %s3472 = scalar_lea.vmem %s1, 448
      %v3473 = vld [vmem:[%s3472] sm:$0xf]
      %v3474 = vld [vmem:[%s3472 + $0x4] sm:$0xf]
      %v3475 = vld [vmem:[%s3472 + $0x8] sm:$0xf]
      %v3476 = vld [vmem:[%s3472 + $0xc] sm:$0xf]
      %v3477 = vld [vmem:[%s3472 + $0x10] sm:$0xf]
      %v3478 = vld [vmem:[%s3472 + $0x14] sm:$0xf]
      %v3479 = vld [vmem:[%s3472 + $0x18] sm:$0xf]
      %v3480 = vld [vmem:[%s3472 + $0x1c] sm:$0xf]
      %v3481 = vld [vmem:[%s3472 + $0x20] sm:$0xf]
      %v3482 = vld [vmem:[%s3472 + $0x24] sm:$0xf]
      %v3483 = vld [vmem:[%s3472 + $0x28] sm:$0xf]
      %v3484 = vld [vmem:[%s3472 + $0x2c] sm:$0xf]
      %v3485 = vld [vmem:[%s3472 + $0x30] sm:$0xf]
      %v3486 = vld [vmem:[%s3472 + $0x34] sm:$0xf]
      %v3487 = vld [vmem:[%s3472 + $0x38] sm:$0xf]
      %v3488 = vld [vmem:[%s3472 + $0x3c] sm:$0xf]
      %v3489 = vunpack.c.l.b16 %v3125
      %v3490 = vunpack.c.l.b16 %v3135
      %v3491 = vunpack.c.l.b16 %v3149
      %v3492 = vunpack.c.l.b16 %v3159
      %v3493 = vunpack.c.l.b16 %v3173
      %v3494 = vunpack.c.l.b16 %v3183
      %v3495 = vunpack.c.l.b16 %v3197
      %v3496 = vunpack.c.l.b16 %v3207
      %v3497 = vunpack.c.l.b16 %v3221
      %v3498 = vunpack.c.l.b16 %v3231
      %v3499 = vunpack.c.l.b16 %v3245
      %v3500 = vunpack.c.l.b16 %v3255
      %v3501 = vunpack.c.l.b16 %v3269
      %v3502 = vunpack.c.l.b16 %v3279
      %v3503 = vunpack.c.l.b16 %v3293
      %v3504 = vunpack.c.l.b16 %v3303
      %v3505 = vunpack.c.l.b16 %v3317
      %v3506 = vunpack.c.l.b16 %v3327
      %v3507 = vunpack.c.l.b16 %v3341
      %v3508 = vunpack.c.l.b16 %v3351
      %v3509 = vunpack.c.l.b16 %v3365
      %v3510 = vunpack.c.l.b16 %v3375
      %v3511 = vunpack.c.l.b16 %v3389
      %v3512 = vunpack.c.l.b16 %v3399
      %v3513 = vunpack.c.l.b16 %v3413
      %v3514 = vunpack.c.l.b16 %v3423
      %v3515 = vunpack.c.l.b16 %v3437
      %v3516 = vunpack.c.l.b16 %v3447
      %v3517 = vunpack.c.l.b16 %v3461
      %v3518 = vunpack.c.l.b16 %v3471
      %v3519 = vpack.c.b16 %v3490, %v3489
      %v3520 = vpack.c.b16 %v3492, %v3491
      %v3521 = vpack.c.b16 %v3494, %v3493
      %v3522 = vpack.c.b16 %v3496, %v3495
      %v3523 = vpack.c.b16 %v3498, %v3497
      %v3524 = vpack.c.b16 %v3500, %v3499
      %v3525 = vpack.c.b16 %v3502, %v3501
      %v3526 = vpack.c.b16 %v3504, %v3503
      %v3527 = vpack.c.b16 %v3506, %v3505
      %v3528 = vpack.c.b16 %v3508, %v3507
      %v3529 = vpack.c.b16 %v3510, %v3509
      %v3530 = vpack.c.b16 %v3512, %v3511
      %v3531 = vpack.c.b16 %v3514, %v3513
      %v3532 = vpack.c.b16 %v3516, %v3515
      %v3533 = vpack.c.b16 %v3518, %v3517
      %v3565 = vunpack.c.l.b16 %v3473
      %v3566 = vunpack.c.l.b16 %v3474
      %v3567 = vunpack.c.l.b16 %v3475
      %v3568 = vunpack.c.l.b16 %v3476
      %v3569 = vunpack.c.l.b16 %v3477
      %v3570 = vunpack.c.l.b16 %v3478
      %v3571 = vunpack.c.l.b16 %v3479
      %v3572 = vunpack.c.l.b16 %v3480
      %v3573 = vunpack.c.l.b16 %v3481
      %v3574 = vunpack.c.l.b16 %v3482
      %v3575 = vunpack.c.l.b16 %v3483
      %v3576 = vunpack.c.l.b16 %v3484
      %v3577 = vunpack.c.l.b16 %v3485
      %v3578 = vunpack.c.l.b16 %v3486
      %v3579 = vunpack.c.l.b16 %v3487
      %v3580 = vunpack.c.l.b16 %v3488
      %v3581 = vpack.c.b16 %v3566, %v3565
      %v3582 = vpack.c.b16 %v3568, %v3567
      %v3583 = vpack.c.b16 %v3570, %v3569
      %v3584 = vpack.c.b16 %v3572, %v3571
      %v3585 = vpack.c.b16 %v3574, %v3573
      %v3586 = vpack.c.b16 %v3576, %v3575
      %v3587 = vpack.c.b16 %v3578, %v3577
      %v3588 = vpack.c.b16 %v3580, %v3579
      %3597 = vmatpush.bf16.msra.mxu0 %v3588
      %3598 = vmatpush.bf16.msra.mxu0 %v3587
      %3599 = vmatpush.bf16.msra.mxu0 %v3586
      %3600 = vmatpush.bf16.msra.mxu0 %v3585
      %3601 = vmatpush.bf16.msra.mxu0 %v3584
      %3602 = vmatpush.bf16.msra.mxu0 %v3583
      %3603 = vmatpush.bf16.msra.mxu0 %v3582
      %3604 = vmatpush.bf16.msra.mxu0 %v3581
      %3605 = vmatmul.bf16.gmra.mxu0 %v3519
      %v3606 = vpop.f32.mrf.mxu0
      %v3607 = vadd.f32 0.0, %v3606
      %v3608 = vpop.f32.mrf.mxu0
      %v3609 = vadd.f32 0.0, %v3608
      %3610 = vmatmul.bf16.gmra.mxu0 %v3520
      %v3611 = vpop.f32.mrf.mxu0
      %v3612 = vadd.f32 0.0, %v3611
      %v3613 = vpop.f32.mrf.mxu0
      %v3614 = vadd.f32 0.0, %v3613
      %3615 = vmatmul.bf16.gmra.mxu0 %v3521
      %v3616 = vpop.f32.mrf.mxu0
      %v3617 = vadd.f32 0.0, %v3616
      %v3618 = vpop.f32.mrf.mxu0
      %v3619 = vadd.f32 0.0, %v3618
      %3620 = vmatmul.bf16.gmra.mxu0 %v3522
      %v3621 = vpop.f32.mrf.mxu0
      %v3622 = vadd.f32 0.0, %v3621
      %v3623 = vpop.f32.mrf.mxu0
      %v3624 = vadd.f32 0.0, %v3623
      %3625 = vmatmul.bf16.gmra.mxu0 %v3523
      %v3626 = vpop.f32.mrf.mxu0
      %v3627 = vadd.f32 0.0, %v3626
      %v3628 = vpop.f32.mrf.mxu0
      %v3629 = vadd.f32 0.0, %v3628
      %3630 = vmatmul.bf16.gmra.mxu0 %v3524
      %v3631 = vpop.f32.mrf.mxu0
      %v3632 = vadd.f32 0.0, %v3631
      %v3633 = vpop.f32.mrf.mxu0
      %v3634 = vadd.f32 0.0, %v3633
      %3635 = vmatmul.bf16.gmra.mxu0 %v3525
      %v3636 = vpop.f32.mrf.mxu0
      %v3637 = vadd.f32 0.0, %v3636
      %v3638 = vpop.f32.mrf.mxu0
      %v3639 = vadd.f32 0.0, %v3638
      %3640 = vmatmul.bf16.gmra.mxu0 %v3526
      %v3641 = vpop.f32.mrf.mxu0
      %v3642 = vadd.f32 0.0, %v3641
      %v3643 = vpop.f32.mrf.mxu0
      %v3644 = vadd.f32 0.0, %v3643
      %3645 = vmatmul.bf16.gmra.mxu0 %v3527
      %v3646 = vpop.f32.mrf.mxu0
      %v3647 = vadd.f32 0.0, %v3646
      %v3648 = vpop.f32.mrf.mxu0
      %v3649 = vadd.f32 0.0, %v3648
      %3650 = vmatmul.bf16.gmra.mxu0 %v3528
      %v3651 = vpop.f32.mrf.mxu0
      %v3652 = vadd.f32 0.0, %v3651
      %v3653 = vpop.f32.mrf.mxu0
      %v3654 = vadd.f32 0.0, %v3653
      %3655 = vmatmul.bf16.gmra.mxu0 %v3529
      %v3656 = vpop.f32.mrf.mxu0
      %v3657 = vadd.f32 0.0, %v3656
      %v3658 = vpop.f32.mrf.mxu0
      %v3659 = vadd.f32 0.0, %v3658
      %3660 = vmatmul.bf16.gmra.mxu0 %v3530
      %v3661 = vpop.f32.mrf.mxu0
      %v3662 = vadd.f32 0.0, %v3661
      %v3663 = vpop.f32.mrf.mxu0
      %v3664 = vadd.f32 0.0, %v3663
      %3665 = vmatmul.bf16.gmra.mxu0 %v3531
      %v3666 = vpop.f32.mrf.mxu0
      %v3667 = vadd.f32 0.0, %v3666
      %v3668 = vpop.f32.mrf.mxu0
      %v3669 = vadd.f32 0.0, %v3668
      %3670 = vmatmul.bf16.gmra.mxu0 %v3532
      %v3671 = vpop.f32.mrf.mxu0
      %v3672 = vadd.f32 0.0, %v3671
      %v3673 = vpop.f32.mrf.mxu0
      %v3674 = vadd.f32 0.0, %v3673
      %3675 = vmatmul.bf16.gmra.mxu0 %v3533
      %v3676 = vpop.f32.mrf.mxu0
      %v3677 = vadd.f32 0.0, %v3676
      %v3678 = vpop.f32.mrf.mxu0
      %v3679 = vadd.f32 0.0, %v3678
      %3680 = vdwg.mxu0
      %v3681 = vadd.f32 %v3037, %v3607
      %v3682 = vadd.f32 %v3038, %v3609
      %v3683 = vadd.f32 %v3039, %v3612
      %v3684 = vadd.f32 %v3040, %v3614
      %v3685 = vadd.f32 %v3041, %v3617
      %v3686 = vadd.f32 %v3042, %v3619
      %v3687 = vadd.f32 %v3043, %v3622
      %v3688 = vadd.f32 %v3044, %v3624
      %v3689 = vadd.f32 %v3045, %v3627
      %v3690 = vadd.f32 %v3046, %v3629
      %v3691 = vadd.f32 %v3047, %v3632
      %v3692 = vadd.f32 %v3048, %v3634
      %v3693 = vadd.f32 %v3049, %v3637
      %v3694 = vadd.f32 %v3050, %v3639
      %v3695 = vadd.f32 %v3051, %v3642
      %v3696 = vadd.f32 %v3052, %v3644
      %v3697 = vadd.f32 %v3053, %v3647
      %v3698 = vadd.f32 %v3054, %v3649
      %v3699 = vadd.f32 %v3055, %v3652
      %v3700 = vadd.f32 %v3056, %v3654
      %v3701 = vadd.f32 %v3057, %v3657
      %v3702 = vadd.f32 %v3058, %v3659
      %v3703 = vadd.f32 %v3059, %v3662
      %v3704 = vadd.f32 %v3060, %v3664
      %v3705 = vadd.f32 %v3061, %v3667
      %v3706 = vadd.f32 %v3062, %v3669
      %v3707 = vadd.f32 %v3063, %v3672
      %v3708 = vadd.f32 %v3064, %v3674
      %v3709 = vadd.f32 %v3065, %v3677
      %v3710 = vadd.f32 %v3066, %v3679
      %v3711 = vld [vmem:[%s2767] sm:$0xe]
      %v3712 = vld [vmem:[%s2767 + $0xc] sm:$0xe]
      %v3713 = vld [vmem:[%s2767 + $0x18] sm:$0xe]
      %v3714 = vld [vmem:[%s2767 + $0x24] sm:$0xe]
      %v3715 = vld [vmem:[%s2767 + $0x30] sm:$0xe]
      %v3716 = vld [vmem:[%s2767 + $0x3c] sm:$0xe]
      %v3717 = vld [vmem:[%s2767 + $0x48] sm:$0xe]
      %v3718 = vld [vmem:[%s2767 + $0x54] sm:$0xe]
      %v3719 = vld [vmem:[%s2767 + $0x60] sm:$0xe]
      %v3720 = vld [vmem:[%s2767 + $0x6c] sm:$0xe]
      %v3721 = vld [vmem:[%s2767 + $0x78] sm:$0xe]
      %v3722 = vld [vmem:[%s2767 + $0x84] sm:$0xe]
      %v3723 = vld [vmem:[%s2767 + $0x90] sm:$0xe]
      %v3724 = vld [vmem:[%s2767 + $0x9c] sm:$0xe]
      %v3725 = vld [vmem:[%s2767 + $0xa8] sm:$0xe]
      %v3771 = vrot.slane %v3711, 5
      %v3772 = vrot.slane %v3771, 4
      %v3773 = vrot.slane %v3068, 5
      %v3774 = vsel %vm1074, %v3772, %v3773
      %v3775 = vrot.slane %v3773, 4
      %v3776 = vrot.slane %v3069, 5
      %v3777 = vsel %vm1074, %v3775, %v3776
      %v3778 = vrot.slane %v3712, 5
      %v3779 = vrot.slane %v3778, 4
      %v3780 = vrot.slane %v3071, 5
      %v3781 = vsel %vm1074, %v3779, %v3780
      %v3782 = vrot.slane %v3780, 4
      %v3783 = vrot.slane %v3072, 5
      %v3784 = vsel %vm1074, %v3782, %v3783
      %v3785 = vrot.slane %v3713, 5
      %v3786 = vrot.slane %v3785, 4
      %v3787 = vrot.slane %v3074, 5
      %v3788 = vsel %vm1074, %v3786, %v3787
      %v3789 = vrot.slane %v3787, 4
      %v3790 = vrot.slane %v3075, 5
      %v3791 = vsel %vm1074, %v3789, %v3790
      %v3792 = vrot.slane %v3714, 5
      %v3793 = vrot.slane %v3792, 4
      %v3794 = vrot.slane %v3077, 5
      %v3795 = vsel %vm1074, %v3793, %v3794
      %v3796 = vrot.slane %v3794, 4
      %v3797 = vrot.slane %v3078, 5
      %v3798 = vsel %vm1074, %v3796, %v3797
      %v3799 = vrot.slane %v3715, 5
      %v3800 = vrot.slane %v3799, 4
      %v3801 = vrot.slane %v3080, 5
      %v3802 = vsel %vm1074, %v3800, %v3801
      %v3803 = vrot.slane %v3801, 4
      %v3804 = vrot.slane %v3081, 5
      %v3805 = vsel %vm1074, %v3803, %v3804
      %v3806 = vrot.slane %v3716, 5
      %v3807 = vrot.slane %v3806, 4
      %v3808 = vrot.slane %v3083, 5
      %v3809 = vsel %vm1074, %v3807, %v3808
      %v3810 = vrot.slane %v3808, 4
      %v3811 = vrot.slane %v3084, 5
      %v3812 = vsel %vm1074, %v3810, %v3811
      %v3813 = vrot.slane %v3717, 5
      %v3814 = vrot.slane %v3813, 4
      %v3815 = vrot.slane %v3086, 5
      %v3816 = vsel %vm1074, %v3814, %v3815
      %v3817 = vrot.slane %v3815, 4
      %v3818 = vrot.slane %v3087, 5
      %v3819 = vsel %vm1074, %v3817, %v3818
      %v3820 = vrot.slane %v3718, 5
      %v3821 = vrot.slane %v3820, 4
      %v3822 = vrot.slane %v3089, 5
      %v3823 = vsel %vm1074, %v3821, %v3822
      %v3824 = vrot.slane %v3822, 4
      %v3825 = vrot.slane %v3090, 5
      %v3826 = vsel %vm1074, %v3824, %v3825
      %v3827 = vrot.slane %v3719, 5
      %v3828 = vrot.slane %v3827, 4
      %v3829 = vrot.slane %v3092, 5
      %v3830 = vsel %vm1074, %v3828, %v3829
      %v3831 = vrot.slane %v3829, 4
      %v3832 = vrot.slane %v3093, 5
      %v3833 = vsel %vm1074, %v3831, %v3832
      %v3834 = vrot.slane %v3720, 5
      %v3835 = vrot.slane %v3834, 4
      %v3836 = vrot.slane %v3095, 5
      %v3837 = vsel %vm1074, %v3835, %v3836
      %v3838 = vrot.slane %v3836, 4
      %v3839 = vrot.slane %v3096, 5
      %v3840 = vsel %vm1074, %v3838, %v3839
      %v3841 = vrot.slane %v3721, 5
      %v3842 = vrot.slane %v3841, 4
      %v3843 = vrot.slane %v3098, 5
      %v3844 = vsel %vm1074, %v3842, %v3843
      %v3845 = vrot.slane %v3843, 4
      %v3846 = vrot.slane %v3099, 5
      %v3847 = vsel %vm1074, %v3845, %v3846
      %v3848 = vrot.slane %v3722, 5
      %v3849 = vrot.slane %v3848, 4
      %v3850 = vrot.slane %v3101, 5
      %v3851 = vsel %vm1074, %v3849, %v3850
      %v3852 = vrot.slane %v3850, 4
      %v3853 = vrot.slane %v3102, 5
      %v3854 = vsel %vm1074, %v3852, %v3853
      %v3855 = vrot.slane %v3723, 5
      %v3856 = vrot.slane %v3855, 4
      %v3857 = vrot.slane %v3104, 5
      %v3858 = vsel %vm1074, %v3856, %v3857
      %v3859 = vrot.slane %v3857, 4
      %v3860 = vrot.slane %v3105, 5
      %v3861 = vsel %vm1074, %v3859, %v3860
      %v3862 = vrot.slane %v3724, 5
      %v3863 = vrot.slane %v3862, 4
      %v3864 = vrot.slane %v3107, 5
      %v3865 = vsel %vm1074, %v3863, %v3864
      %v3866 = vrot.slane %v3864, 4
      %v3867 = vrot.slane %v3108, 5
      %v3868 = vsel %vm1074, %v3866, %v3867
      %v3869 = vrot.slane %v3725, 5
      %v3870 = vrot.slane %v3869, 4
      %v3871 = vrot.slane %v3110, 5
      %v3872 = vsel %vm1074, %v3870, %v3871
      %v3873 = vrot.slane %v3871, 4
      %v3874 = vrot.slane %v3111, 5
      %v3875 = vsel %vm1074, %v3873, %v3874
      %s3876 = scalar_lea.vmem %s1, 512
      %v3877 = vld [vmem:[%s3876] sm:$0xf]
      %v3878 = vld [vmem:[%s3876 + $0x4] sm:$0xf]
      %v3879 = vld [vmem:[%s3876 + $0x8] sm:$0xf]
      %v3880 = vld [vmem:[%s3876 + $0xc] sm:$0xf]
      %v3881 = vld [vmem:[%s3876 + $0x10] sm:$0xf]
      %v3882 = vld [vmem:[%s3876 + $0x14] sm:$0xf]
      %v3883 = vld [vmem:[%s3876 + $0x18] sm:$0xf]
      %v3884 = vld [vmem:[%s3876 + $0x1c] sm:$0xf]
      %v3885 = vld [vmem:[%s3876 + $0x20] sm:$0xf]
      %v3886 = vld [vmem:[%s3876 + $0x24] sm:$0xf]
      %v3887 = vld [vmem:[%s3876 + $0x28] sm:$0xf]
      %v3888 = vld [vmem:[%s3876 + $0x2c] sm:$0xf]
      %v3889 = vld [vmem:[%s3876 + $0x30] sm:$0xf]
      %v3890 = vld [vmem:[%s3876 + $0x34] sm:$0xf]
      %v3891 = vld [vmem:[%s3876 + $0x38] sm:$0xf]
      %v3892 = vld [vmem:[%s3876 + $0x3c] sm:$0xf]
      %v3893 = vunpack.c.l.b16 %v3774
      %v3894 = vunpack.c.l.b16 %v3777
      %v3895 = vunpack.c.l.b16 %v3781
      %v3896 = vunpack.c.l.b16 %v3784
      %v3897 = vunpack.c.l.b16 %v3788
      %v3898 = vunpack.c.l.b16 %v3791
      %v3899 = vunpack.c.l.b16 %v3795
      %v3900 = vunpack.c.l.b16 %v3798
      %v3901 = vunpack.c.l.b16 %v3802
      %v3902 = vunpack.c.l.b16 %v3805
      %v3903 = vunpack.c.l.b16 %v3809
      %v3904 = vunpack.c.l.b16 %v3812
      %v3905 = vunpack.c.l.b16 %v3816
      %v3906 = vunpack.c.l.b16 %v3819
      %v3907 = vunpack.c.l.b16 %v3823
      %v3908 = vunpack.c.l.b16 %v3826
      %v3909 = vunpack.c.l.b16 %v3830
      %v3910 = vunpack.c.l.b16 %v3833
      %v3911 = vunpack.c.l.b16 %v3837
      %v3912 = vunpack.c.l.b16 %v3840
      %v3913 = vunpack.c.l.b16 %v3844
      %v3914 = vunpack.c.l.b16 %v3847
      %v3915 = vunpack.c.l.b16 %v3851
      %v3916 = vunpack.c.l.b16 %v3854
      %v3917 = vunpack.c.l.b16 %v3858
      %v3918 = vunpack.c.l.b16 %v3861
      %v3919 = vunpack.c.l.b16 %v3865
      %v3920 = vunpack.c.l.b16 %v3868
      %v3921 = vunpack.c.l.b16 %v3872
      %v3922 = vunpack.c.l.b16 %v3875
      %v3923 = vpack.c.b16 %v3894, %v3893
      %v3924 = vpack.c.b16 %v3896, %v3895
      %v3925 = vpack.c.b16 %v3898, %v3897
      %v3926 = vpack.c.b16 %v3900, %v3899
      %v3927 = vpack.c.b16 %v3902, %v3901
      %v3928 = vpack.c.b16 %v3904, %v3903
      %v3929 = vpack.c.b16 %v3906, %v3905
      %v3930 = vpack.c.b16 %v3908, %v3907
      %v3931 = vpack.c.b16 %v3910, %v3909
      %v3932 = vpack.c.b16 %v3912, %v3911
      %v3933 = vpack.c.b16 %v3914, %v3913
      %v3934 = vpack.c.b16 %v3916, %v3915
      %v3935 = vpack.c.b16 %v3918, %v3917
      %v3936 = vpack.c.b16 %v3920, %v3919
      %v3937 = vpack.c.b16 %v3922, %v3921
      %v3969 = vunpack.c.l.b16 %v3877
      %v3970 = vunpack.c.l.b16 %v3878
      %v3971 = vunpack.c.l.b16 %v3879
      %v3972 = vunpack.c.l.b16 %v3880
      %v3973 = vunpack.c.l.b16 %v3881
      %v3974 = vunpack.c.l.b16 %v3882
      %v3975 = vunpack.c.l.b16 %v3883
      %v3976 = vunpack.c.l.b16 %v3884
      %v3977 = vunpack.c.l.b16 %v3885
      %v3978 = vunpack.c.l.b16 %v3886
      %v3979 = vunpack.c.l.b16 %v3887
      %v3980 = vunpack.c.l.b16 %v3888
      %v3981 = vunpack.c.l.b16 %v3889
      %v3982 = vunpack.c.l.b16 %v3890
      %v3983 = vunpack.c.l.b16 %v3891
      %v3984 = vunpack.c.l.b16 %v3892
      %v3985 = vpack.c.b16 %v3970, %v3969
      %v3986 = vpack.c.b16 %v3972, %v3971
      %v3987 = vpack.c.b16 %v3974, %v3973
      %v3988 = vpack.c.b16 %v3976, %v3975
      %v3989 = vpack.c.b16 %v3978, %v3977
      %v3990 = vpack.c.b16 %v3980, %v3979
      %v3991 = vpack.c.b16 %v3982, %v3981
      %v3992 = vpack.c.b16 %v3984, %v3983
      %4001 = vmatpush.bf16.msra.mxu0 %v3992
      %4002 = vmatpush.bf16.msra.mxu0 %v3991
      %4003 = vmatpush.bf16.msra.mxu0 %v3990
      %4004 = vmatpush.bf16.msra.mxu0 %v3989
      %4005 = vmatpush.bf16.msra.mxu0 %v3988
      %4006 = vmatpush.bf16.msra.mxu0 %v3987
      %4007 = vmatpush.bf16.msra.mxu0 %v3986
      %4008 = vmatpush.bf16.msra.mxu0 %v3985
      %4009 = vmatmul.bf16.gmra.mxu0 %v3923
      %v4010 = vpop.f32.mrf.mxu0
      %v4011 = vadd.f32 0.0, %v4010
      %v4012 = vpop.f32.mrf.mxu0
      %v4013 = vadd.f32 0.0, %v4012
      %4014 = vmatmul.bf16.gmra.mxu0 %v3924
      %v4015 = vpop.f32.mrf.mxu0
      %v4016 = vadd.f32 0.0, %v4015
      %v4017 = vpop.f32.mrf.mxu0
      %v4018 = vadd.f32 0.0, %v4017
      %4019 = vmatmul.bf16.gmra.mxu0 %v3925
      %v4020 = vpop.f32.mrf.mxu0
      %v4021 = vadd.f32 0.0, %v4020
      %v4022 = vpop.f32.mrf.mxu0
      %v4023 = vadd.f32 0.0, %v4022
      %4024 = vmatmul.bf16.gmra.mxu0 %v3926
      %v4025 = vpop.f32.mrf.mxu0
      %v4026 = vadd.f32 0.0, %v4025
      %v4027 = vpop.f32.mrf.mxu0
      %v4028 = vadd.f32 0.0, %v4027
      %4029 = vmatmul.bf16.gmra.mxu0 %v3927
      %v4030 = vpop.f32.mrf.mxu0
      %v4031 = vadd.f32 0.0, %v4030
      %v4032 = vpop.f32.mrf.mxu0
      %v4033 = vadd.f32 0.0, %v4032
      %4034 = vmatmul.bf16.gmra.mxu0 %v3928
      %v4035 = vpop.f32.mrf.mxu0
      %v4036 = vadd.f32 0.0, %v4035
      %v4037 = vpop.f32.mrf.mxu0
      %v4038 = vadd.f32 0.0, %v4037
      %4039 = vmatmul.bf16.gmra.mxu0 %v3929
      %v4040 = vpop.f32.mrf.mxu0
      %v4041 = vadd.f32 0.0, %v4040
      %v4042 = vpop.f32.mrf.mxu0
      %v4043 = vadd.f32 0.0, %v4042
      %4044 = vmatmul.bf16.gmra.mxu0 %v3930
      %v4045 = vpop.f32.mrf.mxu0
      %v4046 = vadd.f32 0.0, %v4045
      %v4047 = vpop.f32.mrf.mxu0
      %v4048 = vadd.f32 0.0, %v4047
      %4049 = vmatmul.bf16.gmra.mxu0 %v3931
      %v4050 = vpop.f32.mrf.mxu0
      %v4051 = vadd.f32 0.0, %v4050
      %v4052 = vpop.f32.mrf.mxu0
      %v4053 = vadd.f32 0.0, %v4052
      %4054 = vmatmul.bf16.gmra.mxu0 %v3932
      %v4055 = vpop.f32.mrf.mxu0
      %v4056 = vadd.f32 0.0, %v4055
      %v4057 = vpop.f32.mrf.mxu0
      %v4058 = vadd.f32 0.0, %v4057
      %4059 = vmatmul.bf16.gmra.mxu0 %v3933
      %v4060 = vpop.f32.mrf.mxu0
      %v4061 = vadd.f32 0.0, %v4060
      %v4062 = vpop.f32.mrf.mxu0
      %v4063 = vadd.f32 0.0, %v4062
      %4064 = vmatmul.bf16.gmra.mxu0 %v3934
      %v4065 = vpop.f32.mrf.mxu0
      %v4066 = vadd.f32 0.0, %v4065
      %v4067 = vpop.f32.mrf.mxu0
      %v4068 = vadd.f32 0.0, %v4067
      %4069 = vmatmul.bf16.gmra.mxu0 %v3935
      %v4070 = vpop.f32.mrf.mxu0
      %v4071 = vadd.f32 0.0, %v4070
      %v4072 = vpop.f32.mrf.mxu0
      %v4073 = vadd.f32 0.0, %v4072
      %4074 = vmatmul.bf16.gmra.mxu0 %v3936
      %v4075 = vpop.f32.mrf.mxu0
      %v4076 = vadd.f32 0.0, %v4075
      %v4077 = vpop.f32.mrf.mxu0
      %v4078 = vadd.f32 0.0, %v4077
      %4079 = vmatmul.bf16.gmra.mxu0 %v3937
      %v4080 = vpop.f32.mrf.mxu0
      %v4081 = vadd.f32 0.0, %v4080
      %v4082 = vpop.f32.mrf.mxu0
      %v4083 = vadd.f32 0.0, %v4082
      %4084 = vdwg.mxu0
      %v4085 = vadd.f32 %v3681, %v4011
      %v4086 = vadd.f32 %v3682, %v4013
      %v4087 = vadd.f32 %v3683, %v4016
      %v4088 = vadd.f32 %v3684, %v4018
      %v4089 = vadd.f32 %v3685, %v4021
      %v4090 = vadd.f32 %v3686, %v4023
      %v4091 = vadd.f32 %v3687, %v4026
      %v4092 = vadd.f32 %v3688, %v4028
      %v4093 = vadd.f32 %v3689, %v4031
      %v4094 = vadd.f32 %v3690, %v4033
      %v4095 = vadd.f32 %v3691, %v4036
      %v4096 = vadd.f32 %v3692, %v4038
      %v4097 = vadd.f32 %v3693, %v4041
      %v4098 = vadd.f32 %v3694, %v4043
      %v4099 = vadd.f32 %v3695, %v4046
      %v4100 = vadd.f32 %v3696, %v4048
      %v4101 = vadd.f32 %v3697, %v4051
      %v4102 = vadd.f32 %v3698, %v4053
      %v4103 = vadd.f32 %v3699, %v4056
      %v4104 = vadd.f32 %v3700, %v4058
      %v4105 = vadd.f32 %v3701, %v4061
      %v4106 = vadd.f32 %v3702, %v4063
      %v4107 = vadd.f32 %v3703, %v4066
      %v4108 = vadd.f32 %v3704, %v4068
      %v4109 = vadd.f32 %v3705, %v4071
      %v4110 = vadd.f32 %v3706, %v4073
      %v4111 = vadd.f32 %v3707, %v4076
      %v4112 = vadd.f32 %v3708, %v4078
      %v4113 = vadd.f32 %v3709, %v4081
      %v4114 = vadd.f32 %v3710, %v4083
      %v4116 = vperm.slane %v171, 0
      %v4118 = vadd.f32 %v4085, %v4116
      %v4119 = vadd.f32 %v4086, %v4116
      %v4120 = vadd.f32 %v4087, %v4116
      %v4121 = vadd.f32 %v4088, %v4116
      %v4122 = vadd.f32 %v4089, %v4116
      %v4123 = vadd.f32 %v4090, %v4116
      %v4124 = vadd.f32 %v4091, %v4116
      %v4125 = vadd.f32 %v4092, %v4116
      %v4126 = vadd.f32 %v4093, %v4116
      %v4127 = vadd.f32 %v4094, %v4116
      %v4128 = vadd.f32 %v4095, %v4116
      %v4129 = vadd.f32 %v4096, %v4116
      %v4130 = vadd.f32 %v4097, %v4116
      %v4131 = vadd.f32 %v4098, %v4116
      %v4132 = vadd.f32 %v4099, %v4116
      %v4133 = vadd.f32 %v4100, %v4116
      %v4134 = vadd.f32 %v4101, %v4116
      %v4135 = vadd.f32 %v4102, %v4116
      %v4136 = vadd.f32 %v4103, %v4116
      %v4137 = vadd.f32 %v4104, %v4116
      %v4138 = vadd.f32 %v4105, %v4116
      %v4139 = vadd.f32 %v4106, %v4116
      %v4140 = vadd.f32 %v4107, %v4116
      %v4141 = vadd.f32 %v4108, %v4116
      %v4142 = vadd.f32 %v4109, %v4116
      %v4143 = vadd.f32 %v4110, %v4116
      %v4144 = vadd.f32 %v4111, %v4116
      %v4145 = vadd.f32 %v4112, %v4116
      %v4146 = vadd.f32 %v4113, %v4116
      %v4147 = vadd.f32 %v4114, %v4116
      %v4148 = vmax.f32 %v4118, 0.0
      %v4149 = vmax.f32 %v4119, 0.0
      %v4150 = vmax.f32 %v4120, 0.0
      %v4151 = vmax.f32 %v4121, 0.0
      %v4152 = vmax.f32 %v4122, 0.0
      %v4153 = vmax.f32 %v4123, 0.0
      %v4154 = vmax.f32 %v4124, 0.0
      %v4155 = vmax.f32 %v4125, 0.0
      %v4156 = vmax.f32 %v4126, 0.0
      %v4157 = vmax.f32 %v4127, 0.0
      %v4158 = vmax.f32 %v4128, 0.0
      %v4159 = vmax.f32 %v4129, 0.0
      %v4160 = vmax.f32 %v4130, 0.0
      %v4161 = vmax.f32 %v4131, 0.0
      %v4162 = vmax.f32 %v4132, 0.0
      %v4163 = vmax.f32 %v4133, 0.0
      %v4164 = vmax.f32 %v4134, 0.0
      %v4165 = vmax.f32 %v4135, 0.0
      %v4166 = vmax.f32 %v4136, 0.0
      %v4167 = vmax.f32 %v4137, 0.0
      %v4168 = vmax.f32 %v4138, 0.0
      %v4169 = vmax.f32 %v4139, 0.0
      %v4170 = vmax.f32 %v4140, 0.0
      %v4171 = vmax.f32 %v4141, 0.0
      %v4172 = vmax.f32 %v4142, 0.0
      %v4173 = vmax.f32 %v4143, 0.0
      %v4174 = vmax.f32 %v4144, 0.0
      %v4175 = vmax.f32 %v4145, 0.0
      %v4176 = vmax.f32 %v4146, 0.0
      %v4177 = vmax.f32 %v4147, 0.0
      %v4178 = vpack.c.bf16 %v4148, %v4148
      %v4179 = vpack.c.bf16 %v4149, %v4149
      %v4180 = vpack.c.bf16 %v4150, %v4150
      %v4181 = vpack.c.bf16 %v4151, %v4151
      %v4182 = vpack.c.bf16 %v4152, %v4152
      %v4183 = vpack.c.bf16 %v4153, %v4153
      %v4184 = vpack.c.bf16 %v4154, %v4154
      %v4185 = vpack.c.bf16 %v4155, %v4155
      %v4186 = vpack.c.bf16 %v4156, %v4156
      %v4187 = vpack.c.bf16 %v4157, %v4157
      %v4188 = vpack.c.bf16 %v4158, %v4158
      %v4189 = vpack.c.bf16 %v4159, %v4159
      %v4190 = vpack.c.bf16 %v4160, %v4160
      %v4191 = vpack.c.bf16 %v4161, %v4161
      %v4192 = vpack.c.bf16 %v4162, %v4162
      %v4193 = vpack.c.bf16 %v4163, %v4163
      %v4194 = vpack.c.bf16 %v4164, %v4164
      %v4195 = vpack.c.bf16 %v4165, %v4165
      %v4196 = vpack.c.bf16 %v4166, %v4166
      %v4197 = vpack.c.bf16 %v4167, %v4167
      %v4198 = vpack.c.bf16 %v4168, %v4168
      %v4199 = vpack.c.bf16 %v4169, %v4169
      %v4200 = vpack.c.bf16 %v4170, %v4170
      %v4201 = vpack.c.bf16 %v4171, %v4171
      %v4202 = vpack.c.bf16 %v4172, %v4172
      %v4203 = vpack.c.bf16 %v4173, %v4173
      %v4204 = vpack.c.bf16 %v4174, %v4174
      %v4205 = vpack.c.bf16 %v4175, %v4175
      %v4206 = vpack.c.bf16 %v4176, %v4176
      %v4207 = vpack.c.bf16 %v4177, %v4177
      %4208 = vst [vmem:[%s170] sm:$0xf] %v4178
      %4209 = vst [vmem:[%s170 + $0x4] sm:$0xf] %v4179
      %4210 = vst [vmem:[%s170 + $0x8] sm:$0xf] %v4180
      %4211 = vst [vmem:[%s170 + $0xc] sm:$0xf] %v4181
      %4212 = vst [vmem:[%s170 + $0x10] sm:$0xf] %v4182
      %4213 = vst [vmem:[%s170 + $0x14] sm:$0xf] %v4183
      %4214 = vst [vmem:[%s170 + $0x18] sm:$0xf] %v4184
      %4215 = vst [vmem:[%s170 + $0x1c] sm:$0xf] %v4185
      %4216 = vst [vmem:[%s170 + $0x20] sm:$0xf] %v4186
      %4217 = vst [vmem:[%s170 + $0x24] sm:$0xf] %v4187
      %4218 = vst [vmem:[%s170 + $0x28] sm:$0xf] %v4188
      %4219 = vst [vmem:[%s170 + $0x2c] sm:$0xf] %v4189
      %4220 = vst [vmem:[%s170 + $0x30] sm:$0xf] %v4190
      %4221 = vst [vmem:[%s170 + $0x34] sm:$0xf] %v4191
      %4222 = vst [vmem:[%s170 + $0x38] sm:$0xf] %v4192
      %4223 = vst [vmem:[%s170 + $0x3c] sm:$0xf] %v4193
      %4224 = vst [vmem:[%s170 + $0x40] sm:$0xf] %v4194
      %4225 = vst [vmem:[%s170 + $0x44] sm:$0xf] %v4195
      %4226 = vst [vmem:[%s170 + $0x48] sm:$0xf] %v4196
      %4227 = vst [vmem:[%s170 + $0x4c] sm:$0xf] %v4197
      %4228 = vst [vmem:[%s170 + $0x50] sm:$0xf] %v4198
      %4229 = vst [vmem:[%s170 + $0x54] sm:$0xf] %v4199
      %4230 = vst [vmem:[%s170 + $0x58] sm:$0xf] %v4200
      %4231 = vst [vmem:[%s170 + $0x5c] sm:$0xf] %v4201
      %4232 = vst [vmem:[%s170 + $0x60] sm:$0xf] %v4202
      %4233 = vst [vmem:[%s170 + $0x64] sm:$0xf] %v4203
      %4234 = vst [vmem:[%s170 + $0x68] sm:$0xf] %v4204
      %4235 = vst [vmem:[%s170 + $0x6c] sm:$0xf] %v4205
      %4236 = vst [vmem:[%s170 + $0x70] sm:$0xf] %v4206
      %4237 = vst [vmem:[%s170 + $0x74] sm:$0xf] %v4207
      %p4238 = scmp.lt.s32.totalorder %s14, 1
      %s4239 = scalar_select %p4238, %s14, 1
      %s4240 = smul.addr %s4239, 30
      %s4241 = smul.addr %s4240, 4
      %s4242 = scalar_lea.vmem %s3, %s4241
      // Predicated region
      $region33: #{goctave_forward.4} parent=31 // pred_check
        %p4243 = pneg %p100
      $region34: #{goctave_forward.4} parent=31 // pred_check_branch
        %4245 = sbr.rel (%p4243) target = $region36
      $region35: #{goctave_forward.4} parent=31 // pred_region
        _
      $region36: #{goctave_forward.4} parent=31 // pred_fallthru
        _
    $region32: #{goctave_forward.4} parent=5 // pred_fallthru
      _
    %p4246 = scmp.le.s32.totalorder 2, %s9
    // Predicated region
    $region37: #{goctave_forward.4} parent=5 // pred_check
      %p4247 = pneg %p4246
    $region38: #{goctave_forward.4} parent=5 // pred_check_branch
      %4249 = sbr.rel (%p4247) target = $region40
    $region39: #{goctave_forward.4} parent=5 // pred_region
      %s4250 = ssub.s32 %s9, 2
      // Predicated region
      $region41: #{goctave_forward.4} parent=39 // pred_check
        %p4251 = pneg %p106
      $region42: #{goctave_forward.4} parent=39 // pred_check_branch
        %4253 = sbr.rel (%p4251) target = $region44
      $region43: #{goctave_forward.4} parent=39 // pred_region
        %p4254 = scmp.lt.s32.totalorder %s15, 1
        %s4255 = scalar_select %p4254, %s15, 1
        %s4256 = smul.addr %s4255, 30
        %s4257 = smul.addr %s4256, 4
        %s4258 = scalar_lea.vmem %s3, %s4257
      $region44: #{goctave_forward.4} parent=39 // pred_fallthru
        _
    $region40: #{goctave_forward.4} parent=5 // pred_fallthru
      _
  $region6: #{goctave_forward.4} parent=0 // loop_footer
    %s13 = sadd.s32 1, %s9
  $region7: #{goctave_forward.4} parent=0 // loop_footer_branch
    %8 = sbr.rel target = $region3
  $region8: #{goctave_forward.4} parent=0 // loop_exit
    _

</llo_original>
